<compile_context>
chip_gen: v6e
topology: v6e:2x2x1
jax: 0.10.0
libtpu: 0.0.40
codegen_flags: <defaults>
</compile_context>

<pallas_src>
import functools

import jax
import jax.numpy as jnp
from jax.experimental import pallas as pl
from jax.experimental.pallas import tpu as pltpu

EPS = 1e-5
LANE = 128


def _round_up(x, m):
    return (x + m - 1) // m * m


def _vmem_limits():
    """Generation-aware (vmem_limit_bytes, per-step tile budget) in bytes."""
    try:
        cap = int(pltpu.get_tpu_info().vmem_capacity_bytes)
    except Exception:
        cap = 64 * 1024 * 1024                      # conservative (v7x-sized)
    limit = max(min(cap - 16 * 1024 * 1024, 96 * 1024 * 1024),
                32 * 1024 * 1024)
    budget = (limit * 3) // 5                       # headroom for compiler scratch
    return limit, budget


def _pick_row_tile(H, W, CI, CO, budget, min_steps=1):
    """Largest divisor of H whose per-step working set (incl. the
    double-buffered weight block) fits the budget."""
    def fits(th):
        weight = 2 * 9 * CI * CO * 2      # double-buffered bf16 weights
        body_in = 2 * th * W * CI * 2     # double-buffered bf16 body tile
        halos = 2 * 2 * W * CI * 2        # two 1-row halo blocks, x2 buffers
        y_out = 2 * th * W * CO * 2       # double-buffered bf16 output tile
        acc = th * W * CO * 4             # f32 accumulator value
        taps = 4 * (th + 2) * W * CI * 4  # rows value + shifted column variants
        return weight + body_in + halos + y_out + acc + taps <= budget

    divisors = [t for t in range(1, H + 1) if H % t == 0]
    good = [t for t in divisors if fits(t)] or [1]
    pref = [t for t in good if H // t >= min_steps]   # keep >=2 steps for v7x
    return max(pref) if pref else max(good)


# ----------------------------------------------------------------------------
# Kernel 1: fused [optional BN+ReLU of the input] 3x3 conv + per-tile BN stats
# ----------------------------------------------------------------------------
def _make_conv_kernel(TH, W, CI, CO, prenorm):
    def kernel(*refs):
        if prenorm:
            (x_lo, x_top, x_bot, w_ref, sc_ref, bs_ref,
             y_ref, s1_ref, s2_ref) = refs
        else:
            (x_lo, x_top, x_bot, w_ref, y_ref, s1_ref, s2_ref) = refs
            sc_ref = bs_ref = None

        i = pl.program_id(1)
        n_tiles = pl.num_programs(1)

        def pre(v):
            # Previous stage's BN+ReLU, fused into this conv's input read.
            f = v.astype(jnp.float32)
            if not prenorm:
                return f
            sc = sc_ref[...].reshape((1,) * (f.ndim - 1) + (CI,))
            bs = bs_ref[...].reshape((1,) * (f.ndim - 1) + (CI,))
            return jnp.maximum(f * sc + bs, 0.0)

        body = pre(x_lo[...].reshape(TH, W, CI))
        top = pre(x_top[...].reshape(1, W, CI))
        bot = pre(x_bot[...].reshape(1, W, CI))
        # Halo rows are real only in the interior; at the image border they are
        # the zero padding of the (already normalized + ReLU'd) activation.
        top = jnp.where(i > 0, top, jnp.zeros_like(top))
        bot = jnp.where(i < n_tiles - 1, bot, jnp.zeros_like(bot))

        # Concatenate along the leading (tile-stack) axis: cheap.  The reshape
        # below is layout-preserving because W % 8 == 0.
        rows = jnp.concatenate([top, body, bot], axis=0)       # (TH+2, W, CI)
        total = (TH + 2) * W
        flat = rows.reshape(total, CI)

        # Column shifts for the dx = -1 / +1 taps: one sublane roll (XLU) plus
        # a zero mask on the wrapped / image-border column.  No scratch stores.
        col = jax.lax.broadcasted_iota(jnp.int32, (total, 1), 0) % W
        left = jnp.where(col > 0, pltpu.roll(flat, shift=1, axis=0), 0.0)
        right = jnp.where(col < W - 1,
                          pltpu.roll(flat, shift=total - 1, axis=0), 0.0)

        shifted = [
            left.astype(jnp.bfloat16).reshape(TH + 2, W, CI),
            flat.astype(jnp.bfloat16).reshape(TH + 2, W, CI),
            right.astype(jnp.bfloat16).reshape(TH + 2, W, CI),
        ]

        # 9 accumulated per-tap MXU dots: bf16 operands, f32 accumulation.
        # (If MXU-bound on v6e/v7x, taps could be grouped to K = 3*CI >= 256.)
        acc = jnp.zeros((TH * W, CO), jnp.float32)
        for dy in range(3):
            for dx in range(3):
                tap = shifted[dx][dy:dy + TH].reshape(TH * W, CI)
                acc = acc + jnp.dot(tap, w_ref[dy * 3 + dx],
                                    preferred_element_type=jnp.float32)

        # Phase-1 BatchNorm statistics for this tile (reduced in the wrapper):
        # two direct full-block stores, no concat shuffle.
        s1_ref[...] = jnp.sum(acc, axis=0, keepdims=True).reshape(1, 1, 1, CO)
        s2_ref[...] = jnp.sum(acc * acc, axis=0,
                              keepdims=True).reshape(1, 1, 1, CO)

        y_ref[...] = acc.reshape(1, TH, W, CO).astype(y_ref.dtype)

    return kernel


def _conv_bn_stats(x, w, prenorm_scale=None, prenorm_bias=None, row_tile=None,
                   vmem_limit=None, budget=None):
    """3x3 'same' conv over a channel-padded NHWC bf16 tensor, optionally
    preceded by a fused scale/bias/ReLU of the input.  Also returns per-tile
    (sum, sum_sq) of the conv output for the two-phase BatchNorm."""
    N, H, W, CI = x.shape
    CO = w.shape[-1]
    if vmem_limit is None or budget is None:
        vmem_limit, budget = _vmem_limits()
    if row_tile is None:
        row_tile = _pick_row_tile(H, W, CI, CO, budget,
                                  min_steps=2 if N == 1 else 1)
    TH = row_tile
    assert H % TH == 0, (H, TH)
    assert W % 8 == 0, W          # TODO(synk): pad W to a sublane multiple for odd widths
    nT = H // TH
    prenorm = prenorm_scale is not None

    in_specs = [
        pl.BlockSpec((1, TH, W, CI), lambda n, i: (n, i, 0, 0)),
        pl.BlockSpec((1, 1, W, CI),
                     lambda n, i: (n, jnp.maximum(i * TH - 1, 0), 0, 0)),
        pl.BlockSpec((1, 1, W, CI),
                     lambda n, i: (n, jnp.minimum((i + 1) * TH, H - 1), 0, 0)),
        pl.BlockSpec((9, CI, CO), lambda n, i: (0, 0, 0)),
    ]
    args = [x, x, x, w]
    if prenorm:
        in_specs += [pl.BlockSpec((1, CI), lambda n, i: (0, 0)),
                     pl.BlockSpec((1, CI), lambda n, i: (0, 0))]
        args += [prenorm_scale.reshape(1, CI).astype(jnp.float32),
                 prenorm_bias.reshape(1, CI).astype(jnp.float32)]

    y, s1, s2 = pl.pallas_call(
        _make_conv_kernel(TH, W, CI, CO, prenorm),
        grid=(N, nT),
        in_specs=in_specs,
        out_specs=[
            pl.BlockSpec((1, TH, W, CO), lambda n, i: (n, i, 0, 0)),
            pl.BlockSpec((1, 1, 1, CO), lambda n, i: (n, i, 0, 0)),
            pl.BlockSpec((1, 1, 1, CO), lambda n, i: (n, i, 0, 0)),
        ],
        out_shape=[
            jax.ShapeDtypeStruct((N, H, W, CO), jnp.bfloat16),
            jax.ShapeDtypeStruct((N, nT, 1, CO), jnp.float32),
            jax.ShapeDtypeStruct((N, nT, 1, CO), jnp.float32),
        ],
        compiler_params=pltpu.CompilerParams(
            dimension_semantics=("parallel", "parallel"),
            vmem_limit_bytes=vmem_limit),
    )(*args)
    return y, s1, s2


# ----------------------------------------------------------------------------
# Kernel 2: BN (scale/bias already folded) + ReLU, lane-dense tiles
# ----------------------------------------------------------------------------
def _make_bn_relu_kernel(CO):
    def kernel(y_ref, sc_ref, bs_ref, o_ref):
        sc = sc_ref[...].reshape(1, 1, 1, CO)
        bs = bs_ref[...].reshape(1, 1, 1, CO)
        y = y_ref[...].astype(jnp.float32)
        o_ref[...] = jnp.maximum(y * sc + bs, 0.0)
    return kernel


def _bn_relu(y, scale, bias, row_tile=None, vmem_limit=None, budget=None):
    N, H, W, CO = y.shape
    if vmem_limit is None or budget is None:
        vmem_limit, budget = _vmem_limits()
    if row_tile is None:
        row_tile = _pick_row_tile(H, W, CO, CO, budget,
                                  min_steps=2 if N == 1 else 1)
    TH = row_tile
    assert H % TH == 0
    nT = H // TH
    return pl.pallas_call(
        _make_bn_relu_kernel(CO),
        grid=(N, nT),
        in_specs=[
            pl.BlockSpec((1, TH, W, CO), lambda n, i: (n, i, 0, 0)),
            pl.BlockSpec((1, CO), lambda n, i: (0, 0)),
            pl.BlockSpec((1, CO), lambda n, i: (0, 0)),
        ],
        out_specs=pl.BlockSpec((1, TH, W, CO), lambda n, i: (n, i, 0, 0)),
        out_shape=jax.ShapeDtypeStruct((N, H, W, CO), jnp.float32),
        compiler_params=pltpu.CompilerParams(
            dimension_semantics=("parallel", "parallel"),
            vmem_limit_bytes=vmem_limit),
    )(y, scale.reshape(1, CO).astype(jnp.float32),
      bias.reshape(1, CO).astype(jnp.float32))


def _bn_fold(s1, s2, gamma_pad, beta_pad, count):
    """Phase-2 of the two-phase BN: fold batch stats into one scale/bias."""
    mean = s1.sum(axis=(0, 1, 2)) / count            # (C_pad,) -- tiny
    var = jnp.maximum(s2.sum(axis=(0, 1, 2)) / count - mean * mean, 0.0)
    scale = gamma_pad * jax.lax.rsqrt(var + EPS)
    bias = beta_pad - mean * scale
    return scale, bias


# ----------------------------------------------------------------------------
# DoubleConv forward (NCHW in / NCHW out, like PyTorch)
# ----------------------------------------------------------------------------
def double_conv(x_nchw, params, row_tile=None):
    N, Cin, H, W = x_nchw.shape
    Cout = params["w1"].shape[-1]
    ci_pad = _round_up(Cin, LANE)
    co_pad = _round_up(Cout, LANE)
    vmem_limit, budget = _vmem_limits()

    # One-time layout prep on the tiny network input: NCHW -> NHWC, lane-pad C
    # to a multiple of 128, cast to bf16.  All intermediates stay 128-padded
    # bf16 end to end.
    x = jnp.transpose(x_nchw, (0, 2, 3, 1)).astype(jnp.float32)
    x = jnp.pad(x, ((0, 0), (0, 0), (0, 0), (0, ci_pad - Cin)))
    x = x.astype(jnp.bfloat16)

    def pad_w(w, ci, cip, cop):
        co = w.shape[-1]
        wp = jnp.pad(w.astype(jnp.float32),
                     ((0, 0), (0, 0), (0, cip - ci), (0, cop - co)))
        return wp.reshape(9, cip, cop).astype(jnp.bfloat16)   # (tap, cin, cout)

    w1 = pad_w(params["w1"], Cin, ci_pad, co_pad)
    w2 = pad_w(params["w2"], Cout, co_pad, co_pad)
    g1 = jnp.pad(params["g1"].astype(jnp.float32), (0, co_pad - Cout),
                 constant_values=1.0)
    be1 = jnp.pad(params["beta1"].astype(jnp.float32), (0, co_pad - Cout))
    g2 = jnp.pad(params["g2"].astype(jnp.float32), (0, co_pad - Cout),
                 constant_values=1.0)
    be2 = jnp.pad(params["beta2"].astype(jnp.float32), (0, co_pad - Cout))
    # NOTE: conv biases (params["b1"/"b2"]) are intentionally unused: a
    # per-channel constant added before training-mode BatchNorm cancels exactly.
    # TODO(synk): for Cin << 128, a joint (tap, cin) K-packing
    # (K = round_up(9*Cin, 128)) would cut the padded K dimension ~9x.

    count = N * H * W

    # stage 1: conv1 + BN1 statistics
    y1, a1, b1 = _conv_bn_stats(x, w1, row_tile=row_tile,
                                vmem_limit=vmem_limit, budget=budget)
    sc1, bs1 = _bn_fold(a1, b1, g1, be1, count)

    # stage 2: (BN1+ReLU fused into the input read) conv2 + BN2 statistics
    y2, a2, b2 = _conv_bn_stats(y1, w2, prenorm_scale=sc1, prenorm_bias=bs1,
                                row_tile=row_tile,
                                vmem_limit=vmem_limit, budget=budget)
    sc2, bs2 = _bn_fold(a2, b2, g2, be2, count)

    # stage 2 epilogue: BN2 + ReLU (f32 output)
    out = _bn_relu(y2, sc2, bs2, row_tile=row_tile,
                   vmem_limit=vmem_limit, budget=budget)

    out = out[..., :Cout]                    # drop lane padding (Cout % 128 != 0)
    return jnp.transpose(out, (0, 3, 1, 2))  # NHWC -> NCHW


# ----------------------------------------------------------------------------
# Params + pure-JAX reference
# ----------------------------------------------------------------------------
def init_params(key, in_channels, out_channels):
    ks = jax.random.split(key, 8)
    return {
        "w1": 0.1 * jax.random.normal(ks[0], (3, 3, in_channels, out_channels), jnp.float32),
        "b1": 0.1 * jax.random.normal(ks[1], (out_channels,), jnp.float32),
        "g1": 1.0 + 0.1 * jax.random.normal(ks[2], (out_channels,), jnp.float32),
        "beta1": 0.1 * jax.random.normal(ks[3], (out_channels,), jnp.float32),
        "w2": 0.1 * jax.random.normal(ks[4], (3, 3, out_channels, out_channels), jnp.float32),
        "b2": 0.1 * jax.random.normal(ks[5], (out_channels,), jnp.float32),
        "g2": 1.0 + 0.1 * jax.random.normal(ks[6], (out_channels,), jnp.float32),
        "beta2": 0.1 * jax.random.normal(ks[7], (out_channels,), jnp.float32),
    }


def _reference_stage(x_nhwc, w_hwio, b, g, beta):
    y = jax.lax.conv_general_dilated(
        x_nhwc, w_hwio, window_strides=(1, 1), padding="SAME",
        dimension_numbers=("NHWC", "HWIO", "NHWC")) + b
    mean = y.mean(axis=(0, 1, 2), keepdims=True)
    var = ((y - mean) ** 2).mean(axis=(0, 1, 2), keepdims=True)
    y = (y - mean) * jax.lax.rsqrt(var + EPS) * g + beta
    return jnp.maximum(y, 0.0)


def reference_double_conv(x_nchw, params):
    x = jnp.transpose(x_nchw, (0, 2, 3, 1)).astype(jnp.float32)
    y = _reference_stage(x, params["w1"], params["b1"], params["g1"], params["beta1"])
    y = _reference_stage(y, params["w2"], params["b2"], params["g2"], params["beta2"])
    return jnp.transpose(y, (0, 3, 1, 2))


if __name__ == "__main__":
    N, C_IN, C_OUT, H, W = 2, 4, 8, 16, 16

    key = jax.random.PRNGKey(0)
    k_x, k_p = jax.random.split(key)
    x = jax.random.normal(k_x, (N, C_IN, H, W), dtype=jnp.float32)   # NCHW
    params = init_params(k_p, C_IN, C_OUT)

    # row_tile=8 -> grid (2, 2): exercises multi-tile halo + cross-tile BN stats.
    fwd = jax.jit(functools.partial(double_conv, row_tile=8))
    out = jax.block_until_ready(fwd(x, params))
    assert out.shape == (N, C_OUT, H, W), out.shape

    ref = jax.block_until_ready(reference_double_conv(x, params))
    assert jnp.all(jnp.isfinite(out))
    err = float(jnp.max(jnp.abs(out - ref)))
    # bf16 MXU path: tolerance accounts for bf16 operand rounding through two
    # convs + two batch-norms (structural bugs give errors >> 0.1).
    assert jnp.allclose(out, ref, atol=7.5e-2, rtol=5e-2), err

    print("KERNEL_OK")
</pallas_src>

<mosaic_0001>
module attributes {stable_mosaic.version = 11 : i64} {
  func.func @kernel(%arg0: i32, %arg1: i32, %arg2: memref<1x8x16x128xbf16, #tpu.memory_space<vmem>>, %arg3: memref<1x1x16x128xbf16, #tpu.memory_space<vmem>>, %arg4: memref<1x1x16x128xbf16, #tpu.memory_space<vmem>>, %arg5: memref<9x128x128xbf16, #tpu.memory_space<vmem>>, %arg6: memref<1x8x16x128xbf16, #tpu.memory_space<vmem>>, %arg7: memref<1x1x1x128xf32, #tpu.memory_space<vmem>>, %arg8: memref<1x1x1x128xf32, #tpu.memory_space<vmem>>) attributes {dimension_semantics = [#tpu.dimension_semantics<parallel>, #tpu.dimension_semantics<parallel>], iteration_bounds = array<i64: 2, 2>, scalar_prefetch = 0 : i64, scratch_operands = 0 : i64, tpu.core_type = #tpu.core_type<tc>, window_params = [{transform_indices = @transform_0, window_bounds = array<i64: 1, 8, 16, 128>}, {transform_indices = @transform_1, window_bounds = array<i64: 1, 1, 16, 128>}, {transform_indices = @transform_2, window_bounds = array<i64: 1, 1, 16, 128>}, {pipeline_mode = #tpu.pipeline_mode<synchronous>, transform_indices = @transform_3, window_bounds = array<i64: 9, 128, 128>}, {transform_indices = @transform_4, window_bounds = array<i64: 1, 8, 16, 128>}, {transform_indices = @transform_5, window_bounds = array<i64: 1, 1, 1, 128>}, {transform_indices = @transform_6, window_bounds = array<i64: 1, 1, 1, 128>}]} {
    %c0 = arith.constant 0 : index
    %c0_0 = arith.constant 0 : index
    %c0_1 = arith.constant 0 : index
    %c0_2 = arith.constant 0 : index
    %0 = vector.load %arg2[%c0, %c0_0, %c0_1, %c0_2] : memref<1x8x16x128xbf16, #tpu.memory_space<vmem>>, vector<1x8x16x128xbf16>
    %1 = vector.shape_cast %0 : vector<1x8x16x128xbf16> to vector<8x16x128xbf16>
    %2 = arith.extf %1 : vector<8x16x128xbf16> to vector<8x16x128xf32>
    %c0_3 = arith.constant 0 : index
    %c0_4 = arith.constant 0 : index
    %c0_5 = arith.constant 0 : index
    %c0_6 = arith.constant 0 : index
    %3 = vector.load %arg3[%c0_3, %c0_4, %c0_5, %c0_6] : memref<1x1x16x128xbf16, #tpu.memory_space<vmem>>, vector<1x1x16x128xbf16>
    %4 = vector.shape_cast %3 : vector<1x1x16x128xbf16> to vector<1x16x128xbf16>
    %5 = arith.extf %4 : vector<1x16x128xbf16> to vector<1x16x128xf32>
    %c0_7 = arith.constant 0 : index
    %c0_8 = arith.constant 0 : index
    %c0_9 = arith.constant 0 : index
    %c0_10 = arith.constant 0 : index
    %6 = vector.load %arg4[%c0_7, %c0_8, %c0_9, %c0_10] : memref<1x1x16x128xbf16, #tpu.memory_space<vmem>>, vector<1x1x16x128xbf16>
    %7 = vector.shape_cast %6 : vector<1x1x16x128xbf16> to vector<1x16x128xbf16>
    %8 = arith.extf %7 : vector<1x16x128xbf16> to vector<1x16x128xf32>
    %c0_i32 = arith.constant 0 : i32
    %9 = arith.cmpi sgt, %arg1, %c0_i32 : i32
    %cst = arith.constant 0.000000e+00 : f32
    %10 = vector.broadcast %cst : f32 to vector<1x16x128xf32>
    %11 = arith.select %9, %5, %10 : vector<1x16x128xf32>
    %c1_i32 = arith.constant 1 : i32
    %12 = arith.cmpi slt, %arg1, %c1_i32 : i32
    %cst_11 = arith.constant 0.000000e+00 : f32
    %13 = vector.broadcast %cst_11 : f32 to vector<1x16x128xf32>
    %14 = arith.select %12, %8, %13 : vector<1x16x128xf32>
    %15 = tpu.concatenate %11, %2, %14 in 0 : vector<1x16x128xf32>, vector<8x16x128xf32>, vector<1x16x128xf32> -> vector<10x16x128xf32>
    %16 = vector.shape_cast %15 : vector<10x16x128xf32> to vector<160x128xf32>
    %17 = tpu.iota {dimensions = array<i32: 0>} : vector<160x1xi32>
    %c16_i32 = arith.constant 16 : i32
    %c0_i32_12 = arith.constant 0 : i32
    %18 = arith.cmpi eq, %c16_i32, %c0_i32_12 : i32
    %c1_i32_13 = arith.constant 1 : i32
    %19 = arith.select %18, %c1_i32_13, %c16_i32 : i32
    %20 = vector.broadcast %19 : i32 to vector<160x1xi32>
    %21 = arith.remsi %17, %20 : vector<160x1xi32>
    %c0_i32_14 = arith.constant 0 : i32
    %22 = vector.broadcast %c0_i32_14 : i32 to vector<160x1xi32>
    %23 = arith.cmpi ne, %21, %22 : vector<160x1xi32>
    %c0_i32_15 = arith.constant 0 : i32
    %24 = vector.broadcast %c0_i32_15 : i32 to vector<160x1xi32>
    %25 = arith.cmpi slt, %21, %24 : vector<160x1xi32>
    %c0_i32_16 = arith.constant 0 : i32
    %26 = arith.cmpi slt, %19, %c0_i32_16 : i32
    %27 = vector.broadcast %26 : i1 to vector<160x1xi1>
    %28 = vector.broadcast %27 : vector<160x1xi1> to vector<160x1xi1>
    %29 = arith.xori %25, %28 : vector<160x1xi1>
    %30 = arith.andi %29, %23 : vector<160x1xi1>
    %31 = vector.broadcast %19 : i32 to vector<160x1xi32>
    %32 = arith.addi %21, %31 : vector<160x1xi32>
    %33 = arith.select %30, %32, %21 : vector<160x1xi1>, vector<160x1xi32>
    %c0_i32_17 = arith.constant 0 : i32
    %34 = vector.broadcast %c0_i32_17 : i32 to vector<160x1xi32>
    %35 = arith.cmpi sgt, %33, %34 : vector<160x1xi32>
    %c1_i32_18 = arith.constant 1 : i32
    %36 = tpu.dynamic_rotate %16 by %c1_i32_18 dim 0 : vector<160x128xf32>, i32 -> vector<160x128xf32>
    %cst_19 = arith.constant 0.000000e+00 : f32
    %37 = vector.shape_cast %35 : vector<160x1xi1> to vector<160x1xi1>
    %38 = vector.broadcast %37 : vector<160x1xi1> to vector<160x128xi1>
    %39 = vector.broadcast %cst_19 : f32 to vector<160x128xf32>
    %40 = arith.select %38, %36, %39 : vector<160x128xi1>, vector<160x128xf32>
    %c15_i32 = arith.constant 15 : i32
    %41 = vector.broadcast %c15_i32 : i32 to vector<160x1xi32>
    %42 = arith.cmpi slt, %33, %41 : vector<160x1xi32>
    %c159_i32 = arith.constant 159 : i32
    %43 = tpu.dynamic_rotate %16 by %c159_i32 dim 0 : vector<160x128xf32>, i32 -> vector<160x128xf32>
    %cst_20 = arith.constant 0.000000e+00 : f32
    %44 = vector.shape_cast %42 : vector<160x1xi1> to vector<160x1xi1>
    %45 = vector.broadcast %44 : vector<160x1xi1> to vector<160x128xi1>
    %46 = vector.broadcast %cst_20 : f32 to vector<160x128xf32>
    %47 = arith.select %45, %43, %46 : vector<160x128xi1>, vector<160x128xf32>
    %48 = arith.truncf %40 : vector<160x128xf32> to vector<160x128xbf16>
    %49 = vector.shape_cast %48 : vector<160x128xbf16> to vector<10x16x128xbf16>
    %50 = arith.truncf %16 : vector<160x128xf32> to vector<160x128xbf16>
    %51 = vector.shape_cast %50 : vector<160x128xbf16> to vector<10x16x128xbf16>
    %52 = arith.truncf %47 : vector<160x128xf32> to vector<160x128xbf16>
    %53 = vector.shape_cast %52 : vector<160x128xbf16> to vector<10x16x128xbf16>
    %cst_21 = arith.constant 0.000000e+00 : f32
    %54 = vector.broadcast %cst_21 : f32 to vector<128x128xf32>
    %55 = vector.extract_strided_slice %49 {offsets = [0, 0, 0], sizes = [8, 16, 128], strides = [1, 1, 1]} : vector<10x16x128xbf16> to vector<8x16x128xbf16>
    %56 = vector.shape_cast %55 : vector<8x16x128xbf16> to vector<128x128xbf16>
    %c0_22 = arith.constant 0 : index
    %c0_23 = arith.constant 0 : index
    %c0_24 = arith.constant 0 : index
    %57 = vector.load %arg5[%c0_22, %c0_23, %c0_24] : memref<9x128x128xbf16, #tpu.memory_space<vmem>>, vector<1x128x128xbf16>
    %58 = vector.shape_cast %57 : vector<1x128x128xbf16> to vector<128x128xbf16>
    %cst_25 = arith.constant dense<0.000000e+00> : vector<128x128xf32>
    %59 = tpu.matmul %56, %58, %cst_25 {dimension_numbers = #tpu.dot_dimension_numbers<[1], [0], [0], [1], [0, 0, 1, 1], [], []>} : vector<128x128xbf16>, vector<128x128xbf16>, vector<128x128xf32> -> vector<128x128xf32>
    %60 = arith.addf %54, %59 : vector<128x128xf32>
    %61 = vector.extract_strided_slice %51 {offsets = [0, 0, 0], sizes = [8, 16, 128], strides = [1, 1, 1]} : vector<10x16x128xbf16> to vector<8x16x128xbf16>
    %62 = vector.shape_cast %61 : vector<8x16x128xbf16> to vector<128x128xbf16>
    %c1 = arith.constant 1 : index
    %c0_26 = arith.constant 0 : index
    %c0_27 = arith.constant 0 : index
    %63 = vector.load %arg5[%c1, %c0_26, %c0_27] : memref<9x128x128xbf16, #tpu.memory_space<vmem>>, vector<1x128x128xbf16>
    %64 = vector.shape_cast %63 : vector<1x128x128xbf16> to vector<128x128xbf16>
    %cst_28 = arith.constant dense<0.000000e+00> : vector<128x128xf32>
    %65 = tpu.matmul %62, %64, %cst_28 {dimension_numbers = #tpu.dot_dimension_numbers<[1], [0], [0], [1], [0, 0, 1, 1], [], []>} : vector<128x128xbf16>, vector<128x128xbf16>, vector<128x128xf32> -> vector<128x128xf32>
    %66 = arith.addf %60, %65 : vector<128x128xf32>
    %67 = vector.extract_strided_slice %53 {offsets = [0, 0, 0], sizes = [8, 16, 128], strides = [1, 1, 1]} : vector<10x16x128xbf16> to vector<8x16x128xbf16>
    %68 = vector.shape_cast %67 : vector<8x16x128xbf16> to vector<128x128xbf16>
    %c2 = arith.constant 2 : index
    %c0_29 = arith.constant 0 : index
    %c0_30 = arith.constant 0 : index
    %69 = vector.load %arg5[%c2, %c0_29, %c0_30] : memref<9x128x128xbf16, #tpu.memory_space<vmem>>, vector<1x128x128xbf16>
    %70 = vector.shape_cast %69 : vector<1x128x128xbf16> to vector<128x128xbf16>
    %cst_31 = arith.constant dense<0.000000e+00> : vector<128x128xf32>
    %71 = tpu.matmul %68, %70, %cst_31 {dimension_numbers = #tpu.dot_dimension_numbers<[1], [0], [0], [1], [0, 0, 1, 1], [], []>} : vector<128x128xbf16>, vector<128x128xbf16>, vector<128x128xf32> -> vector<128x128xf32>
    %72 = arith.addf %66, %71 : vector<128x128xf32>
    %73 = vector.extract_strided_slice %49 {offsets = [1, 0, 0], sizes = [8, 16, 128], strides = [1, 1, 1]} : vector<10x16x128xbf16> to vector<8x16x128xbf16>
    %74 = vector.shape_cast %73 : vector<8x16x128xbf16> to vector<128x128xbf16>
    %c3 = arith.constant 3 : index
    %c0_32 = arith.constant 0 : index
    %c0_33 = arith.constant 0 : index
    %75 = vector.load %arg5[%c3, %c0_32, %c0_33] : memref<9x128x128xbf16, #tpu.memory_space<vmem>>, vector<1x128x128xbf16>
    %76 = vector.shape_cast %75 : vector<1x128x128xbf16> to vector<128x128xbf16>
    %cst_34 = arith.constant dense<0.000000e+00> : vector<128x128xf32>
    %77 = tpu.matmul %74, %76, %cst_34 {dimension_numbers = #tpu.dot_dimension_numbers<[1], [0], [0], [1], [0, 0, 1, 1], [], []>} : vector<128x128xbf16>, vector<128x128xbf16>, vector<128x128xf32> -> vector<128x128xf32>
    %78 = arith.addf %72, %77 : vector<128x128xf32>
    %79 = vector.extract_strided_slice %51 {offsets = [1, 0, 0], sizes = [8, 16, 128], strides = [1, 1, 1]} : vector<10x16x128xbf16> to vector<8x16x128xbf16>
    %80 = vector.shape_cast %79 : vector<8x16x128xbf16> to vector<128x128xbf16>
    %c4 = arith.constant 4 : index
    %c0_35 = arith.constant 0 : index
    %c0_36 = arith.constant 0 : index
    %81 = vector.load %arg5[%c4, %c0_35, %c0_36] : memref<9x128x128xbf16, #tpu.memory_space<vmem>>, vector<1x128x128xbf16>
    %82 = vector.shape_cast %81 : vector<1x128x128xbf16> to vector<128x128xbf16>
    %cst_37 = arith.constant dense<0.000000e+00> : vector<128x128xf32>
    %83 = tpu.matmul %80, %82, %cst_37 {dimension_numbers = #tpu.dot_dimension_numbers<[1], [0], [0], [1], [0, 0, 1, 1], [], []>} : vector<128x128xbf16>, vector<128x128xbf16>, vector<128x128xf32> -> vector<128x128xf32>
    %84 = arith.addf %78, %83 : vector<128x128xf32>
    %85 = vector.extract_strided_slice %53 {offsets = [1, 0, 0], sizes = [8, 16, 128], strides = [1, 1, 1]} : vector<10x16x128xbf16> to vector<8x16x128xbf16>
    %86 = vector.shape_cast %85 : vector<8x16x128xbf16> to vector<128x128xbf16>
    %c5 = arith.constant 5 : index
    %c0_38 = arith.constant 0 : index
    %c0_39 = arith.constant 0 : index
    %87 = vector.load %arg5[%c5, %c0_38, %c0_39] : memref<9x128x128xbf16, #tpu.memory_space<vmem>>, vector<1x128x128xbf16>
    %88 = vector.shape_cast %87 : vector<1x128x128xbf16> to vector<128x128xbf16>
    %cst_40 = arith.constant dense<0.000000e+00> : vector<128x128xf32>
    %89 = tpu.matmul %86, %88, %cst_40 {dimension_numbers = #tpu.dot_dimension_numbers<[1], [0], [0], [1], [0, 0, 1, 1], [], []>} : vector<128x128xbf16>, vector<128x128xbf16>, vector<128x128xf32> -> vector<128x128xf32>
    %90 = arith.addf %84, %89 : vector<128x128xf32>
    %91 = vector.extract_strided_slice %49 {offsets = [2, 0, 0], sizes = [8, 16, 128], strides = [1, 1, 1]} : vector<10x16x128xbf16> to vector<8x16x128xbf16>
    %92 = vector.shape_cast %91 : vector<8x16x128xbf16> to vector<128x128xbf16>
    %c6 = arith.constant 6 : index
    %c0_41 = arith.constant 0 : index
    %c0_42 = arith.constant 0 : index
    %93 = vector.load %arg5[%c6, %c0_41, %c0_42] : memref<9x128x128xbf16, #tpu.memory_space<vmem>>, vector<1x128x128xbf16>
    %94 = vector.shape_cast %93 : vector<1x128x128xbf16> to vector<128x128xbf16>
    %cst_43 = arith.constant dense<0.000000e+00> : vector<128x128xf32>
    %95 = tpu.matmul %92, %94, %cst_43 {dimension_numbers = #tpu.dot_dimension_numbers<[1], [0], [0], [1], [0, 0, 1, 1], [], []>} : vector<128x128xbf16>, vector<128x128xbf16>, vector<128x128xf32> -> vector<128x128xf32>
    %96 = arith.addf %90, %95 : vector<128x128xf32>
    %97 = vector.extract_strided_slice %51 {offsets = [2, 0, 0], sizes = [8, 16, 128], strides = [1, 1, 1]} : vector<10x16x128xbf16> to vector<8x16x128xbf16>
    %98 = vector.shape_cast %97 : vector<8x16x128xbf16> to vector<128x128xbf16>
    %c7 = arith.constant 7 : index
    %c0_44 = arith.constant 0 : index
    %c0_45 = arith.constant 0 : index
    %99 = vector.load %arg5[%c7, %c0_44, %c0_45] : memref<9x128x128xbf16, #tpu.memory_space<vmem>>, vector<1x128x128xbf16>
    %100 = vector.shape_cast %99 : vector<1x128x128xbf16> to vector<128x128xbf16>
    %cst_46 = arith.constant dense<0.000000e+00> : vector<128x128xf32>
    %101 = tpu.matmul %98, %100, %cst_46 {dimension_numbers = #tpu.dot_dimension_numbers<[1], [0], [0], [1], [0, 0, 1, 1], [], []>} : vector<128x128xbf16>, vector<128x128xbf16>, vector<128x128xf32> -> vector<128x128xf32>
    %102 = arith.addf %96, %101 : vector<128x128xf32>
    %103 = vector.extract_strided_slice %53 {offsets = [2, 0, 0], sizes = [8, 16, 128], strides = [1, 1, 1]} : vector<10x16x128xbf16> to vector<8x16x128xbf16>
    %104 = vector.shape_cast %103 : vector<8x16x128xbf16> to vector<128x128xbf16>
    %c8 = arith.constant 8 : index
    %c0_47 = arith.constant 0 : index
    %c0_48 = arith.constant 0 : index
    %105 = vector.load %arg5[%c8, %c0_47, %c0_48] : memref<9x128x128xbf16, #tpu.memory_space<vmem>>, vector<1x128x128xbf16>
    %106 = vector.shape_cast %105 : vector<1x128x128xbf16> to vector<128x128xbf16>
    %cst_49 = arith.constant dense<0.000000e+00> : vector<128x128xf32>
    %107 = tpu.matmul %104, %106, %cst_49 {dimension_numbers = #tpu.dot_dimension_numbers<[1], [0], [0], [1], [0, 0, 1, 1], [], []>} : vector<128x128xbf16>, vector<128x128xbf16>, vector<128x128xf32> -> vector<128x128xf32>
    %108 = arith.addf %102, %107 : vector<128x128xf32>
    %cst_50 = arith.constant dense<0.000000e+00> : vector<128xf32>
    %109 = vector.multi_reduction <add>, %108, %cst_50 [0] : vector<128x128xf32> to vector<128xf32>
    %110 = vector.shape_cast %109 : vector<128xf32> to vector<1x128xf32>
    %111 = vector.shape_cast %110 : vector<1x128xf32> to vector<1x1x1x128xf32>
    %c0_51 = arith.constant 0 : index
    %c0_52 = arith.constant 0 : index
    %c0_53 = arith.constant 0 : index
    %c0_54 = arith.constant 0 : index
    %112 = vector.load %arg7[%c0_51, %c0_52, %c0_53, %c0_54] : memref<1x1x1x128xf32, #tpu.memory_space<vmem>>, vector<1x1x1x128xf32>
    tpu.vector_store %arg7[%c0_51, %c0_52, %c0_53, %c0_54], %111 {strides = array<i32>} : memref<1x1x1x128xf32, #tpu.memory_space<vmem>>, vector<1x1x1x128xf32>,
    %113 = arith.mulf %108, %108 : vector<128x128xf32>
    %cst_55 = arith.constant dense<0.000000e+00> : vector<128xf32>
    %114 = vector.multi_reduction <add>, %113, %cst_55 [0] : vector<128x128xf32> to vector<128xf32>
    %115 = vector.shape_cast %114 : vector<128xf32> to vector<1x128xf32>
    %116 = vector.shape_cast %115 : vector<1x128xf32> to vector<1x1x1x128xf32>
    %c0_56 = arith.constant 0 : index
    %c0_57 = arith.constant 0 : index
    %c0_58 = arith.constant 0 : index
    %c0_59 = arith.constant 0 : index
    %117 = vector.load %arg8[%c0_56, %c0_57, %c0_58, %c0_59] : memref<1x1x1x128xf32, #tpu.memory_space<vmem>>, vector<1x1x1x128xf32>
    tpu.vector_store %arg8[%c0_56, %c0_57, %c0_58, %c0_59], %116 {strides = array<i32>} : memref<1x1x1x128xf32, #tpu.memory_space<vmem>>, vector<1x1x1x128xf32>,
    %118 = vector.shape_cast %108 : vector<128x128xf32> to vector<1x8x16x128xf32>
    %119 = arith.truncf %118 : vector<1x8x16x128xf32> to vector<1x8x16x128xbf16>
    %c0_60 = arith.constant 0 : index
    %c0_61 = arith.constant 0 : index
    %c0_62 = arith.constant 0 : index
    %c0_63 = arith.constant 0 : index
    %120 = vector.load %arg6[%c0_60, %c0_61, %c0_62, %c0_63] : memref<1x8x16x128xbf16, #tpu.memory_space<vmem>>, vector<1x8x16x128xbf16>
    tpu.vector_store %arg6[%c0_60, %c0_61, %c0_62, %c0_63], %119 {strides = array<i32>} : memref<1x8x16x128xbf16, #tpu.memory_space<vmem>>, vector<1x8x16x128xbf16>,
    return
  }
  func.func @transform_0(%arg0: i32, %arg1: i32) -> (i32, i32, i32, i32) {
    %c0_i32 = arith.constant 0 : i32
    %c0_i32_0 = arith.constant 0 : i32
    %c0_i32_1 = arith.constant 0 : i32
    return %arg0, %arg1, %c0_i32, %c0_i32_0 : i32, i32, i32, i32
  }
  func.func @transform_1(%arg0: i32, %arg1: i32) -> (i32, i32, i32, i32) {
    %c8_i32 = arith.constant 8 : i32
    %0 = arith.muli %arg1, %c8_i32 : i32
    %c1_i32 = arith.constant 1 : i32
    %1 = arith.subi %0, %c1_i32 : i32
    %c0_i32 = arith.constant 0 : i32
    %2 = arith.maxsi %1, %c0_i32 : i32
    %c0_i32_0 = arith.constant 0 : i32
    %c0_i32_1 = arith.constant 0 : i32
    %c0_i32_2 = arith.constant 0 : i32
    return %arg0, %2, %c0_i32_0, %c0_i32_1 : i32, i32, i32, i32
  }
  func.func @transform_2(%arg0: i32, %arg1: i32) -> (i32, i32, i32, i32) {
    %c1_i32 = arith.constant 1 : i32
    %0 = arith.addi %arg1, %c1_i32 : i32
    %c8_i32 = arith.constant 8 : i32
    %1 = arith.muli %0, %c8_i32 : i32
    %c15_i32 = arith.constant 15 : i32
    %2 = arith.minsi %1, %c15_i32 : i32
    %c0_i32 = arith.constant 0 : i32
    %c0_i32_0 = arith.constant 0 : i32
    %c0_i32_1 = arith.constant 0 : i32
    return %arg0, %2, %c0_i32, %c0_i32_0 : i32, i32, i32, i32
  }
  func.func @transform_3(%arg0: i32, %arg1: i32) -> (i32, i32, i32) {
    %c0_i32 = arith.constant 0 : i32
    %c0_i32_0 = arith.constant 0 : i32
    %c0_i32_1 = arith.constant 0 : i32
    %c0_i32_2 = arith.constant 0 : i32
    return %c0_i32, %c0_i32_0, %c0_i32_1 : i32, i32, i32
  }
  func.func @transform_4(%arg0: i32, %arg1: i32) -> (i32, i32, i32, i32) {
    %c0_i32 = arith.constant 0 : i32
    %c0_i32_0 = arith.constant 0 : i32
    %c0_i32_1 = arith.constant 0 : i32
    return %arg0, %arg1, %c0_i32, %c0_i32_0 : i32, i32, i32, i32
  }
  func.func @transform_5(%arg0: i32, %arg1: i32) -> (i32, i32, i32, i32) {
    %c0_i32 = arith.constant 0 : i32
    %c0_i32_0 = arith.constant 0 : i32
    %c0_i32_1 = arith.constant 0 : i32
    return %arg0, %arg1, %c0_i32, %c0_i32_0 : i32, i32, i32, i32
  }
  func.func @transform_6(%arg0: i32, %arg1: i32) -> (i32, i32, i32, i32) {
    %c0_i32 = arith.constant 0 : i32
    %c0_i32_0 = arith.constant 0 : i32
    %c0_i32_1 = arith.constant 0 : i32
    return %arg0, %arg1, %c0_i32, %c0_i32_0 : i32, i32, i32, i32
  }
}

module attributes {stable_mosaic.version = 11 : i64} {
  func.func @kernel(%arg0: i32, %arg1: i32, %arg2: memref<1x8x16x128xbf16, #tpu.memory_space<vmem>>, %arg3: memref<1x128xf32, #tpu.memory_space<vmem>>, %arg4: memref<1x128xf32, #tpu.memory_space<vmem>>, %arg5: memref<1x8x16x128xf32, #tpu.memory_space<vmem>>) attributes {dimension_semantics = [#tpu.dimension_semantics<parallel>, #tpu.dimension_semantics<parallel>], iteration_bounds = array<i64: 2, 2>, scalar_prefetch = 0 : i64, scratch_operands = 0 : i64, tpu.core_type = #tpu.core_type<tc>, window_params = [{transform_indices = @transform_0, window_bounds = array<i64: 1, 8, 16, 128>}, {pipeline_mode = #tpu.pipeline_mode<synchronous>, transform_indices = @transform_1, window_bounds = array<i64: 1, 128>}, {pipeline_mode = #tpu.pipeline_mode<synchronous>, transform_indices = @transform_2, window_bounds = array<i64: 1, 128>}, {transform_indices = @transform_3, window_bounds = array<i64: 1, 8, 16, 128>}]} {
    %c0 = arith.constant 0 : index
    %c0_0 = arith.constant 0 : index
    %0 = vector.load %arg3[%c0, %c0_0] : memref<1x128xf32, #tpu.memory_space<vmem>>, vector<1x128xf32>
    %1 = vector.shape_cast %0 : vector<1x128xf32> to vector<1x1x1x128xf32>
    %c0_1 = arith.constant 0 : index
    %c0_2 = arith.constant 0 : index
    %2 = vector.load %arg4[%c0_1, %c0_2] : memref<1x128xf32, #tpu.memory_space<vmem>>, vector<1x128xf32>
    %3 = vector.shape_cast %2 : vector<1x128xf32> to vector<1x1x1x128xf32>
    %c0_3 = arith.constant 0 : index
    %c0_4 = arith.constant 0 : index
    %c0_5 = arith.constant 0 : index
    %c0_6 = arith.constant 0 : index
    %4 = vector.load %arg2[%c0_3, %c0_4, %c0_5, %c0_6] : memref<1x8x16x128xbf16, #tpu.memory_space<vmem>>, vector<1x8x16x128xbf16>
    %5 = arith.extf %4 : vector<1x8x16x128xbf16> to vector<1x8x16x128xf32>
    %6 = vector.broadcast %1 : vector<1x1x1x128xf32> to vector<1x8x16x128xf32>
    %7 = arith.mulf %5, %6 : vector<1x8x16x128xf32>
    %8 = vector.broadcast %3 : vector<1x1x1x128xf32> to vector<1x8x16x128xf32>
    %9 = arith.addf %7, %8 : vector<1x8x16x128xf32>
    %cst = arith.constant 0.000000e+00 : f32
    %10 = vector.broadcast %cst : f32 to vector<1x8x16x128xf32>
    %11 = arith.maximumf %9, %10 : vector<1x8x16x128xf32>
    %c0_7 = arith.constant 0 : index
    %c0_8 = arith.constant 0 : index
    %c0_9 = arith.constant 0 : index
    %c0_10 = arith.constant 0 : index
    %12 = vector.load %arg5[%c0_7, %c0_8, %c0_9, %c0_10] : memref<1x8x16x128xf32, #tpu.memory_space<vmem>>, vector<1x8x16x128xf32>
    tpu.vector_store %arg5[%c0_7, %c0_8, %c0_9, %c0_10], %11 {strides = array<i32>} : memref<1x8x16x128xf32, #tpu.memory_space<vmem>>, vector<1x8x16x128xf32>,
    return
  }
  func.func @transform_0(%arg0: i32, %arg1: i32) -> (i32, i32, i32, i32) {
    %c0_i32 = arith.constant 0 : i32
    %c0_i32_0 = arith.constant 0 : i32
    %c0_i32_1 = arith.constant 0 : i32
    return %arg0, %arg1, %c0_i32, %c0_i32_0 : i32, i32, i32, i32
  }
  func.func @transform_1(%arg0: i32, %arg1: i32) -> (i32, i32) {
    %c0_i32 = arith.constant 0 : i32
    %c0_i32_0 = arith.constant 0 : i32
    %c0_i32_1 = arith.constant 0 : i32
    return %c0_i32, %c0_i32_0 : i32, i32
  }
  func.func @transform_2(%arg0: i32, %arg1: i32) -> (i32, i32) {
    %c0_i32 = arith.constant 0 : i32
    %c0_i32_0 = arith.constant 0 : i32
    %c0_i32_1 = arith.constant 0 : i32
    return %c0_i32, %c0_i32_0 : i32, i32
  }
  func.func @transform_3(%arg0: i32, %arg1: i32) -> (i32, i32, i32, i32) {
    %c0_i32 = arith.constant 0 : i32
    %c0_i32_0 = arith.constant 0 : i32
    %c0_i32_1 = arith.constant 0 : i32
    return %arg0, %arg1, %c0_i32, %c0_i32_0 : i32, i32, i32, i32
  }
}

module attributes {stable_mosaic.version = 11 : i64} {
  func.func @kernel(%arg0: i32, %arg1: i32, %arg2: memref<1x8x16x128xbf16, #tpu.memory_space<vmem>>, %arg3: memref<1x1x16x128xbf16, #tpu.memory_space<vmem>>, %arg4: memref<1x1x16x128xbf16, #tpu.memory_space<vmem>>, %arg5: memref<9x128x128xbf16, #tpu.memory_space<vmem>>, %arg6: memref<1x128xf32, #tpu.memory_space<vmem>>, %arg7: memref<1x128xf32, #tpu.memory_space<vmem>>, %arg8: memref<1x8x16x128xbf16, #tpu.memory_space<vmem>>, %arg9: memref<1x1x1x128xf32, #tpu.memory_space<vmem>>, %arg10: memref<1x1x1x128xf32, #tpu.memory_space<vmem>>) attributes {dimension_semantics = [#tpu.dimension_semantics<parallel>, #tpu.dimension_semantics<parallel>], iteration_bounds = array<i64: 2, 2>, scalar_prefetch = 0 : i64, scratch_operands = 0 : i64, tpu.core_type = #tpu.core_type<tc>, window_params = [{transform_indices = @transform_0, window_bounds = array<i64: 1, 8, 16, 128>}, {transform_indices = @transform_1, window_bounds = array<i64: 1, 1, 16, 128>}, {transform_indices = @transform_2, window_bounds = array<i64: 1, 1, 16, 128>}, {pipeline_mode = #tpu.pipeline_mode<synchronous>, transform_indices = @transform_3, window_bounds = array<i64: 9, 128, 128>}, {pipeline_mode = #tpu.pipeline_mode<synchronous>, transform_indices = @transform_4, window_bounds = array<i64: 1, 128>}, {pipeline_mode = #tpu.pipeline_mode<synchronous>, transform_indices = @transform_5, window_bounds = array<i64: 1, 128>}, {transform_indices = @transform_6, window_bounds = array<i64: 1, 8, 16, 128>}, {transform_indices = @transform_7, window_bounds = array<i64: 1, 1, 1, 128>}, {transform_indices = @transform_8, window_bounds = array<i64: 1, 1, 1, 128>}]} {
    %c0 = arith.constant 0 : index
    %c0_0 = arith.constant 0 : index
    %c0_1 = arith.constant 0 : index
    %c0_2 = arith.constant 0 : index
    %0 = vector.load %arg2[%c0, %c0_0, %c0_1, %c0_2] : memref<1x8x16x128xbf16, #tpu.memory_space<vmem>>, vector<1x8x16x128xbf16>
    %1 = vector.shape_cast %0 : vector<1x8x16x128xbf16> to vector<8x16x128xbf16>
    %2 = arith.extf %1 : vector<8x16x128xbf16> to vector<8x16x128xf32>
    %c0_3 = arith.constant 0 : index
    %c0_4 = arith.constant 0 : index
    %3 = vector.load %arg6[%c0_3, %c0_4] : memref<1x128xf32, #tpu.memory_space<vmem>>, vector<1x128xf32>
    %4 = vector.shape_cast %3 : vector<1x128xf32> to vector<1x1x128xf32>
    %c0_5 = arith.constant 0 : index
    %c0_6 = arith.constant 0 : index
    %5 = vector.load %arg7[%c0_5, %c0_6] : memref<1x128xf32, #tpu.memory_space<vmem>>, vector<1x128xf32>
    %6 = vector.shape_cast %5 : vector<1x128xf32> to vector<1x1x128xf32>
    %7 = vector.broadcast %4 : vector<1x1x128xf32> to vector<8x16x128xf32>
    %8 = arith.mulf %2, %7 : vector<8x16x128xf32>
    %9 = vector.broadcast %6 : vector<1x1x128xf32> to vector<8x16x128xf32>
    %10 = arith.addf %8, %9 : vector<8x16x128xf32>
    %cst = arith.constant 0.000000e+00 : f32
    %11 = vector.broadcast %cst : f32 to vector<8x16x128xf32>
    %12 = arith.maximumf %10, %11 : vector<8x16x128xf32>
    %c0_7 = arith.constant 0 : index
    %c0_8 = arith.constant 0 : index
    %c0_9 = arith.constant 0 : index
    %c0_10 = arith.constant 0 : index
    %13 = vector.load %arg3[%c0_7, %c0_8, %c0_9, %c0_10] : memref<1x1x16x128xbf16, #tpu.memory_space<vmem>>, vector<1x1x16x128xbf16>
    %14 = vector.shape_cast %13 : vector<1x1x16x128xbf16> to vector<1x16x128xbf16>
    %15 = arith.extf %14 : vector<1x16x128xbf16> to vector<1x16x128xf32>
    %c0_11 = arith.constant 0 : index
    %c0_12 = arith.constant 0 : index
    %16 = vector.load %arg6[%c0_11, %c0_12] : memref<1x128xf32, #tpu.memory_space<vmem>>, vector<1x128xf32>
    %17 = vector.shape_cast %16 : vector<1x128xf32> to vector<1x1x128xf32>
    %c0_13 = arith.constant 0 : index
    %c0_14 = arith.constant 0 : index
    %18 = vector.load %arg7[%c0_13, %c0_14] : memref<1x128xf32, #tpu.memory_space<vmem>>, vector<1x128xf32>
    %19 = vector.shape_cast %18 : vector<1x128xf32> to vector<1x1x128xf32>
    %20 = vector.broadcast %17 : vector<1x1x128xf32> to vector<1x16x128xf32>
    %21 = arith.mulf %15, %20 : vector<1x16x128xf32>
    %22 = vector.broadcast %19 : vector<1x1x128xf32> to vector<1x16x128xf32>
    %23 = arith.addf %21, %22 : vector<1x16x128xf32>
    %cst_15 = arith.constant 0.000000e+00 : f32
    %24 = vector.broadcast %cst_15 : f32 to vector<1x16x128xf32>
    %25 = arith.maximumf %23, %24 : vector<1x16x128xf32>
    %c0_16 = arith.constant 0 : index
    %c0_17 = arith.constant 0 : index
    %c0_18 = arith.constant 0 : index
    %c0_19 = arith.constant 0 : index
    %26 = vector.load %arg4[%c0_16, %c0_17, %c0_18, %c0_19] : memref<1x1x16x128xbf16, #tpu.memory_space<vmem>>, vector<1x1x16x128xbf16>
    %27 = vector.shape_cast %26 : vector<1x1x16x128xbf16> to vector<1x16x128xbf16>
    %28 = arith.extf %27 : vector<1x16x128xbf16> to vector<1x16x128xf32>
    %c0_20 = arith.constant 0 : index
    %c0_21 = arith.constant 0 : index
    %29 = vector.load %arg6[%c0_20, %c0_21] : memref<1x128xf32, #tpu.memory_space<vmem>>, vector<1x128xf32>
    %30 = vector.shape_cast %29 : vector<1x128xf32> to vector<1x1x128xf32>
    %c0_22 = arith.constant 0 : index
    %c0_23 = arith.constant 0 : index
    %31 = vector.load %arg7[%c0_22, %c0_23] : memref<1x128xf32, #tpu.memory_space<vmem>>, vector<1x128xf32>
    %32 = vector.shape_cast %31 : vector<1x128xf32> to vector<1x1x128xf32>
    %33 = vector.broadcast %30 : vector<1x1x128xf32> to vector<1x16x128xf32>
    %34 = arith.mulf %28, %33 : vector<1x16x128xf32>
    %35 = vector.broadcast %32 : vector<1x1x128xf32> to vector<1x16x128xf32>
    %36 = arith.addf %34, %35 : vector<1x16x128xf32>
    %cst_24 = arith.constant 0.000000e+00 : f32
    %37 = vector.broadcast %cst_24 : f32 to vector<1x16x128xf32>
    %38 = arith.maximumf %36, %37 : vector<1x16x128xf32>
    %c0_i32 = arith.constant 0 : i32
    %39 = arith.cmpi sgt, %arg1, %c0_i32 : i32
    %cst_25 = arith.constant 0.000000e+00 : f32
    %40 = vector.broadcast %cst_25 : f32 to vector<1x16x128xf32>
    %41 = arith.select %39, %25, %40 : vector<1x16x128xf32>
    %c1_i32 = arith.constant 1 : i32
    %42 = arith.cmpi slt, %arg1, %c1_i32 : i32
    %cst_26 = arith.constant 0.000000e+00 : f32
    %43 = vector.broadcast %cst_26 : f32 to vector<1x16x128xf32>
    %44 = arith.select %42, %38, %43 : vector<1x16x128xf32>
    %45 = tpu.concatenate %41, %12, %44 in 0 : vector<1x16x128xf32>, vector<8x16x128xf32>, vector<1x16x128xf32> -> vector<10x16x128xf32>
    %46 = vector.shape_cast %45 : vector<10x16x128xf32> to vector<160x128xf32>
    %47 = tpu.iota {dimensions = array<i32: 0>} : vector<160x1xi32>
    %c16_i32 = arith.constant 16 : i32
    %c0_i32_27 = arith.constant 0 : i32
    %48 = arith.cmpi eq, %c16_i32, %c0_i32_27 : i32
    %c1_i32_28 = arith.constant 1 : i32
    %49 = arith.select %48, %c1_i32_28, %c16_i32 : i32
    %50 = vector.broadcast %49 : i32 to vector<160x1xi32>
    %51 = arith.remsi %47, %50 : vector<160x1xi32>
    %c0_i32_29 = arith.constant 0 : i32
    %52 = vector.broadcast %c0_i32_29 : i32 to vector<160x1xi32>
    %53 = arith.cmpi ne, %51, %52 : vector<160x1xi32>
    %c0_i32_30 = arith.constant 0 : i32
    %54 = vector.broadcast %c0_i32_30 : i32 to vector<160x1xi32>
    %55 = arith.cmpi slt, %51, %54 : vector<160x1xi32>
    %c0_i32_31 = arith.constant 0 : i32
    %56 = arith.cmpi slt, %49, %c0_i32_31 : i32
    %57 = vector.broadcast %56 : i1 to vector<160x1xi1>
    %58 = vector.broadcast %57 : vector<160x1xi1> to vector<160x1xi1>
    %59 = arith.xori %55, %58 : vector<160x1xi1>
    %60 = arith.andi %59, %53 : vector<160x1xi1>
    %61 = vector.broadcast %49 : i32 to vector<160x1xi32>
    %62 = arith.addi %51, %61 : vector<160x1xi32>
    %63 = arith.select %60, %62, %51 : vector<160x1xi1>, vector<160x1xi32>
    %c0_i32_32 = arith.constant 0 : i32
    %64 = vector.broadcast %c0_i32_32 : i32 to vector<160x1xi32>
    %65 = arith.cmpi sgt, %63, %64 : vector<160x1xi32>
    %c1_i32_33 = arith.constant 1 : i32
    %66 = tpu.dynamic_rotate %46 by %c1_i32_33 dim 0 : vector<160x128xf32>, i32 -> vector<160x128xf32>
    %cst_34 = arith.constant 0.000000e+00 : f32
    %67 = vector.shape_cast %65 : vector<160x1xi1> to vector<160x1xi1>
    %68 = vector.broadcast %67 : vector<160x1xi1> to vector<160x128xi1>
    %69 = vector.broadcast %cst_34 : f32 to vector<160x128xf32>
    %70 = arith.select %68, %66, %69 : vector<160x128xi1>, vector<160x128xf32>
    %c15_i32 = arith.constant 15 : i32
    %71 = vector.broadcast %c15_i32 : i32 to vector<160x1xi32>
    %72 = arith.cmpi slt, %63, %71 : vector<160x1xi32>
    %c159_i32 = arith.constant 159 : i32
    %73 = tpu.dynamic_rotate %46 by %c159_i32 dim 0 : vector<160x128xf32>, i32 -> vector<160x128xf32>
    %cst_35 = arith.constant 0.000000e+00 : f32
    %74 = vector.shape_cast %72 : vector<160x1xi1> to vector<160x1xi1>
    %75 = vector.broadcast %74 : vector<160x1xi1> to vector<160x128xi1>
    %76 = vector.broadcast %cst_35 : f32 to vector<160x128xf32>
    %77 = arith.select %75, %73, %76 : vector<160x128xi1>, vector<160x128xf32>
    %78 = arith.truncf %70 : vector<160x128xf32> to vector<160x128xbf16>
    %79 = vector.shape_cast %78 : vector<160x128xbf16> to vector<10x16x128xbf16>
    %80 = arith.truncf %46 : vector<160x128xf32> to vector<160x128xbf16>
    %81 = vector.shape_cast %80 : vector<160x128xbf16> to vector<10x16x128xbf16>
    %82 = arith.truncf %77 : vector<160x128xf32> to vector<160x128xbf16>
    %83 = vector.shape_cast %82 : vector<160x128xbf16> to vector<10x16x128xbf16>
    %cst_36 = arith.constant 0.000000e+00 : f32
    %84 = vector.broadcast %cst_36 : f32 to vector<128x128xf32>
    %85 = vector.extract_strided_slice %79 {offsets = [0, 0, 0], sizes = [8, 16, 128], strides = [1, 1, 1]} : vector<10x16x128xbf16> to vector<8x16x128xbf16>
    %86 = vector.shape_cast %85 : vector<8x16x128xbf16> to vector<128x128xbf16>
    %c0_37 = arith.constant 0 : index
    %c0_38 = arith.constant 0 : index
    %c0_39 = arith.constant 0 : index
    %87 = vector.load %arg5[%c0_37, %c0_38, %c0_39] : memref<9x128x128xbf16, #tpu.memory_space<vmem>>, vector<1x128x128xbf16>
    %88 = vector.shape_cast %87 : vector<1x128x128xbf16> to vector<128x128xbf16>
    %cst_40 = arith.constant dense<0.000000e+00> : vector<128x128xf32>
    %89 = tpu.matmul %86, %88, %cst_40 {dimension_numbers = #tpu.dot_dimension_numbers<[1], [0], [0], [1], [0, 0, 1, 1], [], []>} : vector<128x128xbf16>, vector<128x128xbf16>, vector<128x128xf32> -> vector<128x128xf32>
    %90 = arith.addf %84, %89 : vector<128x128xf32>
    %91 = vector.extract_strided_slice %81 {offsets = [0, 0, 0], sizes = [8, 16, 128], strides = [1, 1, 1]} : vector<10x16x128xbf16> to vector<8x16x128xbf16>
    %92 = vector.shape_cast %91 : vector<8x16x128xbf16> to vector<128x128xbf16>
    %c1 = arith.constant 1 : index
    %c0_41 = arith.constant 0 : index
    %c0_42 = arith.constant 0 : index
    %93 = vector.load %arg5[%c1, %c0_41, %c0_42] : memref<9x128x128xbf16, #tpu.memory_space<vmem>>, vector<1x128x128xbf16>
    %94 = vector.shape_cast %93 : vector<1x128x128xbf16> to vector<128x128xbf16>
    %cst_43 = arith.constant dense<0.000000e+00> : vector<128x128xf32>
    %95 = tpu.matmul %92, %94, %cst_43 {dimension_numbers = #tpu.dot_dimension_numbers<[1], [0], [0], [1], [0, 0, 1, 1], [], []>} : vector<128x128xbf16>, vector<128x128xbf16>, vector<128x128xf32> -> vector<128x128xf32>
    %96 = arith.addf %90, %95 : vector<128x128xf32>
    %97 = vector.extract_strided_slice %83 {offsets = [0, 0, 0], sizes = [8, 16, 128], strides = [1, 1, 1]} : vector<10x16x128xbf16> to vector<8x16x128xbf16>
    %98 = vector.shape_cast %97 : vector<8x16x128xbf16> to vector<128x128xbf16>
    %c2 = arith.constant 2 : index
    %c0_44 = arith.constant 0 : index
    %c0_45 = arith.constant 0 : index
    %99 = vector.load %arg5[%c2, %c0_44, %c0_45] : memref<9x128x128xbf16, #tpu.memory_space<vmem>>, vector<1x128x128xbf16>
    %100 = vector.shape_cast %99 : vector<1x128x128xbf16> to vector<128x128xbf16>
    %cst_46 = arith.constant dense<0.000000e+00> : vector<128x128xf32>
    %101 = tpu.matmul %98, %100, %cst_46 {dimension_numbers = #tpu.dot_dimension_numbers<[1], [0], [0], [1], [0, 0, 1, 1], [], []>} : vector<128x128xbf16>, vector<128x128xbf16>, vector<128x128xf32> -> vector<128x128xf32>
    %102 = arith.addf %96, %101 : vector<128x128xf32>
    %103 = vector.extract_strided_slice %79 {offsets = [1, 0, 0], sizes = [8, 16, 128], strides = [1, 1, 1]} : vector<10x16x128xbf16> to vector<8x16x128xbf16>
    %104 = vector.shape_cast %103 : vector<8x16x128xbf16> to vector<128x128xbf16>
    %c3 = arith.constant 3 : index
    %c0_47 = arith.constant 0 : index
    %c0_48 = arith.constant 0 : index
    %105 = vector.load %arg5[%c3, %c0_47, %c0_48] : memref<9x128x128xbf16, #tpu.memory_space<vmem>>, vector<1x128x128xbf16>
    %106 = vector.shape_cast %105 : vector<1x128x128xbf16> to vector<128x128xbf16>
    %cst_49 = arith.constant dense<0.000000e+00> : vector<128x128xf32>
    %107 = tpu.matmul %104, %106, %cst_49 {dimension_numbers = #tpu.dot_dimension_numbers<[1], [0], [0], [1], [0, 0, 1, 1], [], []>} : vector<128x128xbf16>, vector<128x128xbf16>, vector<128x128xf32> -> vector<128x128xf32>
    %108 = arith.addf %102, %107 : vector<128x128xf32>
    %109 = vector.extract_strided_slice %81 {offsets = [1, 0, 0], sizes = [8, 16, 128], strides = [1, 1, 1]} : vector<10x16x128xbf16> to vector<8x16x128xbf16>
    %110 = vector.shape_cast %109 : vector<8x16x128xbf16> to vector<128x128xbf16>
    %c4 = arith.constant 4 : index
    %c0_50 = arith.constant 0 : index
    %c0_51 = arith.constant 0 : index
    %111 = vector.load %arg5[%c4, %c0_50, %c0_51] : memref<9x128x128xbf16, #tpu.memory_space<vmem>>, vector<1x128x128xbf16>
    %112 = vector.shape_cast %111 : vector<1x128x128xbf16> to vector<128x128xbf16>
    %cst_52 = arith.constant dense<0.000000e+00> : vector<128x128xf32>
    %113 = tpu.matmul %110, %112, %cst_52 {dimension_numbers = #tpu.dot_dimension_numbers<[1], [0], [0], [1], [0, 0, 1, 1], [], []>} : vector<128x128xbf16>, vector<128x128xbf16>, vector<128x128xf32> -> vector<128x128xf32>
    %114 = arith.addf %108, %113 : vector<128x128xf32>
    %115 = vector.extract_strided_slice %83 {offsets = [1, 0, 0], sizes = [8, 16, 128], strides = [1, 1, 1]} : vector<10x16x128xbf16> to vector<8x16x128xbf16>
    %116 = vector.shape_cast %115 : vector<8x16x128xbf16> to vector<128x128xbf16>
    %c5 = arith.constant 5 : index
    %c0_53 = arith.constant 0 : index
    %c0_54 = arith.constant 0 : index
    %117 = vector.load %arg5[%c5, %c0_53, %c0_54] : memref<9x128x128xbf16, #tpu.memory_space<vmem>>, vector<1x128x128xbf16>
    %118 = vector.shape_cast %117 : vector<1x128x128xbf16> to vector<128x128xbf16>
    %cst_55 = arith.constant dense<0.000000e+00> : vector<128x128xf32>
    %119 = tpu.matmul %116, %118, %cst_55 {dimension_numbers = #tpu.dot_dimension_numbers<[1], [0], [0], [1], [0, 0, 1, 1], [], []>} : vector<128x128xbf16>, vector<128x128xbf16>, vector<128x128xf32> -> vector<128x128xf32>
    %120 = arith.addf %114, %119 : vector<128x128xf32>
    %121 = vector.extract_strided_slice %79 {offsets = [2, 0, 0], sizes = [8, 16, 128], strides = [1, 1, 1]} : vector<10x16x128xbf16> to vector<8x16x128xbf16>
    %122 = vector.shape_cast %121 : vector<8x16x128xbf16> to vector<128x128xbf16>
    %c6 = arith.constant 6 : index
    %c0_56 = arith.constant 0 : index
    %c0_57 = arith.constant 0 : index
    %123 = vector.load %arg5[%c6, %c0_56, %c0_57] : memref<9x128x128xbf16, #tpu.memory_space<vmem>>, vector<1x128x128xbf16>
    %124 = vector.shape_cast %123 : vector<1x128x128xbf16> to vector<128x128xbf16>
    %cst_58 = arith.constant dense<0.000000e+00> : vector<128x128xf32>
    %125 = tpu.matmul %122, %124, %cst_58 {dimension_numbers = #tpu.dot_dimension_numbers<[1], [0], [0], [1], [0, 0, 1, 1], [], []>} : vector<128x128xbf16>, vector<128x128xbf16>, vector<128x128xf32> -> vector<128x128xf32>
    %126 = arith.addf %120, %125 : vector<128x128xf32>
    %127 = vector.extract_strided_slice %81 {offsets = [2, 0, 0], sizes = [8, 16, 128], strides = [1, 1, 1]} : vector<10x16x128xbf16> to vector<8x16x128xbf16>
    %128 = vector.shape_cast %127 : vector<8x16x128xbf16> to vector<128x128xbf16>
    %c7 = arith.constant 7 : index
    %c0_59 = arith.constant 0 : index
    %c0_60 = arith.constant 0 : index
    %129 = vector.load %arg5[%c7, %c0_59, %c0_60] : memref<9x128x128xbf16, #tpu.memory_space<vmem>>, vector<1x128x128xbf16>
    %130 = vector.shape_cast %129 : vector<1x128x128xbf16> to vector<128x128xbf16>
    %cst_61 = arith.constant dense<0.000000e+00> : vector<128x128xf32>
    %131 = tpu.matmul %128, %130, %cst_61 {dimension_numbers = #tpu.dot_dimension_numbers<[1], [0], [0], [1], [0, 0, 1, 1], [], []>} : vector<128x128xbf16>, vector<128x128xbf16>, vector<128x128xf32> -> vector<128x128xf32>
    %132 = arith.addf %126, %131 : vector<128x128xf32>
    %133 = vector.extract_strided_slice %83 {offsets = [2, 0, 0], sizes = [8, 16, 128], strides = [1, 1, 1]} : vector<10x16x128xbf16> to vector<8x16x128xbf16>
    %134 = vector.shape_cast %133 : vector<8x16x128xbf16> to vector<128x128xbf16>
    %c8 = arith.constant 8 : index
    %c0_62 = arith.constant 0 : index
    %c0_63 = arith.constant 0 : index
    %135 = vector.load %arg5[%c8, %c0_62, %c0_63] : memref<9x128x128xbf16, #tpu.memory_space<vmem>>, vector<1x128x128xbf16>
    %136 = vector.shape_cast %135 : vector<1x128x128xbf16> to vector<128x128xbf16>
    %cst_64 = arith.constant dense<0.000000e+00> : vector<128x128xf32>
    %137 = tpu.matmul %134, %136, %cst_64 {dimension_numbers = #tpu.dot_dimension_numbers<[1], [0], [0], [1], [0, 0, 1, 1], [], []>} : vector<128x128xbf16>, vector<128x128xbf16>, vector<128x128xf32> -> vector<128x128xf32>
    %138 = arith.addf %132, %137 : vector<128x128xf32>
    %cst_65 = arith.constant dense<0.000000e+00> : vector<128xf32>
    %139 = vector.multi_reduction <add>, %138, %cst_65 [0] : vector<128x128xf32> to vector<128xf32>
    %140 = vector.shape_cast %139 : vector<128xf32> to vector<1x128xf32>
    %141 = vector.shape_cast %140 : vector<1x128xf32> to vector<1x1x1x128xf32>
    %c0_66 = arith.constant 0 : index
    %c0_67 = arith.constant 0 : index
    %c0_68 = arith.constant 0 : index
    %c0_69 = arith.constant 0 : index
    %142 = vector.load %arg9[%c0_66, %c0_67, %c0_68, %c0_69] : memref<1x1x1x128xf32, #tpu.memory_space<vmem>>, vector<1x1x1x128xf32>
    tpu.vector_store %arg9[%c0_66, %c0_67, %c0_68, %c0_69], %141 {strides = array<i32>} : memref<1x1x1x128xf32, #tpu.memory_space<vmem>>, vector<1x1x1x128xf32>,
    %143 = arith.mulf %138, %138 : vector<128x128xf32>
    %cst_70 = arith.constant dense<0.000000e+00> : vector<128xf32>
    %144 = vector.multi_reduction <add>, %143, %cst_70 [0] : vector<128x128xf32> to vector<128xf32>
    %145 = vector.shape_cast %144 : vector<128xf32> to vector<1x128xf32>
    %146 = vector.shape_cast %145 : vector<1x128xf32> to vector<1x1x1x128xf32>
    %c0_71 = arith.constant 0 : index
    %c0_72 = arith.constant 0 : index
    %c0_73 = arith.constant 0 : index
    %c0_74 = arith.constant 0 : index
    %147 = vector.load %arg10[%c0_71, %c0_72, %c0_73, %c0_74] : memref<1x1x1x128xf32, #tpu.memory_space<vmem>>, vector<1x1x1x128xf32>
    tpu.vector_store %arg10[%c0_71, %c0_72, %c0_73, %c0_74], %146 {strides = array<i32>} : memref<1x1x1x128xf32, #tpu.memory_space<vmem>>, vector<1x1x1x128xf32>,
    %148 = vector.shape_cast %138 : vector<128x128xf32> to vector<1x8x16x128xf32>
    %149 = arith.truncf %148 : vector<1x8x16x128xf32> to vector<1x8x16x128xbf16>
    %c0_75 = arith.constant 0 : index
    %c0_76 = arith.constant 0 : index
    %c0_77 = arith.constant 0 : index
    %c0_78 = arith.constant 0 : index
    %150 = vector.load %arg8[%c0_75, %c0_76, %c0_77, %c0_78] : memref<1x8x16x128xbf16, #tpu.memory_space<vmem>>, vector<1x8x16x128xbf16>
    tpu.vector_store %arg8[%c0_75, %c0_76, %c0_77, %c0_78], %149 {strides = array<i32>} : memref<1x8x16x128xbf16, #tpu.memory_space<vmem>>, vector<1x8x16x128xbf16>,
    return
  }
  func.func @transform_0(%arg0: i32, %arg1: i32) -> (i32, i32, i32, i32) {
    %c0_i32 = arith.constant 0 : i32
    %c0_i32_0 = arith.constant 0 : i32
    %c0_i32_1 = arith.constant 0 : i32
    return %arg0, %arg1, %c0_i32, %c0_i32_0 : i32, i32, i32, i32
  }
  func.func @transform_1(%arg0: i32, %arg1: i32) -> (i32, i32, i32, i32) {
    %c8_i32 = arith.constant 8 : i32
    %0 = arith.muli %arg1, %c8_i32 : i32
    %c1_i32 = arith.constant 1 : i32
    %1 = arith.subi %0, %c1_i32 : i32
    %c0_i32 = arith.constant 0 : i32
    %2 = arith.maxsi %1, %c0_i32 : i32
    %c0_i32_0 = arith.constant 0 : i32
    %c0_i32_1 = arith.constant 0 : i32
    %c0_i32_2 = arith.constant 0 : i32
    return %arg0, %2, %c0_i32_0, %c0_i32_1 : i32, i32, i32, i32
  }
  func.func @transform_2(%arg0: i32, %arg1: i32) -> (i32, i32, i32, i32) {
    %c1_i32 = arith.constant 1 : i32
    %0 = arith.addi %arg1, %c1_i32 : i32
    %c8_i32 = arith.constant 8 : i32
    %1 = arith.muli %0, %c8_i32 : i32
    %c15_i32 = arith.constant 15 : i32
    %2 = arith.minsi %1, %c15_i32 : i32
    %c0_i32 = arith.constant 0 : i32
    %c0_i32_0 = arith.constant 0 : i32
    %c0_i32_1 = arith.constant 0 : i32
    return %arg0, %2, %c0_i32, %c0_i32_0 : i32, i32, i32, i32
  }
  func.func @transform_3(%arg0: i32, %arg1: i32) -> (i32, i32, i32) {
    %c0_i32 = arith.constant 0 : i32
    %c0_i32_0 = arith.constant 0 : i32
    %c0_i32_1 = arith.constant 0 : i32
    %c0_i32_2 = arith.constant 0 : i32
    return %c0_i32, %c0_i32_0, %c0_i32_1 : i32, i32, i32
  }
  func.func @transform_4(%arg0: i32, %arg1: i32) -> (i32, i32) {
    %c0_i32 = arith.constant 0 : i32
    %c0_i32_0 = arith.constant 0 : i32
    %c0_i32_1 = arith.constant 0 : i32
    return %c0_i32, %c0_i32_0 : i32, i32
  }
  func.func @transform_5(%arg0: i32, %arg1: i32) -> (i32, i32) {
    %c0_i32 = arith.constant 0 : i32
    %c0_i32_0 = arith.constant 0 : i32
    %c0_i32_1 = arith.constant 0 : i32
    return %c0_i32, %c0_i32_0 : i32, i32
  }
  func.func @transform_6(%arg0: i32, %arg1: i32) -> (i32, i32, i32, i32) {
    %c0_i32 = arith.constant 0 : i32
    %c0_i32_0 = arith.constant 0 : i32
    %c0_i32_1 = arith.constant 0 : i32
    return %arg0, %arg1, %c0_i32, %c0_i32_0 : i32, i32, i32, i32
  }
  func.func @transform_7(%arg0: i32, %arg1: i32) -> (i32, i32, i32, i32) {
    %c0_i32 = arith.constant 0 : i32
    %c0_i32_0 = arith.constant 0 : i32
    %c0_i32_1 = arith.constant 0 : i32
    return %arg0, %arg1, %c0_i32, %c0_i32_0 : i32, i32, i32, i32
  }
  func.func @transform_8(%arg0: i32, %arg1: i32) -> (i32, i32, i32, i32) {
    %c0_i32 = arith.constant 0 : i32
    %c0_i32_0 = arith.constant 0 : i32
    %c0_i32_1 = arith.constant 0 : i32
    return %arg0, %arg1, %c0_i32, %c0_i32_0 : i32, i32, i32, i32
  }
}

</mosaic_0001>

<llo_original>
// kernel: double_conv.5
$region0: #{double_conv.5}
  #allocation0 [shape = 'u32[]', space=smem, size = 0x4, offset = 0x4, fixed_abs, tag = 'smem constant byte address 0x4 - core index']
  #allocation1 [shape = 'u32[144,128]{1,0:T(1,128)}', space=vmem, size = 0x12000, scoped, tag = 'internal scratch']
  %s0 = inlined_call_operand.vmem [shape: bf16[2,16,16,128], index: 0, kind: input, shape index: {}]
  %s1 = inlined_call_operand.vmem [shape: f32[1,128], index: 1, kind: input, shape index: {}]
  %s2 = inlined_call_operand.vmem [shape: f32[1,128], index: 2, kind: input, shape index: {}]
  %s3 = inlined_call_operand.vmem [shape: f32[2,16,16,128], index: 3, kind: output, shape index: {}]
  %s4 = sld [smem:[#allocation0]]
  $region45: #{double_conv.5} parent=0
    _
  %s6 = ssub.s32 1, %s4
  %s7 = scalar_select 0, %s6, %s4
  loop: start=0, step=1, limit=6
  $region2: #{double_conv.5} parent=0 // loop_pre_header
    _
  $region3: #{double_conv.5} parent=0 // loop_header
    %s9 = sphi 0, %s13
    %p10 = scmp.ge.s32.totalorder %s9, 6
    %s16 = sphi 0, %s28
    %s17 = sphi 0, %s24
    %s18 = sphi 0, %s16
    %s19 = sphi 0, %s17
    %s20 = sphi 0, %s18
    %s21 = sphi 0, %s19
    %s33 = sphi 0, %s35
    %s36 = sphi 0, %s33
    %s37 = sphi 0, %s36
    %s53 = sphi 0, %s37
    %s57 = sphi 0, %s57
    %s59 = sphi 0, %s57
    %s60 = sphi 0, %s59
    %s74 = sphi 0, %s60
    %s78 = sphi 0, %s78
    %s80 = sphi 0, %s78
    %s81 = sphi 0, %s80
    %s95 = sphi 0, %s81
    %s103 = sphi 0, %s105
    %s106 = sphi 0, %s103
    %s107 = sphi 0, %s106
    %s123 = sphi 0, %s107
  $region4: #{double_conv.5} parent=0 // loop_header_branch
    %12 = sbr.rel (%p10) target = $region8
  $region5: #{double_conv.5} parent=0 // loop_body
    %s14 = ssub.s32 %s9, 1
    %s15 = ssub.s32 %s9, 2
    %s22 = sadd.s32 1, %s17
    %p23 = scmp.ge.s32.totalorder %s22, 2
    %s24 = scalar_select %p23, 0, %s22
    %s25 = sadd.s32 1, %s16
    %s26 = scalar_select %p23, %s25, %s16
    %p27 = scmp.ge.s32.totalorder %s26, 2
    %s28 = scalar_select %p27, 0, %s26
    %s29 = ssub.s32 %s16, %s28
    %s30 = ssub.s32 %s17, %s24
    %s31 = sor.u32 %s29, %s30
    %p32 = scmp.eq.s32.totalorder %s31, 0
    %s34 = sadd.s32 %s33, 1
    %s35 = scalar_select %p32, %s33, %s34
    %p38 = pneg %p32
    %p39 = scmp.eq.s32.totalorder %s9, 3
    %p40 = por %p38, %p39
    %p41 = scmp.ne.s32.totalorder %s33, %s36
    %p42 = scmp.eq.s32.totalorder %s9, 0
    %p43 = por %p41, %p42
    %p44 = scmp.ne.s32.totalorder %s33, %s36
    %p45 = scmp.eq.s32.totalorder %s14, 3
    %p46 = por %p44, %p45
    %p47 = scmp.ne.s32.totalorder %s36, %s37
    %p48 = scmp.eq.s32.totalorder %s14, 0
    %p49 = por %p47, %p48
    %p50 = scmp.ne.s32.totalorder %s36, %s37
    %p51 = scmp.eq.s32.totalorder %s15, 3
    %p52 = por %p50, %p51
    %p54 = scmp.ne.s32.totalorder %s37, %s53
    %p55 = scmp.eq.s32.totalorder %s15, 0
    %p56 = por %p54, %p55
    %s58 = sadd.s32 %s57, 1
    %p61 = scmp.eq.s32.totalorder %s9, 3
    %p62 = scmp.ne.s32.totalorder %s57, %s59
    %p63 = scmp.eq.s32.totalorder %s9, 0
    %p64 = por %p62, %p63
    %p65 = scmp.ne.s32.totalorder %s57, %s59
    %p66 = scmp.eq.s32.totalorder %s14, 3
    %p67 = por %p65, %p66
    %p68 = scmp.ne.s32.totalorder %s59, %s60
    %p69 = scmp.eq.s32.totalorder %s14, 0
    %p70 = por %p68, %p69
    %p71 = scmp.ne.s32.totalorder %s59, %s60
    %p72 = scmp.eq.s32.totalorder %s15, 3
    %p73 = por %p71, %p72
    %p75 = scmp.ne.s32.totalorder %s60, %s74
    %p76 = scmp.eq.s32.totalorder %s15, 0
    %p77 = por %p75, %p76
    %s79 = sadd.s32 %s78, 1
    %p82 = scmp.eq.s32.totalorder %s9, 3
    %p83 = scmp.ne.s32.totalorder %s78, %s80
    %p84 = scmp.eq.s32.totalorder %s9, 0
    %p85 = por %p83, %p84
    %p86 = scmp.ne.s32.totalorder %s78, %s80
    %p87 = scmp.eq.s32.totalorder %s14, 3
    %p88 = por %p86, %p87
    %p89 = scmp.ne.s32.totalorder %s80, %s81
    %p90 = scmp.eq.s32.totalorder %s14, 0
    %p91 = por %p89, %p90
    %p92 = scmp.ne.s32.totalorder %s80, %s81
    %p93 = scmp.eq.s32.totalorder %s15, 3
    %p94 = por %p92, %p93
    %p96 = scmp.ne.s32.totalorder %s81, %s95
    %p97 = scmp.eq.s32.totalorder %s15, 0
    %p98 = por %p96, %p97
    %s99 = ssub.s32 %s16, %s28
    %s100 = ssub.s32 %s17, %s24
    %s101 = sor.u32 %s99, %s100
    %p102 = scmp.eq.s32.totalorder %s101, 0
    %s104 = sadd.s32 %s103, 1
    %s105 = scalar_select %p102, %s103, %s104
    %p108 = pneg %p102
    %p109 = scmp.eq.s32.totalorder %s9, 3
    %p110 = por %p108, %p109
    %p111 = scmp.ne.s32.totalorder %s103, %s106
    %p112 = scmp.eq.s32.totalorder %s9, 0
    %p113 = por %p111, %p112
    %p114 = scmp.ne.s32.totalorder %s103, %s106
    %p115 = scmp.eq.s32.totalorder %s14, 3
    %p116 = por %p114, %p115
    %p117 = scmp.ne.s32.totalorder %s106, %s107
    %p118 = scmp.eq.s32.totalorder %s14, 0
    %p119 = por %p117, %p118
    %p120 = scmp.ne.s32.totalorder %s106, %s107
    %p121 = scmp.eq.s32.totalorder %s15, 3
    %p122 = por %p120, %p121
    %p124 = scmp.ne.s32.totalorder %s107, %s123
    %p125 = scmp.eq.s32.totalorder %s15, 0
    %p126 = por %p124, %p125
    %p127 = scmp.le.s32.totalorder 1, %s9
    %p128 = scmp.lt.s32.totalorder %s9, 5
    %p129 = pnand %p127, %p128
    %p130 = pneg %p129
    // Predicated region
    $region9: #{double_conv.5} parent=5 // pred_check
      _
    $region10: #{double_conv.5} parent=5 // pred_check_branch
      %132 = sbr.rel (%p129) target = $region12
    $region11: #{double_conv.5} parent=5 // pred_region
      %s133 = ssub.s32 %s9, 1
      // Predicated region
      $region13: #{double_conv.5} parent=11 // pred_check
        %p134 = pneg %p70
      $region14: #{double_conv.5} parent=11 // pred_check_branch
        %136 = sbr.rel (%p134) target = $region16
      $region15: #{double_conv.5} parent=11 // pred_region
        _
      $region16: #{double_conv.5} parent=11 // pred_fallthru
        _
      // Predicated region
      $region17: #{double_conv.5} parent=11 // pred_check
        %p137 = pneg %p91
      $region18: #{double_conv.5} parent=11 // pred_check_branch
        %139 = sbr.rel (%p137) target = $region20
      $region19: #{double_conv.5} parent=11 // pred_region
        _
      $region20: #{double_conv.5} parent=11 // pred_fallthru
        _
    $region12: #{double_conv.5} parent=5 // pred_fallthru
      _
    %p140 = scmp.lt.s32.totalorder %s9, 4
    // Predicated region
    $region21: #{double_conv.5} parent=5 // pred_check
      %p141 = pneg %p140
    $region22: #{double_conv.5} parent=5 // pred_check_branch
      %143 = sbr.rel (%p141) target = $region24
    $region23: #{double_conv.5} parent=5 // pred_region
      // Predicated region
      $region25: #{double_conv.5} parent=23 // pred_check
        %p144 = pneg %p43
      $region26: #{double_conv.5} parent=23 // pred_check_branch
        %146 = sbr.rel (%p144) target = $region28
      $region27: #{double_conv.5} parent=23 // pred_region
        %s147 = smul.u32 8, %s17
        %p148 = scmp.lt.s32.totalorder %s16, 1
        %s149 = scalar_select %p148, %s16, 1
        %p150 = scmp.lt.s32.totalorder %s147, 15
        %s151 = scalar_select %p150, %s147, 15
        %s152 = smul.addr %s151, 2
        %s153 = smul.addr %s149, 32
        %s154 = sadd.s32 %s152, %s153
        %s155 = smul.addr %s154, 4
        %s156 = scalar_lea.vmem %s0, %s155
        %s157 = smul.u32 8, %s17
      $region28: #{double_conv.5} parent=23 // pred_fallthru
        _
    $region24: #{double_conv.5} parent=5 // pred_fallthru
      _
    %p158 = scmp.le.s32.totalorder 1, %s9
    %p159 = scmp.lt.s32.totalorder %s9, 5
    %p160 = pnand %p158, %p159
    %p161 = pneg %p160
    // Predicated region
    $region29: #{double_conv.5} parent=5 // pred_check
      _
    $region30: #{double_conv.5} parent=5 // pred_check_branch
      %163 = sbr.rel (%p160) target = $region32
    $region31: #{double_conv.5} parent=5 // pred_region
      %s164 = ssub.s32 %s9, 1
      %s165 = smul.u32 8, %s19
      %p166 = scmp.lt.s32.totalorder %s18, 1
      %s167 = scalar_select %p166, %s18, 1
      %p168 = scmp.lt.s32.totalorder %s165, 15
      %s169 = scalar_select %p168, %s165, 15
      %s170 = smul.addr %s169, 2
      %s171 = smul.addr %s167, 32
      %s172 = sadd.s32 %s170, %s171
      %s173 = smul.addr %s172, 4
      %s174 = scalar_lea.vmem %s0, %s173
      %p175 = pneg %p49
      %p176 = pneg %p46
      %p177 = pneg %p70
      %p178 = pneg %p67
      %p179 = pneg %p91
      %p180 = pneg %p88
      %p181 = pneg %p119
      %p182 = pneg %p116
      %s183 = smul.u32 8, %s19
      %p184 = scmp.lt.s32.totalorder %s18, 1
      %s185 = scalar_select %p184, %s18, 1
      %p186 = scmp.lt.s32.totalorder %s183, 15
      %s187 = scalar_select %p186, %s183, 15
      %s188 = smul.addr %s187, 2
      %s189 = smul.addr %s185, 32
      %s190 = sadd.s32 %s188, %s189
      %s191 = smul.addr %s190, 8
      %s192 = scalar_lea.vmem %s3, %s191
      %s193 = smul.u32 8, %s19
      %p194 = scmp.lt.s32.totalorder %s18, 1
      %s195 = scalar_select %p194, %s18, 1
      %p196 = scmp.lt.s32.totalorder %s193, 15
      %s197 = scalar_select %p196, %s193, 15
      %s198 = smul.addr %s197, 2
      %s199 = smul.addr %s195, 32
      %s200 = sadd.s32 %s198, %s199
      %s201 = smul.addr %s200, 4
      %s202 = scalar_lea.vmem %s0, %s201
      %s203 = smul.u32 8, %s19
      %s204 = smul.u32 8, %s19
      %p205 = scmp.lt.s32.totalorder %s18, 1
      %s206 = scalar_select %p205, %s18, 1
      %p207 = scmp.lt.s32.totalorder %s204, 15
      %s208 = scalar_select %p207, %s204, 15
      %s209 = smul.addr %s208, 2
      %s210 = smul.addr %s206, 32
      %s211 = sadd.s32 %s209, %s210
      %s212 = smul.addr %s211, 8
      %s213 = scalar_lea.vmem %s3, %s212
      %s214 = smul.u32 8, %s19
      %v215 = vld [vmem:[%s1] sm:$0x1]
      %v216 = vld [vmem:[%s2] sm:$0x1]
      %v217 = vld [vmem:[%s202] sm:$0xf]
      %v218 = vld [vmem:[%s202 + $0x4] sm:$0xf]
      %v219 = vld [vmem:[%s202 + $0x8] sm:$0xf]
      %v220 = vld [vmem:[%s202 + $0xc] sm:$0xf]
      %v221 = vld [vmem:[%s202 + $0x10] sm:$0xf]
      %v222 = vld [vmem:[%s202 + $0x14] sm:$0xf]
      %v223 = vld [vmem:[%s202 + $0x18] sm:$0xf]
      %v224 = vld [vmem:[%s202 + $0x1c] sm:$0xf]
      %v225 = vld [vmem:[%s202 + $0x20] sm:$0xf]
      %v226 = vld [vmem:[%s202 + $0x24] sm:$0xf]
      %v227 = vld [vmem:[%s202 + $0x28] sm:$0xf]
      %v228 = vld [vmem:[%s202 + $0x2c] sm:$0xf]
      %v229 = vld [vmem:[%s202 + $0x30] sm:$0xf]
      %v230 = vld [vmem:[%s202 + $0x34] sm:$0xf]
      %v231 = vld [vmem:[%s202 + $0x38] sm:$0xf]
      %v232 = vld [vmem:[%s202 + $0x3c] sm:$0xf]
      %v233 = vunpack.c.l.bf16 %v217
      %v234 = vunpack.c.l.bf16 %v218
      %v235 = vunpack.c.l.bf16 %v219
      %v236 = vunpack.c.l.bf16 %v220
      %v237 = vunpack.c.l.bf16 %v221
      %v238 = vunpack.c.l.bf16 %v222
      %v239 = vunpack.c.l.bf16 %v223
      %v240 = vunpack.c.l.bf16 %v224
      %v241 = vunpack.c.l.bf16 %v225
      %v242 = vunpack.c.l.bf16 %v226
      %v243 = vunpack.c.l.bf16 %v227
      %v244 = vunpack.c.l.bf16 %v228
      %v245 = vunpack.c.l.bf16 %v229
      %v246 = vunpack.c.l.bf16 %v230
      %v247 = vunpack.c.l.bf16 %v231
      %v248 = vunpack.c.l.bf16 %v232
      %v250 = vlaneseq
      %v251 = vshrl.u32 %v250, 7
      %v252 = vsub.s32 0, %v251
      %v253 = vrot.slane %v215, %v252
      %v255 = vmul.f32 %v233, %v253
      %v256 = vmul.f32 %v234, %v253
      %v257 = vmul.f32 %v235, %v253
      %v258 = vmul.f32 %v236, %v253
      %v259 = vmul.f32 %v237, %v253
      %v260 = vmul.f32 %v238, %v253
      %v261 = vmul.f32 %v239, %v253
      %v262 = vmul.f32 %v240, %v253
      %v263 = vmul.f32 %v241, %v253
      %v264 = vmul.f32 %v242, %v253
      %v265 = vmul.f32 %v243, %v253
      %v266 = vmul.f32 %v244, %v253
      %v267 = vmul.f32 %v245, %v253
      %v268 = vmul.f32 %v246, %v253
      %v269 = vmul.f32 %v247, %v253
      %v270 = vmul.f32 %v248, %v253
      %v272 = vlaneseq
      %v273 = vshrl.u32 %v272, 7
      %v274 = vsub.s32 0, %v273
      %v275 = vrot.slane %v216, %v274
      %v277 = vadd.f32 %v255, %v275
      %v278 = vadd.f32 %v256, %v275
      %v279 = vadd.f32 %v257, %v275
      %v280 = vadd.f32 %v258, %v275
      %v281 = vadd.f32 %v259, %v275
      %v282 = vadd.f32 %v260, %v275
      %v283 = vadd.f32 %v261, %v275
      %v284 = vadd.f32 %v262, %v275
      %v285 = vadd.f32 %v263, %v275
      %v286 = vadd.f32 %v264, %v275
      %v287 = vadd.f32 %v265, %v275
      %v288 = vadd.f32 %v266, %v275
      %v289 = vadd.f32 %v267, %v275
      %v290 = vadd.f32 %v268, %v275
      %v291 = vadd.f32 %v269, %v275
      %v292 = vadd.f32 %v270, %v275
      %v293 = vmax.f32 %v277, 0.0
      %v294 = vmax.f32 %v278, 0.0
      %v295 = vmax.f32 %v279, 0.0
      %v296 = vmax.f32 %v280, 0.0
      %v297 = vmax.f32 %v281, 0.0
      %v298 = vmax.f32 %v282, 0.0
      %v299 = vmax.f32 %v283, 0.0
      %v300 = vmax.f32 %v284, 0.0
      %v301 = vmax.f32 %v285, 0.0
      %v302 = vmax.f32 %v286, 0.0
      %v303 = vmax.f32 %v287, 0.0
      %v304 = vmax.f32 %v288, 0.0
      %v305 = vmax.f32 %v289, 0.0
      %v306 = vmax.f32 %v290, 0.0
      %v307 = vmax.f32 %v291, 0.0
      %v308 = vmax.f32 %v292, 0.0
      %309 = vst [vmem:[%s213] sm:$0xff] %v293
      %310 = vst [vmem:[%s213 + $0x8] sm:$0xff] %v294
      %311 = vst [vmem:[%s213 + $0x10] sm:$0xff] %v295
      %312 = vst [vmem:[%s213 + $0x18] sm:$0xff] %v296
      %313 = vst [vmem:[%s213 + $0x20] sm:$0xff] %v297
      %314 = vst [vmem:[%s213 + $0x28] sm:$0xff] %v298
      %315 = vst [vmem:[%s213 + $0x30] sm:$0xff] %v299
      %316 = vst [vmem:[%s213 + $0x38] sm:$0xff] %v300
      %317 = vst [vmem:[%s213 + $0x40] sm:$0xff] %v301
      %318 = vst [vmem:[%s213 + $0x48] sm:$0xff] %v302
      %319 = vst [vmem:[%s213 + $0x50] sm:$0xff] %v303
      %320 = vst [vmem:[%s213 + $0x58] sm:$0xff] %v304
      %321 = vst [vmem:[%s213 + $0x60] sm:$0xff] %v305
      %322 = vst [vmem:[%s213 + $0x68] sm:$0xff] %v306
      %323 = vst [vmem:[%s213 + $0x70] sm:$0xff] %v307
      %324 = vst [vmem:[%s213 + $0x78] sm:$0xff] %v308
      %s325 = smul.u32 8, %s19
      %p326 = scmp.lt.s32.totalorder %s18, 1
      %s327 = scalar_select %p326, %s18, 1
      %p328 = scmp.lt.s32.totalorder %s325, 15
      %s329 = scalar_select %p328, %s325, 15
      %s330 = smul.addr %s329, 2
      %s331 = smul.addr %s327, 32
      %s332 = sadd.s32 %s330, %s331
      %s333 = smul.addr %s332, 8
      %s334 = scalar_lea.vmem %s3, %s333
      // Predicated region
      $region33: #{double_conv.5} parent=31 // pred_check
        %p335 = pneg %p116
      $region34: #{double_conv.5} parent=31 // pred_check_branch
        %337 = sbr.rel (%p335) target = $region36
      $region35: #{double_conv.5} parent=31 // pred_region
        %s338 = smul.u32 8, %s19
      $region36: #{double_conv.5} parent=31 // pred_fallthru
        _
    $region32: #{double_conv.5} parent=5 // pred_fallthru
      _
    %p339 = scmp.le.s32.totalorder 2, %s9
    // Predicated region
    $region37: #{double_conv.5} parent=5 // pred_check
      %p340 = pneg %p339
    $region38: #{double_conv.5} parent=5 // pred_check_branch
      %342 = sbr.rel (%p340) target = $region40
    $region39: #{double_conv.5} parent=5 // pred_region
      %s343 = ssub.s32 %s9, 2
      // Predicated region
      $region41: #{double_conv.5} parent=39 // pred_check
        %p344 = pneg %p122
      $region42: #{double_conv.5} parent=39 // pred_check_branch
        %346 = sbr.rel (%p344) target = $region44
      $region43: #{double_conv.5} parent=39 // pred_region
        %s347 = smul.u32 8, %s21
        %p348 = scmp.lt.s32.totalorder %s20, 1
        %s349 = scalar_select %p348, %s20, 1
        %p350 = scmp.lt.s32.totalorder %s347, 15
        %s351 = scalar_select %p350, %s347, 15
        %s352 = smul.addr %s351, 2
        %s353 = smul.addr %s349, 32
        %s354 = sadd.s32 %s352, %s353
        %s355 = smul.addr %s354, 8
        %s356 = scalar_lea.vmem %s3, %s355
      $region44: #{double_conv.5} parent=39 // pred_fallthru
        _
    $region40: #{double_conv.5} parent=5 // pred_fallthru
      _
  $region6: #{double_conv.5} parent=0 // loop_footer
    %s13 = sadd.s32 1, %s9
  $region7: #{double_conv.5} parent=0 // loop_footer_branch
    %8 = sbr.rel target = $region3
  $region8: #{double_conv.5} parent=0 // loop_exit
    _

// kernel: double_conv.3
$region0: #{double_conv.3}
  #allocation0 [shape = 'u32[]', space=smem, size = 0x4, offset = 0x4, fixed_abs, tag = 'smem constant byte address 0x4 - core index']
  #allocation1 [shape = 'u32[144,128]{1,0:T(1,128)}', space=vmem, size = 0x12000, scoped, tag = 'internal scratch']
  %s0 = inlined_call_operand.vmem [shape: bf16[2,16,16,128], index: 0, kind: input, shape index: {}, may-alias: {0,1,2}]
  %s1 = inlined_call_operand.vmem [shape: bf16[2,16,16,128], index: 1, kind: input, shape index: {}, may-alias: {0,1,2}]
  %s2 = inlined_call_operand.vmem [shape: bf16[2,16,16,128], index: 2, kind: input, shape index: {}, may-alias: {0,1,2}]
  %s3 = inlined_call_operand.vmem [shape: bf16[9,128,128], index: 3, kind: input, shape index: {}]
  %s4 = inlined_call_operand.vmem [shape: bf16[2,16,16,128], index: 4, kind: output, shape index: {0}]
  %s5 = inlined_call_operand.vmem [shape: f32[2,2,1,128], index: 5, kind: output, shape index: {1}]
  %s6 = inlined_call_operand.vmem [shape: f32[2,2,1,128], index: 6, kind: output, shape index: {2}]
  %7 = xla_tuple %s4, %s5, %s6
  %s8 = sld [smem:[#allocation0]]
  $region65: #{double_conv.3} parent=0
    _
  %s10 = ssub.s32 1, %s8
  %s11 = scalar_select 0, %s10, %s8
  loop: start=0, step=1, limit=6
  $region2: #{double_conv.3} parent=0 // loop_pre_header
    _
  $region3: #{double_conv.3} parent=0 // loop_header
    %s13 = sphi 0, %s17
    %p14 = scmp.ge.s32.totalorder %s13, 6
    %s20 = sphi 0, %s32
    %s21 = sphi 0, %s28
    %s22 = sphi 0, %s20
    %s23 = sphi 0, %s21
    %s24 = sphi 0, %s22
    %s25 = sphi 0, %s23
    %s37 = sphi 0, %s39
    %s40 = sphi 0, %s37
    %s41 = sphi 0, %s40
    %s57 = sphi 0, %s41
    %s73 = sphi 0, %s75
    %s76 = sphi 0, %s73
    %s77 = sphi 0, %s76
    %s93 = sphi 0, %s77
    %s109 = sphi 0, %s111
    %s112 = sphi 0, %s109
    %s113 = sphi 0, %s112
    %s129 = sphi 0, %s113
    %s133 = sphi 0, %s133
    %s135 = sphi 0, %s133
    %s136 = sphi 0, %s135
    %s150 = sphi 0, %s136
    %s158 = sphi 0, %s160
    %s161 = sphi 0, %s158
    %s162 = sphi 0, %s161
    %s178 = sphi 0, %s162
    %s186 = sphi 0, %s188
    %s189 = sphi 0, %s186
    %s190 = sphi 0, %s189
    %s206 = sphi 0, %s190
    %s214 = sphi 0, %s216
    %s217 = sphi 0, %s214
    %s218 = sphi 0, %s217
    %s234 = sphi 0, %s218
  $region4: #{double_conv.3} parent=0 // loop_header_branch
    %16 = sbr.rel (%p14) target = $region8
  $region5: #{double_conv.3} parent=0 // loop_body
    %s18 = ssub.s32 %s13, 1
    %s19 = ssub.s32 %s13, 2
    %s26 = sadd.s32 1, %s21
    %p27 = scmp.ge.s32.totalorder %s26, 2
    %s28 = scalar_select %p27, 0, %s26
    %s29 = sadd.s32 1, %s20
    %s30 = scalar_select %p27, %s29, %s20
    %p31 = scmp.ge.s32.totalorder %s30, 2
    %s32 = scalar_select %p31, 0, %s30
    %s33 = ssub.s32 %s20, %s32
    %s34 = ssub.s32 %s21, %s28
    %s35 = sor.u32 %s33, %s34
    %p36 = scmp.eq.s32.totalorder %s35, 0
    %s38 = sadd.s32 %s37, 1
    %s39 = scalar_select %p36, %s37, %s38
    %p42 = pneg %p36
    %p43 = scmp.eq.s32.totalorder %s13, 3
    %p44 = por %p42, %p43
    %p45 = scmp.ne.s32.totalorder %s37, %s40
    %p46 = scmp.eq.s32.totalorder %s13, 0
    %p47 = por %p45, %p46
    %p48 = scmp.ne.s32.totalorder %s37, %s40
    %p49 = scmp.eq.s32.totalorder %s18, 3
    %p50 = por %p48, %p49
    %p51 = scmp.ne.s32.totalorder %s40, %s41
    %p52 = scmp.eq.s32.totalorder %s18, 0
    %p53 = por %p51, %p52
    %p54 = scmp.ne.s32.totalorder %s40, %s41
    %p55 = scmp.eq.s32.totalorder %s19, 3
    %p56 = por %p54, %p55
    %p58 = scmp.ne.s32.totalorder %s41, %s57
    %p59 = scmp.eq.s32.totalorder %s19, 0
    %p60 = por %p58, %p59
    %s61 = smul.u32 %s21, 8
    %s62 = ssub.s32 %s61, 1
    %p63 = scmp.gt.s32.totalorder %s62, 0
    %s64 = scalar_select %p63, %s62, 0
    %s65 = smul.u32 %s28, 8
    %s66 = ssub.s32 %s65, 1
    %p67 = scmp.gt.s32.totalorder %s66, 0
    %s68 = scalar_select %p67, %s66, 0
    %s69 = ssub.s32 %s20, %s32
    %s70 = ssub.s32 %s64, %s68
    %s71 = sor.u32 %s69, %s70
    %p72 = scmp.eq.s32.totalorder %s71, 0
    %s74 = sadd.s32 %s73, 1
    %s75 = scalar_select %p72, %s73, %s74
    %p78 = pneg %p72
    %p79 = scmp.eq.s32.totalorder %s13, 3
    %p80 = por %p78, %p79
    %p81 = scmp.ne.s32.totalorder %s73, %s76
    %p82 = scmp.eq.s32.totalorder %s13, 0
    %p83 = por %p81, %p82
    %p84 = scmp.ne.s32.totalorder %s73, %s76
    %p85 = scmp.eq.s32.totalorder %s18, 3
    %p86 = por %p84, %p85
    %p87 = scmp.ne.s32.totalorder %s76, %s77
    %p88 = scmp.eq.s32.totalorder %s18, 0
    %p89 = por %p87, %p88
    %p90 = scmp.ne.s32.totalorder %s76, %s77
    %p91 = scmp.eq.s32.totalorder %s19, 3
    %p92 = por %p90, %p91
    %p94 = scmp.ne.s32.totalorder %s77, %s93
    %p95 = scmp.eq.s32.totalorder %s19, 0
    %p96 = por %p94, %p95
    %s97 = sadd.s32 %s21, 1
    %s98 = smul.u32 %s97, 8
    %p99 = scmp.lt.s32.totalorder %s98, 15
    %s100 = scalar_select %p99, %s98, 15
    %s101 = sadd.s32 %s28, 1
    %s102 = smul.u32 %s101, 8
    %p103 = scmp.lt.s32.totalorder %s102, 15
    %s104 = scalar_select %p103, %s102, 15
    %s105 = ssub.s32 %s20, %s32
    %s106 = ssub.s32 %s100, %s104
    %s107 = sor.u32 %s105, %s106
    %p108 = scmp.eq.s32.totalorder %s107, 0
    %s110 = sadd.s32 %s109, 1
    %s111 = scalar_select %p108, %s109, %s110
    %p114 = pneg %p108
    %p115 = scmp.eq.s32.totalorder %s13, 3
    %p116 = por %p114, %p115
    %p117 = scmp.ne.s32.totalorder %s109, %s112
    %p118 = scmp.eq.s32.totalorder %s13, 0
    %p119 = por %p117, %p118
    %p120 = scmp.ne.s32.totalorder %s109, %s112
    %p121 = scmp.eq.s32.totalorder %s18, 3
    %p122 = por %p120, %p121
    %p123 = scmp.ne.s32.totalorder %s112, %s113
    %p124 = scmp.eq.s32.totalorder %s18, 0
    %p125 = por %p123, %p124
    %p126 = scmp.ne.s32.totalorder %s112, %s113
    %p127 = scmp.eq.s32.totalorder %s19, 3
    %p128 = por %p126, %p127
    %p130 = scmp.ne.s32.totalorder %s113, %s129
    %p131 = scmp.eq.s32.totalorder %s19, 0
    %p132 = por %p130, %p131
    %s134 = sadd.s32 %s133, 1
    %p137 = scmp.eq.s32.totalorder %s13, 3
    %p138 = scmp.ne.s32.totalorder %s133, %s135
    %p139 = scmp.eq.s32.totalorder %s13, 0
    %p140 = por %p138, %p139
    %p141 = scmp.ne.s32.totalorder %s133, %s135
    %p142 = scmp.eq.s32.totalorder %s18, 3
    %p143 = por %p141, %p142
    %p144 = scmp.ne.s32.totalorder %s135, %s136
    %p145 = scmp.eq.s32.totalorder %s18, 0
    %p146 = por %p144, %p145
    %p147 = scmp.ne.s32.totalorder %s135, %s136
    %p148 = scmp.eq.s32.totalorder %s19, 3
    %p149 = por %p147, %p148
    %p151 = scmp.ne.s32.totalorder %s136, %s150
    %p152 = scmp.eq.s32.totalorder %s19, 0
    %p153 = por %p151, %p152
    %s154 = ssub.s32 %s20, %s32
    %s155 = ssub.s32 %s21, %s28
    %s156 = sor.u32 %s154, %s155
    %p157 = scmp.eq.s32.totalorder %s156, 0
    %s159 = sadd.s32 %s158, 1
    %s160 = scalar_select %p157, %s158, %s159
    %p163 = pneg %p157
    %p164 = scmp.eq.s32.totalorder %s13, 3
    %p165 = por %p163, %p164
    %p166 = scmp.ne.s32.totalorder %s158, %s161
    %p167 = scmp.eq.s32.totalorder %s13, 0
    %p168 = por %p166, %p167
    %p169 = scmp.ne.s32.totalorder %s158, %s161
    %p170 = scmp.eq.s32.totalorder %s18, 3
    %p171 = por %p169, %p170
    %p172 = scmp.ne.s32.totalorder %s161, %s162
    %p173 = scmp.eq.s32.totalorder %s18, 0
    %p174 = por %p172, %p173
    %p175 = scmp.ne.s32.totalorder %s161, %s162
    %p176 = scmp.eq.s32.totalorder %s19, 3
    %p177 = por %p175, %p176
    %p179 = scmp.ne.s32.totalorder %s162, %s178
    %p180 = scmp.eq.s32.totalorder %s19, 0
    %p181 = por %p179, %p180
    %s182 = ssub.s32 %s20, %s32
    %s183 = ssub.s32 %s21, %s28
    %s184 = sor.u32 %s182, %s183
    %p185 = scmp.eq.s32.totalorder %s184, 0
    %s187 = sadd.s32 %s186, 1
    %s188 = scalar_select %p185, %s186, %s187
    %p191 = pneg %p185
    %p192 = scmp.eq.s32.totalorder %s13, 3
    %p193 = por %p191, %p192
    %p194 = scmp.ne.s32.totalorder %s186, %s189
    %p195 = scmp.eq.s32.totalorder %s13, 0
    %p196 = por %p194, %p195
    %p197 = scmp.ne.s32.totalorder %s186, %s189
    %p198 = scmp.eq.s32.totalorder %s18, 3
    %p199 = por %p197, %p198
    %p200 = scmp.ne.s32.totalorder %s189, %s190
    %p201 = scmp.eq.s32.totalorder %s18, 0
    %p202 = por %p200, %p201
    %p203 = scmp.ne.s32.totalorder %s189, %s190
    %p204 = scmp.eq.s32.totalorder %s19, 3
    %p205 = por %p203, %p204
    %p207 = scmp.ne.s32.totalorder %s190, %s206
    %p208 = scmp.eq.s32.totalorder %s19, 0
    %p209 = por %p207, %p208
    %s210 = ssub.s32 %s20, %s32
    %s211 = ssub.s32 %s21, %s28
    %s212 = sor.u32 %s210, %s211
    %p213 = scmp.eq.s32.totalorder %s212, 0
    %s215 = sadd.s32 %s214, 1
    %s216 = scalar_select %p213, %s214, %s215
    %p219 = pneg %p213
    %p220 = scmp.eq.s32.totalorder %s13, 3
    %p221 = por %p219, %p220
    %p222 = scmp.ne.s32.totalorder %s214, %s217
    %p223 = scmp.eq.s32.totalorder %s13, 0
    %p224 = por %p222, %p223
    %p225 = scmp.ne.s32.totalorder %s214, %s217
    %p226 = scmp.eq.s32.totalorder %s18, 3
    %p227 = por %p225, %p226
    %p228 = scmp.ne.s32.totalorder %s217, %s218
    %p229 = scmp.eq.s32.totalorder %s18, 0
    %p230 = por %p228, %p229
    %p231 = scmp.ne.s32.totalorder %s217, %s218
    %p232 = scmp.eq.s32.totalorder %s19, 3
    %p233 = por %p231, %p232
    %p235 = scmp.ne.s32.totalorder %s218, %s234
    %p236 = scmp.eq.s32.totalorder %s19, 0
    %p237 = por %p235, %p236
    %p238 = scmp.le.s32.totalorder 1, %s13
    %p239 = scmp.lt.s32.totalorder %s13, 5
    %p240 = pnand %p238, %p239
    %p241 = pneg %p240
    // Predicated region
    $region9: #{double_conv.3} parent=5 // pred_check
      _
    $region10: #{double_conv.3} parent=5 // pred_check_branch
      %243 = sbr.rel (%p240) target = $region12
    $region11: #{double_conv.3} parent=5 // pred_region
      %s244 = ssub.s32 %s13, 1
      // Predicated region
      $region13: #{double_conv.3} parent=11 // pred_check
        %p245 = pneg %p146
      $region14: #{double_conv.3} parent=11 // pred_check_branch
        %247 = sbr.rel (%p245) target = $region16
      $region15: #{double_conv.3} parent=11 // pred_region
        _
      $region16: #{double_conv.3} parent=11 // pred_fallthru
        _
    $region12: #{double_conv.3} parent=5 // pred_fallthru
      _
    %p248 = scmp.lt.s32.totalorder %s13, 4
    // Predicated region
    $region17: #{double_conv.3} parent=5 // pred_check
      %p249 = pneg %p248
    $region18: #{double_conv.3} parent=5 // pred_check_branch
      %251 = sbr.rel (%p249) target = $region20
    $region19: #{double_conv.3} parent=5 // pred_region
      // Predicated region
      $region21: #{double_conv.3} parent=19 // pred_check
        %p252 = pneg %p47
      $region22: #{double_conv.3} parent=19 // pred_check_branch
        %254 = sbr.rel (%p252) target = $region24
      $region23: #{double_conv.3} parent=19 // pred_region
        %s255 = smul.u32 8, %s21
        %p256 = scmp.lt.s32.totalorder %s20, 1
        %s257 = scalar_select %p256, %s20, 1
        %p258 = scmp.lt.s32.totalorder %s255, 15
        %s259 = scalar_select %p258, %s255, 15
        %s260 = smul.addr %s259, 2
        %s261 = smul.addr %s257, 32
        %s262 = sadd.s32 %s260, %s261
        %s263 = smul.addr %s262, 4
        %s264 = scalar_lea.vmem %s0, %s263
        %s265 = smul.u32 8, %s21
      $region24: #{double_conv.3} parent=19 // pred_fallthru
        _
      // Predicated region
      $region25: #{double_conv.3} parent=19 // pred_check
        %p266 = pneg %p83
      $region26: #{double_conv.3} parent=19 // pred_check_branch
        %268 = sbr.rel (%p266) target = $region28
      $region27: #{double_conv.3} parent=19 // pred_region
        %s269 = smul.u32 %s21, 8
        %s270 = ssub.s32 %s269, 1
        %p271 = scmp.gt.s32.totalorder %s270, 0
        %s272 = scalar_select %p271, %s270, 0
        %p273 = scmp.lt.s32.totalorder %s20, 1
        %s274 = scalar_select %p273, %s20, 1
        %p275 = scmp.lt.s32.totalorder %s272, 15
        %s276 = scalar_select %p275, %s272, 15
        %s277 = smul.addr %s276, 2
        %s278 = smul.addr %s274, 32
        %s279 = sadd.s32 %s277, %s278
        %s280 = smul.addr %s279, 4
        %s281 = scalar_lea.vmem %s1, %s280
        %s282 = smul.u32 %s21, 8
        %s283 = ssub.s32 %s282, 1
        %p284 = scmp.gt.s32.totalorder %s283, 0
        %s285 = scalar_select %p284, %s283, 0
      $region28: #{double_conv.3} parent=19 // pred_fallthru
        _
      // Predicated region
      $region29: #{double_conv.3} parent=19 // pred_check
        %p286 = pneg %p119
      $region30: #{double_conv.3} parent=19 // pred_check_branch
        %288 = sbr.rel (%p286) target = $region32
      $region31: #{double_conv.3} parent=19 // pred_region
        %s289 = sadd.s32 %s21, 1
        %s290 = smul.u32 %s289, 8
        %p291 = scmp.lt.s32.totalorder %s290, 15
        %s292 = scalar_select %p291, %s290, 15
        %p293 = scmp.lt.s32.totalorder %s20, 1
        %s294 = scalar_select %p293, %s20, 1
        %p295 = scmp.lt.s32.totalorder %s292, 15
        %s296 = scalar_select %p295, %s292, 15
        %s297 = smul.addr %s296, 2
        %s298 = smul.addr %s294, 32
        %s299 = sadd.s32 %s297, %s298
        %s300 = smul.addr %s299, 4
        %s301 = scalar_lea.vmem %s2, %s300
        %s302 = sadd.s32 %s21, 1
        %s303 = smul.u32 %s302, 8
        %p304 = scmp.lt.s32.totalorder %s303, 15
        %s305 = scalar_select %p304, %s303, 15
      $region32: #{double_conv.3} parent=19 // pred_fallthru
        _
    $region20: #{double_conv.3} parent=5 // pred_fallthru
      _
    %p306 = scmp.le.s32.totalorder 1, %s13
    %p307 = scmp.lt.s32.totalorder %s13, 5
    %p308 = pnand %p306, %p307
    %p309 = pneg %p308
    // Predicated region
    $region33: #{double_conv.3} parent=5 // pred_check
      _
    $region34: #{double_conv.3} parent=5 // pred_check_branch
      %311 = sbr.rel (%p308) target = $region36
    $region35: #{double_conv.3} parent=5 // pred_region
      %s312 = ssub.s32 %s13, 1
      %s313 = smul.u32 8, %s23
      %p314 = scmp.lt.s32.totalorder %s22, 1
      %s315 = scalar_select %p314, %s22, 1
      %p316 = scmp.lt.s32.totalorder %s313, 15
      %s317 = scalar_select %p316, %s313, 15
      %s318 = smul.addr %s317, 2
      %s319 = smul.addr %s315, 32
      %s320 = sadd.s32 %s318, %s319
      %s321 = smul.addr %s320, 4
      %s322 = scalar_lea.vmem %s0, %s321
      %p323 = pneg %p53
      %p324 = pneg %p50
      %s325 = smul.u32 %s23, 8
      %s326 = ssub.s32 %s325, 1
      %p327 = scmp.gt.s32.totalorder %s326, 0
      %s328 = scalar_select %p327, %s326, 0
      %p329 = scmp.lt.s32.totalorder %s22, 1
      %s330 = scalar_select %p329, %s22, 1
      %p331 = scmp.lt.s32.totalorder %s328, 15
      %s332 = scalar_select %p331, %s328, 15
      %s333 = smul.addr %s332, 2
      %s334 = smul.addr %s330, 32
      %s335 = sadd.s32 %s333, %s334
      %s336 = smul.addr %s335, 4
      %s337 = scalar_lea.vmem %s1, %s336
      %p338 = pneg %p89
      %p339 = pneg %p86
      %s340 = sadd.s32 %s23, 1
      %s341 = smul.u32 %s340, 8
      %p342 = scmp.lt.s32.totalorder %s341, 15
      %s343 = scalar_select %p342, %s341, 15
      %p344 = scmp.lt.s32.totalorder %s22, 1
      %s345 = scalar_select %p344, %s22, 1
      %p346 = scmp.lt.s32.totalorder %s343, 15
      %s347 = scalar_select %p346, %s343, 15
      %s348 = smul.addr %s347, 2
      %s349 = smul.addr %s345, 32
      %s350 = sadd.s32 %s348, %s349
      %s351 = smul.addr %s350, 4
      %s352 = scalar_lea.vmem %s2, %s351
      %p353 = pneg %p125
      %p354 = pneg %p122
      %p355 = pneg %p146
      %p356 = pneg %p143
      %p357 = pneg %p174
      %p358 = pneg %p171
      %s359 = smul.u32 8, %s23
      %p360 = scmp.lt.s32.totalorder %s22, 1
      %s361 = scalar_select %p360, %s22, 1
      %p362 = scmp.lt.s32.totalorder %s359, 15
      %s363 = scalar_select %p362, %s359, 15
      %s364 = smul.addr %s363, 2
      %s365 = smul.addr %s361, 32
      %s366 = sadd.s32 %s364, %s365
      %s367 = smul.addr %s366, 4
      %s368 = scalar_lea.vmem %s4, %s367
      %p369 = pneg %p202
      %p370 = pneg %p199
      %p371 = scmp.lt.s32.totalorder %s22, 1
      %s372 = scalar_select %p371, %s22, 1
      %p373 = scmp.lt.s32.totalorder %s23, 1
      %s374 = scalar_select %p373, %s23, 1
      %s375 = smul.addr %s372, 2
      %s376 = sadd.s32 %s374, %s375
      %s377 = scalar_lea.vmem %s5, %s376
      %p378 = pneg %p230
      %p379 = pneg %p227
      %p380 = scmp.lt.s32.totalorder %s22, 1
      %s381 = scalar_select %p380, %s22, 1
      %p382 = scmp.lt.s32.totalorder %s23, 1
      %s383 = scalar_select %p382, %s23, 1
      %s384 = smul.addr %s381, 2
      %s385 = sadd.s32 %s383, %s384
      %s386 = scalar_lea.vmem %s6, %s385
      %s387 = smul.u32 8, %s23
      %p388 = scmp.lt.s32.totalorder %s22, 1
      %s389 = scalar_select %p388, %s22, 1
      %p390 = scmp.lt.s32.totalorder %s387, 15
      %s391 = scalar_select %p390, %s387, 15
      %s392 = smul.addr %s391, 2
      %s393 = smul.addr %s389, 32
      %s394 = sadd.s32 %s392, %s393
      %s395 = smul.addr %s394, 4
      %s396 = scalar_lea.vmem %s0, %s395
      %s397 = smul.u32 8, %s23
      %s398 = smul.u32 %s23, 8
      %s399 = ssub.s32 %s398, 1
      %p400 = scmp.gt.s32.totalorder %s399, 0
      %s401 = scalar_select %p400, %s399, 0
      %p402 = scmp.lt.s32.totalorder %s22, 1
      %s403 = scalar_select %p402, %s22, 1
      %p404 = scmp.lt.s32.totalorder %s401, 15
      %s405 = scalar_select %p404, %s401, 15
      %s406 = smul.addr %s405, 2
      %s407 = smul.addr %s403, 32
      %s408 = sadd.s32 %s406, %s407
      %s409 = smul.addr %s408, 4
      %s410 = scalar_lea.vmem %s1, %s409
      %s411 = smul.u32 %s23, 8
      %s412 = ssub.s32 %s411, 1
      %p413 = scmp.gt.s32.totalorder %s412, 0
      %s414 = scalar_select %p413, %s412, 0
      %s415 = sadd.s32 %s23, 1
      %s416 = smul.u32 %s415, 8
      %p417 = scmp.lt.s32.totalorder %s416, 15
      %s418 = scalar_select %p417, %s416, 15
      %p419 = scmp.lt.s32.totalorder %s22, 1
      %s420 = scalar_select %p419, %s22, 1
      %p421 = scmp.lt.s32.totalorder %s418, 15
      %s422 = scalar_select %p421, %s418, 15
      %s423 = smul.addr %s422, 2
      %s424 = smul.addr %s420, 32
      %s425 = sadd.s32 %s423, %s424
      %s426 = smul.addr %s425, 4
      %s427 = scalar_lea.vmem %s2, %s426
      %s428 = sadd.s32 %s23, 1
      %s429 = smul.u32 %s428, 8
      %p430 = scmp.lt.s32.totalorder %s429, 15
      %s431 = scalar_select %p430, %s429, 15
      %s432 = smul.u32 8, %s23
      %p433 = scmp.lt.s32.totalorder %s22, 1
      %s434 = scalar_select %p433, %s22, 1
      %p435 = scmp.lt.s32.totalorder %s432, 15
      %s436 = scalar_select %p435, %s432, 15
      %s437 = smul.addr %s436, 2
      %s438 = smul.addr %s434, 32
      %s439 = sadd.s32 %s437, %s438
      %s440 = smul.addr %s439, 4
      %s441 = scalar_lea.vmem %s4, %s440
      %s442 = smul.u32 8, %s23
      %p443 = scmp.lt.s32.totalorder %s22, 1
      %s444 = scalar_select %p443, %s22, 1
      %p445 = scmp.lt.s32.totalorder %s23, 1
      %s446 = scalar_select %p445, %s23, 1
      %s447 = smul.addr %s444, 2
      %s448 = sadd.s32 %s446, %s447
      %s449 = scalar_lea.vmem %s5, %s448
      %p450 = scmp.lt.s32.totalorder %s22, 1
      %s451 = scalar_select %p450, %s22, 1
      %p452 = scmp.lt.s32.totalorder %s23, 1
      %s453 = scalar_select %p452, %s23, 1
      %s454 = smul.addr %s451, 2
      %s455 = sadd.s32 %s453, %s454
      %s456 = scalar_lea.vmem %s6, %s455
      %v458 = vld [vmem:[%s396] sm:$0xf]
      %v459 = vld [vmem:[%s396 + $0x4] sm:$0xf]
      %v460 = vld [vmem:[%s396 + $0x8] sm:$0xf]
      %v461 = vld [vmem:[%s396 + $0xc] sm:$0xf]
      %v462 = vld [vmem:[%s396 + $0x10] sm:$0xf]
      %v463 = vld [vmem:[%s396 + $0x14] sm:$0xf]
      %v464 = vld [vmem:[%s396 + $0x18] sm:$0xf]
      %v465 = vld [vmem:[%s396 + $0x1c] sm:$0xf]
      %v466 = vld [vmem:[%s396 + $0x20] sm:$0xf]
      %v467 = vld [vmem:[%s396 + $0x24] sm:$0xf]
      %v468 = vld [vmem:[%s396 + $0x28] sm:$0xf]
      %v469 = vld [vmem:[%s396 + $0x2c] sm:$0xf]
      %v470 = vld [vmem:[%s396 + $0x30] sm:$0xf]
      %v471 = vld [vmem:[%s396 + $0x34] sm:$0xf]
      %v472 = vld [vmem:[%s396 + $0x38] sm:$0xf]
      %v473 = vld [vmem:[%s396 + $0x3c] sm:$0xf]
      %v474 = vunpack.c.l.bf16 %v458
      %v475 = vunpack.c.l.bf16 %v459
      %v476 = vunpack.c.l.bf16 %v460
      %v477 = vunpack.c.l.bf16 %v461
      %v478 = vunpack.c.l.bf16 %v462
      %v479 = vunpack.c.l.bf16 %v463
      %v480 = vunpack.c.l.bf16 %v464
      %v481 = vunpack.c.l.bf16 %v465
      %v482 = vunpack.c.l.bf16 %v466
      %v483 = vunpack.c.l.bf16 %v467
      %v484 = vunpack.c.l.bf16 %v468
      %v485 = vunpack.c.l.bf16 %v469
      %v486 = vunpack.c.l.bf16 %v470
      %v487 = vunpack.c.l.bf16 %v471
      %v488 = vunpack.c.l.bf16 %v472
      %v489 = vunpack.c.l.bf16 %v473
      %v490 = vld [vmem:[%s410] sm:$0xf]
      %v491 = vld [vmem:[%s410 + $0x4] sm:$0xf]
      %v492 = vunpack.c.l.bf16 %v490
      %v493 = vunpack.c.l.bf16 %v491
      %v494 = vld [vmem:[%s427] sm:$0xf]
      %v495 = vld [vmem:[%s427 + $0x4] sm:$0xf]
      %v496 = vunpack.c.l.bf16 %v494
      %v497 = vunpack.c.l.bf16 %v495
      %p498 = scmp.gt.s32.totalorder %s23, 0
      %s499 = scalar_select %p498, 1, 0
      %v500 = vstv %s499
      %vm501 = vcmp.eq.s32.totalorder %v500, 1
      %v502 = vsel %vm501, %v492, 0.0
      %v503 = vsel %vm501, %v493, 0.0
      %p504 = scmp.lt.s32.totalorder %s23, 1
      %s505 = scalar_select %p504, 1, 0
      %v506 = vstv %s505
      %vm507 = vcmp.eq.s32.totalorder %v506, 1
      %v508 = vsel %vm507, %v496, 0.0
      %v509 = vsel %vm507, %v497, 0.0
      %v510 = vlaneseq
      %v511 = vshrl.u32 %v510, 7
      %v512 = vadd.s32 %v511, 8
      %v513 = vadd.s32 %v511, 16
      %v514 = vadd.s32 %v511, 24
      %v515 = vadd.s32 %v511, 32
      %v516 = vadd.s32 %v511, 40
      %v517 = vadd.s32 %v511, 48
      %v518 = vadd.s32 %v511, 56
      %v519 = vadd.s32 %v511, 64
      %v520 = vadd.s32 %v511, 72
      %v521 = vadd.s32 %v511, 80
      %v522 = vadd.s32 %v511, 88
      %v523 = vadd.s32 %v511, 96
      %v524 = vadd.s32 %v511, 104
      %v525 = vadd.s32 %v511, 112
      %v526 = vadd.s32 %v511, 120
      %v527 = vadd.s32 %v511, 128
      %v528 = vadd.s32 %v511, 136
      %v529 = vadd.s32 %v511, 144
      %v530 = vadd.s32 %v511, 152
      %vm531 = vcmp.lt.s32.totalorder %v511, 0
      %v532 = vsub.s32 0, %v511
      %v533 = vsel %vm531, %v532, %v511
      %v534 = vshrl.u32 %v533, 4
      %v535 = vand.u32 %v533, 15
      %v536 = vsub.s32 0, %v535
      %v537 = vsel %vm531, %v536, %v535
      %vm538 = vcmp.lt.s32.totalorder %v512, 0
      %v539 = vsub.s32 0, %v512
      %v540 = vsel %vm538, %v539, %v512
      %v541 = vshrl.u32 %v540, 4
      %v542 = vand.u32 %v540, 15
      %v543 = vsub.s32 0, %v542
      %v544 = vsel %vm538, %v543, %v542
      %vm545 = vcmp.lt.s32.totalorder %v513, 0
      %v546 = vsub.s32 0, %v513
      %v547 = vsel %vm545, %v546, %v513
      %v548 = vshrl.u32 %v547, 4
      %v549 = vand.u32 %v547, 15
      %v550 = vsub.s32 0, %v549
      %v551 = vsel %vm545, %v550, %v549
      %vm552 = vcmp.lt.s32.totalorder %v514, 0
      %v553 = vsub.s32 0, %v514
      %v554 = vsel %vm552, %v553, %v514
      %v555 = vshrl.u32 %v554, 4
      %v556 = vand.u32 %v554, 15
      %v557 = vsub.s32 0, %v556
      %v558 = vsel %vm552, %v557, %v556
      %vm559 = vcmp.lt.s32.totalorder %v515, 0
      %v560 = vsub.s32 0, %v515
      %v561 = vsel %vm559, %v560, %v515
      %v562 = vshrl.u32 %v561, 4
      %v563 = vand.u32 %v561, 15
      %v564 = vsub.s32 0, %v563
      %v565 = vsel %vm559, %v564, %v563
      %vm566 = vcmp.lt.s32.totalorder %v516, 0
      %v567 = vsub.s32 0, %v516
      %v568 = vsel %vm566, %v567, %v516
      %v569 = vshrl.u32 %v568, 4
      %v570 = vand.u32 %v568, 15
      %v571 = vsub.s32 0, %v570
      %v572 = vsel %vm566, %v571, %v570
      %vm573 = vcmp.lt.s32.totalorder %v517, 0
      %v574 = vsub.s32 0, %v517
      %v575 = vsel %vm573, %v574, %v517
      %v576 = vshrl.u32 %v575, 4
      %v577 = vand.u32 %v575, 15
      %v578 = vsub.s32 0, %v577
      %v579 = vsel %vm573, %v578, %v577
      %vm580 = vcmp.lt.s32.totalorder %v518, 0
      %v581 = vsub.s32 0, %v518
      %v582 = vsel %vm580, %v581, %v518
      %v583 = vshrl.u32 %v582, 4
      %v584 = vand.u32 %v582, 15
      %v585 = vsub.s32 0, %v584
      %v586 = vsel %vm580, %v585, %v584
      %vm587 = vcmp.lt.s32.totalorder %v519, 0
      %v588 = vsub.s32 0, %v519
      %v589 = vsel %vm587, %v588, %v519
      %v590 = vshrl.u32 %v589, 4
      %v591 = vand.u32 %v589, 15
      %v592 = vsub.s32 0, %v591
      %v593 = vsel %vm587, %v592, %v591
      %vm594 = vcmp.lt.s32.totalorder %v520, 0
      %v595 = vsub.s32 0, %v520
      %v596 = vsel %vm594, %v595, %v520
      %v597 = vshrl.u32 %v596, 4
      %v598 = vand.u32 %v596, 15
      %v599 = vsub.s32 0, %v598
      %v600 = vsel %vm594, %v599, %v598
      %vm601 = vcmp.lt.s32.totalorder %v521, 0
      %v602 = vsub.s32 0, %v521
      %v603 = vsel %vm601, %v602, %v521
      %v604 = vshrl.u32 %v603, 4
      %v605 = vand.u32 %v603, 15
      %v606 = vsub.s32 0, %v605
      %v607 = vsel %vm601, %v606, %v605
      %vm608 = vcmp.lt.s32.totalorder %v522, 0
      %v609 = vsub.s32 0, %v522
      %v610 = vsel %vm608, %v609, %v522
      %v611 = vshrl.u32 %v610, 4
      %v612 = vand.u32 %v610, 15
      %v613 = vsub.s32 0, %v612
      %v614 = vsel %vm608, %v613, %v612
      %vm615 = vcmp.lt.s32.totalorder %v523, 0
      %v616 = vsub.s32 0, %v523
      %v617 = vsel %vm615, %v616, %v523
      %v618 = vshrl.u32 %v617, 4
      %v619 = vand.u32 %v617, 15
      %v620 = vsub.s32 0, %v619
      %v621 = vsel %vm615, %v620, %v619
      %vm622 = vcmp.lt.s32.totalorder %v524, 0
      %v623 = vsub.s32 0, %v524
      %v624 = vsel %vm622, %v623, %v524
      %v625 = vshrl.u32 %v624, 4
      %v626 = vand.u32 %v624, 15
      %v627 = vsub.s32 0, %v626
      %v628 = vsel %vm622, %v627, %v626
      %vm629 = vcmp.lt.s32.totalorder %v525, 0
      %v630 = vsub.s32 0, %v525
      %v631 = vsel %vm629, %v630, %v525
      %v632 = vshrl.u32 %v631, 4
      %v633 = vand.u32 %v631, 15
      %v634 = vsub.s32 0, %v633
      %v635 = vsel %vm629, %v634, %v633
      %vm636 = vcmp.lt.s32.totalorder %v526, 0
      %v637 = vsub.s32 0, %v526
      %v638 = vsel %vm636, %v637, %v526
      %v639 = vshrl.u32 %v638, 4
      %v640 = vand.u32 %v638, 15
      %v641 = vsub.s32 0, %v640
      %v642 = vsel %vm636, %v641, %v640
      %vm643 = vcmp.lt.s32.totalorder %v527, 0
      %v644 = vsub.s32 0, %v527
      %v645 = vsel %vm643, %v644, %v527
      %v646 = vshrl.u32 %v645, 4
      %v647 = vand.u32 %v645, 15
      %v648 = vsub.s32 0, %v647
      %v649 = vsel %vm643, %v648, %v647
      %vm650 = vcmp.lt.s32.totalorder %v528, 0
      %v651 = vsub.s32 0, %v528
      %v652 = vsel %vm650, %v651, %v528
      %v653 = vshrl.u32 %v652, 4
      %v654 = vand.u32 %v652, 15
      %v655 = vsub.s32 0, %v654
      %v656 = vsel %vm650, %v655, %v654
      %vm657 = vcmp.lt.s32.totalorder %v529, 0
      %v658 = vsub.s32 0, %v529
      %v659 = vsel %vm657, %v658, %v529
      %v660 = vshrl.u32 %v659, 4
      %v661 = vand.u32 %v659, 15
      %v662 = vsub.s32 0, %v661
      %v663 = vsel %vm657, %v662, %v661
      %vm664 = vcmp.lt.s32.totalorder %v530, 0
      %v665 = vsub.s32 0, %v530
      %v666 = vsel %vm664, %v665, %v530
      %v667 = vshrl.u32 %v666, 4
      %v668 = vand.u32 %v666, 15
      %v669 = vsub.s32 0, %v668
      %v670 = vsel %vm664, %v669, %v668
      %vm671 = vcmp.ne.s32.totalorder %v537, 0
      %vm672 = vcmp.ne.s32.totalorder %v544, 0
      %vm673 = vcmp.ne.s32.totalorder %v551, 0
      %vm674 = vcmp.ne.s32.totalorder %v558, 0
      %vm675 = vcmp.ne.s32.totalorder %v565, 0
      %vm676 = vcmp.ne.s32.totalorder %v572, 0
      %vm677 = vcmp.ne.s32.totalorder %v579, 0
      %vm678 = vcmp.ne.s32.totalorder %v586, 0
      %vm679 = vcmp.ne.s32.totalorder %v593, 0
      %vm680 = vcmp.ne.s32.totalorder %v600, 0
      %vm681 = vcmp.ne.s32.totalorder %v607, 0
      %vm682 = vcmp.ne.s32.totalorder %v614, 0
      %vm683 = vcmp.ne.s32.totalorder %v621, 0
      %vm684 = vcmp.ne.s32.totalorder %v628, 0
      %vm685 = vcmp.ne.s32.totalorder %v635, 0
      %vm686 = vcmp.ne.s32.totalorder %v642, 0
      %vm687 = vcmp.ne.s32.totalorder %v649, 0
      %vm688 = vcmp.ne.s32.totalorder %v656, 0
      %vm689 = vcmp.ne.s32.totalorder %v663, 0
      %vm690 = vcmp.ne.s32.totalorder %v670, 0
      %vm691 = vcmp.lt.s32.totalorder %v537, 0
      %vm692 = vcmp.lt.s32.totalorder %v544, 0
      %vm693 = vcmp.lt.s32.totalorder %v551, 0
      %vm694 = vcmp.lt.s32.totalorder %v558, 0
      %vm695 = vcmp.lt.s32.totalorder %v565, 0
      %vm696 = vcmp.lt.s32.totalorder %v572, 0
      %vm697 = vcmp.lt.s32.totalorder %v579, 0
      %vm698 = vcmp.lt.s32.totalorder %v586, 0
      %vm699 = vcmp.lt.s32.totalorder %v593, 0
      %vm700 = vcmp.lt.s32.totalorder %v600, 0
      %vm701 = vcmp.lt.s32.totalorder %v607, 0
      %vm702 = vcmp.lt.s32.totalorder %v614, 0
      %vm703 = vcmp.lt.s32.totalorder %v621, 0
      %vm704 = vcmp.lt.s32.totalorder %v628, 0
      %vm705 = vcmp.lt.s32.totalorder %v635, 0
      %vm706 = vcmp.lt.s32.totalorder %v642, 0
      %vm707 = vcmp.lt.s32.totalorder %v649, 0
      %vm708 = vcmp.lt.s32.totalorder %v656, 0
      %vm709 = vcmp.lt.s32.totalorder %v663, 0
      %vm710 = vcmp.lt.s32.totalorder %v670, 0
      %vm711 = vmand %vm691, %vm671
      %vm712 = vmand %vm692, %vm672
      %vm713 = vmand %vm693, %vm673
      %vm714 = vmand %vm694, %vm674
      %vm715 = vmand %vm695, %vm675
      %vm716 = vmand %vm696, %vm676
      %vm717 = vmand %vm697, %vm677
      %vm718 = vmand %vm698, %vm678
      %vm719 = vmand %vm699, %vm679
      %vm720 = vmand %vm700, %vm680
      %vm721 = vmand %vm701, %vm681
      %vm722 = vmand %vm702, %vm682
      %vm723 = vmand %vm703, %vm683
      %vm724 = vmand %vm704, %vm684
      %vm725 = vmand %vm705, %vm685
      %vm726 = vmand %vm706, %vm686
      %vm727 = vmand %vm707, %vm687
      %vm728 = vmand %vm708, %vm688
      %vm729 = vmand %vm709, %vm689
      %vm730 = vmand %vm710, %vm690
      %v731 = vadd.s32 %v537, 16
      %v732 = vadd.s32 %v544, 16
      %v733 = vadd.s32 %v551, 16
      %v734 = vadd.s32 %v558, 16
      %v735 = vadd.s32 %v565, 16
      %v736 = vadd.s32 %v572, 16
      %v737 = vadd.s32 %v579, 16
      %v738 = vadd.s32 %v586, 16
      %v739 = vadd.s32 %v593, 16
      %v740 = vadd.s32 %v600, 16
      %v741 = vadd.s32 %v607, 16
      %v742 = vadd.s32 %v614, 16
      %v743 = vadd.s32 %v621, 16
      %v744 = vadd.s32 %v628, 16
      %v745 = vadd.s32 %v635, 16
      %v746 = vadd.s32 %v642, 16
      %v747 = vadd.s32 %v649, 16
      %v748 = vadd.s32 %v656, 16
      %v749 = vadd.s32 %v663, 16
      %v750 = vadd.s32 %v670, 16
      %v751 = vsel %vm711, %v731, %v537
      %v752 = vsel %vm712, %v732, %v544
      %v753 = vsel %vm713, %v733, %v551
      %v754 = vsel %vm714, %v734, %v558
      %v755 = vsel %vm715, %v735, %v565
      %v756 = vsel %vm716, %v736, %v572
      %v757 = vsel %vm717, %v737, %v579
      %v758 = vsel %vm718, %v738, %v586
      %v759 = vsel %vm719, %v739, %v593
      %v760 = vsel %vm720, %v740, %v600
      %v761 = vsel %vm721, %v741, %v607
      %v762 = vsel %vm722, %v742, %v614
      %v763 = vsel %vm723, %v743, %v621
      %v764 = vsel %vm724, %v744, %v628
      %v765 = vsel %vm725, %v745, %v635
      %v766 = vsel %vm726, %v746, %v642
      %v767 = vsel %vm727, %v747, %v649
      %v768 = vsel %vm728, %v748, %v656
      %v769 = vsel %vm729, %v749, %v663
      %v770 = vsel %vm730, %v750, %v670
      %vm771 = vcmp.gt.s32.totalorder %v751, 0
      %vm772 = vcmp.gt.s32.totalorder %v752, 0
      %vm773 = vcmp.gt.s32.totalorder %v753, 0
      %vm774 = vcmp.gt.s32.totalorder %v754, 0
      %vm775 = vcmp.gt.s32.totalorder %v755, 0
      %vm776 = vcmp.gt.s32.totalorder %v756, 0
      %vm777 = vcmp.gt.s32.totalorder %v757, 0
      %vm778 = vcmp.gt.s32.totalorder %v758, 0
      %vm779 = vcmp.gt.s32.totalorder %v759, 0
      %vm780 = vcmp.gt.s32.totalorder %v760, 0
      %vm781 = vcmp.gt.s32.totalorder %v761, 0
      %vm782 = vcmp.gt.s32.totalorder %v762, 0
      %vm783 = vcmp.gt.s32.totalorder %v763, 0
      %vm784 = vcmp.gt.s32.totalorder %v764, 0
      %vm785 = vcmp.gt.s32.totalorder %v765, 0
      %vm786 = vcmp.gt.s32.totalorder %v766, 0
      %vm787 = vcmp.gt.s32.totalorder %v767, 0
      %vm788 = vcmp.gt.s32.totalorder %v768, 0
      %vm789 = vcmp.gt.s32.totalorder %v769, 0
      %vm790 = vcmp.gt.s32.totalorder %v770, 0
      %v791 = vrot.slane %v502, 7
      %v792 = vrot.slane %v503, 7
      %v793 = vrot.slane %v474, 7
      %v794 = vrot.slane %v475, 7
      %v795 = vrot.slane %v476, 7
      %v796 = vrot.slane %v477, 7
      %v797 = vrot.slane %v478, 7
      %v798 = vrot.slane %v479, 7
      %v799 = vrot.slane %v480, 7
      %v800 = vrot.slane %v481, 7
      %v801 = vrot.slane %v482, 7
      %v802 = vrot.slane %v483, 7
      %v803 = vrot.slane %v484, 7
      %v804 = vrot.slane %v485, 7
      %v805 = vrot.slane %v486, 7
      %v806 = vrot.slane %v487, 7
      %v807 = vrot.slane %v488, 7
      %v808 = vrot.slane %v489, 7
      %v809 = vrot.slane %v508, 7
      %v810 = vrot.slane %v509, 7
      %vm811 = vcmp.lt.s32.totalorder %v511, 1
      %v812 = vsel %vm811, %v809, %v810
      %v813 = vsel %vm811, %v808, %v809
      %v814 = vsel %vm811, %v807, %v808
      %v815 = vsel %vm811, %v806, %v807
      %v816 = vsel %vm811, %v805, %v806
      %v817 = vsel %vm811, %v804, %v805
      %v818 = vsel %vm811, %v803, %v804
      %v819 = vsel %vm811, %v802, %v803
      %v820 = vsel %vm811, %v801, %v802
      %v821 = vsel %vm811, %v800, %v801
      %v822 = vsel %vm811, %v799, %v800
      %v823 = vsel %vm811, %v798, %v799
      %v824 = vsel %vm811, %v797, %v798
      %v825 = vsel %vm811, %v796, %v797
      %v826 = vsel %vm811, %v795, %v796
      %v827 = vsel %vm811, %v794, %v795
      %v828 = vsel %vm811, %v793, %v794
      %v829 = vsel %vm811, %v792, %v793
      %v830 = vsel %vm811, %v791, %v792
      %v831 = vsel %vm811, %v810, %v791
      %v832 = vsel %vm771, 1, 0
      %v833 = vsel %vm772, 1, 0
      %v834 = vsel %vm773, 1, 0
      %v835 = vsel %vm774, 1, 0
      %v836 = vsel %vm775, 1, 0
      %v837 = vsel %vm776, 1, 0
      %v838 = vsel %vm777, 1, 0
      %v839 = vsel %vm778, 1, 0
      %v840 = vsel %vm779, 1, 0
      %v841 = vsel %vm780, 1, 0
      %v842 = vsel %vm781, 1, 0
      %v843 = vsel %vm782, 1, 0
      %v844 = vsel %vm783, 1, 0
      %v845 = vsel %vm784, 1, 0
      %v846 = vsel %vm785, 1, 0
      %v847 = vsel %vm786, 1, 0
      %v848 = vsel %vm787, 1, 0
      %v849 = vsel %vm788, 1, 0
      %v850 = vsel %vm789, 1, 0
      %v851 = vsel %vm790, 1, 0
      %vm852 = vcmp.eq.s32.totalorder %v832, 1
      %vm853 = vcmp.eq.s32.totalorder %v833, 1
      %vm854 = vcmp.eq.s32.totalorder %v834, 1
      %vm855 = vcmp.eq.s32.totalorder %v835, 1
      %vm856 = vcmp.eq.s32.totalorder %v836, 1
      %vm857 = vcmp.eq.s32.totalorder %v837, 1
      %vm858 = vcmp.eq.s32.totalorder %v838, 1
      %vm859 = vcmp.eq.s32.totalorder %v839, 1
      %vm860 = vcmp.eq.s32.totalorder %v840, 1
      %vm861 = vcmp.eq.s32.totalorder %v841, 1
      %vm862 = vcmp.eq.s32.totalorder %v842, 1
      %vm863 = vcmp.eq.s32.totalorder %v843, 1
      %vm864 = vcmp.eq.s32.totalorder %v844, 1
      %vm865 = vcmp.eq.s32.totalorder %v845, 1
      %vm866 = vcmp.eq.s32.totalorder %v846, 1
      %vm867 = vcmp.eq.s32.totalorder %v847, 1
      %vm868 = vcmp.eq.s32.totalorder %v848, 1
      %vm869 = vcmp.eq.s32.totalorder %v849, 1
      %vm870 = vcmp.eq.s32.totalorder %v850, 1
      %vm871 = vcmp.eq.s32.totalorder %v851, 1
      %v872 = vsel %vm852, %v831, 0.0
      %v873 = vsel %vm853, %v830, 0.0
      %v874 = vsel %vm854, %v829, 0.0
      %v875 = vsel %vm855, %v828, 0.0
      %v876 = vsel %vm856, %v827, 0.0
      %v877 = vsel %vm857, %v826, 0.0
      %v878 = vsel %vm858, %v825, 0.0
      %v879 = vsel %vm859, %v824, 0.0
      %v880 = vsel %vm860, %v823, 0.0
      %v881 = vsel %vm861, %v822, 0.0
      %v882 = vsel %vm862, %v821, 0.0
      %v883 = vsel %vm863, %v820, 0.0
      %v884 = vsel %vm864, %v819, 0.0
      %v885 = vsel %vm865, %v818, 0.0
      %v886 = vsel %vm866, %v817, 0.0
      %v887 = vsel %vm867, %v816, 0.0
      %v888 = vsel %vm868, %v815, 0.0
      %v889 = vsel %vm869, %v814, 0.0
      %v890 = vsel %vm870, %v813, 0.0
      %v891 = vsel %vm871, %v812, 0.0
      %vm892 = vcmp.lt.s32.totalorder %v751, 15
      %vm893 = vcmp.lt.s32.totalorder %v752, 15
      %vm894 = vcmp.lt.s32.totalorder %v753, 15
      %vm895 = vcmp.lt.s32.totalorder %v754, 15
      %vm896 = vcmp.lt.s32.totalorder %v755, 15
      %vm897 = vcmp.lt.s32.totalorder %v756, 15
      %vm898 = vcmp.lt.s32.totalorder %v757, 15
      %vm899 = vcmp.lt.s32.totalorder %v758, 15
      %vm900 = vcmp.lt.s32.totalorder %v759, 15
      %vm901 = vcmp.lt.s32.totalorder %v760, 15
      %vm902 = vcmp.lt.s32.totalorder %v761, 15
      %vm903 = vcmp.lt.s32.totalorder %v762, 15
      %vm904 = vcmp.lt.s32.totalorder %v763, 15
      %vm905 = vcmp.lt.s32.totalorder %v764, 15
      %vm906 = vcmp.lt.s32.totalorder %v765, 15
      %vm907 = vcmp.lt.s32.totalorder %v766, 15
      %vm908 = vcmp.lt.s32.totalorder %v767, 15
      %vm909 = vcmp.lt.s32.totalorder %v768, 15
      %vm910 = vcmp.lt.s32.totalorder %v769, 15
      %vm911 = vcmp.lt.s32.totalorder %v770, 15
      %v912 = vrot.slane %v502, 1
      %v913 = vrot.slane %v503, 1
      %v914 = vrot.slane %v474, 1
      %v915 = vrot.slane %v475, 1
      %v916 = vrot.slane %v476, 1
      %v917 = vrot.slane %v477, 1
      %v918 = vrot.slane %v478, 1
      %v919 = vrot.slane %v479, 1
      %v920 = vrot.slane %v480, 1
      %v921 = vrot.slane %v481, 1
      %v922 = vrot.slane %v482, 1
      %v923 = vrot.slane %v483, 1
      %v924 = vrot.slane %v484, 1
      %v925 = vrot.slane %v485, 1
      %v926 = vrot.slane %v486, 1
      %v927 = vrot.slane %v487, 1
      %v928 = vrot.slane %v488, 1
      %v929 = vrot.slane %v489, 1
      %v930 = vrot.slane %v508, 1
      %v931 = vrot.slane %v509, 1
      %vm932 = vcmp.lt.s32.totalorder %v511, 7
      %v933 = vsel %vm932, %v930, %v931
      %v934 = vsel %vm932, %v929, %v930
      %v935 = vsel %vm932, %v928, %v929
      %v936 = vsel %vm932, %v927, %v928
      %v937 = vsel %vm932, %v926, %v927
      %v938 = vsel %vm932, %v925, %v926
      %v939 = vsel %vm932, %v924, %v925
      %v940 = vsel %vm932, %v923, %v924
      %v941 = vsel %vm932, %v922, %v923
      %v942 = vsel %vm932, %v921, %v922
      %v943 = vsel %vm932, %v920, %v921
      %v944 = vsel %vm932, %v919, %v920
      %v945 = vsel %vm932, %v918, %v919
      %v946 = vsel %vm932, %v917, %v918
      %v947 = vsel %vm932, %v916, %v917
      %v948 = vsel %vm932, %v915, %v916
      %v949 = vsel %vm932, %v914, %v915
      %v950 = vsel %vm932, %v913, %v914
      %v951 = vsel %vm932, %v912, %v913
      %v952 = vsel %vm932, %v931, %v912
      %v953 = vsel %vm892, 1, 0
      %v954 = vsel %vm893, 1, 0
      %v955 = vsel %vm894, 1, 0
      %v956 = vsel %vm895, 1, 0
      %v957 = vsel %vm896, 1, 0
      %v958 = vsel %vm897, 1, 0
      %v959 = vsel %vm898, 1, 0
      %v960 = vsel %vm899, 1, 0
      %v961 = vsel %vm900, 1, 0
      %v962 = vsel %vm901, 1, 0
      %v963 = vsel %vm902, 1, 0
      %v964 = vsel %vm903, 1, 0
      %v965 = vsel %vm904, 1, 0
      %v966 = vsel %vm905, 1, 0
      %v967 = vsel %vm906, 1, 0
      %v968 = vsel %vm907, 1, 0
      %v969 = vsel %vm908, 1, 0
      %v970 = vsel %vm909, 1, 0
      %v971 = vsel %vm910, 1, 0
      %v972 = vsel %vm911, 1, 0
      %vm973 = vcmp.eq.s32.totalorder %v953, 1
      %vm974 = vcmp.eq.s32.totalorder %v954, 1
      %vm975 = vcmp.eq.s32.totalorder %v955, 1
      %vm976 = vcmp.eq.s32.totalorder %v956, 1
      %vm977 = vcmp.eq.s32.totalorder %v957, 1
      %vm978 = vcmp.eq.s32.totalorder %v958, 1
      %vm979 = vcmp.eq.s32.totalorder %v959, 1
      %vm980 = vcmp.eq.s32.totalorder %v960, 1
      %vm981 = vcmp.eq.s32.totalorder %v961, 1
      %vm982 = vcmp.eq.s32.totalorder %v962, 1
      %vm983 = vcmp.eq.s32.totalorder %v963, 1
      %vm984 = vcmp.eq.s32.totalorder %v964, 1
      %vm985 = vcmp.eq.s32.totalorder %v965, 1
      %vm986 = vcmp.eq.s32.totalorder %v966, 1
      %vm987 = vcmp.eq.s32.totalorder %v967, 1
      %vm988 = vcmp.eq.s32.totalorder %v968, 1
      %vm989 = vcmp.eq.s32.totalorder %v969, 1
      %vm990 = vcmp.eq.s32.totalorder %v970, 1
      %vm991 = vcmp.eq.s32.totalorder %v971, 1
      %vm992 = vcmp.eq.s32.totalorder %v972, 1
      %v993 = vsel %vm973, %v951, 0.0
      %v994 = vsel %vm974, %v950, 0.0
      %v995 = vsel %vm975, %v949, 0.0
      %v996 = vsel %vm976, %v948, 0.0
      %v997 = vsel %vm977, %v947, 0.0
      %v998 = vsel %vm978, %v946, 0.0
      %v999 = vsel %vm979, %v945, 0.0
      %v1000 = vsel %vm980, %v944, 0.0
      %v1001 = vsel %vm981, %v943, 0.0
      %v1002 = vsel %vm982, %v942, 0.0
      %v1003 = vsel %vm983, %v941, 0.0
      %v1004 = vsel %vm984, %v940, 0.0
      %v1005 = vsel %vm985, %v939, 0.0
      %v1006 = vsel %vm986, %v938, 0.0
      %v1007 = vsel %vm987, %v937, 0.0
      %v1008 = vsel %vm988, %v936, 0.0
      %v1009 = vsel %vm989, %v935, 0.0
      %v1010 = vsel %vm990, %v934, 0.0
      %v1011 = vsel %vm991, %v933, 0.0
      %v1012 = vsel %vm992, %v952, 0.0
      %v1013 = vpack.c.bf16 %v873, %v872
      %v1014 = vpack.c.bf16 %v875, %v874
      %v1015 = vpack.c.bf16 %v877, %v876
      %v1016 = vpack.c.bf16 %v879, %v878
      %v1017 = vpack.c.bf16 %v881, %v880
      %v1018 = vpack.c.bf16 %v883, %v882
      %v1019 = vpack.c.bf16 %v885, %v884
      %v1020 = vpack.c.bf16 %v887, %v886
      %v1021 = vpack.c.bf16 %v889, %v888
      %v1022 = vpack.c.bf16 %v891, %v890
      %v1023 = vpack.c.bf16 %v503, %v502
      %v1024 = vpack.c.bf16 %v475, %v474
      %v1025 = vpack.c.bf16 %v477, %v476
      %v1026 = vpack.c.bf16 %v479, %v478
      %v1027 = vpack.c.bf16 %v481, %v480
      %v1028 = vpack.c.bf16 %v483, %v482
      %v1029 = vpack.c.bf16 %v485, %v484
      %v1030 = vpack.c.bf16 %v487, %v486
      %v1031 = vpack.c.bf16 %v489, %v488
      %v1032 = vpack.c.bf16 %v509, %v508
      %v1033 = vpack.c.bf16 %v994, %v993
      %v1034 = vpack.c.bf16 %v996, %v995
      %v1035 = vpack.c.bf16 %v998, %v997
      %v1036 = vpack.c.bf16 %v1000, %v999
      %v1037 = vpack.c.bf16 %v1002, %v1001
      %v1038 = vpack.c.bf16 %v1004, %v1003
      %v1039 = vpack.c.bf16 %v1006, %v1005
      %v1040 = vpack.c.bf16 %v1008, %v1007
      %v1041 = vpack.c.bf16 %v1010, %v1009
      %v1042 = vpack.c.bf16 %v1012, %v1011
      %v1043 = vld [vmem:[%s3] sm:$0xf]
      %v1044 = vld [vmem:[%s3 + $0x4] sm:$0xf]
      %v1045 = vld [vmem:[%s3 + $0x8] sm:$0xf]
      %v1046 = vld [vmem:[%s3 + $0xc] sm:$0xf]
      %v1047 = vld [vmem:[%s3 + $0x10] sm:$0xf]
      %v1048 = vld [vmem:[%s3 + $0x14] sm:$0xf]
      %v1049 = vld [vmem:[%s3 + $0x18] sm:$0xf]
      %v1050 = vld [vmem:[%s3 + $0x1c] sm:$0xf]
      %v1051 = vld [vmem:[%s3 + $0x20] sm:$0xf]
      %v1052 = vld [vmem:[%s3 + $0x24] sm:$0xf]
      %v1053 = vld [vmem:[%s3 + $0x28] sm:$0xf]
      %v1054 = vld [vmem:[%s3 + $0x2c] sm:$0xf]
      %v1055 = vld [vmem:[%s3 + $0x30] sm:$0xf]
      %v1056 = vld [vmem:[%s3 + $0x34] sm:$0xf]
      %v1057 = vld [vmem:[%s3 + $0x38] sm:$0xf]
      %v1058 = vld [vmem:[%s3 + $0x3c] sm:$0xf]
      %s1059 = scalar_lea.vmem %s3, 64
      %v1060 = vld [vmem:[%s1059] sm:$0xf]
      %v1061 = vld [vmem:[%s1059 + $0x4] sm:$0xf]
      %v1062 = vld [vmem:[%s1059 + $0x8] sm:$0xf]
      %v1063 = vld [vmem:[%s1059 + $0xc] sm:$0xf]
      %v1064 = vld [vmem:[%s1059 + $0x10] sm:$0xf]
      %v1065 = vld [vmem:[%s1059 + $0x14] sm:$0xf]
      %v1066 = vld [vmem:[%s1059 + $0x18] sm:$0xf]
      %v1067 = vld [vmem:[%s1059 + $0x1c] sm:$0xf]
      %v1068 = vld [vmem:[%s1059 + $0x20] sm:$0xf]
      %v1069 = vld [vmem:[%s1059 + $0x24] sm:$0xf]
      %v1070 = vld [vmem:[%s1059 + $0x28] sm:$0xf]
      %v1071 = vld [vmem:[%s1059 + $0x2c] sm:$0xf]
      %v1072 = vld [vmem:[%s1059 + $0x30] sm:$0xf]
      %v1073 = vld [vmem:[%s1059 + $0x34] sm:$0xf]
      %v1074 = vld [vmem:[%s1059 + $0x38] sm:$0xf]
      %v1075 = vld [vmem:[%s1059 + $0x3c] sm:$0xf]
      %v1092 = vunpack.c.l.b16 %v1060
      %v1093 = vunpack.c.l.b16 %v1061
      %v1094 = vunpack.c.l.b16 %v1062
      %v1095 = vunpack.c.l.b16 %v1063
      %v1096 = vunpack.c.l.b16 %v1064
      %v1097 = vunpack.c.l.b16 %v1065
      %v1098 = vunpack.c.l.b16 %v1066
      %v1099 = vunpack.c.l.b16 %v1067
      %v1100 = vunpack.c.l.b16 %v1068
      %v1101 = vunpack.c.l.b16 %v1069
      %v1102 = vunpack.c.l.b16 %v1070
      %v1103 = vunpack.c.l.b16 %v1071
      %v1104 = vunpack.c.l.b16 %v1072
      %v1105 = vunpack.c.l.b16 %v1073
      %v1106 = vunpack.c.l.b16 %v1074
      %v1107 = vunpack.c.l.b16 %v1075
      %v1108 = vpack.c.b16 %v1093, %v1092
      %v1109 = vpack.c.b16 %v1095, %v1094
      %v1110 = vpack.c.b16 %v1097, %v1096
      %v1111 = vpack.c.b16 %v1099, %v1098
      %v1112 = vpack.c.b16 %v1101, %v1100
      %v1113 = vpack.c.b16 %v1103, %v1102
      %v1114 = vpack.c.b16 %v1105, %v1104
      %v1115 = vpack.c.b16 %v1107, %v1106
      %1124 = vmatprep.subr.bf16.mxu0 0
      %1125 = vmatpush1.bf16.msra.mxu0 %v1115
      %1126 = vmatprep.subr.bf16.mxu0 0
      %1127 = vmatpush1.bf16.msra.mxu0 %v1114
      %1128 = vmatprep.subr.bf16.mxu0 0
      %1129 = vmatpush1.bf16.msra.mxu0 %v1113
      %1130 = vmatprep.subr.bf16.mxu0 0
      %1131 = vmatpush1.bf16.msra.mxu0 %v1112
      %1132 = vmatprep.subr.bf16.mxu0 0
      %1133 = vmatpush1.bf16.msra.mxu0 %v1111
      %1134 = vmatprep.subr.bf16.mxu0 0
      %1135 = vmatpush1.bf16.msra.mxu0 %v1110
      %1136 = vmatprep.subr.bf16.mxu0 0
      %1137 = vmatpush1.bf16.msra.mxu0 %v1109
      %1138 = vmatprep.subr.bf16.mxu0 0
      %1139 = vmatpush1.bf16.msra.mxu0 %v1108
      %1140 = vmatprep.subr.bf16.mxu0 0
      %1141 = vmatpush2.bf16.msra.mxu0 0
      %1142 = vmatprep.subr.bf16.mxu0 0
      %1143 = vmatpush2.bf16.msra.mxu0 0
      %1144 = vmatprep.subr.bf16.mxu0 0
      %1145 = vmatpush2.bf16.msra.mxu0 0
      %1146 = vmatprep.subr.bf16.mxu0 0
      %1147 = vmatpush2.bf16.msra.mxu0 0
      %1148 = vmatprep.subr.bf16.mxu0 0
      %1149 = vmatpush2.bf16.msra.mxu0 0
      %1150 = vmatprep.subr.bf16.mxu0 0
      %1151 = vmatpush2.bf16.msra.mxu0 0
      %1152 = vmatprep.subr.bf16.mxu0 0
      %1153 = vmatpush2.bf16.msra.mxu0 0
      %1154 = vmatprep.subr.bf16.mxu0 0
      %1155 = vmatpush2.bf16.msra.mxu0 0
      %1156 = vmatprep.mubr.bf16.mxu0 0
      %1157 = vmatmul.mubr.bf16.gmra.mxu0 %v1023
      %v1158 = vpop.f32.mrf.mxu0
      %v1159 = vadd.f32 0.0, %v1158
      %v1160 = vpop.f32.mrf.mxu0
      %v1161 = vpop.f32.mrf.mxu0
      %v1162 = vadd.f32 0.0, %v1161
      %v1163 = vpop.f32.mrf.mxu0
      %1164 = vmatprep.mubr.bf16.mxu0 0
      %1165 = vmatmul.mubr.bf16.gmra.mxu0 %v1024
      %v1166 = vpop.f32.mrf.mxu0
      %v1167 = vadd.f32 0.0, %v1166
      %v1168 = vpop.f32.mrf.mxu0
      %v1169 = vpop.f32.mrf.mxu0
      %v1170 = vadd.f32 0.0, %v1169
      %v1171 = vpop.f32.mrf.mxu0
      %1172 = vmatprep.mubr.bf16.mxu0 0
      %1173 = vmatmul.mubr.bf16.gmra.mxu0 %v1025
      %v1174 = vpop.f32.mrf.mxu0
      %v1175 = vadd.f32 0.0, %v1174
      %v1176 = vpop.f32.mrf.mxu0
      %v1177 = vpop.f32.mrf.mxu0
      %v1178 = vadd.f32 0.0, %v1177
      %v1179 = vpop.f32.mrf.mxu0
      %1180 = vmatprep.mubr.bf16.mxu0 0
      %1181 = vmatmul.mubr.bf16.gmra.mxu0 %v1026
      %v1182 = vpop.f32.mrf.mxu0
      %v1183 = vadd.f32 0.0, %v1182
      %v1184 = vpop.f32.mrf.mxu0
      %v1185 = vpop.f32.mrf.mxu0
      %v1186 = vadd.f32 0.0, %v1185
      %v1187 = vpop.f32.mrf.mxu0
      %1188 = vmatprep.mubr.bf16.mxu0 0
      %1189 = vmatmul.mubr.bf16.gmra.mxu0 %v1027
      %v1190 = vpop.f32.mrf.mxu0
      %v1191 = vadd.f32 0.0, %v1190
      %v1192 = vpop.f32.mrf.mxu0
      %v1193 = vpop.f32.mrf.mxu0
      %v1194 = vadd.f32 0.0, %v1193
      %v1195 = vpop.f32.mrf.mxu0
      %1196 = vmatprep.mubr.bf16.mxu0 0
      %1197 = vmatmul.mubr.bf16.gmra.mxu0 %v1028
      %v1198 = vpop.f32.mrf.mxu0
      %v1199 = vadd.f32 0.0, %v1198
      %v1200 = vpop.f32.mrf.mxu0
      %v1201 = vpop.f32.mrf.mxu0
      %v1202 = vadd.f32 0.0, %v1201
      %v1203 = vpop.f32.mrf.mxu0
      %1204 = vmatprep.mubr.bf16.mxu0 0
      %1205 = vmatmul.mubr.bf16.gmra.mxu0 %v1029
      %v1206 = vpop.f32.mrf.mxu0
      %v1207 = vadd.f32 0.0, %v1206
      %v1208 = vpop.f32.mrf.mxu0
      %v1209 = vpop.f32.mrf.mxu0
      %v1210 = vadd.f32 0.0, %v1209
      %v1211 = vpop.f32.mrf.mxu0
      %1212 = vmatprep.mubr.bf16.mxu0 0
      %1213 = vmatmul.mubr.bf16.gmra.mxu0 %v1030
      %v1214 = vpop.f32.mrf.mxu0
      %v1215 = vadd.f32 0.0, %v1214
      %v1216 = vpop.f32.mrf.mxu0
      %v1217 = vpop.f32.mrf.mxu0
      %v1218 = vadd.f32 0.0, %v1217
      %v1219 = vpop.f32.mrf.mxu0
      %1220 = vdwg.mxu0
      %v1237 = vunpack.c.l.b16 %v1043
      %v1238 = vunpack.c.l.b16 %v1044
      %v1239 = vunpack.c.l.b16 %v1045
      %v1240 = vunpack.c.l.b16 %v1046
      %v1241 = vunpack.c.l.b16 %v1047
      %v1242 = vunpack.c.l.b16 %v1048
      %v1243 = vunpack.c.l.b16 %v1049
      %v1244 = vunpack.c.l.b16 %v1050
      %v1245 = vunpack.c.l.b16 %v1051
      %v1246 = vunpack.c.l.b16 %v1052
      %v1247 = vunpack.c.l.b16 %v1053
      %v1248 = vunpack.c.l.b16 %v1054
      %v1249 = vunpack.c.l.b16 %v1055
      %v1250 = vunpack.c.l.b16 %v1056
      %v1251 = vunpack.c.l.b16 %v1057
      %v1252 = vunpack.c.l.b16 %v1058
      %v1253 = vpack.c.b16 %v1238, %v1237
      %v1254 = vpack.c.b16 %v1240, %v1239
      %v1255 = vpack.c.b16 %v1242, %v1241
      %v1256 = vpack.c.b16 %v1244, %v1243
      %v1257 = vpack.c.b16 %v1246, %v1245
      %v1258 = vpack.c.b16 %v1248, %v1247
      %v1259 = vpack.c.b16 %v1250, %v1249
      %v1260 = vpack.c.b16 %v1252, %v1251
      %1269 = vmatprep.subr.bf16.mxu0 0
      %1270 = vmatpush1.bf16.msra.mxu0 %v1260
      %1271 = vmatprep.subr.bf16.mxu0 0
      %1272 = vmatpush1.bf16.msra.mxu0 %v1259
      %1273 = vmatprep.subr.bf16.mxu0 0
      %1274 = vmatpush1.bf16.msra.mxu0 %v1258
      %1275 = vmatprep.subr.bf16.mxu0 0
      %1276 = vmatpush1.bf16.msra.mxu0 %v1257
      %1277 = vmatprep.subr.bf16.mxu0 0
      %1278 = vmatpush1.bf16.msra.mxu0 %v1256
      %1279 = vmatprep.subr.bf16.mxu0 0
      %1280 = vmatpush1.bf16.msra.mxu0 %v1255
      %1281 = vmatprep.subr.bf16.mxu0 0
      %1282 = vmatpush1.bf16.msra.mxu0 %v1254
      %1283 = vmatprep.subr.bf16.mxu0 0
      %1284 = vmatpush1.bf16.msra.mxu0 %v1253
      %1285 = vmatprep.subr.bf16.mxu0 0
      %1286 = vmatpush2.bf16.msra.mxu0 0
      %1287 = vmatprep.subr.bf16.mxu0 0
      %1288 = vmatpush2.bf16.msra.mxu0 0
      %1289 = vmatprep.subr.bf16.mxu0 0
      %1290 = vmatpush2.bf16.msra.mxu0 0
      %1291 = vmatprep.subr.bf16.mxu0 0
      %1292 = vmatpush2.bf16.msra.mxu0 0
      %1293 = vmatprep.subr.bf16.mxu0 0
      %1294 = vmatpush2.bf16.msra.mxu0 0
      %1295 = vmatprep.subr.bf16.mxu0 0
      %1296 = vmatpush2.bf16.msra.mxu0 0
      %1297 = vmatprep.subr.bf16.mxu0 0
      %1298 = vmatpush2.bf16.msra.mxu0 0
      %1299 = vmatprep.subr.bf16.mxu0 0
      %1300 = vmatpush2.bf16.msra.mxu0 0
      %1301 = vmatprep.mubr.bf16.mxu0 0
      %1302 = vmatmul.mubr.bf16.gmra.mxu0 %v1013
      %v1303 = vpop.f32.mrf.mxu0
      %v1304 = vadd.f32 %v1159, %v1303
      %v1305 = vpop.f32.mrf.mxu0
      %v1306 = vpop.f32.mrf.mxu0
      %v1307 = vadd.f32 %v1162, %v1306
      %v1308 = vpop.f32.mrf.mxu0
      %1309 = vmatprep.mubr.bf16.mxu0 0
      %1310 = vmatmul.mubr.bf16.gmra.mxu0 %v1014
      %v1311 = vpop.f32.mrf.mxu0
      %v1312 = vadd.f32 %v1167, %v1311
      %v1313 = vpop.f32.mrf.mxu0
      %v1314 = vpop.f32.mrf.mxu0
      %v1315 = vadd.f32 %v1170, %v1314
      %v1316 = vpop.f32.mrf.mxu0
      %1317 = vmatprep.mubr.bf16.mxu0 0
      %1318 = vmatmul.mubr.bf16.gmra.mxu0 %v1015
      %v1319 = vpop.f32.mrf.mxu0
      %v1320 = vadd.f32 %v1175, %v1319
      %v1321 = vpop.f32.mrf.mxu0
      %v1322 = vpop.f32.mrf.mxu0
      %v1323 = vadd.f32 %v1178, %v1322
      %v1324 = vpop.f32.mrf.mxu0
      %1325 = vmatprep.mubr.bf16.mxu0 0
      %1326 = vmatmul.mubr.bf16.gmra.mxu0 %v1016
      %v1327 = vpop.f32.mrf.mxu0
      %v1328 = vadd.f32 %v1183, %v1327
      %v1329 = vpop.f32.mrf.mxu0
      %v1330 = vpop.f32.mrf.mxu0
      %v1331 = vadd.f32 %v1186, %v1330
      %v1332 = vpop.f32.mrf.mxu0
      %1333 = vmatprep.mubr.bf16.mxu0 0
      %1334 = vmatmul.mubr.bf16.gmra.mxu0 %v1017
      %v1335 = vpop.f32.mrf.mxu0
      %v1336 = vadd.f32 %v1191, %v1335
      %v1337 = vpop.f32.mrf.mxu0
      %v1338 = vpop.f32.mrf.mxu0
      %v1339 = vadd.f32 %v1194, %v1338
      %v1340 = vpop.f32.mrf.mxu0
      %1341 = vmatprep.mubr.bf16.mxu0 0
      %1342 = vmatmul.mubr.bf16.gmra.mxu0 %v1018
      %v1343 = vpop.f32.mrf.mxu0
      %v1344 = vadd.f32 %v1199, %v1343
      %v1345 = vpop.f32.mrf.mxu0
      %v1346 = vpop.f32.mrf.mxu0
      %v1347 = vadd.f32 %v1202, %v1346
      %v1348 = vpop.f32.mrf.mxu0
      %1349 = vmatprep.mubr.bf16.mxu0 0
      %1350 = vmatmul.mubr.bf16.gmra.mxu0 %v1019
      %v1351 = vpop.f32.mrf.mxu0
      %v1352 = vadd.f32 %v1207, %v1351
      %v1353 = vpop.f32.mrf.mxu0
      %v1354 = vpop.f32.mrf.mxu0
      %v1355 = vadd.f32 %v1210, %v1354
      %v1356 = vpop.f32.mrf.mxu0
      %1357 = vmatprep.mubr.bf16.mxu0 0
      %1358 = vmatmul.mubr.bf16.gmra.mxu0 %v1020
      %v1359 = vpop.f32.mrf.mxu0
      %v1360 = vadd.f32 %v1215, %v1359
      %v1361 = vpop.f32.mrf.mxu0
      %v1362 = vpop.f32.mrf.mxu0
      %v1363 = vadd.f32 %v1218, %v1362
      %v1364 = vpop.f32.mrf.mxu0
      %1365 = vdwg.mxu0
      %s1366 = scalar_lea.vmem %s3, 128
      %v1367 = vld [vmem:[%s1366] sm:$0xf]
      %v1368 = vld [vmem:[%s1366 + $0x4] sm:$0xf]
      %v1369 = vld [vmem:[%s1366 + $0x8] sm:$0xf]
      %v1370 = vld [vmem:[%s1366 + $0xc] sm:$0xf]
      %v1371 = vld [vmem:[%s1366 + $0x10] sm:$0xf]
      %v1372 = vld [vmem:[%s1366 + $0x14] sm:$0xf]
      %v1373 = vld [vmem:[%s1366 + $0x18] sm:$0xf]
      %v1374 = vld [vmem:[%s1366 + $0x1c] sm:$0xf]
      %v1375 = vld [vmem:[%s1366 + $0x20] sm:$0xf]
      %v1376 = vld [vmem:[%s1366 + $0x24] sm:$0xf]
      %v1377 = vld [vmem:[%s1366 + $0x28] sm:$0xf]
      %v1378 = vld [vmem:[%s1366 + $0x2c] sm:$0xf]
      %v1379 = vld [vmem:[%s1366 + $0x30] sm:$0xf]
      %v1380 = vld [vmem:[%s1366 + $0x34] sm:$0xf]
      %v1381 = vld [vmem:[%s1366 + $0x38] sm:$0xf]
      %v1382 = vld [vmem:[%s1366 + $0x3c] sm:$0xf]
      %v1399 = vunpack.c.l.b16 %v1367
      %v1400 = vunpack.c.l.b16 %v1368
      %v1401 = vunpack.c.l.b16 %v1369
      %v1402 = vunpack.c.l.b16 %v1370
      %v1403 = vunpack.c.l.b16 %v1371
      %v1404 = vunpack.c.l.b16 %v1372
      %v1405 = vunpack.c.l.b16 %v1373
      %v1406 = vunpack.c.l.b16 %v1374
      %v1407 = vunpack.c.l.b16 %v1375
      %v1408 = vunpack.c.l.b16 %v1376
      %v1409 = vunpack.c.l.b16 %v1377
      %v1410 = vunpack.c.l.b16 %v1378
      %v1411 = vunpack.c.l.b16 %v1379
      %v1412 = vunpack.c.l.b16 %v1380
      %v1413 = vunpack.c.l.b16 %v1381
      %v1414 = vunpack.c.l.b16 %v1382
      %v1415 = vpack.c.b16 %v1400, %v1399
      %v1416 = vpack.c.b16 %v1402, %v1401
      %v1417 = vpack.c.b16 %v1404, %v1403
      %v1418 = vpack.c.b16 %v1406, %v1405
      %v1419 = vpack.c.b16 %v1408, %v1407
      %v1420 = vpack.c.b16 %v1410, %v1409
      %v1421 = vpack.c.b16 %v1412, %v1411
      %v1422 = vpack.c.b16 %v1414, %v1413
      %1431 = vmatprep.subr.bf16.mxu0 0
      %1432 = vmatpush1.bf16.msra.mxu0 %v1422
      %1433 = vmatprep.subr.bf16.mxu0 0
      %1434 = vmatpush1.bf16.msra.mxu0 %v1421
      %1435 = vmatprep.subr.bf16.mxu0 0
      %1436 = vmatpush1.bf16.msra.mxu0 %v1420
      %1437 = vmatprep.subr.bf16.mxu0 0
      %1438 = vmatpush1.bf16.msra.mxu0 %v1419
      %1439 = vmatprep.subr.bf16.mxu0 0
      %1440 = vmatpush1.bf16.msra.mxu0 %v1418
      %1441 = vmatprep.subr.bf16.mxu0 0
      %1442 = vmatpush1.bf16.msra.mxu0 %v1417
      %1443 = vmatprep.subr.bf16.mxu0 0
      %1444 = vmatpush1.bf16.msra.mxu0 %v1416
      %1445 = vmatprep.subr.bf16.mxu0 0
      %1446 = vmatpush1.bf16.msra.mxu0 %v1415
      %1447 = vmatprep.subr.bf16.mxu0 0
      %1448 = vmatpush2.bf16.msra.mxu0 0
      %1449 = vmatprep.subr.bf16.mxu0 0
      %1450 = vmatpush2.bf16.msra.mxu0 0
      %1451 = vmatprep.subr.bf16.mxu0 0
      %1452 = vmatpush2.bf16.msra.mxu0 0
      %1453 = vmatprep.subr.bf16.mxu0 0
      %1454 = vmatpush2.bf16.msra.mxu0 0
      %1455 = vmatprep.subr.bf16.mxu0 0
      %1456 = vmatpush2.bf16.msra.mxu0 0
      %1457 = vmatprep.subr.bf16.mxu0 0
      %1458 = vmatpush2.bf16.msra.mxu0 0
      %1459 = vmatprep.subr.bf16.mxu0 0
      %1460 = vmatpush2.bf16.msra.mxu0 0
      %1461 = vmatprep.subr.bf16.mxu0 0
      %1462 = vmatpush2.bf16.msra.mxu0 0
      %1463 = vmatprep.mubr.bf16.mxu0 0
      %1464 = vmatmul.mubr.bf16.gmra.mxu0 %v1033
      %v1465 = vpop.f32.mrf.mxu0
      %v1466 = vadd.f32 0.0, %v1465
      %v1467 = vpop.f32.mrf.mxu0
      %v1468 = vpop.f32.mrf.mxu0
      %v1469 = vadd.f32 0.0, %v1468
      %v1470 = vpop.f32.mrf.mxu0
      %1471 = vmatprep.mubr.bf16.mxu0 0
      %1472 = vmatmul.mubr.bf16.gmra.mxu0 %v1034
      %v1473 = vpop.f32.mrf.mxu0
      %v1474 = vadd.f32 0.0, %v1473
      %v1475 = vpop.f32.mrf.mxu0
      %v1476 = vpop.f32.mrf.mxu0
      %v1477 = vadd.f32 0.0, %v1476
      %v1478 = vpop.f32.mrf.mxu0
      %1479 = vmatprep.mubr.bf16.mxu0 0
      %1480 = vmatmul.mubr.bf16.gmra.mxu0 %v1035
      %v1481 = vpop.f32.mrf.mxu0
      %v1482 = vadd.f32 0.0, %v1481
      %v1483 = vpop.f32.mrf.mxu0
      %v1484 = vpop.f32.mrf.mxu0
      %v1485 = vadd.f32 0.0, %v1484
      %v1486 = vpop.f32.mrf.mxu0
      %1487 = vmatprep.mubr.bf16.mxu0 0
      %1488 = vmatmul.mubr.bf16.gmra.mxu0 %v1036
      %v1489 = vpop.f32.mrf.mxu0
      %v1490 = vadd.f32 0.0, %v1489
      %v1491 = vpop.f32.mrf.mxu0
      %v1492 = vpop.f32.mrf.mxu0
      %v1493 = vadd.f32 0.0, %v1492
      %v1494 = vpop.f32.mrf.mxu0
      %1495 = vmatprep.mubr.bf16.mxu0 0
      %1496 = vmatmul.mubr.bf16.gmra.mxu0 %v1037
      %v1497 = vpop.f32.mrf.mxu0
      %v1498 = vadd.f32 0.0, %v1497
      %v1499 = vpop.f32.mrf.mxu0
      %v1500 = vpop.f32.mrf.mxu0
      %v1501 = vadd.f32 0.0, %v1500
      %v1502 = vpop.f32.mrf.mxu0
      %1503 = vmatprep.mubr.bf16.mxu0 0
      %1504 = vmatmul.mubr.bf16.gmra.mxu0 %v1038
      %v1505 = vpop.f32.mrf.mxu0
      %v1506 = vadd.f32 0.0, %v1505
      %v1507 = vpop.f32.mrf.mxu0
      %v1508 = vpop.f32.mrf.mxu0
      %v1509 = vadd.f32 0.0, %v1508
      %v1510 = vpop.f32.mrf.mxu0
      %1511 = vmatprep.mubr.bf16.mxu0 0
      %1512 = vmatmul.mubr.bf16.gmra.mxu0 %v1039
      %v1513 = vpop.f32.mrf.mxu0
      %v1514 = vadd.f32 0.0, %v1513
      %v1515 = vpop.f32.mrf.mxu0
      %v1516 = vpop.f32.mrf.mxu0
      %v1517 = vadd.f32 0.0, %v1516
      %v1518 = vpop.f32.mrf.mxu0
      %1519 = vmatprep.mubr.bf16.mxu0 0
      %1520 = vmatmul.mubr.bf16.gmra.mxu0 %v1040
      %v1521 = vpop.f32.mrf.mxu0
      %v1522 = vadd.f32 0.0, %v1521
      %v1523 = vpop.f32.mrf.mxu0
      %v1524 = vpop.f32.mrf.mxu0
      %v1525 = vadd.f32 0.0, %v1524
      %v1526 = vpop.f32.mrf.mxu0
      %1527 = vdwg.mxu0
      %v1528 = vadd.f32 %v1304, %v1466
      %v1529 = vadd.f32 %v1307, %v1469
      %v1530 = vadd.f32 %v1312, %v1474
      %v1531 = vadd.f32 %v1315, %v1477
      %v1532 = vadd.f32 %v1320, %v1482
      %v1533 = vadd.f32 %v1323, %v1485
      %v1534 = vadd.f32 %v1328, %v1490
      %v1535 = vadd.f32 %v1331, %v1493
      %v1536 = vadd.f32 %v1336, %v1498
      %v1537 = vadd.f32 %v1339, %v1501
      %v1538 = vadd.f32 %v1344, %v1506
      %v1539 = vadd.f32 %v1347, %v1509
      %v1540 = vadd.f32 %v1352, %v1514
      %v1541 = vadd.f32 %v1355, %v1517
      %v1542 = vadd.f32 %v1360, %v1522
      %v1543 = vadd.f32 %v1363, %v1525
      %s1544 = scalar_lea.vmem %s3, 192
      %v1545 = vld [vmem:[%s1544] sm:$0xf]
      %v1546 = vld [vmem:[%s1544 + $0x4] sm:$0xf]
      %v1547 = vld [vmem:[%s1544 + $0x8] sm:$0xf]
      %v1548 = vld [vmem:[%s1544 + $0xc] sm:$0xf]
      %v1549 = vld [vmem:[%s1544 + $0x10] sm:$0xf]
      %v1550 = vld [vmem:[%s1544 + $0x14] sm:$0xf]
      %v1551 = vld [vmem:[%s1544 + $0x18] sm:$0xf]
      %v1552 = vld [vmem:[%s1544 + $0x1c] sm:$0xf]
      %v1553 = vld [vmem:[%s1544 + $0x20] sm:$0xf]
      %v1554 = vld [vmem:[%s1544 + $0x24] sm:$0xf]
      %v1555 = vld [vmem:[%s1544 + $0x28] sm:$0xf]
      %v1556 = vld [vmem:[%s1544 + $0x2c] sm:$0xf]
      %v1557 = vld [vmem:[%s1544 + $0x30] sm:$0xf]
      %v1558 = vld [vmem:[%s1544 + $0x34] sm:$0xf]
      %v1559 = vld [vmem:[%s1544 + $0x38] sm:$0xf]
      %v1560 = vld [vmem:[%s1544 + $0x3c] sm:$0xf]
      %v1577 = vunpack.c.l.b16 %v1545
      %v1578 = vunpack.c.l.b16 %v1546
      %v1579 = vunpack.c.l.b16 %v1547
      %v1580 = vunpack.c.l.b16 %v1548
      %v1581 = vunpack.c.l.b16 %v1549
      %v1582 = vunpack.c.l.b16 %v1550
      %v1583 = vunpack.c.l.b16 %v1551
      %v1584 = vunpack.c.l.b16 %v1552
      %v1585 = vunpack.c.l.b16 %v1553
      %v1586 = vunpack.c.l.b16 %v1554
      %v1587 = vunpack.c.l.b16 %v1555
      %v1588 = vunpack.c.l.b16 %v1556
      %v1589 = vunpack.c.l.b16 %v1557
      %v1590 = vunpack.c.l.b16 %v1558
      %v1591 = vunpack.c.l.b16 %v1559
      %v1592 = vunpack.c.l.b16 %v1560
      %v1593 = vpack.c.b16 %v1578, %v1577
      %v1594 = vpack.c.b16 %v1580, %v1579
      %v1595 = vpack.c.b16 %v1582, %v1581
      %v1596 = vpack.c.b16 %v1584, %v1583
      %v1597 = vpack.c.b16 %v1586, %v1585
      %v1598 = vpack.c.b16 %v1588, %v1587
      %v1599 = vpack.c.b16 %v1590, %v1589
      %v1600 = vpack.c.b16 %v1592, %v1591
      %1609 = vmatprep.subr.bf16.mxu0 0
      %1610 = vmatpush1.bf16.msra.mxu0 %v1600
      %1611 = vmatprep.subr.bf16.mxu0 0
      %1612 = vmatpush1.bf16.msra.mxu0 %v1599
      %1613 = vmatprep.subr.bf16.mxu0 0
      %1614 = vmatpush1.bf16.msra.mxu0 %v1598
      %1615 = vmatprep.subr.bf16.mxu0 0
      %1616 = vmatpush1.bf16.msra.mxu0 %v1597
      %1617 = vmatprep.subr.bf16.mxu0 0
      %1618 = vmatpush1.bf16.msra.mxu0 %v1596
      %1619 = vmatprep.subr.bf16.mxu0 0
      %1620 = vmatpush1.bf16.msra.mxu0 %v1595
      %1621 = vmatprep.subr.bf16.mxu0 0
      %1622 = vmatpush1.bf16.msra.mxu0 %v1594
      %1623 = vmatprep.subr.bf16.mxu0 0
      %1624 = vmatpush1.bf16.msra.mxu0 %v1593
      %1625 = vmatprep.subr.bf16.mxu0 0
      %1626 = vmatpush2.bf16.msra.mxu0 0
      %1627 = vmatprep.subr.bf16.mxu0 0
      %1628 = vmatpush2.bf16.msra.mxu0 0
      %1629 = vmatprep.subr.bf16.mxu0 0
      %1630 = vmatpush2.bf16.msra.mxu0 0
      %1631 = vmatprep.subr.bf16.mxu0 0
      %1632 = vmatpush2.bf16.msra.mxu0 0
      %1633 = vmatprep.subr.bf16.mxu0 0
      %1634 = vmatpush2.bf16.msra.mxu0 0
      %1635 = vmatprep.subr.bf16.mxu0 0
      %1636 = vmatpush2.bf16.msra.mxu0 0
      %1637 = vmatprep.subr.bf16.mxu0 0
      %1638 = vmatpush2.bf16.msra.mxu0 0
      %1639 = vmatprep.subr.bf16.mxu0 0
      %1640 = vmatpush2.bf16.msra.mxu0 0
      %1641 = vmatprep.mubr.bf16.mxu0 0
      %1642 = vmatmul.mubr.bf16.gmra.mxu0 %v1014
      %v1643 = vpop.f32.mrf.mxu0
      %v1644 = vadd.f32 0.0, %v1643
      %v1645 = vpop.f32.mrf.mxu0
      %v1646 = vpop.f32.mrf.mxu0
      %v1647 = vadd.f32 0.0, %v1646
      %v1648 = vpop.f32.mrf.mxu0
      %1649 = vmatprep.mubr.bf16.mxu0 0
      %1650 = vmatmul.mubr.bf16.gmra.mxu0 %v1015
      %v1651 = vpop.f32.mrf.mxu0
      %v1652 = vadd.f32 0.0, %v1651
      %v1653 = vpop.f32.mrf.mxu0
      %v1654 = vpop.f32.mrf.mxu0
      %v1655 = vadd.f32 0.0, %v1654
      %v1656 = vpop.f32.mrf.mxu0
      %1657 = vmatprep.mubr.bf16.mxu0 0
      %1658 = vmatmul.mubr.bf16.gmra.mxu0 %v1016
      %v1659 = vpop.f32.mrf.mxu0
      %v1660 = vadd.f32 0.0, %v1659
      %v1661 = vpop.f32.mrf.mxu0
      %v1662 = vpop.f32.mrf.mxu0
      %v1663 = vadd.f32 0.0, %v1662
      %v1664 = vpop.f32.mrf.mxu0
      %1665 = vmatprep.mubr.bf16.mxu0 0
      %1666 = vmatmul.mubr.bf16.gmra.mxu0 %v1017
      %v1667 = vpop.f32.mrf.mxu0
      %v1668 = vadd.f32 0.0, %v1667
      %v1669 = vpop.f32.mrf.mxu0
      %v1670 = vpop.f32.mrf.mxu0
      %v1671 = vadd.f32 0.0, %v1670
      %v1672 = vpop.f32.mrf.mxu0
      %1673 = vmatprep.mubr.bf16.mxu0 0
      %1674 = vmatmul.mubr.bf16.gmra.mxu0 %v1018
      %v1675 = vpop.f32.mrf.mxu0
      %v1676 = vadd.f32 0.0, %v1675
      %v1677 = vpop.f32.mrf.mxu0
      %v1678 = vpop.f32.mrf.mxu0
      %v1679 = vadd.f32 0.0, %v1678
      %v1680 = vpop.f32.mrf.mxu0
      %1681 = vmatprep.mubr.bf16.mxu0 0
      %1682 = vmatmul.mubr.bf16.gmra.mxu0 %v1019
      %v1683 = vpop.f32.mrf.mxu0
      %v1684 = vadd.f32 0.0, %v1683
      %v1685 = vpop.f32.mrf.mxu0
      %v1686 = vpop.f32.mrf.mxu0
      %v1687 = vadd.f32 0.0, %v1686
      %v1688 = vpop.f32.mrf.mxu0
      %1689 = vmatprep.mubr.bf16.mxu0 0
      %1690 = vmatmul.mubr.bf16.gmra.mxu0 %v1020
      %v1691 = vpop.f32.mrf.mxu0
      %v1692 = vadd.f32 0.0, %v1691
      %v1693 = vpop.f32.mrf.mxu0
      %v1694 = vpop.f32.mrf.mxu0
      %v1695 = vadd.f32 0.0, %v1694
      %v1696 = vpop.f32.mrf.mxu0
      %1697 = vmatprep.mubr.bf16.mxu0 0
      %1698 = vmatmul.mubr.bf16.gmra.mxu0 %v1021
      %v1699 = vpop.f32.mrf.mxu0
      %v1700 = vadd.f32 0.0, %v1699
      %v1701 = vpop.f32.mrf.mxu0
      %v1702 = vpop.f32.mrf.mxu0
      %v1703 = vadd.f32 0.0, %v1702
      %v1704 = vpop.f32.mrf.mxu0
      %1705 = vdwg.mxu0
      %v1706 = vadd.f32 %v1528, %v1644
      %v1707 = vadd.f32 %v1529, %v1647
      %v1708 = vadd.f32 %v1530, %v1652
      %v1709 = vadd.f32 %v1531, %v1655
      %v1710 = vadd.f32 %v1532, %v1660
      %v1711 = vadd.f32 %v1533, %v1663
      %v1712 = vadd.f32 %v1534, %v1668
      %v1713 = vadd.f32 %v1535, %v1671
      %v1714 = vadd.f32 %v1536, %v1676
      %v1715 = vadd.f32 %v1537, %v1679
      %v1716 = vadd.f32 %v1538, %v1684
      %v1717 = vadd.f32 %v1539, %v1687
      %v1718 = vadd.f32 %v1540, %v1692
      %v1719 = vadd.f32 %v1541, %v1695
      %v1720 = vadd.f32 %v1542, %v1700
      %v1721 = vadd.f32 %v1543, %v1703
      %s1722 = scalar_lea.vmem %s3, 256
      %v1723 = vld [vmem:[%s1722] sm:$0xf]
      %v1724 = vld [vmem:[%s1722 + $0x4] sm:$0xf]
      %v1725 = vld [vmem:[%s1722 + $0x8] sm:$0xf]
      %v1726 = vld [vmem:[%s1722 + $0xc] sm:$0xf]
      %v1727 = vld [vmem:[%s1722 + $0x10] sm:$0xf]
      %v1728 = vld [vmem:[%s1722 + $0x14] sm:$0xf]
      %v1729 = vld [vmem:[%s1722 + $0x18] sm:$0xf]
      %v1730 = vld [vmem:[%s1722 + $0x1c] sm:$0xf]
      %v1731 = vld [vmem:[%s1722 + $0x20] sm:$0xf]
      %v1732 = vld [vmem:[%s1722 + $0x24] sm:$0xf]
      %v1733 = vld [vmem:[%s1722 + $0x28] sm:$0xf]
      %v1734 = vld [vmem:[%s1722 + $0x2c] sm:$0xf]
      %v1735 = vld [vmem:[%s1722 + $0x30] sm:$0xf]
      %v1736 = vld [vmem:[%s1722 + $0x34] sm:$0xf]
      %v1737 = vld [vmem:[%s1722 + $0x38] sm:$0xf]
      %v1738 = vld [vmem:[%s1722 + $0x3c] sm:$0xf]
      %v1755 = vunpack.c.l.b16 %v1723
      %v1756 = vunpack.c.l.b16 %v1724
      %v1757 = vunpack.c.l.b16 %v1725
      %v1758 = vunpack.c.l.b16 %v1726
      %v1759 = vunpack.c.l.b16 %v1727
      %v1760 = vunpack.c.l.b16 %v1728
      %v1761 = vunpack.c.l.b16 %v1729
      %v1762 = vunpack.c.l.b16 %v1730
      %v1763 = vunpack.c.l.b16 %v1731
      %v1764 = vunpack.c.l.b16 %v1732
      %v1765 = vunpack.c.l.b16 %v1733
      %v1766 = vunpack.c.l.b16 %v1734
      %v1767 = vunpack.c.l.b16 %v1735
      %v1768 = vunpack.c.l.b16 %v1736
      %v1769 = vunpack.c.l.b16 %v1737
      %v1770 = vunpack.c.l.b16 %v1738
      %v1771 = vpack.c.b16 %v1756, %v1755
      %v1772 = vpack.c.b16 %v1758, %v1757
      %v1773 = vpack.c.b16 %v1760, %v1759
      %v1774 = vpack.c.b16 %v1762, %v1761
      %v1775 = vpack.c.b16 %v1764, %v1763
      %v1776 = vpack.c.b16 %v1766, %v1765
      %v1777 = vpack.c.b16 %v1768, %v1767
      %v1778 = vpack.c.b16 %v1770, %v1769
      %1787 = vmatprep.subr.bf16.mxu0 0
      %1788 = vmatpush1.bf16.msra.mxu0 %v1778
      %1789 = vmatprep.subr.bf16.mxu0 0
      %1790 = vmatpush1.bf16.msra.mxu0 %v1777
      %1791 = vmatprep.subr.bf16.mxu0 0
      %1792 = vmatpush1.bf16.msra.mxu0 %v1776
      %1793 = vmatprep.subr.bf16.mxu0 0
      %1794 = vmatpush1.bf16.msra.mxu0 %v1775
      %1795 = vmatprep.subr.bf16.mxu0 0
      %1796 = vmatpush1.bf16.msra.mxu0 %v1774
      %1797 = vmatprep.subr.bf16.mxu0 0
      %1798 = vmatpush1.bf16.msra.mxu0 %v1773
      %1799 = vmatprep.subr.bf16.mxu0 0
      %1800 = vmatpush1.bf16.msra.mxu0 %v1772
      %1801 = vmatprep.subr.bf16.mxu0 0
      %1802 = vmatpush1.bf16.msra.mxu0 %v1771
      %1803 = vmatprep.subr.bf16.mxu0 0
      %1804 = vmatpush2.bf16.msra.mxu0 0
      %1805 = vmatprep.subr.bf16.mxu0 0
      %1806 = vmatpush2.bf16.msra.mxu0 0
      %1807 = vmatprep.subr.bf16.mxu0 0
      %1808 = vmatpush2.bf16.msra.mxu0 0
      %1809 = vmatprep.subr.bf16.mxu0 0
      %1810 = vmatpush2.bf16.msra.mxu0 0
      %1811 = vmatprep.subr.bf16.mxu0 0
      %1812 = vmatpush2.bf16.msra.mxu0 0
      %1813 = vmatprep.subr.bf16.mxu0 0
      %1814 = vmatpush2.bf16.msra.mxu0 0
      %1815 = vmatprep.subr.bf16.mxu0 0
      %1816 = vmatpush2.bf16.msra.mxu0 0
      %1817 = vmatprep.subr.bf16.mxu0 0
      %1818 = vmatpush2.bf16.msra.mxu0 0
      %1819 = vmatprep.mubr.bf16.mxu0 0
      %1820 = vmatmul.mubr.bf16.gmra.mxu0 %v1024
      %v1821 = vpop.f32.mrf.mxu0
      %v1822 = vadd.f32 0.0, %v1821
      %v1823 = vpop.f32.mrf.mxu0
      %v1824 = vpop.f32.mrf.mxu0
      %v1825 = vadd.f32 0.0, %v1824
      %v1826 = vpop.f32.mrf.mxu0
      %1827 = vmatprep.mubr.bf16.mxu0 0
      %1828 = vmatmul.mubr.bf16.gmra.mxu0 %v1025
      %v1829 = vpop.f32.mrf.mxu0
      %v1830 = vadd.f32 0.0, %v1829
      %v1831 = vpop.f32.mrf.mxu0
      %v1832 = vpop.f32.mrf.mxu0
      %v1833 = vadd.f32 0.0, %v1832
      %v1834 = vpop.f32.mrf.mxu0
      %1835 = vmatprep.mubr.bf16.mxu0 0
      %1836 = vmatmul.mubr.bf16.gmra.mxu0 %v1026
      %v1837 = vpop.f32.mrf.mxu0
      %v1838 = vadd.f32 0.0, %v1837
      %v1839 = vpop.f32.mrf.mxu0
      %v1840 = vpop.f32.mrf.mxu0
      %v1841 = vadd.f32 0.0, %v1840
      %v1842 = vpop.f32.mrf.mxu0
      %1843 = vmatprep.mubr.bf16.mxu0 0
      %1844 = vmatmul.mubr.bf16.gmra.mxu0 %v1027
      %v1845 = vpop.f32.mrf.mxu0
      %v1846 = vadd.f32 0.0, %v1845
      %v1847 = vpop.f32.mrf.mxu0
      %v1848 = vpop.f32.mrf.mxu0
      %v1849 = vadd.f32 0.0, %v1848
      %v1850 = vpop.f32.mrf.mxu0
      %1851 = vmatprep.mubr.bf16.mxu0 0
      %1852 = vmatmul.mubr.bf16.gmra.mxu0 %v1028
      %v1853 = vpop.f32.mrf.mxu0
      %v1854 = vadd.f32 0.0, %v1853
      %v1855 = vpop.f32.mrf.mxu0
      %v1856 = vpop.f32.mrf.mxu0
      %v1857 = vadd.f32 0.0, %v1856
      %v1858 = vpop.f32.mrf.mxu0
      %1859 = vmatprep.mubr.bf16.mxu0 0
      %1860 = vmatmul.mubr.bf16.gmra.mxu0 %v1029
      %v1861 = vpop.f32.mrf.mxu0
      %v1862 = vadd.f32 0.0, %v1861
      %v1863 = vpop.f32.mrf.mxu0
      %v1864 = vpop.f32.mrf.mxu0
      %v1865 = vadd.f32 0.0, %v1864
      %v1866 = vpop.f32.mrf.mxu0
      %1867 = vmatprep.mubr.bf16.mxu0 0
      %1868 = vmatmul.mubr.bf16.gmra.mxu0 %v1030
      %v1869 = vpop.f32.mrf.mxu0
      %v1870 = vadd.f32 0.0, %v1869
      %v1871 = vpop.f32.mrf.mxu0
      %v1872 = vpop.f32.mrf.mxu0
      %v1873 = vadd.f32 0.0, %v1872
      %v1874 = vpop.f32.mrf.mxu0
      %1875 = vmatprep.mubr.bf16.mxu0 0
      %1876 = vmatmul.mubr.bf16.gmra.mxu0 %v1031
      %v1877 = vpop.f32.mrf.mxu0
      %v1878 = vadd.f32 0.0, %v1877
      %v1879 = vpop.f32.mrf.mxu0
      %v1880 = vpop.f32.mrf.mxu0
      %v1881 = vadd.f32 0.0, %v1880
      %v1882 = vpop.f32.mrf.mxu0
      %1883 = vdwg.mxu0
      %v1884 = vadd.f32 %v1706, %v1822
      %v1885 = vadd.f32 %v1707, %v1825
      %v1886 = vadd.f32 %v1708, %v1830
      %v1887 = vadd.f32 %v1709, %v1833
      %v1888 = vadd.f32 %v1710, %v1838
      %v1889 = vadd.f32 %v1711, %v1841
      %v1890 = vadd.f32 %v1712, %v1846
      %v1891 = vadd.f32 %v1713, %v1849
      %v1892 = vadd.f32 %v1714, %v1854
      %v1893 = vadd.f32 %v1715, %v1857
      %v1894 = vadd.f32 %v1716, %v1862
      %v1895 = vadd.f32 %v1717, %v1865
      %v1896 = vadd.f32 %v1718, %v1870
      %v1897 = vadd.f32 %v1719, %v1873
      %v1898 = vadd.f32 %v1720, %v1878
      %v1899 = vadd.f32 %v1721, %v1881
      %s1900 = scalar_lea.vmem %s3, 320
      %v1901 = vld [vmem:[%s1900] sm:$0xf]
      %v1902 = vld [vmem:[%s1900 + $0x4] sm:$0xf]
      %v1903 = vld [vmem:[%s1900 + $0x8] sm:$0xf]
      %v1904 = vld [vmem:[%s1900 + $0xc] sm:$0xf]
      %v1905 = vld [vmem:[%s1900 + $0x10] sm:$0xf]
      %v1906 = vld [vmem:[%s1900 + $0x14] sm:$0xf]
      %v1907 = vld [vmem:[%s1900 + $0x18] sm:$0xf]
      %v1908 = vld [vmem:[%s1900 + $0x1c] sm:$0xf]
      %v1909 = vld [vmem:[%s1900 + $0x20] sm:$0xf]
      %v1910 = vld [vmem:[%s1900 + $0x24] sm:$0xf]
      %v1911 = vld [vmem:[%s1900 + $0x28] sm:$0xf]
      %v1912 = vld [vmem:[%s1900 + $0x2c] sm:$0xf]
      %v1913 = vld [vmem:[%s1900 + $0x30] sm:$0xf]
      %v1914 = vld [vmem:[%s1900 + $0x34] sm:$0xf]
      %v1915 = vld [vmem:[%s1900 + $0x38] sm:$0xf]
      %v1916 = vld [vmem:[%s1900 + $0x3c] sm:$0xf]
      %v1933 = vunpack.c.l.b16 %v1901
      %v1934 = vunpack.c.l.b16 %v1902
      %v1935 = vunpack.c.l.b16 %v1903
      %v1936 = vunpack.c.l.b16 %v1904
      %v1937 = vunpack.c.l.b16 %v1905
      %v1938 = vunpack.c.l.b16 %v1906
      %v1939 = vunpack.c.l.b16 %v1907
      %v1940 = vunpack.c.l.b16 %v1908
      %v1941 = vunpack.c.l.b16 %v1909
      %v1942 = vunpack.c.l.b16 %v1910
      %v1943 = vunpack.c.l.b16 %v1911
      %v1944 = vunpack.c.l.b16 %v1912
      %v1945 = vunpack.c.l.b16 %v1913
      %v1946 = vunpack.c.l.b16 %v1914
      %v1947 = vunpack.c.l.b16 %v1915
      %v1948 = vunpack.c.l.b16 %v1916
      %v1949 = vpack.c.b16 %v1934, %v1933
      %v1950 = vpack.c.b16 %v1936, %v1935
      %v1951 = vpack.c.b16 %v1938, %v1937
      %v1952 = vpack.c.b16 %v1940, %v1939
      %v1953 = vpack.c.b16 %v1942, %v1941
      %v1954 = vpack.c.b16 %v1944, %v1943
      %v1955 = vpack.c.b16 %v1946, %v1945
      %v1956 = vpack.c.b16 %v1948, %v1947
      %1965 = vmatprep.subr.bf16.mxu0 0
      %1966 = vmatpush1.bf16.msra.mxu0 %v1956
      %1967 = vmatprep.subr.bf16.mxu0 0
      %1968 = vmatpush1.bf16.msra.mxu0 %v1955
      %1969 = vmatprep.subr.bf16.mxu0 0
      %1970 = vmatpush1.bf16.msra.mxu0 %v1954
      %1971 = vmatprep.subr.bf16.mxu0 0
      %1972 = vmatpush1.bf16.msra.mxu0 %v1953
      %1973 = vmatprep.subr.bf16.mxu0 0
      %1974 = vmatpush1.bf16.msra.mxu0 %v1952
      %1975 = vmatprep.subr.bf16.mxu0 0
      %1976 = vmatpush1.bf16.msra.mxu0 %v1951
      %1977 = vmatprep.subr.bf16.mxu0 0
      %1978 = vmatpush1.bf16.msra.mxu0 %v1950
      %1979 = vmatprep.subr.bf16.mxu0 0
      %1980 = vmatpush1.bf16.msra.mxu0 %v1949
      %1981 = vmatprep.subr.bf16.mxu0 0
      %1982 = vmatpush2.bf16.msra.mxu0 0
      %1983 = vmatprep.subr.bf16.mxu0 0
      %1984 = vmatpush2.bf16.msra.mxu0 0
      %1985 = vmatprep.subr.bf16.mxu0 0
      %1986 = vmatpush2.bf16.msra.mxu0 0
      %1987 = vmatprep.subr.bf16.mxu0 0
      %1988 = vmatpush2.bf16.msra.mxu0 0
      %1989 = vmatprep.subr.bf16.mxu0 0
      %1990 = vmatpush2.bf16.msra.mxu0 0
      %1991 = vmatprep.subr.bf16.mxu0 0
      %1992 = vmatpush2.bf16.msra.mxu0 0
      %1993 = vmatprep.subr.bf16.mxu0 0
      %1994 = vmatpush2.bf16.msra.mxu0 0
      %1995 = vmatprep.subr.bf16.mxu0 0
      %1996 = vmatpush2.bf16.msra.mxu0 0
      %1997 = vmatprep.mubr.bf16.mxu0 0
      %1998 = vmatmul.mubr.bf16.gmra.mxu0 %v1034
      %v1999 = vpop.f32.mrf.mxu0
      %v2000 = vadd.f32 0.0, %v1999
      %v2001 = vpop.f32.mrf.mxu0
      %v2002 = vpop.f32.mrf.mxu0
      %v2003 = vadd.f32 0.0, %v2002
      %v2004 = vpop.f32.mrf.mxu0
      %2005 = vmatprep.mubr.bf16.mxu0 0
      %2006 = vmatmul.mubr.bf16.gmra.mxu0 %v1035
      %v2007 = vpop.f32.mrf.mxu0
      %v2008 = vadd.f32 0.0, %v2007
      %v2009 = vpop.f32.mrf.mxu0
      %v2010 = vpop.f32.mrf.mxu0
      %v2011 = vadd.f32 0.0, %v2010
      %v2012 = vpop.f32.mrf.mxu0
      %2013 = vmatprep.mubr.bf16.mxu0 0
      %2014 = vmatmul.mubr.bf16.gmra.mxu0 %v1036
      %v2015 = vpop.f32.mrf.mxu0
      %v2016 = vadd.f32 0.0, %v2015
      %v2017 = vpop.f32.mrf.mxu0
      %v2018 = vpop.f32.mrf.mxu0
      %v2019 = vadd.f32 0.0, %v2018
      %v2020 = vpop.f32.mrf.mxu0
      %2021 = vmatprep.mubr.bf16.mxu0 0
      %2022 = vmatmul.mubr.bf16.gmra.mxu0 %v1037
      %v2023 = vpop.f32.mrf.mxu0
      %v2024 = vadd.f32 0.0, %v2023
      %v2025 = vpop.f32.mrf.mxu0
      %v2026 = vpop.f32.mrf.mxu0
      %v2027 = vadd.f32 0.0, %v2026
      %v2028 = vpop.f32.mrf.mxu0
      %2029 = vmatprep.mubr.bf16.mxu0 0
      %2030 = vmatmul.mubr.bf16.gmra.mxu0 %v1038
      %v2031 = vpop.f32.mrf.mxu0
      %v2032 = vadd.f32 0.0, %v2031
      %v2033 = vpop.f32.mrf.mxu0
      %v2034 = vpop.f32.mrf.mxu0
      %v2035 = vadd.f32 0.0, %v2034
      %v2036 = vpop.f32.mrf.mxu0
      %2037 = vmatprep.mubr.bf16.mxu0 0
      %2038 = vmatmul.mubr.bf16.gmra.mxu0 %v1039
      %v2039 = vpop.f32.mrf.mxu0
      %v2040 = vadd.f32 0.0, %v2039
      %v2041 = vpop.f32.mrf.mxu0
      %v2042 = vpop.f32.mrf.mxu0
      %v2043 = vadd.f32 0.0, %v2042
      %v2044 = vpop.f32.mrf.mxu0
      %2045 = vmatprep.mubr.bf16.mxu0 0
      %2046 = vmatmul.mubr.bf16.gmra.mxu0 %v1040
      %v2047 = vpop.f32.mrf.mxu0
      %v2048 = vadd.f32 0.0, %v2047
      %v2049 = vpop.f32.mrf.mxu0
      %v2050 = vpop.f32.mrf.mxu0
      %v2051 = vadd.f32 0.0, %v2050
      %v2052 = vpop.f32.mrf.mxu0
      %2053 = vmatprep.mubr.bf16.mxu0 0
      %2054 = vmatmul.mubr.bf16.gmra.mxu0 %v1041
      %v2055 = vpop.f32.mrf.mxu0
      %v2056 = vadd.f32 0.0, %v2055
      %v2057 = vpop.f32.mrf.mxu0
      %v2058 = vpop.f32.mrf.mxu0
      %v2059 = vadd.f32 0.0, %v2058
      %v2060 = vpop.f32.mrf.mxu0
      %2061 = vdwg.mxu0
      %v2062 = vadd.f32 %v1884, %v2000
      %v2063 = vadd.f32 %v1885, %v2003
      %v2064 = vadd.f32 %v1886, %v2008
      %v2065 = vadd.f32 %v1887, %v2011
      %v2066 = vadd.f32 %v1888, %v2016
      %v2067 = vadd.f32 %v1889, %v2019
      %v2068 = vadd.f32 %v1890, %v2024
      %v2069 = vadd.f32 %v1891, %v2027
      %v2070 = vadd.f32 %v1892, %v2032
      %v2071 = vadd.f32 %v1893, %v2035
      %v2072 = vadd.f32 %v1894, %v2040
      %v2073 = vadd.f32 %v1895, %v2043
      %v2074 = vadd.f32 %v1896, %v2048
      %v2075 = vadd.f32 %v1897, %v2051
      %v2076 = vadd.f32 %v1898, %v2056
      %v2077 = vadd.f32 %v1899, %v2059
      %s2078 = scalar_lea.vmem %s3, 384
      %v2079 = vld [vmem:[%s2078] sm:$0xf]
      %v2080 = vld [vmem:[%s2078 + $0x4] sm:$0xf]
      %v2081 = vld [vmem:[%s2078 + $0x8] sm:$0xf]
      %v2082 = vld [vmem:[%s2078 + $0xc] sm:$0xf]
      %v2083 = vld [vmem:[%s2078 + $0x10] sm:$0xf]
      %v2084 = vld [vmem:[%s2078 + $0x14] sm:$0xf]
      %v2085 = vld [vmem:[%s2078 + $0x18] sm:$0xf]
      %v2086 = vld [vmem:[%s2078 + $0x1c] sm:$0xf]
      %v2087 = vld [vmem:[%s2078 + $0x20] sm:$0xf]
      %v2088 = vld [vmem:[%s2078 + $0x24] sm:$0xf]
      %v2089 = vld [vmem:[%s2078 + $0x28] sm:$0xf]
      %v2090 = vld [vmem:[%s2078 + $0x2c] sm:$0xf]
      %v2091 = vld [vmem:[%s2078 + $0x30] sm:$0xf]
      %v2092 = vld [vmem:[%s2078 + $0x34] sm:$0xf]
      %v2093 = vld [vmem:[%s2078 + $0x38] sm:$0xf]
      %v2094 = vld [vmem:[%s2078 + $0x3c] sm:$0xf]
      %v2111 = vunpack.c.l.b16 %v2079
      %v2112 = vunpack.c.l.b16 %v2080
      %v2113 = vunpack.c.l.b16 %v2081
      %v2114 = vunpack.c.l.b16 %v2082
      %v2115 = vunpack.c.l.b16 %v2083
      %v2116 = vunpack.c.l.b16 %v2084
      %v2117 = vunpack.c.l.b16 %v2085
      %v2118 = vunpack.c.l.b16 %v2086
      %v2119 = vunpack.c.l.b16 %v2087
      %v2120 = vunpack.c.l.b16 %v2088
      %v2121 = vunpack.c.l.b16 %v2089
      %v2122 = vunpack.c.l.b16 %v2090
      %v2123 = vunpack.c.l.b16 %v2091
      %v2124 = vunpack.c.l.b16 %v2092
      %v2125 = vunpack.c.l.b16 %v2093
      %v2126 = vunpack.c.l.b16 %v2094
      %v2127 = vpack.c.b16 %v2112, %v2111
      %v2128 = vpack.c.b16 %v2114, %v2113
      %v2129 = vpack.c.b16 %v2116, %v2115
      %v2130 = vpack.c.b16 %v2118, %v2117
      %v2131 = vpack.c.b16 %v2120, %v2119
      %v2132 = vpack.c.b16 %v2122, %v2121
      %v2133 = vpack.c.b16 %v2124, %v2123
      %v2134 = vpack.c.b16 %v2126, %v2125
      %2143 = vmatprep.subr.bf16.mxu0 0
      %2144 = vmatpush1.bf16.msra.mxu0 %v2134
      %2145 = vmatprep.subr.bf16.mxu0 0
      %2146 = vmatpush1.bf16.msra.mxu0 %v2133
      %2147 = vmatprep.subr.bf16.mxu0 0
      %2148 = vmatpush1.bf16.msra.mxu0 %v2132
      %2149 = vmatprep.subr.bf16.mxu0 0
      %2150 = vmatpush1.bf16.msra.mxu0 %v2131
      %2151 = vmatprep.subr.bf16.mxu0 0
      %2152 = vmatpush1.bf16.msra.mxu0 %v2130
      %2153 = vmatprep.subr.bf16.mxu0 0
      %2154 = vmatpush1.bf16.msra.mxu0 %v2129
      %2155 = vmatprep.subr.bf16.mxu0 0
      %2156 = vmatpush1.bf16.msra.mxu0 %v2128
      %2157 = vmatprep.subr.bf16.mxu0 0
      %2158 = vmatpush1.bf16.msra.mxu0 %v2127
      %2159 = vmatprep.subr.bf16.mxu0 0
      %2160 = vmatpush2.bf16.msra.mxu0 0
      %2161 = vmatprep.subr.bf16.mxu0 0
      %2162 = vmatpush2.bf16.msra.mxu0 0
      %2163 = vmatprep.subr.bf16.mxu0 0
      %2164 = vmatpush2.bf16.msra.mxu0 0
      %2165 = vmatprep.subr.bf16.mxu0 0
      %2166 = vmatpush2.bf16.msra.mxu0 0
      %2167 = vmatprep.subr.bf16.mxu0 0
      %2168 = vmatpush2.bf16.msra.mxu0 0
      %2169 = vmatprep.subr.bf16.mxu0 0
      %2170 = vmatpush2.bf16.msra.mxu0 0
      %2171 = vmatprep.subr.bf16.mxu0 0
      %2172 = vmatpush2.bf16.msra.mxu0 0
      %2173 = vmatprep.subr.bf16.mxu0 0
      %2174 = vmatpush2.bf16.msra.mxu0 0
      %2175 = vmatprep.mubr.bf16.mxu0 0
      %2176 = vmatmul.mubr.bf16.gmra.mxu0 %v1015
      %v2177 = vpop.f32.mrf.mxu0
      %v2178 = vadd.f32 0.0, %v2177
      %v2179 = vpop.f32.mrf.mxu0
      %v2180 = vpop.f32.mrf.mxu0
      %v2181 = vadd.f32 0.0, %v2180
      %v2182 = vpop.f32.mrf.mxu0
      %2183 = vmatprep.mubr.bf16.mxu0 0
      %2184 = vmatmul.mubr.bf16.gmra.mxu0 %v1016
      %v2185 = vpop.f32.mrf.mxu0
      %v2186 = vadd.f32 0.0, %v2185
      %v2187 = vpop.f32.mrf.mxu0
      %v2188 = vpop.f32.mrf.mxu0
      %v2189 = vadd.f32 0.0, %v2188
      %v2190 = vpop.f32.mrf.mxu0
      %2191 = vmatprep.mubr.bf16.mxu0 0
      %2192 = vmatmul.mubr.bf16.gmra.mxu0 %v1017
      %v2193 = vpop.f32.mrf.mxu0
      %v2194 = vadd.f32 0.0, %v2193
      %v2195 = vpop.f32.mrf.mxu0
      %v2196 = vpop.f32.mrf.mxu0
      %v2197 = vadd.f32 0.0, %v2196
      %v2198 = vpop.f32.mrf.mxu0
      %2199 = vmatprep.mubr.bf16.mxu0 0
      %2200 = vmatmul.mubr.bf16.gmra.mxu0 %v1018
      %v2201 = vpop.f32.mrf.mxu0
      %v2202 = vadd.f32 0.0, %v2201
      %v2203 = vpop.f32.mrf.mxu0
      %v2204 = vpop.f32.mrf.mxu0
      %v2205 = vadd.f32 0.0, %v2204
      %v2206 = vpop.f32.mrf.mxu0
      %2207 = vmatprep.mubr.bf16.mxu0 0
      %2208 = vmatmul.mubr.bf16.gmra.mxu0 %v1019
      %v2209 = vpop.f32.mrf.mxu0
      %v2210 = vadd.f32 0.0, %v2209
      %v2211 = vpop.f32.mrf.mxu0
      %v2212 = vpop.f32.mrf.mxu0
      %v2213 = vadd.f32 0.0, %v2212
      %v2214 = vpop.f32.mrf.mxu0
      %2215 = vmatprep.mubr.bf16.mxu0 0
      %2216 = vmatmul.mubr.bf16.gmra.mxu0 %v1020
      %v2217 = vpop.f32.mrf.mxu0
      %v2218 = vadd.f32 0.0, %v2217
      %v2219 = vpop.f32.mrf.mxu0
      %v2220 = vpop.f32.mrf.mxu0
      %v2221 = vadd.f32 0.0, %v2220
      %v2222 = vpop.f32.mrf.mxu0
      %2223 = vmatprep.mubr.bf16.mxu0 0
      %2224 = vmatmul.mubr.bf16.gmra.mxu0 %v1021
      %v2225 = vpop.f32.mrf.mxu0
      %v2226 = vadd.f32 0.0, %v2225
      %v2227 = vpop.f32.mrf.mxu0
      %v2228 = vpop.f32.mrf.mxu0
      %v2229 = vadd.f32 0.0, %v2228
      %v2230 = vpop.f32.mrf.mxu0
      %2231 = vmatprep.mubr.bf16.mxu0 0
      %2232 = vmatmul.mubr.bf16.gmra.mxu0 %v1022
      %v2233 = vpop.f32.mrf.mxu0
      %v2234 = vadd.f32 0.0, %v2233
      %v2235 = vpop.f32.mrf.mxu0
      %v2236 = vpop.f32.mrf.mxu0
      %v2237 = vadd.f32 0.0, %v2236
      %v2238 = vpop.f32.mrf.mxu0
      %2239 = vdwg.mxu0
      %v2240 = vadd.f32 %v2062, %v2178
      %v2241 = vadd.f32 %v2063, %v2181
      %v2242 = vadd.f32 %v2064, %v2186
      %v2243 = vadd.f32 %v2065, %v2189
      %v2244 = vadd.f32 %v2066, %v2194
      %v2245 = vadd.f32 %v2067, %v2197
      %v2246 = vadd.f32 %v2068, %v2202
      %v2247 = vadd.f32 %v2069, %v2205
      %v2248 = vadd.f32 %v2070, %v2210
      %v2249 = vadd.f32 %v2071, %v2213
      %v2250 = vadd.f32 %v2072, %v2218
      %v2251 = vadd.f32 %v2073, %v2221
      %v2252 = vadd.f32 %v2074, %v2226
      %v2253 = vadd.f32 %v2075, %v2229
      %v2254 = vadd.f32 %v2076, %v2234
      %v2255 = vadd.f32 %v2077, %v2237
      %s2256 = scalar_lea.vmem %s3, 448
      %v2257 = vld [vmem:[%s2256] sm:$0xf]
      %v2258 = vld [vmem:[%s2256 + $0x4] sm:$0xf]
      %v2259 = vld [vmem:[%s2256 + $0x8] sm:$0xf]
      %v2260 = vld [vmem:[%s2256 + $0xc] sm:$0xf]
      %v2261 = vld [vmem:[%s2256 + $0x10] sm:$0xf]
      %v2262 = vld [vmem:[%s2256 + $0x14] sm:$0xf]
      %v2263 = vld [vmem:[%s2256 + $0x18] sm:$0xf]
      %v2264 = vld [vmem:[%s2256 + $0x1c] sm:$0xf]
      %v2265 = vld [vmem:[%s2256 + $0x20] sm:$0xf]
      %v2266 = vld [vmem:[%s2256 + $0x24] sm:$0xf]
      %v2267 = vld [vmem:[%s2256 + $0x28] sm:$0xf]
      %v2268 = vld [vmem:[%s2256 + $0x2c] sm:$0xf]
      %v2269 = vld [vmem:[%s2256 + $0x30] sm:$0xf]
      %v2270 = vld [vmem:[%s2256 + $0x34] sm:$0xf]
      %v2271 = vld [vmem:[%s2256 + $0x38] sm:$0xf]
      %v2272 = vld [vmem:[%s2256 + $0x3c] sm:$0xf]
      %v2289 = vunpack.c.l.b16 %v2257
      %v2290 = vunpack.c.l.b16 %v2258
      %v2291 = vunpack.c.l.b16 %v2259
      %v2292 = vunpack.c.l.b16 %v2260
      %v2293 = vunpack.c.l.b16 %v2261
      %v2294 = vunpack.c.l.b16 %v2262
      %v2295 = vunpack.c.l.b16 %v2263
      %v2296 = vunpack.c.l.b16 %v2264
      %v2297 = vunpack.c.l.b16 %v2265
      %v2298 = vunpack.c.l.b16 %v2266
      %v2299 = vunpack.c.l.b16 %v2267
      %v2300 = vunpack.c.l.b16 %v2268
      %v2301 = vunpack.c.l.b16 %v2269
      %v2302 = vunpack.c.l.b16 %v2270
      %v2303 = vunpack.c.l.b16 %v2271
      %v2304 = vunpack.c.l.b16 %v2272
      %v2305 = vpack.c.b16 %v2290, %v2289
      %v2306 = vpack.c.b16 %v2292, %v2291
      %v2307 = vpack.c.b16 %v2294, %v2293
      %v2308 = vpack.c.b16 %v2296, %v2295
      %v2309 = vpack.c.b16 %v2298, %v2297
      %v2310 = vpack.c.b16 %v2300, %v2299
      %v2311 = vpack.c.b16 %v2302, %v2301
      %v2312 = vpack.c.b16 %v2304, %v2303
      %2321 = vmatprep.subr.bf16.mxu0 0
      %2322 = vmatpush1.bf16.msra.mxu0 %v2312
      %2323 = vmatprep.subr.bf16.mxu0 0
      %2324 = vmatpush1.bf16.msra.mxu0 %v2311
      %2325 = vmatprep.subr.bf16.mxu0 0
      %2326 = vmatpush1.bf16.msra.mxu0 %v2310
      %2327 = vmatprep.subr.bf16.mxu0 0
      %2328 = vmatpush1.bf16.msra.mxu0 %v2309
      %2329 = vmatprep.subr.bf16.mxu0 0
      %2330 = vmatpush1.bf16.msra.mxu0 %v2308
      %2331 = vmatprep.subr.bf16.mxu0 0
      %2332 = vmatpush1.bf16.msra.mxu0 %v2307
      %2333 = vmatprep.subr.bf16.mxu0 0
      %2334 = vmatpush1.bf16.msra.mxu0 %v2306
      %2335 = vmatprep.subr.bf16.mxu0 0
      %2336 = vmatpush1.bf16.msra.mxu0 %v2305
      %2337 = vmatprep.subr.bf16.mxu0 0
      %2338 = vmatpush2.bf16.msra.mxu0 0
      %2339 = vmatprep.subr.bf16.mxu0 0
      %2340 = vmatpush2.bf16.msra.mxu0 0
      %2341 = vmatprep.subr.bf16.mxu0 0
      %2342 = vmatpush2.bf16.msra.mxu0 0
      %2343 = vmatprep.subr.bf16.mxu0 0
      %2344 = vmatpush2.bf16.msra.mxu0 0
      %2345 = vmatprep.subr.bf16.mxu0 0
      %2346 = vmatpush2.bf16.msra.mxu0 0
      %2347 = vmatprep.subr.bf16.mxu0 0
      %2348 = vmatpush2.bf16.msra.mxu0 0
      %2349 = vmatprep.subr.bf16.mxu0 0
      %2350 = vmatpush2.bf16.msra.mxu0 0
      %2351 = vmatprep.subr.bf16.mxu0 0
      %2352 = vmatpush2.bf16.msra.mxu0 0
      %2353 = vmatprep.mubr.bf16.mxu0 0
      %2354 = vmatmul.mubr.bf16.gmra.mxu0 %v1025
      %v2355 = vpop.f32.mrf.mxu0
      %v2356 = vadd.f32 0.0, %v2355
      %v2357 = vpop.f32.mrf.mxu0
      %v2358 = vpop.f32.mrf.mxu0
      %v2359 = vadd.f32 0.0, %v2358
      %v2360 = vpop.f32.mrf.mxu0
      %2361 = vmatprep.mubr.bf16.mxu0 0
      %2362 = vmatmul.mubr.bf16.gmra.mxu0 %v1026
      %v2363 = vpop.f32.mrf.mxu0
      %v2364 = vadd.f32 0.0, %v2363
      %v2365 = vpop.f32.mrf.mxu0
      %v2366 = vpop.f32.mrf.mxu0
      %v2367 = vadd.f32 0.0, %v2366
      %v2368 = vpop.f32.mrf.mxu0
      %2369 = vmatprep.mubr.bf16.mxu0 0
      %2370 = vmatmul.mubr.bf16.gmra.mxu0 %v1027
      %v2371 = vpop.f32.mrf.mxu0
      %v2372 = vadd.f32 0.0, %v2371
      %v2373 = vpop.f32.mrf.mxu0
      %v2374 = vpop.f32.mrf.mxu0
      %v2375 = vadd.f32 0.0, %v2374
      %v2376 = vpop.f32.mrf.mxu0
      %2377 = vmatprep.mubr.bf16.mxu0 0
      %2378 = vmatmul.mubr.bf16.gmra.mxu0 %v1028
      %v2379 = vpop.f32.mrf.mxu0
      %v2380 = vadd.f32 0.0, %v2379
      %v2381 = vpop.f32.mrf.mxu0
      %v2382 = vpop.f32.mrf.mxu0
      %v2383 = vadd.f32 0.0, %v2382
      %v2384 = vpop.f32.mrf.mxu0
      %2385 = vmatprep.mubr.bf16.mxu0 0
      %2386 = vmatmul.mubr.bf16.gmra.mxu0 %v1029
      %v2387 = vpop.f32.mrf.mxu0
      %v2388 = vadd.f32 0.0, %v2387
      %v2389 = vpop.f32.mrf.mxu0
      %v2390 = vpop.f32.mrf.mxu0
      %v2391 = vadd.f32 0.0, %v2390
      %v2392 = vpop.f32.mrf.mxu0
      %2393 = vmatprep.mubr.bf16.mxu0 0
      %2394 = vmatmul.mubr.bf16.gmra.mxu0 %v1030
      %v2395 = vpop.f32.mrf.mxu0
      %v2396 = vadd.f32 0.0, %v2395
      %v2397 = vpop.f32.mrf.mxu0
      %v2398 = vpop.f32.mrf.mxu0
      %v2399 = vadd.f32 0.0, %v2398
      %v2400 = vpop.f32.mrf.mxu0
      %2401 = vmatprep.mubr.bf16.mxu0 0
      %2402 = vmatmul.mubr.bf16.gmra.mxu0 %v1031
      %v2403 = vpop.f32.mrf.mxu0
      %v2404 = vadd.f32 0.0, %v2403
      %v2405 = vpop.f32.mrf.mxu0
      %v2406 = vpop.f32.mrf.mxu0
      %v2407 = vadd.f32 0.0, %v2406
      %v2408 = vpop.f32.mrf.mxu0
      %2409 = vmatprep.mubr.bf16.mxu0 0
      %2410 = vmatmul.mubr.bf16.gmra.mxu0 %v1032
      %v2411 = vpop.f32.mrf.mxu0
      %v2412 = vadd.f32 0.0, %v2411
      %v2413 = vpop.f32.mrf.mxu0
      %v2414 = vpop.f32.mrf.mxu0
      %v2415 = vadd.f32 0.0, %v2414
      %v2416 = vpop.f32.mrf.mxu0
      %2417 = vdwg.mxu0
      %v2418 = vadd.f32 %v2240, %v2356
      %v2419 = vadd.f32 %v2241, %v2359
      %v2420 = vadd.f32 %v2242, %v2364
      %v2421 = vadd.f32 %v2243, %v2367
      %v2422 = vadd.f32 %v2244, %v2372
      %v2423 = vadd.f32 %v2245, %v2375
      %v2424 = vadd.f32 %v2246, %v2380
      %v2425 = vadd.f32 %v2247, %v2383
      %v2426 = vadd.f32 %v2248, %v2388
      %v2427 = vadd.f32 %v2249, %v2391
      %v2428 = vadd.f32 %v2250, %v2396
      %v2429 = vadd.f32 %v2251, %v2399
      %v2430 = vadd.f32 %v2252, %v2404
      %v2431 = vadd.f32 %v2253, %v2407
      %v2432 = vadd.f32 %v2254, %v2412
      %v2433 = vadd.f32 %v2255, %v2415
      %s2434 = scalar_lea.vmem %s3, 512
      %v2435 = vld [vmem:[%s2434] sm:$0xf]
      %v2436 = vld [vmem:[%s2434 + $0x4] sm:$0xf]
      %v2437 = vld [vmem:[%s2434 + $0x8] sm:$0xf]
      %v2438 = vld [vmem:[%s2434 + $0xc] sm:$0xf]
      %v2439 = vld [vmem:[%s2434 + $0x10] sm:$0xf]
      %v2440 = vld [vmem:[%s2434 + $0x14] sm:$0xf]
      %v2441 = vld [vmem:[%s2434 + $0x18] sm:$0xf]
      %v2442 = vld [vmem:[%s2434 + $0x1c] sm:$0xf]
      %v2443 = vld [vmem:[%s2434 + $0x20] sm:$0xf]
      %v2444 = vld [vmem:[%s2434 + $0x24] sm:$0xf]
      %v2445 = vld [vmem:[%s2434 + $0x28] sm:$0xf]
      %v2446 = vld [vmem:[%s2434 + $0x2c] sm:$0xf]
      %v2447 = vld [vmem:[%s2434 + $0x30] sm:$0xf]
      %v2448 = vld [vmem:[%s2434 + $0x34] sm:$0xf]
      %v2449 = vld [vmem:[%s2434 + $0x38] sm:$0xf]
      %v2450 = vld [vmem:[%s2434 + $0x3c] sm:$0xf]
      %v2467 = vunpack.c.l.b16 %v2435
      %v2468 = vunpack.c.l.b16 %v2436
      %v2469 = vunpack.c.l.b16 %v2437
      %v2470 = vunpack.c.l.b16 %v2438
      %v2471 = vunpack.c.l.b16 %v2439
      %v2472 = vunpack.c.l.b16 %v2440
      %v2473 = vunpack.c.l.b16 %v2441
      %v2474 = vunpack.c.l.b16 %v2442
      %v2475 = vunpack.c.l.b16 %v2443
      %v2476 = vunpack.c.l.b16 %v2444
      %v2477 = vunpack.c.l.b16 %v2445
      %v2478 = vunpack.c.l.b16 %v2446
      %v2479 = vunpack.c.l.b16 %v2447
      %v2480 = vunpack.c.l.b16 %v2448
      %v2481 = vunpack.c.l.b16 %v2449
      %v2482 = vunpack.c.l.b16 %v2450
      %v2483 = vpack.c.b16 %v2468, %v2467
      %v2484 = vpack.c.b16 %v2470, %v2469
      %v2485 = vpack.c.b16 %v2472, %v2471
      %v2486 = vpack.c.b16 %v2474, %v2473
      %v2487 = vpack.c.b16 %v2476, %v2475
      %v2488 = vpack.c.b16 %v2478, %v2477
      %v2489 = vpack.c.b16 %v2480, %v2479
      %v2490 = vpack.c.b16 %v2482, %v2481
      %2499 = vmatprep.subr.bf16.mxu0 0
      %2500 = vmatpush1.bf16.msra.mxu0 %v2490
      %2501 = vmatprep.subr.bf16.mxu0 0
      %2502 = vmatpush1.bf16.msra.mxu0 %v2489
      %2503 = vmatprep.subr.bf16.mxu0 0
      %2504 = vmatpush1.bf16.msra.mxu0 %v2488
      %2505 = vmatprep.subr.bf16.mxu0 0
      %2506 = vmatpush1.bf16.msra.mxu0 %v2487
      %2507 = vmatprep.subr.bf16.mxu0 0
      %2508 = vmatpush1.bf16.msra.mxu0 %v2486
      %2509 = vmatprep.subr.bf16.mxu0 0
      %2510 = vmatpush1.bf16.msra.mxu0 %v2485
      %2511 = vmatprep.subr.bf16.mxu0 0
      %2512 = vmatpush1.bf16.msra.mxu0 %v2484
      %2513 = vmatprep.subr.bf16.mxu0 0
      %2514 = vmatpush1.bf16.msra.mxu0 %v2483
      %2515 = vmatprep.subr.bf16.mxu0 0
      %2516 = vmatpush2.bf16.msra.mxu0 0
      %2517 = vmatprep.subr.bf16.mxu0 0
      %2518 = vmatpush2.bf16.msra.mxu0 0
      %2519 = vmatprep.subr.bf16.mxu0 0
      %2520 = vmatpush2.bf16.msra.mxu0 0
      %2521 = vmatprep.subr.bf16.mxu0 0
      %2522 = vmatpush2.bf16.msra.mxu0 0
      %2523 = vmatprep.subr.bf16.mxu0 0
      %2524 = vmatpush2.bf16.msra.mxu0 0
      %2525 = vmatprep.subr.bf16.mxu0 0
      %2526 = vmatpush2.bf16.msra.mxu0 0
      %2527 = vmatprep.subr.bf16.mxu0 0
      %2528 = vmatpush2.bf16.msra.mxu0 0
      %2529 = vmatprep.subr.bf16.mxu0 0
      %2530 = vmatpush2.bf16.msra.mxu0 0
      %2531 = vmatprep.mubr.bf16.mxu0 0
      %2532 = vmatmul.mubr.bf16.gmra.mxu0 %v1035
      %v2533 = vpop.f32.mrf.mxu0
      %v2534 = vadd.f32 0.0, %v2533
      %v2535 = vpop.f32.mrf.mxu0
      %v2536 = vpop.f32.mrf.mxu0
      %v2537 = vadd.f32 0.0, %v2536
      %v2538 = vpop.f32.mrf.mxu0
      %2539 = vmatprep.mubr.bf16.mxu0 0
      %2540 = vmatmul.mubr.bf16.gmra.mxu0 %v1036
      %v2541 = vpop.f32.mrf.mxu0
      %v2542 = vadd.f32 0.0, %v2541
      %v2543 = vpop.f32.mrf.mxu0
      %v2544 = vpop.f32.mrf.mxu0
      %v2545 = vadd.f32 0.0, %v2544
      %v2546 = vpop.f32.mrf.mxu0
      %2547 = vmatprep.mubr.bf16.mxu0 0
      %2548 = vmatmul.mubr.bf16.gmra.mxu0 %v1037
      %v2549 = vpop.f32.mrf.mxu0
      %v2550 = vadd.f32 0.0, %v2549
      %v2551 = vpop.f32.mrf.mxu0
      %v2552 = vpop.f32.mrf.mxu0
      %v2553 = vadd.f32 0.0, %v2552
      %v2554 = vpop.f32.mrf.mxu0
      %2555 = vmatprep.mubr.bf16.mxu0 0
      %2556 = vmatmul.mubr.bf16.gmra.mxu0 %v1038
      %v2557 = vpop.f32.mrf.mxu0
      %v2558 = vadd.f32 0.0, %v2557
      %v2559 = vpop.f32.mrf.mxu0
      %v2560 = vpop.f32.mrf.mxu0
      %v2561 = vadd.f32 0.0, %v2560
      %v2562 = vpop.f32.mrf.mxu0
      %2563 = vmatprep.mubr.bf16.mxu0 0
      %2564 = vmatmul.mubr.bf16.gmra.mxu0 %v1039
      %v2565 = vpop.f32.mrf.mxu0
      %v2566 = vadd.f32 0.0, %v2565
      %v2567 = vpop.f32.mrf.mxu0
      %v2568 = vpop.f32.mrf.mxu0
      %v2569 = vadd.f32 0.0, %v2568
      %v2570 = vpop.f32.mrf.mxu0
      %2571 = vmatprep.mubr.bf16.mxu0 0
      %2572 = vmatmul.mubr.bf16.gmra.mxu0 %v1040
      %v2573 = vpop.f32.mrf.mxu0
      %v2574 = vadd.f32 0.0, %v2573
      %v2575 = vpop.f32.mrf.mxu0
      %v2576 = vpop.f32.mrf.mxu0
      %v2577 = vadd.f32 0.0, %v2576
      %v2578 = vpop.f32.mrf.mxu0
      %2579 = vmatprep.mubr.bf16.mxu0 0
      %2580 = vmatmul.mubr.bf16.gmra.mxu0 %v1041
      %v2581 = vpop.f32.mrf.mxu0
      %v2582 = vadd.f32 0.0, %v2581
      %v2583 = vpop.f32.mrf.mxu0
      %v2584 = vpop.f32.mrf.mxu0
      %v2585 = vadd.f32 0.0, %v2584
      %v2586 = vpop.f32.mrf.mxu0
      %2587 = vmatprep.mubr.bf16.mxu0 0
      %2588 = vmatmul.mubr.bf16.gmra.mxu0 %v1042
      %v2589 = vpop.f32.mrf.mxu0
      %v2590 = vadd.f32 0.0, %v2589
      %v2591 = vpop.f32.mrf.mxu0
      %v2592 = vpop.f32.mrf.mxu0
      %v2593 = vadd.f32 0.0, %v2592
      %v2594 = vpop.f32.mrf.mxu0
      %2595 = vdwg.mxu0
      %v2596 = vadd.f32 %v2418, %v2534
      %v2597 = vadd.f32 %v2419, %v2537
      %v2598 = vadd.f32 %v2420, %v2542
      %v2599 = vadd.f32 %v2421, %v2545
      %v2600 = vadd.f32 %v2422, %v2550
      %v2601 = vadd.f32 %v2423, %v2553
      %v2602 = vadd.f32 %v2424, %v2558
      %v2603 = vadd.f32 %v2425, %v2561
      %v2604 = vadd.f32 %v2426, %v2566
      %v2605 = vadd.f32 %v2427, %v2569
      %v2606 = vadd.f32 %v2428, %v2574
      %v2607 = vadd.f32 %v2429, %v2577
      %v2608 = vadd.f32 %v2430, %v2582
      %v2609 = vadd.f32 %v2431, %v2585
      %v2610 = vadd.f32 %v2432, %v2590
      %v2611 = vadd.f32 %v2433, %v2593
      %v2612 = vadd.f32 %v2596, %v2597
      %v2613 = vadd.f32 %v2612, %v2598
      %v2614 = vadd.f32 %v2613, %v2599
      %v2615 = vadd.f32 %v2614, %v2600
      %v2616 = vadd.f32 %v2615, %v2601
      %v2617 = vadd.f32 %v2616, %v2602
      %v2618 = vadd.f32 %v2617, %v2603
      %v2619 = vadd.f32 %v2618, %v2604
      %v2620 = vadd.f32 %v2619, %v2605
      %v2621 = vadd.f32 %v2620, %v2606
      %v2622 = vadd.f32 %v2621, %v2607
      %v2623 = vadd.f32 %v2622, %v2608
      %v2624 = vadd.f32 %v2623, %v2609
      %v2625 = vadd.f32 %v2624, %v2610
      %v2626 = vadd.f32 %v2625, %v2611
      %v2627 = vrot.slane %v2626, 4
      %v2628 = vadd.f32 %v2626, %v2627
      %v2629 = vrot.slane %v2628, 2
      %v2630 = vadd.f32 %v2628, %v2629
      %v2631 = vrot.slane %v2630, 1
      %v2632 = vadd.f32 %v2630, %v2631
      %2633 = vst [vmem:[%s449] sm:$0x1] %v2632
      %v2634 = vmul.f32 %v2596, %v2596
      %v2635 = vmul.f32 %v2597, %v2597
      %v2636 = vmul.f32 %v2598, %v2598
      %v2637 = vmul.f32 %v2599, %v2599
      %v2638 = vmul.f32 %v2600, %v2600
      %v2639 = vmul.f32 %v2601, %v2601
      %v2640 = vmul.f32 %v2602, %v2602
      %v2641 = vmul.f32 %v2603, %v2603
      %v2642 = vmul.f32 %v2604, %v2604
      %v2643 = vmul.f32 %v2605, %v2605
      %v2644 = vmul.f32 %v2606, %v2606
      %v2645 = vmul.f32 %v2607, %v2607
      %v2646 = vmul.f32 %v2608, %v2608
      %v2647 = vmul.f32 %v2609, %v2609
      %v2648 = vmul.f32 %v2610, %v2610
      %v2649 = vmul.f32 %v2611, %v2611
      %v2650 = vadd.f32 %v2634, %v2635
      %v2651 = vadd.f32 %v2650, %v2636
      %v2652 = vadd.f32 %v2651, %v2637
      %v2653 = vadd.f32 %v2652, %v2638
      %v2654 = vadd.f32 %v2653, %v2639
      %v2655 = vadd.f32 %v2654, %v2640
      %v2656 = vadd.f32 %v2655, %v2641
      %v2657 = vadd.f32 %v2656, %v2642
      %v2658 = vadd.f32 %v2657, %v2643
      %v2659 = vadd.f32 %v2658, %v2644
      %v2660 = vadd.f32 %v2659, %v2645
      %v2661 = vadd.f32 %v2660, %v2646
      %v2662 = vadd.f32 %v2661, %v2647
      %v2663 = vadd.f32 %v2662, %v2648
      %v2664 = vadd.f32 %v2663, %v2649
      %v2665 = vrot.slane %v2664, 4
      %v2666 = vadd.f32 %v2664, %v2665
      %v2667 = vrot.slane %v2666, 2
      %v2668 = vadd.f32 %v2666, %v2667
      %v2669 = vrot.slane %v2668, 1
      %v2670 = vadd.f32 %v2668, %v2669
      %2671 = vst [vmem:[%s456] sm:$0x1] %v2670
      %v2672 = vpack.c.bf16 %v2597, %v2596
      %v2673 = vpack.c.bf16 %v2599, %v2598
      %v2674 = vpack.c.bf16 %v2601, %v2600
      %v2675 = vpack.c.bf16 %v2603, %v2602
      %v2676 = vpack.c.bf16 %v2605, %v2604
      %v2677 = vpack.c.bf16 %v2607, %v2606
      %v2678 = vpack.c.bf16 %v2609, %v2608
      %v2679 = vpack.c.bf16 %v2611, %v2610
      %v2688 = vunpack.c.l.b16 %v2672
      %v2689 = vunpack.c.h.b16 %v2672
      %v2690 = vunpack.c.l.b16 %v2673
      %v2691 = vunpack.c.h.b16 %v2673
      %v2692 = vunpack.c.l.b16 %v2674
      %v2693 = vunpack.c.h.b16 %v2674
      %v2694 = vunpack.c.l.b16 %v2675
      %v2695 = vunpack.c.h.b16 %v2675
      %v2696 = vunpack.c.l.b16 %v2676
      %v2697 = vunpack.c.h.b16 %v2676
      %v2698 = vunpack.c.l.b16 %v2677
      %v2699 = vunpack.c.h.b16 %v2677
      %v2700 = vunpack.c.l.b16 %v2678
      %v2701 = vunpack.c.h.b16 %v2678
      %v2702 = vunpack.c.l.b16 %v2679
      %v2703 = vunpack.c.h.b16 %v2679
      %v2704 = vpack.c.b16 %v2688, %v2688
      %v2705 = vpack.c.b16 %v2689, %v2689
      %v2706 = vpack.c.b16 %v2690, %v2690
      %v2707 = vpack.c.b16 %v2691, %v2691
      %v2708 = vpack.c.b16 %v2692, %v2692
      %v2709 = vpack.c.b16 %v2693, %v2693
      %v2710 = vpack.c.b16 %v2694, %v2694
      %v2711 = vpack.c.b16 %v2695, %v2695
      %v2712 = vpack.c.b16 %v2696, %v2696
      %v2713 = vpack.c.b16 %v2697, %v2697
      %v2714 = vpack.c.b16 %v2698, %v2698
      %v2715 = vpack.c.b16 %v2699, %v2699
      %v2716 = vpack.c.b16 %v2700, %v2700
      %v2717 = vpack.c.b16 %v2701, %v2701
      %v2718 = vpack.c.b16 %v2702, %v2702
      %v2719 = vpack.c.b16 %v2703, %v2703
      %2736 = vst [vmem:[%s441] sm:$0xf] %v2704
      %2737 = vst [vmem:[%s441 + $0x4] sm:$0xf] %v2705
      %2738 = vst [vmem:[%s441 + $0x8] sm:$0xf] %v2706
      %2739 = vst [vmem:[%s441 + $0xc] sm:$0xf] %v2707
      %2740 = vst [vmem:[%s441 + $0x10] sm:$0xf] %v2708
      %2741 = vst [vmem:[%s441 + $0x14] sm:$0xf] %v2709
      %2742 = vst [vmem:[%s441 + $0x18] sm:$0xf] %v2710
      %2743 = vst [vmem:[%s441 + $0x1c] sm:$0xf] %v2711
      %2744 = vst [vmem:[%s441 + $0x20] sm:$0xf] %v2712
      %2745 = vst [vmem:[%s441 + $0x24] sm:$0xf] %v2713
      %2746 = vst [vmem:[%s441 + $0x28] sm:$0xf] %v2714
      %2747 = vst [vmem:[%s441 + $0x2c] sm:$0xf] %v2715
      %2748 = vst [vmem:[%s441 + $0x30] sm:$0xf] %v2716
      %2749 = vst [vmem:[%s441 + $0x34] sm:$0xf] %v2717
      %2750 = vst [vmem:[%s441 + $0x38] sm:$0xf] %v2718
      %2751 = vst [vmem:[%s441 + $0x3c] sm:$0xf] %v2719
      %s2752 = smul.u32 8, %s23
      %p2753 = scmp.lt.s32.totalorder %s22, 1
      %s2754 = scalar_select %p2753, %s22, 1
      %p2755 = scmp.lt.s32.totalorder %s2752, 15
      %s2756 = scalar_select %p2755, %s2752, 15
      %s2757 = smul.addr %s2756, 2
      %s2758 = smul.addr %s2754, 32
      %s2759 = sadd.s32 %s2757, %s2758
      %s2760 = smul.addr %s2759, 4
      %s2761 = scalar_lea.vmem %s4, %s2760
      %p2762 = scmp.lt.s32.totalorder %s22, 1
      %s2763 = scalar_select %p2762, %s22, 1
      %p2764 = scmp.lt.s32.totalorder %s23, 1
      %s2765 = scalar_select %p2764, %s23, 1
      %s2766 = smul.addr %s2763, 2
      %s2767 = sadd.s32 %s2765, %s2766
      %s2768 = scalar_lea.vmem %s5, %s2767
      %p2769 = scmp.lt.s32.totalorder %s22, 1
      %s2770 = scalar_select %p2769, %s22, 1
      %p2771 = scmp.lt.s32.totalorder %s23, 1
      %s2772 = scalar_select %p2771, %s23, 1
      %s2773 = smul.addr %s2770, 2
      %s2774 = sadd.s32 %s2772, %s2773
      %s2775 = scalar_lea.vmem %s6, %s2774
      // Predicated region
      $region37: #{double_conv.3} parent=35 // pred_check
        %p2776 = pneg %p171
      $region38: #{double_conv.3} parent=35 // pred_check_branch
        %2778 = sbr.rel (%p2776) target = $region40
      $region39: #{double_conv.3} parent=35 // pred_region
        %s2779 = smul.u32 8, %s23
      $region40: #{double_conv.3} parent=35 // pred_fallthru
        _
      // Predicated region
      $region41: #{double_conv.3} parent=35 // pred_check
        %p2780 = pneg %p199
      $region42: #{double_conv.3} parent=35 // pred_check_branch
        %2782 = sbr.rel (%p2780) target = $region44
      $region43: #{double_conv.3} parent=35 // pred_region
        _
      $region44: #{double_conv.3} parent=35 // pred_fallthru
        _
      // Predicated region
      $region45: #{double_conv.3} parent=35 // pred_check
        %p2783 = pneg %p227
      $region46: #{double_conv.3} parent=35 // pred_check_branch
        %2785 = sbr.rel (%p2783) target = $region48
      $region47: #{double_conv.3} parent=35 // pred_region
        _
      $region48: #{double_conv.3} parent=35 // pred_fallthru
        _
    $region36: #{double_conv.3} parent=5 // pred_fallthru
      _
    %p2786 = scmp.le.s32.totalorder 2, %s13
    // Predicated region
    $region49: #{double_conv.3} parent=5 // pred_check
      %p2787 = pneg %p2786
    $region50: #{double_conv.3} parent=5 // pred_check_branch
      %2789 = sbr.rel (%p2787) target = $region52
    $region51: #{double_conv.3} parent=5 // pred_region
      %s2790 = ssub.s32 %s13, 2
      // Predicated region
      $region53: #{double_conv.3} parent=51 // pred_check
        %p2791 = pneg %p177
      $region54: #{double_conv.3} parent=51 // pred_check_branch
        %2793 = sbr.rel (%p2791) target = $region56
      $region55: #{double_conv.3} parent=51 // pred_region
        %s2794 = smul.u32 8, %s25
        %p2795 = scmp.lt.s32.totalorder %s24, 1
        %s2796 = scalar_select %p2795, %s24, 1
        %p2797 = scmp.lt.s32.totalorder %s2794, 15
        %s2798 = scalar_select %p2797, %s2794, 15
        %s2799 = smul.addr %s2798, 2
        %s2800 = smul.addr %s2796, 32
        %s2801 = sadd.s32 %s2799, %s2800
        %s2802 = smul.addr %s2801, 4
        %s2803 = scalar_lea.vmem %s4, %s2802
      $region56: #{double_conv.3} parent=51 // pred_fallthru
        _
      // Predicated region
      $region57: #{double_conv.3} parent=51 // pred_check
        %p2804 = pneg %p205
      $region58: #{double_conv.3} parent=51 // pred_check_branch
        %2806 = sbr.rel (%p2804) target = $region60
      $region59: #{double_conv.3} parent=51 // pred_region
        %p2807 = scmp.lt.s32.totalorder %s24, 1
        %s2808 = scalar_select %p2807, %s24, 1
        %p2809 = scmp.lt.s32.totalorder %s25, 1
        %s2810 = scalar_select %p2809, %s25, 1
        %s2811 = smul.addr %s2808, 2
        %s2812 = sadd.s32 %s2810, %s2811
        %s2813 = scalar_lea.vmem %s5, %s2812
      $region60: #{double_conv.3} parent=51 // pred_fallthru
        _
      // Predicated region
      $region61: #{double_conv.3} parent=51 // pred_check
        %p2814 = pneg %p233
      $region62: #{double_conv.3} parent=51 // pred_check_branch
        %2816 = sbr.rel (%p2814) target = $region64
      $region63: #{double_conv.3} parent=51 // pred_region
        %p2817 = scmp.lt.s32.totalorder %s24, 1
        %s2818 = scalar_select %p2817, %s24, 1
        %p2819 = scmp.lt.s32.totalorder %s25, 1
        %s2820 = scalar_select %p2819, %s25, 1
        %s2821 = smul.addr %s2818, 2
        %s2822 = sadd.s32 %s2820, %s2821
        %s2823 = scalar_lea.vmem %s6, %s2822
      $region64: #{double_conv.3} parent=51 // pred_fallthru
        _
    $region52: #{double_conv.3} parent=5 // pred_fallthru
      _
  $region6: #{double_conv.3} parent=0 // loop_footer
    %s17 = sadd.s32 1, %s13
  $region7: #{double_conv.3} parent=0 // loop_footer_branch
    %12 = sbr.rel target = $region3
  $region8: #{double_conv.3} parent=0 // loop_exit
    _

// kernel: double_conv.4
$region0: #{double_conv.4}
  #allocation0 [shape = 'u32[]', space=smem, size = 0x4, offset = 0x4, fixed_abs, tag = 'smem constant byte address 0x4 - core index']
  #allocation1 [shape = 'u32[144,128]{1,0:T(1,128)}', space=vmem, size = 0x12000, scoped, tag = 'internal scratch']
  %s0 = inlined_call_operand.vmem [shape: bf16[2,16,16,128], index: 0, kind: input, shape index: {}, may-alias: {0,1,2}]
  %s1 = inlined_call_operand.vmem [shape: bf16[2,16,16,128], index: 1, kind: input, shape index: {}, may-alias: {0,1,2}]
  %s2 = inlined_call_operand.vmem [shape: bf16[2,16,16,128], index: 2, kind: input, shape index: {}, may-alias: {0,1,2}]
  %s3 = inlined_call_operand.vmem [shape: bf16[9,128,128], index: 3, kind: input, shape index: {}]
  %s4 = inlined_call_operand.vmem [shape: f32[1,128], index: 4, kind: input, shape index: {}]
  %s5 = inlined_call_operand.vmem [shape: f32[1,128], index: 5, kind: input, shape index: {}]
  %s6 = inlined_call_operand.vmem [shape: bf16[2,16,16,128], index: 6, kind: output, shape index: {0}]
  %s7 = inlined_call_operand.vmem [shape: f32[2,2,1,128], index: 7, kind: output, shape index: {1}]
  %s8 = inlined_call_operand.vmem [shape: f32[2,2,1,128], index: 8, kind: output, shape index: {2}]
  %9 = xla_tuple %s6, %s7, %s8
  %s10 = sld [smem:[#allocation0]]
  $region73: #{double_conv.4} parent=0
    _
  %s12 = ssub.s32 1, %s10
  %s13 = scalar_select 0, %s12, %s10
  loop: start=0, step=1, limit=6
  $region2: #{double_conv.4} parent=0 // loop_pre_header
    _
  $region3: #{double_conv.4} parent=0 // loop_header
    %s15 = sphi 0, %s19
    %p16 = scmp.ge.s32.totalorder %s15, 6
    %s22 = sphi 0, %s34
    %s23 = sphi 0, %s30
    %s24 = sphi 0, %s22
    %s25 = sphi 0, %s23
    %s26 = sphi 0, %s24
    %s27 = sphi 0, %s25
    %s39 = sphi 0, %s41
    %s42 = sphi 0, %s39
    %s43 = sphi 0, %s42
    %s59 = sphi 0, %s43
    %s75 = sphi 0, %s77
    %s78 = sphi 0, %s75
    %s79 = sphi 0, %s78
    %s95 = sphi 0, %s79
    %s111 = sphi 0, %s113
    %s114 = sphi 0, %s111
    %s115 = sphi 0, %s114
    %s131 = sphi 0, %s115
    %s135 = sphi 0, %s135
    %s137 = sphi 0, %s135
    %s138 = sphi 0, %s137
    %s152 = sphi 0, %s138
    %s156 = sphi 0, %s156
    %s158 = sphi 0, %s156
    %s159 = sphi 0, %s158
    %s173 = sphi 0, %s159
    %s177 = sphi 0, %s177
    %s179 = sphi 0, %s177
    %s180 = sphi 0, %s179
    %s194 = sphi 0, %s180
    %s202 = sphi 0, %s204
    %s205 = sphi 0, %s202
    %s206 = sphi 0, %s205
    %s222 = sphi 0, %s206
    %s230 = sphi 0, %s232
    %s233 = sphi 0, %s230
    %s234 = sphi 0, %s233
    %s250 = sphi 0, %s234
    %s258 = sphi 0, %s260
    %s261 = sphi 0, %s258
    %s262 = sphi 0, %s261
    %s278 = sphi 0, %s262
  $region4: #{double_conv.4} parent=0 // loop_header_branch
    %18 = sbr.rel (%p16) target = $region8
  $region5: #{double_conv.4} parent=0 // loop_body
    %s20 = ssub.s32 %s15, 1
    %s21 = ssub.s32 %s15, 2
    %s28 = sadd.s32 1, %s23
    %p29 = scmp.ge.s32.totalorder %s28, 2
    %s30 = scalar_select %p29, 0, %s28
    %s31 = sadd.s32 1, %s22
    %s32 = scalar_select %p29, %s31, %s22
    %p33 = scmp.ge.s32.totalorder %s32, 2
    %s34 = scalar_select %p33, 0, %s32
    %s35 = ssub.s32 %s22, %s34
    %s36 = ssub.s32 %s23, %s30
    %s37 = sor.u32 %s35, %s36
    %p38 = scmp.eq.s32.totalorder %s37, 0
    %s40 = sadd.s32 %s39, 1
    %s41 = scalar_select %p38, %s39, %s40
    %p44 = pneg %p38
    %p45 = scmp.eq.s32.totalorder %s15, 3
    %p46 = por %p44, %p45
    %p47 = scmp.ne.s32.totalorder %s39, %s42
    %p48 = scmp.eq.s32.totalorder %s15, 0
    %p49 = por %p47, %p48
    %p50 = scmp.ne.s32.totalorder %s39, %s42
    %p51 = scmp.eq.s32.totalorder %s20, 3
    %p52 = por %p50, %p51
    %p53 = scmp.ne.s32.totalorder %s42, %s43
    %p54 = scmp.eq.s32.totalorder %s20, 0
    %p55 = por %p53, %p54
    %p56 = scmp.ne.s32.totalorder %s42, %s43
    %p57 = scmp.eq.s32.totalorder %s21, 3
    %p58 = por %p56, %p57
    %p60 = scmp.ne.s32.totalorder %s43, %s59
    %p61 = scmp.eq.s32.totalorder %s21, 0
    %p62 = por %p60, %p61
    %s63 = smul.u32 %s23, 8
    %s64 = ssub.s32 %s63, 1
    %p65 = scmp.gt.s32.totalorder %s64, 0
    %s66 = scalar_select %p65, %s64, 0
    %s67 = smul.u32 %s30, 8
    %s68 = ssub.s32 %s67, 1
    %p69 = scmp.gt.s32.totalorder %s68, 0
    %s70 = scalar_select %p69, %s68, 0
    %s71 = ssub.s32 %s22, %s34
    %s72 = ssub.s32 %s66, %s70
    %s73 = sor.u32 %s71, %s72
    %p74 = scmp.eq.s32.totalorder %s73, 0
    %s76 = sadd.s32 %s75, 1
    %s77 = scalar_select %p74, %s75, %s76
    %p80 = pneg %p74
    %p81 = scmp.eq.s32.totalorder %s15, 3
    %p82 = por %p80, %p81
    %p83 = scmp.ne.s32.totalorder %s75, %s78
    %p84 = scmp.eq.s32.totalorder %s15, 0
    %p85 = por %p83, %p84
    %p86 = scmp.ne.s32.totalorder %s75, %s78
    %p87 = scmp.eq.s32.totalorder %s20, 3
    %p88 = por %p86, %p87
    %p89 = scmp.ne.s32.totalorder %s78, %s79
    %p90 = scmp.eq.s32.totalorder %s20, 0
    %p91 = por %p89, %p90
    %p92 = scmp.ne.s32.totalorder %s78, %s79
    %p93 = scmp.eq.s32.totalorder %s21, 3
    %p94 = por %p92, %p93
    %p96 = scmp.ne.s32.totalorder %s79, %s95
    %p97 = scmp.eq.s32.totalorder %s21, 0
    %p98 = por %p96, %p97
    %s99 = sadd.s32 %s23, 1
    %s100 = smul.u32 %s99, 8
    %p101 = scmp.lt.s32.totalorder %s100, 15
    %s102 = scalar_select %p101, %s100, 15
    %s103 = sadd.s32 %s30, 1
    %s104 = smul.u32 %s103, 8
    %p105 = scmp.lt.s32.totalorder %s104, 15
    %s106 = scalar_select %p105, %s104, 15
    %s107 = ssub.s32 %s22, %s34
    %s108 = ssub.s32 %s102, %s106
    %s109 = sor.u32 %s107, %s108
    %p110 = scmp.eq.s32.totalorder %s109, 0
    %s112 = sadd.s32 %s111, 1
    %s113 = scalar_select %p110, %s111, %s112
    %p116 = pneg %p110
    %p117 = scmp.eq.s32.totalorder %s15, 3
    %p118 = por %p116, %p117
    %p119 = scmp.ne.s32.totalorder %s111, %s114
    %p120 = scmp.eq.s32.totalorder %s15, 0
    %p121 = por %p119, %p120
    %p122 = scmp.ne.s32.totalorder %s111, %s114
    %p123 = scmp.eq.s32.totalorder %s20, 3
    %p124 = por %p122, %p123
    %p125 = scmp.ne.s32.totalorder %s114, %s115
    %p126 = scmp.eq.s32.totalorder %s20, 0
    %p127 = por %p125, %p126
    %p128 = scmp.ne.s32.totalorder %s114, %s115
    %p129 = scmp.eq.s32.totalorder %s21, 3
    %p130 = por %p128, %p129
    %p132 = scmp.ne.s32.totalorder %s115, %s131
    %p133 = scmp.eq.s32.totalorder %s21, 0
    %p134 = por %p132, %p133
    %s136 = sadd.s32 %s135, 1
    %p139 = scmp.eq.s32.totalorder %s15, 3
    %p140 = scmp.ne.s32.totalorder %s135, %s137
    %p141 = scmp.eq.s32.totalorder %s15, 0
    %p142 = por %p140, %p141
    %p143 = scmp.ne.s32.totalorder %s135, %s137
    %p144 = scmp.eq.s32.totalorder %s20, 3
    %p145 = por %p143, %p144
    %p146 = scmp.ne.s32.totalorder %s137, %s138
    %p147 = scmp.eq.s32.totalorder %s20, 0
    %p148 = por %p146, %p147
    %p149 = scmp.ne.s32.totalorder %s137, %s138
    %p150 = scmp.eq.s32.totalorder %s21, 3
    %p151 = por %p149, %p150
    %p153 = scmp.ne.s32.totalorder %s138, %s152
    %p154 = scmp.eq.s32.totalorder %s21, 0
    %p155 = por %p153, %p154
    %s157 = sadd.s32 %s156, 1
    %p160 = scmp.eq.s32.totalorder %s15, 3
    %p161 = scmp.ne.s32.totalorder %s156, %s158
    %p162 = scmp.eq.s32.totalorder %s15, 0
    %p163 = por %p161, %p162
    %p164 = scmp.ne.s32.totalorder %s156, %s158
    %p165 = scmp.eq.s32.totalorder %s20, 3
    %p166 = por %p164, %p165
    %p167 = scmp.ne.s32.totalorder %s158, %s159
    %p168 = scmp.eq.s32.totalorder %s20, 0
    %p169 = por %p167, %p168
    %p170 = scmp.ne.s32.totalorder %s158, %s159
    %p171 = scmp.eq.s32.totalorder %s21, 3
    %p172 = por %p170, %p171
    %p174 = scmp.ne.s32.totalorder %s159, %s173
    %p175 = scmp.eq.s32.totalorder %s21, 0
    %p176 = por %p174, %p175
    %s178 = sadd.s32 %s177, 1
    %p181 = scmp.eq.s32.totalorder %s15, 3
    %p182 = scmp.ne.s32.totalorder %s177, %s179
    %p183 = scmp.eq.s32.totalorder %s15, 0
    %p184 = por %p182, %p183
    %p185 = scmp.ne.s32.totalorder %s177, %s179
    %p186 = scmp.eq.s32.totalorder %s20, 3
    %p187 = por %p185, %p186
    %p188 = scmp.ne.s32.totalorder %s179, %s180
    %p189 = scmp.eq.s32.totalorder %s20, 0
    %p190 = por %p188, %p189
    %p191 = scmp.ne.s32.totalorder %s179, %s180
    %p192 = scmp.eq.s32.totalorder %s21, 3
    %p193 = por %p191, %p192
    %p195 = scmp.ne.s32.totalorder %s180, %s194
    %p196 = scmp.eq.s32.totalorder %s21, 0
    %p197 = por %p195, %p196
    %s198 = ssub.s32 %s22, %s34
    %s199 = ssub.s32 %s23, %s30
    %s200 = sor.u32 %s198, %s199
    %p201 = scmp.eq.s32.totalorder %s200, 0
    %s203 = sadd.s32 %s202, 1
    %s204 = scalar_select %p201, %s202, %s203
    %p207 = pneg %p201
    %p208 = scmp.eq.s32.totalorder %s15, 3
    %p209 = por %p207, %p208
    %p210 = scmp.ne.s32.totalorder %s202, %s205
    %p211 = scmp.eq.s32.totalorder %s15, 0
    %p212 = por %p210, %p211
    %p213 = scmp.ne.s32.totalorder %s202, %s205
    %p214 = scmp.eq.s32.totalorder %s20, 3
    %p215 = por %p213, %p214
    %p216 = scmp.ne.s32.totalorder %s205, %s206
    %p217 = scmp.eq.s32.totalorder %s20, 0
    %p218 = por %p216, %p217
    %p219 = scmp.ne.s32.totalorder %s205, %s206
    %p220 = scmp.eq.s32.totalorder %s21, 3
    %p221 = por %p219, %p220
    %p223 = scmp.ne.s32.totalorder %s206, %s222
    %p224 = scmp.eq.s32.totalorder %s21, 0
    %p225 = por %p223, %p224
    %s226 = ssub.s32 %s22, %s34
    %s227 = ssub.s32 %s23, %s30
    %s228 = sor.u32 %s226, %s227
    %p229 = scmp.eq.s32.totalorder %s228, 0
    %s231 = sadd.s32 %s230, 1
    %s232 = scalar_select %p229, %s230, %s231
    %p235 = pneg %p229
    %p236 = scmp.eq.s32.totalorder %s15, 3
    %p237 = por %p235, %p236
    %p238 = scmp.ne.s32.totalorder %s230, %s233
    %p239 = scmp.eq.s32.totalorder %s15, 0
    %p240 = por %p238, %p239
    %p241 = scmp.ne.s32.totalorder %s230, %s233
    %p242 = scmp.eq.s32.totalorder %s20, 3
    %p243 = por %p241, %p242
    %p244 = scmp.ne.s32.totalorder %s233, %s234
    %p245 = scmp.eq.s32.totalorder %s20, 0
    %p246 = por %p244, %p245
    %p247 = scmp.ne.s32.totalorder %s233, %s234
    %p248 = scmp.eq.s32.totalorder %s21, 3
    %p249 = por %p247, %p248
    %p251 = scmp.ne.s32.totalorder %s234, %s250
    %p252 = scmp.eq.s32.totalorder %s21, 0
    %p253 = por %p251, %p252
    %s254 = ssub.s32 %s22, %s34
    %s255 = ssub.s32 %s23, %s30
    %s256 = sor.u32 %s254, %s255
    %p257 = scmp.eq.s32.totalorder %s256, 0
    %s259 = sadd.s32 %s258, 1
    %s260 = scalar_select %p257, %s258, %s259
    %p263 = pneg %p257
    %p264 = scmp.eq.s32.totalorder %s15, 3
    %p265 = por %p263, %p264
    %p266 = scmp.ne.s32.totalorder %s258, %s261
    %p267 = scmp.eq.s32.totalorder %s15, 0
    %p268 = por %p266, %p267
    %p269 = scmp.ne.s32.totalorder %s258, %s261
    %p270 = scmp.eq.s32.totalorder %s20, 3
    %p271 = por %p269, %p270
    %p272 = scmp.ne.s32.totalorder %s261, %s262
    %p273 = scmp.eq.s32.totalorder %s20, 0
    %p274 = por %p272, %p273
    %p275 = scmp.ne.s32.totalorder %s261, %s262
    %p276 = scmp.eq.s32.totalorder %s21, 3
    %p277 = por %p275, %p276
    %p279 = scmp.ne.s32.totalorder %s262, %s278
    %p280 = scmp.eq.s32.totalorder %s21, 0
    %p281 = por %p279, %p280
    %p282 = scmp.le.s32.totalorder 1, %s15
    %p283 = scmp.lt.s32.totalorder %s15, 5
    %p284 = pnand %p282, %p283
    %p285 = pneg %p284
    // Predicated region
    $region9: #{double_conv.4} parent=5 // pred_check
      _
    $region10: #{double_conv.4} parent=5 // pred_check_branch
      %287 = sbr.rel (%p284) target = $region12
    $region11: #{double_conv.4} parent=5 // pred_region
      %s288 = ssub.s32 %s15, 1
      // Predicated region
      $region13: #{double_conv.4} parent=11 // pred_check
        %p289 = pneg %p148
      $region14: #{double_conv.4} parent=11 // pred_check_branch
        %291 = sbr.rel (%p289) target = $region16
      $region15: #{double_conv.4} parent=11 // pred_region
        _
      $region16: #{double_conv.4} parent=11 // pred_fallthru
        _
      // Predicated region
      $region17: #{double_conv.4} parent=11 // pred_check
        %p292 = pneg %p169
      $region18: #{double_conv.4} parent=11 // pred_check_branch
        %294 = sbr.rel (%p292) target = $region20
      $region19: #{double_conv.4} parent=11 // pred_region
        _
      $region20: #{double_conv.4} parent=11 // pred_fallthru
        _
      // Predicated region
      $region21: #{double_conv.4} parent=11 // pred_check
        %p295 = pneg %p190
      $region22: #{double_conv.4} parent=11 // pred_check_branch
        %297 = sbr.rel (%p295) target = $region24
      $region23: #{double_conv.4} parent=11 // pred_region
        _
      $region24: #{double_conv.4} parent=11 // pred_fallthru
        _
    $region12: #{double_conv.4} parent=5 // pred_fallthru
      _
    %p298 = scmp.lt.s32.totalorder %s15, 4
    // Predicated region
    $region25: #{double_conv.4} parent=5 // pred_check
      %p299 = pneg %p298
    $region26: #{double_conv.4} parent=5 // pred_check_branch
      %301 = sbr.rel (%p299) target = $region28
    $region27: #{double_conv.4} parent=5 // pred_region
      // Predicated region
      $region29: #{double_conv.4} parent=27 // pred_check
        %p302 = pneg %p49
      $region30: #{double_conv.4} parent=27 // pred_check_branch
        %304 = sbr.rel (%p302) target = $region32
      $region31: #{double_conv.4} parent=27 // pred_region
        %s305 = smul.u32 8, %s23
        %p306 = scmp.lt.s32.totalorder %s22, 1
        %s307 = scalar_select %p306, %s22, 1
        %p308 = scmp.lt.s32.totalorder %s305, 15
        %s309 = scalar_select %p308, %s305, 15
        %s310 = smul.addr %s309, 2
        %s311 = smul.addr %s307, 32
        %s312 = sadd.s32 %s310, %s311
        %s313 = smul.addr %s312, 4
        %s314 = scalar_lea.vmem %s0, %s313
        %s315 = smul.u32 8, %s23
      $region32: #{double_conv.4} parent=27 // pred_fallthru
        _
      // Predicated region
      $region33: #{double_conv.4} parent=27 // pred_check
        %p316 = pneg %p85
      $region34: #{double_conv.4} parent=27 // pred_check_branch
        %318 = sbr.rel (%p316) target = $region36
      $region35: #{double_conv.4} parent=27 // pred_region
        %s319 = smul.u32 %s23, 8
        %s320 = ssub.s32 %s319, 1
        %p321 = scmp.gt.s32.totalorder %s320, 0
        %s322 = scalar_select %p321, %s320, 0
        %p323 = scmp.lt.s32.totalorder %s22, 1
        %s324 = scalar_select %p323, %s22, 1
        %p325 = scmp.lt.s32.totalorder %s322, 15
        %s326 = scalar_select %p325, %s322, 15
        %s327 = smul.addr %s326, 2
        %s328 = smul.addr %s324, 32
        %s329 = sadd.s32 %s327, %s328
        %s330 = smul.addr %s329, 4
        %s331 = scalar_lea.vmem %s1, %s330
        %s332 = smul.u32 %s23, 8
        %s333 = ssub.s32 %s332, 1
        %p334 = scmp.gt.s32.totalorder %s333, 0
        %s335 = scalar_select %p334, %s333, 0
      $region36: #{double_conv.4} parent=27 // pred_fallthru
        _
      // Predicated region
      $region37: #{double_conv.4} parent=27 // pred_check
        %p336 = pneg %p121
      $region38: #{double_conv.4} parent=27 // pred_check_branch
        %338 = sbr.rel (%p336) target = $region40
      $region39: #{double_conv.4} parent=27 // pred_region
        %s339 = sadd.s32 %s23, 1
        %s340 = smul.u32 %s339, 8
        %p341 = scmp.lt.s32.totalorder %s340, 15
        %s342 = scalar_select %p341, %s340, 15
        %p343 = scmp.lt.s32.totalorder %s22, 1
        %s344 = scalar_select %p343, %s22, 1
        %p345 = scmp.lt.s32.totalorder %s342, 15
        %s346 = scalar_select %p345, %s342, 15
        %s347 = smul.addr %s346, 2
        %s348 = smul.addr %s344, 32
        %s349 = sadd.s32 %s347, %s348
        %s350 = smul.addr %s349, 4
        %s351 = scalar_lea.vmem %s2, %s350
        %s352 = sadd.s32 %s23, 1
        %s353 = smul.u32 %s352, 8
        %p354 = scmp.lt.s32.totalorder %s353, 15
        %s355 = scalar_select %p354, %s353, 15
      $region40: #{double_conv.4} parent=27 // pred_fallthru
        _
    $region28: #{double_conv.4} parent=5 // pred_fallthru
      _
    %p356 = scmp.le.s32.totalorder 1, %s15
    %p357 = scmp.lt.s32.totalorder %s15, 5
    %p358 = pnand %p356, %p357
    %p359 = pneg %p358
    // Predicated region
    $region41: #{double_conv.4} parent=5 // pred_check
      _
    $region42: #{double_conv.4} parent=5 // pred_check_branch
      %361 = sbr.rel (%p358) target = $region44
    $region43: #{double_conv.4} parent=5 // pred_region
      %s362 = ssub.s32 %s15, 1
      %s363 = smul.u32 8, %s25
      %p364 = scmp.lt.s32.totalorder %s24, 1
      %s365 = scalar_select %p364, %s24, 1
      %p366 = scmp.lt.s32.totalorder %s363, 15
      %s367 = scalar_select %p366, %s363, 15
      %s368 = smul.addr %s367, 2
      %s369 = smul.addr %s365, 32
      %s370 = sadd.s32 %s368, %s369
      %s371 = smul.addr %s370, 4
      %s372 = scalar_lea.vmem %s0, %s371
      %p373 = pneg %p55
      %p374 = pneg %p52
      %s375 = smul.u32 %s25, 8
      %s376 = ssub.s32 %s375, 1
      %p377 = scmp.gt.s32.totalorder %s376, 0
      %s378 = scalar_select %p377, %s376, 0
      %p379 = scmp.lt.s32.totalorder %s24, 1
      %s380 = scalar_select %p379, %s24, 1
      %p381 = scmp.lt.s32.totalorder %s378, 15
      %s382 = scalar_select %p381, %s378, 15
      %s383 = smul.addr %s382, 2
      %s384 = smul.addr %s380, 32
      %s385 = sadd.s32 %s383, %s384
      %s386 = smul.addr %s385, 4
      %s387 = scalar_lea.vmem %s1, %s386
      %p388 = pneg %p91
      %p389 = pneg %p88
      %s390 = sadd.s32 %s25, 1
      %s391 = smul.u32 %s390, 8
      %p392 = scmp.lt.s32.totalorder %s391, 15
      %s393 = scalar_select %p392, %s391, 15
      %p394 = scmp.lt.s32.totalorder %s24, 1
      %s395 = scalar_select %p394, %s24, 1
      %p396 = scmp.lt.s32.totalorder %s393, 15
      %s397 = scalar_select %p396, %s393, 15
      %s398 = smul.addr %s397, 2
      %s399 = smul.addr %s395, 32
      %s400 = sadd.s32 %s398, %s399
      %s401 = smul.addr %s400, 4
      %s402 = scalar_lea.vmem %s2, %s401
      %p403 = pneg %p127
      %p404 = pneg %p124
      %p405 = pneg %p148
      %p406 = pneg %p145
      %p407 = pneg %p169
      %p408 = pneg %p166
      %p409 = pneg %p190
      %p410 = pneg %p187
      %p411 = pneg %p218
      %p412 = pneg %p215
      %s413 = smul.u32 8, %s25
      %p414 = scmp.lt.s32.totalorder %s24, 1
      %s415 = scalar_select %p414, %s24, 1
      %p416 = scmp.lt.s32.totalorder %s413, 15
      %s417 = scalar_select %p416, %s413, 15
      %s418 = smul.addr %s417, 2
      %s419 = smul.addr %s415, 32
      %s420 = sadd.s32 %s418, %s419
      %s421 = smul.addr %s420, 4
      %s422 = scalar_lea.vmem %s6, %s421
      %p423 = pneg %p246
      %p424 = pneg %p243
      %p425 = scmp.lt.s32.totalorder %s24, 1
      %s426 = scalar_select %p425, %s24, 1
      %p427 = scmp.lt.s32.totalorder %s25, 1
      %s428 = scalar_select %p427, %s25, 1
      %s429 = smul.addr %s426, 2
      %s430 = sadd.s32 %s428, %s429
      %s431 = scalar_lea.vmem %s7, %s430
      %p432 = pneg %p274
      %p433 = pneg %p271
      %p434 = scmp.lt.s32.totalorder %s24, 1
      %s435 = scalar_select %p434, %s24, 1
      %p436 = scmp.lt.s32.totalorder %s25, 1
      %s437 = scalar_select %p436, %s25, 1
      %s438 = smul.addr %s435, 2
      %s439 = sadd.s32 %s437, %s438
      %s440 = scalar_lea.vmem %s8, %s439
      %s441 = smul.u32 8, %s25
      %p442 = scmp.lt.s32.totalorder %s24, 1
      %s443 = scalar_select %p442, %s24, 1
      %p444 = scmp.lt.s32.totalorder %s441, 15
      %s445 = scalar_select %p444, %s441, 15
      %s446 = smul.addr %s445, 2
      %s447 = smul.addr %s443, 32
      %s448 = sadd.s32 %s446, %s447
      %s449 = smul.addr %s448, 4
      %s450 = scalar_lea.vmem %s0, %s449
      %s451 = smul.u32 8, %s25
      %s452 = smul.u32 %s25, 8
      %s453 = ssub.s32 %s452, 1
      %p454 = scmp.gt.s32.totalorder %s453, 0
      %s455 = scalar_select %p454, %s453, 0
      %p456 = scmp.lt.s32.totalorder %s24, 1
      %s457 = scalar_select %p456, %s24, 1
      %p458 = scmp.lt.s32.totalorder %s455, 15
      %s459 = scalar_select %p458, %s455, 15
      %s460 = smul.addr %s459, 2
      %s461 = smul.addr %s457, 32
      %s462 = sadd.s32 %s460, %s461
      %s463 = smul.addr %s462, 4
      %s464 = scalar_lea.vmem %s1, %s463
      %s465 = smul.u32 %s25, 8
      %s466 = ssub.s32 %s465, 1
      %p467 = scmp.gt.s32.totalorder %s466, 0
      %s468 = scalar_select %p467, %s466, 0
      %s469 = sadd.s32 %s25, 1
      %s470 = smul.u32 %s469, 8
      %p471 = scmp.lt.s32.totalorder %s470, 15
      %s472 = scalar_select %p471, %s470, 15
      %p473 = scmp.lt.s32.totalorder %s24, 1
      %s474 = scalar_select %p473, %s24, 1
      %p475 = scmp.lt.s32.totalorder %s472, 15
      %s476 = scalar_select %p475, %s472, 15
      %s477 = smul.addr %s476, 2
      %s478 = smul.addr %s474, 32
      %s479 = sadd.s32 %s477, %s478
      %s480 = smul.addr %s479, 4
      %s481 = scalar_lea.vmem %s2, %s480
      %s482 = sadd.s32 %s25, 1
      %s483 = smul.u32 %s482, 8
      %p484 = scmp.lt.s32.totalorder %s483, 15
      %s485 = scalar_select %p484, %s483, 15
      %s486 = smul.u32 8, %s25
      %p487 = scmp.lt.s32.totalorder %s24, 1
      %s488 = scalar_select %p487, %s24, 1
      %p489 = scmp.lt.s32.totalorder %s486, 15
      %s490 = scalar_select %p489, %s486, 15
      %s491 = smul.addr %s490, 2
      %s492 = smul.addr %s488, 32
      %s493 = sadd.s32 %s491, %s492
      %s494 = smul.addr %s493, 4
      %s495 = scalar_lea.vmem %s6, %s494
      %s496 = smul.u32 8, %s25
      %p497 = scmp.lt.s32.totalorder %s24, 1
      %s498 = scalar_select %p497, %s24, 1
      %p499 = scmp.lt.s32.totalorder %s25, 1
      %s500 = scalar_select %p499, %s25, 1
      %s501 = smul.addr %s498, 2
      %s502 = sadd.s32 %s500, %s501
      %s503 = scalar_lea.vmem %s7, %s502
      %p504 = scmp.lt.s32.totalorder %s24, 1
      %s505 = scalar_select %p504, %s24, 1
      %p506 = scmp.lt.s32.totalorder %s25, 1
      %s507 = scalar_select %p506, %s25, 1
      %s508 = smul.addr %s505, 2
      %s509 = sadd.s32 %s507, %s508
      %s510 = scalar_lea.vmem %s8, %s509
      %v512 = vld [vmem:[%s450] sm:$0xf]
      %v513 = vld [vmem:[%s450 + $0x4] sm:$0xf]
      %v514 = vld [vmem:[%s450 + $0x8] sm:$0xf]
      %v515 = vld [vmem:[%s450 + $0xc] sm:$0xf]
      %v516 = vld [vmem:[%s450 + $0x10] sm:$0xf]
      %v517 = vld [vmem:[%s450 + $0x14] sm:$0xf]
      %v518 = vld [vmem:[%s450 + $0x18] sm:$0xf]
      %v519 = vld [vmem:[%s450 + $0x1c] sm:$0xf]
      %v520 = vld [vmem:[%s450 + $0x20] sm:$0xf]
      %v521 = vld [vmem:[%s450 + $0x24] sm:$0xf]
      %v522 = vld [vmem:[%s450 + $0x28] sm:$0xf]
      %v523 = vld [vmem:[%s450 + $0x2c] sm:$0xf]
      %v524 = vld [vmem:[%s450 + $0x30] sm:$0xf]
      %v525 = vld [vmem:[%s450 + $0x34] sm:$0xf]
      %v526 = vld [vmem:[%s450 + $0x38] sm:$0xf]
      %v527 = vld [vmem:[%s450 + $0x3c] sm:$0xf]
      %v528 = vunpack.c.l.bf16 %v512
      %v529 = vunpack.c.l.bf16 %v513
      %v530 = vunpack.c.l.bf16 %v514
      %v531 = vunpack.c.l.bf16 %v515
      %v532 = vunpack.c.l.bf16 %v516
      %v533 = vunpack.c.l.bf16 %v517
      %v534 = vunpack.c.l.bf16 %v518
      %v535 = vunpack.c.l.bf16 %v519
      %v536 = vunpack.c.l.bf16 %v520
      %v537 = vunpack.c.l.bf16 %v521
      %v538 = vunpack.c.l.bf16 %v522
      %v539 = vunpack.c.l.bf16 %v523
      %v540 = vunpack.c.l.bf16 %v524
      %v541 = vunpack.c.l.bf16 %v525
      %v542 = vunpack.c.l.bf16 %v526
      %v543 = vunpack.c.l.bf16 %v527
      %v544 = vld [vmem:[%s4] sm:$0x1]
      %v545 = vld [vmem:[%s5] sm:$0x1]
      %v547 = vlaneseq
      %v548 = vshrl.u32 %v547, 7
      %v549 = vsub.s32 0, %v548
      %v550 = vrot.slane %v544, %v549
      %v552 = vmul.f32 %v528, %v550
      %v553 = vmul.f32 %v529, %v550
      %v554 = vmul.f32 %v530, %v550
      %v555 = vmul.f32 %v531, %v550
      %v556 = vmul.f32 %v532, %v550
      %v557 = vmul.f32 %v533, %v550
      %v558 = vmul.f32 %v534, %v550
      %v559 = vmul.f32 %v535, %v550
      %v560 = vmul.f32 %v536, %v550
      %v561 = vmul.f32 %v537, %v550
      %v562 = vmul.f32 %v538, %v550
      %v563 = vmul.f32 %v539, %v550
      %v564 = vmul.f32 %v540, %v550
      %v565 = vmul.f32 %v541, %v550
      %v566 = vmul.f32 %v542, %v550
      %v567 = vmul.f32 %v543, %v550
      %v569 = vlaneseq
      %v570 = vshrl.u32 %v569, 7
      %v571 = vsub.s32 0, %v570
      %v572 = vrot.slane %v545, %v571
      %v574 = vadd.f32 %v552, %v572
      %v575 = vadd.f32 %v553, %v572
      %v576 = vadd.f32 %v554, %v572
      %v577 = vadd.f32 %v555, %v572
      %v578 = vadd.f32 %v556, %v572
      %v579 = vadd.f32 %v557, %v572
      %v580 = vadd.f32 %v558, %v572
      %v581 = vadd.f32 %v559, %v572
      %v582 = vadd.f32 %v560, %v572
      %v583 = vadd.f32 %v561, %v572
      %v584 = vadd.f32 %v562, %v572
      %v585 = vadd.f32 %v563, %v572
      %v586 = vadd.f32 %v564, %v572
      %v587 = vadd.f32 %v565, %v572
      %v588 = vadd.f32 %v566, %v572
      %v589 = vadd.f32 %v567, %v572
      %v590 = vmax.f32 %v574, 0.0
      %v591 = vmax.f32 %v575, 0.0
      %v592 = vmax.f32 %v576, 0.0
      %v593 = vmax.f32 %v577, 0.0
      %v594 = vmax.f32 %v578, 0.0
      %v595 = vmax.f32 %v579, 0.0
      %v596 = vmax.f32 %v580, 0.0
      %v597 = vmax.f32 %v581, 0.0
      %v598 = vmax.f32 %v582, 0.0
      %v599 = vmax.f32 %v583, 0.0
      %v600 = vmax.f32 %v584, 0.0
      %v601 = vmax.f32 %v585, 0.0
      %v602 = vmax.f32 %v586, 0.0
      %v603 = vmax.f32 %v587, 0.0
      %v604 = vmax.f32 %v588, 0.0
      %v605 = vmax.f32 %v589, 0.0
      %v606 = vld [vmem:[%s464] sm:$0xf]
      %v607 = vld [vmem:[%s464 + $0x4] sm:$0xf]
      %v608 = vunpack.c.l.bf16 %v606
      %v609 = vunpack.c.l.bf16 %v607
      %v610 = vmul.f32 %v608, %v550
      %v611 = vmul.f32 %v609, %v550
      %v612 = vadd.f32 %v610, %v572
      %v613 = vadd.f32 %v611, %v572
      %v614 = vmax.f32 %v612, 0.0
      %v615 = vmax.f32 %v613, 0.0
      %v616 = vld [vmem:[%s481] sm:$0xf]
      %v617 = vld [vmem:[%s481 + $0x4] sm:$0xf]
      %v618 = vunpack.c.l.bf16 %v616
      %v619 = vunpack.c.l.bf16 %v617
      %v620 = vmul.f32 %v618, %v550
      %v621 = vmul.f32 %v619, %v550
      %v622 = vadd.f32 %v620, %v572
      %v623 = vadd.f32 %v621, %v572
      %v624 = vmax.f32 %v622, 0.0
      %v625 = vmax.f32 %v623, 0.0
      %p626 = scmp.gt.s32.totalorder %s25, 0
      %s627 = scalar_select %p626, 1, 0
      %v628 = vstv %s627
      %vm629 = vcmp.eq.s32.totalorder %v628, 1
      %v630 = vsel %vm629, %v614, 0.0
      %v631 = vsel %vm629, %v615, 0.0
      %p632 = scmp.lt.s32.totalorder %s25, 1
      %s633 = scalar_select %p632, 1, 0
      %v634 = vstv %s633
      %vm635 = vcmp.eq.s32.totalorder %v634, 1
      %v636 = vsel %vm635, %v624, 0.0
      %v637 = vsel %vm635, %v625, 0.0
      %v638 = vlaneseq
      %v639 = vshrl.u32 %v638, 7
      %v640 = vadd.s32 %v639, 8
      %v641 = vadd.s32 %v639, 16
      %v642 = vadd.s32 %v639, 24
      %v643 = vadd.s32 %v639, 32
      %v644 = vadd.s32 %v639, 40
      %v645 = vadd.s32 %v639, 48
      %v646 = vadd.s32 %v639, 56
      %v647 = vadd.s32 %v639, 64
      %v648 = vadd.s32 %v639, 72
      %v649 = vadd.s32 %v639, 80
      %v650 = vadd.s32 %v639, 88
      %v651 = vadd.s32 %v639, 96
      %v652 = vadd.s32 %v639, 104
      %v653 = vadd.s32 %v639, 112
      %v654 = vadd.s32 %v639, 120
      %v655 = vadd.s32 %v639, 128
      %v656 = vadd.s32 %v639, 136
      %v657 = vadd.s32 %v639, 144
      %v658 = vadd.s32 %v639, 152
      %vm659 = vcmp.lt.s32.totalorder %v639, 0
      %v660 = vsub.s32 0, %v639
      %v661 = vsel %vm659, %v660, %v639
      %v662 = vshrl.u32 %v661, 4
      %v663 = vand.u32 %v661, 15
      %v664 = vsub.s32 0, %v663
      %v665 = vsel %vm659, %v664, %v663
      %vm666 = vcmp.lt.s32.totalorder %v640, 0
      %v667 = vsub.s32 0, %v640
      %v668 = vsel %vm666, %v667, %v640
      %v669 = vshrl.u32 %v668, 4
      %v670 = vand.u32 %v668, 15
      %v671 = vsub.s32 0, %v670
      %v672 = vsel %vm666, %v671, %v670
      %vm673 = vcmp.lt.s32.totalorder %v641, 0
      %v674 = vsub.s32 0, %v641
      %v675 = vsel %vm673, %v674, %v641
      %v676 = vshrl.u32 %v675, 4
      %v677 = vand.u32 %v675, 15
      %v678 = vsub.s32 0, %v677
      %v679 = vsel %vm673, %v678, %v677
      %vm680 = vcmp.lt.s32.totalorder %v642, 0
      %v681 = vsub.s32 0, %v642
      %v682 = vsel %vm680, %v681, %v642
      %v683 = vshrl.u32 %v682, 4
      %v684 = vand.u32 %v682, 15
      %v685 = vsub.s32 0, %v684
      %v686 = vsel %vm680, %v685, %v684
      %vm687 = vcmp.lt.s32.totalorder %v643, 0
      %v688 = vsub.s32 0, %v643
      %v689 = vsel %vm687, %v688, %v643
      %v690 = vshrl.u32 %v689, 4
      %v691 = vand.u32 %v689, 15
      %v692 = vsub.s32 0, %v691
      %v693 = vsel %vm687, %v692, %v691
      %vm694 = vcmp.lt.s32.totalorder %v644, 0
      %v695 = vsub.s32 0, %v644
      %v696 = vsel %vm694, %v695, %v644
      %v697 = vshrl.u32 %v696, 4
      %v698 = vand.u32 %v696, 15
      %v699 = vsub.s32 0, %v698
      %v700 = vsel %vm694, %v699, %v698
      %vm701 = vcmp.lt.s32.totalorder %v645, 0
      %v702 = vsub.s32 0, %v645
      %v703 = vsel %vm701, %v702, %v645
      %v704 = vshrl.u32 %v703, 4
      %v705 = vand.u32 %v703, 15
      %v706 = vsub.s32 0, %v705
      %v707 = vsel %vm701, %v706, %v705
      %vm708 = vcmp.lt.s32.totalorder %v646, 0
      %v709 = vsub.s32 0, %v646
      %v710 = vsel %vm708, %v709, %v646
      %v711 = vshrl.u32 %v710, 4
      %v712 = vand.u32 %v710, 15
      %v713 = vsub.s32 0, %v712
      %v714 = vsel %vm708, %v713, %v712
      %vm715 = vcmp.lt.s32.totalorder %v647, 0
      %v716 = vsub.s32 0, %v647
      %v717 = vsel %vm715, %v716, %v647
      %v718 = vshrl.u32 %v717, 4
      %v719 = vand.u32 %v717, 15
      %v720 = vsub.s32 0, %v719
      %v721 = vsel %vm715, %v720, %v719
      %vm722 = vcmp.lt.s32.totalorder %v648, 0
      %v723 = vsub.s32 0, %v648
      %v724 = vsel %vm722, %v723, %v648
      %v725 = vshrl.u32 %v724, 4
      %v726 = vand.u32 %v724, 15
      %v727 = vsub.s32 0, %v726
      %v728 = vsel %vm722, %v727, %v726
      %vm729 = vcmp.lt.s32.totalorder %v649, 0
      %v730 = vsub.s32 0, %v649
      %v731 = vsel %vm729, %v730, %v649
      %v732 = vshrl.u32 %v731, 4
      %v733 = vand.u32 %v731, 15
      %v734 = vsub.s32 0, %v733
      %v735 = vsel %vm729, %v734, %v733
      %vm736 = vcmp.lt.s32.totalorder %v650, 0
      %v737 = vsub.s32 0, %v650
      %v738 = vsel %vm736, %v737, %v650
      %v739 = vshrl.u32 %v738, 4
      %v740 = vand.u32 %v738, 15
      %v741 = vsub.s32 0, %v740
      %v742 = vsel %vm736, %v741, %v740
      %vm743 = vcmp.lt.s32.totalorder %v651, 0
      %v744 = vsub.s32 0, %v651
      %v745 = vsel %vm743, %v744, %v651
      %v746 = vshrl.u32 %v745, 4
      %v747 = vand.u32 %v745, 15
      %v748 = vsub.s32 0, %v747
      %v749 = vsel %vm743, %v748, %v747
      %vm750 = vcmp.lt.s32.totalorder %v652, 0
      %v751 = vsub.s32 0, %v652
      %v752 = vsel %vm750, %v751, %v652
      %v753 = vshrl.u32 %v752, 4
      %v754 = vand.u32 %v752, 15
      %v755 = vsub.s32 0, %v754
      %v756 = vsel %vm750, %v755, %v754
      %vm757 = vcmp.lt.s32.totalorder %v653, 0
      %v758 = vsub.s32 0, %v653
      %v759 = vsel %vm757, %v758, %v653
      %v760 = vshrl.u32 %v759, 4
      %v761 = vand.u32 %v759, 15
      %v762 = vsub.s32 0, %v761
      %v763 = vsel %vm757, %v762, %v761
      %vm764 = vcmp.lt.s32.totalorder %v654, 0
      %v765 = vsub.s32 0, %v654
      %v766 = vsel %vm764, %v765, %v654
      %v767 = vshrl.u32 %v766, 4
      %v768 = vand.u32 %v766, 15
      %v769 = vsub.s32 0, %v768
      %v770 = vsel %vm764, %v769, %v768
      %vm771 = vcmp.lt.s32.totalorder %v655, 0
      %v772 = vsub.s32 0, %v655
      %v773 = vsel %vm771, %v772, %v655
      %v774 = vshrl.u32 %v773, 4
      %v775 = vand.u32 %v773, 15
      %v776 = vsub.s32 0, %v775
      %v777 = vsel %vm771, %v776, %v775
      %vm778 = vcmp.lt.s32.totalorder %v656, 0
      %v779 = vsub.s32 0, %v656
      %v780 = vsel %vm778, %v779, %v656
      %v781 = vshrl.u32 %v780, 4
      %v782 = vand.u32 %v780, 15
      %v783 = vsub.s32 0, %v782
      %v784 = vsel %vm778, %v783, %v782
      %vm785 = vcmp.lt.s32.totalorder %v657, 0
      %v786 = vsub.s32 0, %v657
      %v787 = vsel %vm785, %v786, %v657
      %v788 = vshrl.u32 %v787, 4
      %v789 = vand.u32 %v787, 15
      %v790 = vsub.s32 0, %v789
      %v791 = vsel %vm785, %v790, %v789
      %vm792 = vcmp.lt.s32.totalorder %v658, 0
      %v793 = vsub.s32 0, %v658
      %v794 = vsel %vm792, %v793, %v658
      %v795 = vshrl.u32 %v794, 4
      %v796 = vand.u32 %v794, 15
      %v797 = vsub.s32 0, %v796
      %v798 = vsel %vm792, %v797, %v796
      %vm799 = vcmp.ne.s32.totalorder %v665, 0
      %vm800 = vcmp.ne.s32.totalorder %v672, 0
      %vm801 = vcmp.ne.s32.totalorder %v679, 0
      %vm802 = vcmp.ne.s32.totalorder %v686, 0
      %vm803 = vcmp.ne.s32.totalorder %v693, 0
      %vm804 = vcmp.ne.s32.totalorder %v700, 0
      %vm805 = vcmp.ne.s32.totalorder %v707, 0
      %vm806 = vcmp.ne.s32.totalorder %v714, 0
      %vm807 = vcmp.ne.s32.totalorder %v721, 0
      %vm808 = vcmp.ne.s32.totalorder %v728, 0
      %vm809 = vcmp.ne.s32.totalorder %v735, 0
      %vm810 = vcmp.ne.s32.totalorder %v742, 0
      %vm811 = vcmp.ne.s32.totalorder %v749, 0
      %vm812 = vcmp.ne.s32.totalorder %v756, 0
      %vm813 = vcmp.ne.s32.totalorder %v763, 0
      %vm814 = vcmp.ne.s32.totalorder %v770, 0
      %vm815 = vcmp.ne.s32.totalorder %v777, 0
      %vm816 = vcmp.ne.s32.totalorder %v784, 0
      %vm817 = vcmp.ne.s32.totalorder %v791, 0
      %vm818 = vcmp.ne.s32.totalorder %v798, 0
      %vm819 = vcmp.lt.s32.totalorder %v665, 0
      %vm820 = vcmp.lt.s32.totalorder %v672, 0
      %vm821 = vcmp.lt.s32.totalorder %v679, 0
      %vm822 = vcmp.lt.s32.totalorder %v686, 0
      %vm823 = vcmp.lt.s32.totalorder %v693, 0
      %vm824 = vcmp.lt.s32.totalorder %v700, 0
      %vm825 = vcmp.lt.s32.totalorder %v707, 0
      %vm826 = vcmp.lt.s32.totalorder %v714, 0
      %vm827 = vcmp.lt.s32.totalorder %v721, 0
      %vm828 = vcmp.lt.s32.totalorder %v728, 0
      %vm829 = vcmp.lt.s32.totalorder %v735, 0
      %vm830 = vcmp.lt.s32.totalorder %v742, 0
      %vm831 = vcmp.lt.s32.totalorder %v749, 0
      %vm832 = vcmp.lt.s32.totalorder %v756, 0
      %vm833 = vcmp.lt.s32.totalorder %v763, 0
      %vm834 = vcmp.lt.s32.totalorder %v770, 0
      %vm835 = vcmp.lt.s32.totalorder %v777, 0
      %vm836 = vcmp.lt.s32.totalorder %v784, 0
      %vm837 = vcmp.lt.s32.totalorder %v791, 0
      %vm838 = vcmp.lt.s32.totalorder %v798, 0
      %vm839 = vmand %vm819, %vm799
      %vm840 = vmand %vm820, %vm800
      %vm841 = vmand %vm821, %vm801
      %vm842 = vmand %vm822, %vm802
      %vm843 = vmand %vm823, %vm803
      %vm844 = vmand %vm824, %vm804
      %vm845 = vmand %vm825, %vm805
      %vm846 = vmand %vm826, %vm806
      %vm847 = vmand %vm827, %vm807
      %vm848 = vmand %vm828, %vm808
      %vm849 = vmand %vm829, %vm809
      %vm850 = vmand %vm830, %vm810
      %vm851 = vmand %vm831, %vm811
      %vm852 = vmand %vm832, %vm812
      %vm853 = vmand %vm833, %vm813
      %vm854 = vmand %vm834, %vm814
      %vm855 = vmand %vm835, %vm815
      %vm856 = vmand %vm836, %vm816
      %vm857 = vmand %vm837, %vm817
      %vm858 = vmand %vm838, %vm818
      %v859 = vadd.s32 %v665, 16
      %v860 = vadd.s32 %v672, 16
      %v861 = vadd.s32 %v679, 16
      %v862 = vadd.s32 %v686, 16
      %v863 = vadd.s32 %v693, 16
      %v864 = vadd.s32 %v700, 16
      %v865 = vadd.s32 %v707, 16
      %v866 = vadd.s32 %v714, 16
      %v867 = vadd.s32 %v721, 16
      %v868 = vadd.s32 %v728, 16
      %v869 = vadd.s32 %v735, 16
      %v870 = vadd.s32 %v742, 16
      %v871 = vadd.s32 %v749, 16
      %v872 = vadd.s32 %v756, 16
      %v873 = vadd.s32 %v763, 16
      %v874 = vadd.s32 %v770, 16
      %v875 = vadd.s32 %v777, 16
      %v876 = vadd.s32 %v784, 16
      %v877 = vadd.s32 %v791, 16
      %v878 = vadd.s32 %v798, 16
      %v879 = vsel %vm839, %v859, %v665
      %v880 = vsel %vm840, %v860, %v672
      %v881 = vsel %vm841, %v861, %v679
      %v882 = vsel %vm842, %v862, %v686
      %v883 = vsel %vm843, %v863, %v693
      %v884 = vsel %vm844, %v864, %v700
      %v885 = vsel %vm845, %v865, %v707
      %v886 = vsel %vm846, %v866, %v714
      %v887 = vsel %vm847, %v867, %v721
      %v888 = vsel %vm848, %v868, %v728
      %v889 = vsel %vm849, %v869, %v735
      %v890 = vsel %vm850, %v870, %v742
      %v891 = vsel %vm851, %v871, %v749
      %v892 = vsel %vm852, %v872, %v756
      %v893 = vsel %vm853, %v873, %v763
      %v894 = vsel %vm854, %v874, %v770
      %v895 = vsel %vm855, %v875, %v777
      %v896 = vsel %vm856, %v876, %v784
      %v897 = vsel %vm857, %v877, %v791
      %v898 = vsel %vm858, %v878, %v798
      %vm899 = vcmp.gt.s32.totalorder %v879, 0
      %vm900 = vcmp.gt.s32.totalorder %v880, 0
      %vm901 = vcmp.gt.s32.totalorder %v881, 0
      %vm902 = vcmp.gt.s32.totalorder %v882, 0
      %vm903 = vcmp.gt.s32.totalorder %v883, 0
      %vm904 = vcmp.gt.s32.totalorder %v884, 0
      %vm905 = vcmp.gt.s32.totalorder %v885, 0
      %vm906 = vcmp.gt.s32.totalorder %v886, 0
      %vm907 = vcmp.gt.s32.totalorder %v887, 0
      %vm908 = vcmp.gt.s32.totalorder %v888, 0
      %vm909 = vcmp.gt.s32.totalorder %v889, 0
      %vm910 = vcmp.gt.s32.totalorder %v890, 0
      %vm911 = vcmp.gt.s32.totalorder %v891, 0
      %vm912 = vcmp.gt.s32.totalorder %v892, 0
      %vm913 = vcmp.gt.s32.totalorder %v893, 0
      %vm914 = vcmp.gt.s32.totalorder %v894, 0
      %vm915 = vcmp.gt.s32.totalorder %v895, 0
      %vm916 = vcmp.gt.s32.totalorder %v896, 0
      %vm917 = vcmp.gt.s32.totalorder %v897, 0
      %vm918 = vcmp.gt.s32.totalorder %v898, 0
      %v919 = vrot.slane %v630, 7
      %v920 = vrot.slane %v631, 7
      %v921 = vrot.slane %v590, 7
      %v922 = vrot.slane %v591, 7
      %v923 = vrot.slane %v592, 7
      %v924 = vrot.slane %v593, 7
      %v925 = vrot.slane %v594, 7
      %v926 = vrot.slane %v595, 7
      %v927 = vrot.slane %v596, 7
      %v928 = vrot.slane %v597, 7
      %v929 = vrot.slane %v598, 7
      %v930 = vrot.slane %v599, 7
      %v931 = vrot.slane %v600, 7
      %v932 = vrot.slane %v601, 7
      %v933 = vrot.slane %v602, 7
      %v934 = vrot.slane %v603, 7
      %v935 = vrot.slane %v604, 7
      %v936 = vrot.slane %v605, 7
      %v937 = vrot.slane %v636, 7
      %v938 = vrot.slane %v637, 7
      %vm939 = vcmp.lt.s32.totalorder %v639, 1
      %v940 = vsel %vm939, %v937, %v938
      %v941 = vsel %vm939, %v936, %v937
      %v942 = vsel %vm939, %v935, %v936
      %v943 = vsel %vm939, %v934, %v935
      %v944 = vsel %vm939, %v933, %v934
      %v945 = vsel %vm939, %v932, %v933
      %v946 = vsel %vm939, %v931, %v932
      %v947 = vsel %vm939, %v930, %v931
      %v948 = vsel %vm939, %v929, %v930
      %v949 = vsel %vm939, %v928, %v929
      %v950 = vsel %vm939, %v927, %v928
      %v951 = vsel %vm939, %v926, %v927
      %v952 = vsel %vm939, %v925, %v926
      %v953 = vsel %vm939, %v924, %v925
      %v954 = vsel %vm939, %v923, %v924
      %v955 = vsel %vm939, %v922, %v923
      %v956 = vsel %vm939, %v921, %v922
      %v957 = vsel %vm939, %v920, %v921
      %v958 = vsel %vm939, %v919, %v920
      %v959 = vsel %vm939, %v938, %v919
      %v960 = vsel %vm899, 1, 0
      %v961 = vsel %vm900, 1, 0
      %v962 = vsel %vm901, 1, 0
      %v963 = vsel %vm902, 1, 0
      %v964 = vsel %vm903, 1, 0
      %v965 = vsel %vm904, 1, 0
      %v966 = vsel %vm905, 1, 0
      %v967 = vsel %vm906, 1, 0
      %v968 = vsel %vm907, 1, 0
      %v969 = vsel %vm908, 1, 0
      %v970 = vsel %vm909, 1, 0
      %v971 = vsel %vm910, 1, 0
      %v972 = vsel %vm911, 1, 0
      %v973 = vsel %vm912, 1, 0
      %v974 = vsel %vm913, 1, 0
      %v975 = vsel %vm914, 1, 0
      %v976 = vsel %vm915, 1, 0
      %v977 = vsel %vm916, 1, 0
      %v978 = vsel %vm917, 1, 0
      %v979 = vsel %vm918, 1, 0
      %vm980 = vcmp.eq.s32.totalorder %v960, 1
      %vm981 = vcmp.eq.s32.totalorder %v961, 1
      %vm982 = vcmp.eq.s32.totalorder %v962, 1
      %vm983 = vcmp.eq.s32.totalorder %v963, 1
      %vm984 = vcmp.eq.s32.totalorder %v964, 1
      %vm985 = vcmp.eq.s32.totalorder %v965, 1
      %vm986 = vcmp.eq.s32.totalorder %v966, 1
      %vm987 = vcmp.eq.s32.totalorder %v967, 1
      %vm988 = vcmp.eq.s32.totalorder %v968, 1
      %vm989 = vcmp.eq.s32.totalorder %v969, 1
      %vm990 = vcmp.eq.s32.totalorder %v970, 1
      %vm991 = vcmp.eq.s32.totalorder %v971, 1
      %vm992 = vcmp.eq.s32.totalorder %v972, 1
      %vm993 = vcmp.eq.s32.totalorder %v973, 1
      %vm994 = vcmp.eq.s32.totalorder %v974, 1
      %vm995 = vcmp.eq.s32.totalorder %v975, 1
      %vm996 = vcmp.eq.s32.totalorder %v976, 1
      %vm997 = vcmp.eq.s32.totalorder %v977, 1
      %vm998 = vcmp.eq.s32.totalorder %v978, 1
      %vm999 = vcmp.eq.s32.totalorder %v979, 1
      %v1000 = vsel %vm980, %v959, 0.0
      %v1001 = vsel %vm981, %v958, 0.0
      %v1002 = vsel %vm982, %v957, 0.0
      %v1003 = vsel %vm983, %v956, 0.0
      %v1004 = vsel %vm984, %v955, 0.0
      %v1005 = vsel %vm985, %v954, 0.0
      %v1006 = vsel %vm986, %v953, 0.0
      %v1007 = vsel %vm987, %v952, 0.0
      %v1008 = vsel %vm988, %v951, 0.0
      %v1009 = vsel %vm989, %v950, 0.0
      %v1010 = vsel %vm990, %v949, 0.0
      %v1011 = vsel %vm991, %v948, 0.0
      %v1012 = vsel %vm992, %v947, 0.0
      %v1013 = vsel %vm993, %v946, 0.0
      %v1014 = vsel %vm994, %v945, 0.0
      %v1015 = vsel %vm995, %v944, 0.0
      %v1016 = vsel %vm996, %v943, 0.0
      %v1017 = vsel %vm997, %v942, 0.0
      %v1018 = vsel %vm998, %v941, 0.0
      %v1019 = vsel %vm999, %v940, 0.0
      %vm1020 = vcmp.lt.s32.totalorder %v879, 15
      %vm1021 = vcmp.lt.s32.totalorder %v880, 15
      %vm1022 = vcmp.lt.s32.totalorder %v881, 15
      %vm1023 = vcmp.lt.s32.totalorder %v882, 15
      %vm1024 = vcmp.lt.s32.totalorder %v883, 15
      %vm1025 = vcmp.lt.s32.totalorder %v884, 15
      %vm1026 = vcmp.lt.s32.totalorder %v885, 15
      %vm1027 = vcmp.lt.s32.totalorder %v886, 15
      %vm1028 = vcmp.lt.s32.totalorder %v887, 15
      %vm1029 = vcmp.lt.s32.totalorder %v888, 15
      %vm1030 = vcmp.lt.s32.totalorder %v889, 15
      %vm1031 = vcmp.lt.s32.totalorder %v890, 15
      %vm1032 = vcmp.lt.s32.totalorder %v891, 15
      %vm1033 = vcmp.lt.s32.totalorder %v892, 15
      %vm1034 = vcmp.lt.s32.totalorder %v893, 15
      %vm1035 = vcmp.lt.s32.totalorder %v894, 15
      %vm1036 = vcmp.lt.s32.totalorder %v895, 15
      %vm1037 = vcmp.lt.s32.totalorder %v896, 15
      %vm1038 = vcmp.lt.s32.totalorder %v897, 15
      %vm1039 = vcmp.lt.s32.totalorder %v898, 15
      %v1040 = vrot.slane %v630, 1
      %v1041 = vrot.slane %v631, 1
      %v1042 = vrot.slane %v590, 1
      %v1043 = vrot.slane %v591, 1
      %v1044 = vrot.slane %v592, 1
      %v1045 = vrot.slane %v593, 1
      %v1046 = vrot.slane %v594, 1
      %v1047 = vrot.slane %v595, 1
      %v1048 = vrot.slane %v596, 1
      %v1049 = vrot.slane %v597, 1
      %v1050 = vrot.slane %v598, 1
      %v1051 = vrot.slane %v599, 1
      %v1052 = vrot.slane %v600, 1
      %v1053 = vrot.slane %v601, 1
      %v1054 = vrot.slane %v602, 1
      %v1055 = vrot.slane %v603, 1
      %v1056 = vrot.slane %v604, 1
      %v1057 = vrot.slane %v605, 1
      %v1058 = vrot.slane %v636, 1
      %v1059 = vrot.slane %v637, 1
      %vm1060 = vcmp.lt.s32.totalorder %v639, 7
      %v1061 = vsel %vm1060, %v1058, %v1059
      %v1062 = vsel %vm1060, %v1057, %v1058
      %v1063 = vsel %vm1060, %v1056, %v1057
      %v1064 = vsel %vm1060, %v1055, %v1056
      %v1065 = vsel %vm1060, %v1054, %v1055
      %v1066 = vsel %vm1060, %v1053, %v1054
      %v1067 = vsel %vm1060, %v1052, %v1053
      %v1068 = vsel %vm1060, %v1051, %v1052
      %v1069 = vsel %vm1060, %v1050, %v1051
      %v1070 = vsel %vm1060, %v1049, %v1050
      %v1071 = vsel %vm1060, %v1048, %v1049
      %v1072 = vsel %vm1060, %v1047, %v1048
      %v1073 = vsel %vm1060, %v1046, %v1047
      %v1074 = vsel %vm1060, %v1045, %v1046
      %v1075 = vsel %vm1060, %v1044, %v1045
      %v1076 = vsel %vm1060, %v1043, %v1044
      %v1077 = vsel %vm1060, %v1042, %v1043
      %v1078 = vsel %vm1060, %v1041, %v1042
      %v1079 = vsel %vm1060, %v1040, %v1041
      %v1080 = vsel %vm1060, %v1059, %v1040
      %v1081 = vsel %vm1020, 1, 0
      %v1082 = vsel %vm1021, 1, 0
      %v1083 = vsel %vm1022, 1, 0
      %v1084 = vsel %vm1023, 1, 0
      %v1085 = vsel %vm1024, 1, 0
      %v1086 = vsel %vm1025, 1, 0
      %v1087 = vsel %vm1026, 1, 0
      %v1088 = vsel %vm1027, 1, 0
      %v1089 = vsel %vm1028, 1, 0
      %v1090 = vsel %vm1029, 1, 0
      %v1091 = vsel %vm1030, 1, 0
      %v1092 = vsel %vm1031, 1, 0
      %v1093 = vsel %vm1032, 1, 0
      %v1094 = vsel %vm1033, 1, 0
      %v1095 = vsel %vm1034, 1, 0
      %v1096 = vsel %vm1035, 1, 0
      %v1097 = vsel %vm1036, 1, 0
      %v1098 = vsel %vm1037, 1, 0
      %v1099 = vsel %vm1038, 1, 0
      %v1100 = vsel %vm1039, 1, 0
      %vm1101 = vcmp.eq.s32.totalorder %v1081, 1
      %vm1102 = vcmp.eq.s32.totalorder %v1082, 1
      %vm1103 = vcmp.eq.s32.totalorder %v1083, 1
      %vm1104 = vcmp.eq.s32.totalorder %v1084, 1
      %vm1105 = vcmp.eq.s32.totalorder %v1085, 1
      %vm1106 = vcmp.eq.s32.totalorder %v1086, 1
      %vm1107 = vcmp.eq.s32.totalorder %v1087, 1
      %vm1108 = vcmp.eq.s32.totalorder %v1088, 1
      %vm1109 = vcmp.eq.s32.totalorder %v1089, 1
      %vm1110 = vcmp.eq.s32.totalorder %v1090, 1
      %vm1111 = vcmp.eq.s32.totalorder %v1091, 1
      %vm1112 = vcmp.eq.s32.totalorder %v1092, 1
      %vm1113 = vcmp.eq.s32.totalorder %v1093, 1
      %vm1114 = vcmp.eq.s32.totalorder %v1094, 1
      %vm1115 = vcmp.eq.s32.totalorder %v1095, 1
      %vm1116 = vcmp.eq.s32.totalorder %v1096, 1
      %vm1117 = vcmp.eq.s32.totalorder %v1097, 1
      %vm1118 = vcmp.eq.s32.totalorder %v1098, 1
      %vm1119 = vcmp.eq.s32.totalorder %v1099, 1
      %vm1120 = vcmp.eq.s32.totalorder %v1100, 1
      %v1121 = vsel %vm1101, %v1079, 0.0
      %v1122 = vsel %vm1102, %v1078, 0.0
      %v1123 = vsel %vm1103, %v1077, 0.0
      %v1124 = vsel %vm1104, %v1076, 0.0
      %v1125 = vsel %vm1105, %v1075, 0.0
      %v1126 = vsel %vm1106, %v1074, 0.0
      %v1127 = vsel %vm1107, %v1073, 0.0
      %v1128 = vsel %vm1108, %v1072, 0.0
      %v1129 = vsel %vm1109, %v1071, 0.0
      %v1130 = vsel %vm1110, %v1070, 0.0
      %v1131 = vsel %vm1111, %v1069, 0.0
      %v1132 = vsel %vm1112, %v1068, 0.0
      %v1133 = vsel %vm1113, %v1067, 0.0
      %v1134 = vsel %vm1114, %v1066, 0.0
      %v1135 = vsel %vm1115, %v1065, 0.0
      %v1136 = vsel %vm1116, %v1064, 0.0
      %v1137 = vsel %vm1117, %v1063, 0.0
      %v1138 = vsel %vm1118, %v1062, 0.0
      %v1139 = vsel %vm1119, %v1061, 0.0
      %v1140 = vsel %vm1120, %v1080, 0.0
      %v1141 = vpack.c.bf16 %v1001, %v1000
      %v1142 = vpack.c.bf16 %v1003, %v1002
      %v1143 = vpack.c.bf16 %v1005, %v1004
      %v1144 = vpack.c.bf16 %v1007, %v1006
      %v1145 = vpack.c.bf16 %v1009, %v1008
      %v1146 = vpack.c.bf16 %v1011, %v1010
      %v1147 = vpack.c.bf16 %v1013, %v1012
      %v1148 = vpack.c.bf16 %v1015, %v1014
      %v1149 = vpack.c.bf16 %v1017, %v1016
      %v1150 = vpack.c.bf16 %v1019, %v1018
      %v1151 = vpack.c.bf16 %v631, %v630
      %v1152 = vpack.c.bf16 %v591, %v590
      %v1153 = vpack.c.bf16 %v593, %v592
      %v1154 = vpack.c.bf16 %v595, %v594
      %v1155 = vpack.c.bf16 %v597, %v596
      %v1156 = vpack.c.bf16 %v599, %v598
      %v1157 = vpack.c.bf16 %v601, %v600
      %v1158 = vpack.c.bf16 %v603, %v602
      %v1159 = vpack.c.bf16 %v605, %v604
      %v1160 = vpack.c.bf16 %v637, %v636
      %v1161 = vpack.c.bf16 %v1122, %v1121
      %v1162 = vpack.c.bf16 %v1124, %v1123
      %v1163 = vpack.c.bf16 %v1126, %v1125
      %v1164 = vpack.c.bf16 %v1128, %v1127
      %v1165 = vpack.c.bf16 %v1130, %v1129
      %v1166 = vpack.c.bf16 %v1132, %v1131
      %v1167 = vpack.c.bf16 %v1134, %v1133
      %v1168 = vpack.c.bf16 %v1136, %v1135
      %v1169 = vpack.c.bf16 %v1138, %v1137
      %v1170 = vpack.c.bf16 %v1140, %v1139
      %v1171 = vld [vmem:[%s3] sm:$0xf]
      %v1172 = vld [vmem:[%s3 + $0x4] sm:$0xf]
      %v1173 = vld [vmem:[%s3 + $0x8] sm:$0xf]
      %v1174 = vld [vmem:[%s3 + $0xc] sm:$0xf]
      %v1175 = vld [vmem:[%s3 + $0x10] sm:$0xf]
      %v1176 = vld [vmem:[%s3 + $0x14] sm:$0xf]
      %v1177 = vld [vmem:[%s3 + $0x18] sm:$0xf]
      %v1178 = vld [vmem:[%s3 + $0x1c] sm:$0xf]
      %v1179 = vld [vmem:[%s3 + $0x20] sm:$0xf]
      %v1180 = vld [vmem:[%s3 + $0x24] sm:$0xf]
      %v1181 = vld [vmem:[%s3 + $0x28] sm:$0xf]
      %v1182 = vld [vmem:[%s3 + $0x2c] sm:$0xf]
      %v1183 = vld [vmem:[%s3 + $0x30] sm:$0xf]
      %v1184 = vld [vmem:[%s3 + $0x34] sm:$0xf]
      %v1185 = vld [vmem:[%s3 + $0x38] sm:$0xf]
      %v1186 = vld [vmem:[%s3 + $0x3c] sm:$0xf]
      %s1187 = scalar_lea.vmem %s3, 64
      %v1188 = vld [vmem:[%s1187] sm:$0xf]
      %v1189 = vld [vmem:[%s1187 + $0x4] sm:$0xf]
      %v1190 = vld [vmem:[%s1187 + $0x8] sm:$0xf]
      %v1191 = vld [vmem:[%s1187 + $0xc] sm:$0xf]
      %v1192 = vld [vmem:[%s1187 + $0x10] sm:$0xf]
      %v1193 = vld [vmem:[%s1187 + $0x14] sm:$0xf]
      %v1194 = vld [vmem:[%s1187 + $0x18] sm:$0xf]
      %v1195 = vld [vmem:[%s1187 + $0x1c] sm:$0xf]
      %v1196 = vld [vmem:[%s1187 + $0x20] sm:$0xf]
      %v1197 = vld [vmem:[%s1187 + $0x24] sm:$0xf]
      %v1198 = vld [vmem:[%s1187 + $0x28] sm:$0xf]
      %v1199 = vld [vmem:[%s1187 + $0x2c] sm:$0xf]
      %v1200 = vld [vmem:[%s1187 + $0x30] sm:$0xf]
      %v1201 = vld [vmem:[%s1187 + $0x34] sm:$0xf]
      %v1202 = vld [vmem:[%s1187 + $0x38] sm:$0xf]
      %v1203 = vld [vmem:[%s1187 + $0x3c] sm:$0xf]
      %v1220 = vunpack.c.l.b16 %v1188
      %v1221 = vunpack.c.l.b16 %v1189
      %v1222 = vunpack.c.l.b16 %v1190
      %v1223 = vunpack.c.l.b16 %v1191
      %v1224 = vunpack.c.l.b16 %v1192
      %v1225 = vunpack.c.l.b16 %v1193
      %v1226 = vunpack.c.l.b16 %v1194
      %v1227 = vunpack.c.l.b16 %v1195
      %v1228 = vunpack.c.l.b16 %v1196
      %v1229 = vunpack.c.l.b16 %v1197
      %v1230 = vunpack.c.l.b16 %v1198
      %v1231 = vunpack.c.l.b16 %v1199
      %v1232 = vunpack.c.l.b16 %v1200
      %v1233 = vunpack.c.l.b16 %v1201
      %v1234 = vunpack.c.l.b16 %v1202
      %v1235 = vunpack.c.l.b16 %v1203
      %v1236 = vpack.c.b16 %v1221, %v1220
      %v1237 = vpack.c.b16 %v1223, %v1222
      %v1238 = vpack.c.b16 %v1225, %v1224
      %v1239 = vpack.c.b16 %v1227, %v1226
      %v1240 = vpack.c.b16 %v1229, %v1228
      %v1241 = vpack.c.b16 %v1231, %v1230
      %v1242 = vpack.c.b16 %v1233, %v1232
      %v1243 = vpack.c.b16 %v1235, %v1234
      %1252 = vmatprep.subr.bf16.mxu0 0
      %1253 = vmatpush1.bf16.msra.mxu0 %v1243
      %1254 = vmatprep.subr.bf16.mxu0 0
      %1255 = vmatpush1.bf16.msra.mxu0 %v1242
      %1256 = vmatprep.subr.bf16.mxu0 0
      %1257 = vmatpush1.bf16.msra.mxu0 %v1241
      %1258 = vmatprep.subr.bf16.mxu0 0
      %1259 = vmatpush1.bf16.msra.mxu0 %v1240
      %1260 = vmatprep.subr.bf16.mxu0 0
      %1261 = vmatpush1.bf16.msra.mxu0 %v1239
      %1262 = vmatprep.subr.bf16.mxu0 0
      %1263 = vmatpush1.bf16.msra.mxu0 %v1238
      %1264 = vmatprep.subr.bf16.mxu0 0
      %1265 = vmatpush1.bf16.msra.mxu0 %v1237
      %1266 = vmatprep.subr.bf16.mxu0 0
      %1267 = vmatpush1.bf16.msra.mxu0 %v1236
      %1268 = vmatprep.subr.bf16.mxu0 0
      %1269 = vmatpush2.bf16.msra.mxu0 0
      %1270 = vmatprep.subr.bf16.mxu0 0
      %1271 = vmatpush2.bf16.msra.mxu0 0
      %1272 = vmatprep.subr.bf16.mxu0 0
      %1273 = vmatpush2.bf16.msra.mxu0 0
      %1274 = vmatprep.subr.bf16.mxu0 0
      %1275 = vmatpush2.bf16.msra.mxu0 0
      %1276 = vmatprep.subr.bf16.mxu0 0
      %1277 = vmatpush2.bf16.msra.mxu0 0
      %1278 = vmatprep.subr.bf16.mxu0 0
      %1279 = vmatpush2.bf16.msra.mxu0 0
      %1280 = vmatprep.subr.bf16.mxu0 0
      %1281 = vmatpush2.bf16.msra.mxu0 0
      %1282 = vmatprep.subr.bf16.mxu0 0
      %1283 = vmatpush2.bf16.msra.mxu0 0
      %1284 = vmatprep.mubr.bf16.mxu0 0
      %1285 = vmatmul.mubr.bf16.gmra.mxu0 %v1151
      %v1286 = vpop.f32.mrf.mxu0
      %v1287 = vadd.f32 0.0, %v1286
      %v1288 = vpop.f32.mrf.mxu0
      %v1289 = vpop.f32.mrf.mxu0
      %v1290 = vadd.f32 0.0, %v1289
      %v1291 = vpop.f32.mrf.mxu0
      %1292 = vmatprep.mubr.bf16.mxu0 0
      %1293 = vmatmul.mubr.bf16.gmra.mxu0 %v1152
      %v1294 = vpop.f32.mrf.mxu0
      %v1295 = vadd.f32 0.0, %v1294
      %v1296 = vpop.f32.mrf.mxu0
      %v1297 = vpop.f32.mrf.mxu0
      %v1298 = vadd.f32 0.0, %v1297
      %v1299 = vpop.f32.mrf.mxu0
      %1300 = vmatprep.mubr.bf16.mxu0 0
      %1301 = vmatmul.mubr.bf16.gmra.mxu0 %v1153
      %v1302 = vpop.f32.mrf.mxu0
      %v1303 = vadd.f32 0.0, %v1302
      %v1304 = vpop.f32.mrf.mxu0
      %v1305 = vpop.f32.mrf.mxu0
      %v1306 = vadd.f32 0.0, %v1305
      %v1307 = vpop.f32.mrf.mxu0
      %1308 = vmatprep.mubr.bf16.mxu0 0
      %1309 = vmatmul.mubr.bf16.gmra.mxu0 %v1154
      %v1310 = vpop.f32.mrf.mxu0
      %v1311 = vadd.f32 0.0, %v1310
      %v1312 = vpop.f32.mrf.mxu0
      %v1313 = vpop.f32.mrf.mxu0
      %v1314 = vadd.f32 0.0, %v1313
      %v1315 = vpop.f32.mrf.mxu0
      %1316 = vmatprep.mubr.bf16.mxu0 0
      %1317 = vmatmul.mubr.bf16.gmra.mxu0 %v1155
      %v1318 = vpop.f32.mrf.mxu0
      %v1319 = vadd.f32 0.0, %v1318
      %v1320 = vpop.f32.mrf.mxu0
      %v1321 = vpop.f32.mrf.mxu0
      %v1322 = vadd.f32 0.0, %v1321
      %v1323 = vpop.f32.mrf.mxu0
      %1324 = vmatprep.mubr.bf16.mxu0 0
      %1325 = vmatmul.mubr.bf16.gmra.mxu0 %v1156
      %v1326 = vpop.f32.mrf.mxu0
      %v1327 = vadd.f32 0.0, %v1326
      %v1328 = vpop.f32.mrf.mxu0
      %v1329 = vpop.f32.mrf.mxu0
      %v1330 = vadd.f32 0.0, %v1329
      %v1331 = vpop.f32.mrf.mxu0
      %1332 = vmatprep.mubr.bf16.mxu0 0
      %1333 = vmatmul.mubr.bf16.gmra.mxu0 %v1157
      %v1334 = vpop.f32.mrf.mxu0
      %v1335 = vadd.f32 0.0, %v1334
      %v1336 = vpop.f32.mrf.mxu0
      %v1337 = vpop.f32.mrf.mxu0
      %v1338 = vadd.f32 0.0, %v1337
      %v1339 = vpop.f32.mrf.mxu0
      %1340 = vmatprep.mubr.bf16.mxu0 0
      %1341 = vmatmul.mubr.bf16.gmra.mxu0 %v1158
      %v1342 = vpop.f32.mrf.mxu0
      %v1343 = vadd.f32 0.0, %v1342
      %v1344 = vpop.f32.mrf.mxu0
      %v1345 = vpop.f32.mrf.mxu0
      %v1346 = vadd.f32 0.0, %v1345
      %v1347 = vpop.f32.mrf.mxu0
      %1348 = vdwg.mxu0
      %v1365 = vunpack.c.l.b16 %v1171
      %v1366 = vunpack.c.l.b16 %v1172
      %v1367 = vunpack.c.l.b16 %v1173
      %v1368 = vunpack.c.l.b16 %v1174
      %v1369 = vunpack.c.l.b16 %v1175
      %v1370 = vunpack.c.l.b16 %v1176
      %v1371 = vunpack.c.l.b16 %v1177
      %v1372 = vunpack.c.l.b16 %v1178
      %v1373 = vunpack.c.l.b16 %v1179
      %v1374 = vunpack.c.l.b16 %v1180
      %v1375 = vunpack.c.l.b16 %v1181
      %v1376 = vunpack.c.l.b16 %v1182
      %v1377 = vunpack.c.l.b16 %v1183
      %v1378 = vunpack.c.l.b16 %v1184
      %v1379 = vunpack.c.l.b16 %v1185
      %v1380 = vunpack.c.l.b16 %v1186
      %v1381 = vpack.c.b16 %v1366, %v1365
      %v1382 = vpack.c.b16 %v1368, %v1367
      %v1383 = vpack.c.b16 %v1370, %v1369
      %v1384 = vpack.c.b16 %v1372, %v1371
      %v1385 = vpack.c.b16 %v1374, %v1373
      %v1386 = vpack.c.b16 %v1376, %v1375
      %v1387 = vpack.c.b16 %v1378, %v1377
      %v1388 = vpack.c.b16 %v1380, %v1379
      %1397 = vmatprep.subr.bf16.mxu0 0
      %1398 = vmatpush1.bf16.msra.mxu0 %v1388
      %1399 = vmatprep.subr.bf16.mxu0 0
      %1400 = vmatpush1.bf16.msra.mxu0 %v1387
      %1401 = vmatprep.subr.bf16.mxu0 0
      %1402 = vmatpush1.bf16.msra.mxu0 %v1386
      %1403 = vmatprep.subr.bf16.mxu0 0
      %1404 = vmatpush1.bf16.msra.mxu0 %v1385
      %1405 = vmatprep.subr.bf16.mxu0 0
      %1406 = vmatpush1.bf16.msra.mxu0 %v1384
      %1407 = vmatprep.subr.bf16.mxu0 0
      %1408 = vmatpush1.bf16.msra.mxu0 %v1383
      %1409 = vmatprep.subr.bf16.mxu0 0
      %1410 = vmatpush1.bf16.msra.mxu0 %v1382
      %1411 = vmatprep.subr.bf16.mxu0 0
      %1412 = vmatpush1.bf16.msra.mxu0 %v1381
      %1413 = vmatprep.subr.bf16.mxu0 0
      %1414 = vmatpush2.bf16.msra.mxu0 0
      %1415 = vmatprep.subr.bf16.mxu0 0
      %1416 = vmatpush2.bf16.msra.mxu0 0
      %1417 = vmatprep.subr.bf16.mxu0 0
      %1418 = vmatpush2.bf16.msra.mxu0 0
      %1419 = vmatprep.subr.bf16.mxu0 0
      %1420 = vmatpush2.bf16.msra.mxu0 0
      %1421 = vmatprep.subr.bf16.mxu0 0
      %1422 = vmatpush2.bf16.msra.mxu0 0
      %1423 = vmatprep.subr.bf16.mxu0 0
      %1424 = vmatpush2.bf16.msra.mxu0 0
      %1425 = vmatprep.subr.bf16.mxu0 0
      %1426 = vmatpush2.bf16.msra.mxu0 0
      %1427 = vmatprep.subr.bf16.mxu0 0
      %1428 = vmatpush2.bf16.msra.mxu0 0
      %1429 = vmatprep.mubr.bf16.mxu0 0
      %1430 = vmatmul.mubr.bf16.gmra.mxu0 %v1141
      %v1431 = vpop.f32.mrf.mxu0
      %v1432 = vadd.f32 %v1287, %v1431
      %v1433 = vpop.f32.mrf.mxu0
      %v1434 = vpop.f32.mrf.mxu0
      %v1435 = vadd.f32 %v1290, %v1434
      %v1436 = vpop.f32.mrf.mxu0
      %1437 = vmatprep.mubr.bf16.mxu0 0
      %1438 = vmatmul.mubr.bf16.gmra.mxu0 %v1142
      %v1439 = vpop.f32.mrf.mxu0
      %v1440 = vadd.f32 %v1295, %v1439
      %v1441 = vpop.f32.mrf.mxu0
      %v1442 = vpop.f32.mrf.mxu0
      %v1443 = vadd.f32 %v1298, %v1442
      %v1444 = vpop.f32.mrf.mxu0
      %1445 = vmatprep.mubr.bf16.mxu0 0
      %1446 = vmatmul.mubr.bf16.gmra.mxu0 %v1143
      %v1447 = vpop.f32.mrf.mxu0
      %v1448 = vadd.f32 %v1303, %v1447
      %v1449 = vpop.f32.mrf.mxu0
      %v1450 = vpop.f32.mrf.mxu0
      %v1451 = vadd.f32 %v1306, %v1450
      %v1452 = vpop.f32.mrf.mxu0
      %1453 = vmatprep.mubr.bf16.mxu0 0
      %1454 = vmatmul.mubr.bf16.gmra.mxu0 %v1144
      %v1455 = vpop.f32.mrf.mxu0
      %v1456 = vadd.f32 %v1311, %v1455
      %v1457 = vpop.f32.mrf.mxu0
      %v1458 = vpop.f32.mrf.mxu0
      %v1459 = vadd.f32 %v1314, %v1458
      %v1460 = vpop.f32.mrf.mxu0
      %1461 = vmatprep.mubr.bf16.mxu0 0
      %1462 = vmatmul.mubr.bf16.gmra.mxu0 %v1145
      %v1463 = vpop.f32.mrf.mxu0
      %v1464 = vadd.f32 %v1319, %v1463
      %v1465 = vpop.f32.mrf.mxu0
      %v1466 = vpop.f32.mrf.mxu0
      %v1467 = vadd.f32 %v1322, %v1466
      %v1468 = vpop.f32.mrf.mxu0
      %1469 = vmatprep.mubr.bf16.mxu0 0
      %1470 = vmatmul.mubr.bf16.gmra.mxu0 %v1146
      %v1471 = vpop.f32.mrf.mxu0
      %v1472 = vadd.f32 %v1327, %v1471
      %v1473 = vpop.f32.mrf.mxu0
      %v1474 = vpop.f32.mrf.mxu0
      %v1475 = vadd.f32 %v1330, %v1474
      %v1476 = vpop.f32.mrf.mxu0
      %1477 = vmatprep.mubr.bf16.mxu0 0
      %1478 = vmatmul.mubr.bf16.gmra.mxu0 %v1147
      %v1479 = vpop.f32.mrf.mxu0
      %v1480 = vadd.f32 %v1335, %v1479
      %v1481 = vpop.f32.mrf.mxu0
      %v1482 = vpop.f32.mrf.mxu0
      %v1483 = vadd.f32 %v1338, %v1482
      %v1484 = vpop.f32.mrf.mxu0
      %1485 = vmatprep.mubr.bf16.mxu0 0
      %1486 = vmatmul.mubr.bf16.gmra.mxu0 %v1148
      %v1487 = vpop.f32.mrf.mxu0
      %v1488 = vadd.f32 %v1343, %v1487
      %v1489 = vpop.f32.mrf.mxu0
      %v1490 = vpop.f32.mrf.mxu0
      %v1491 = vadd.f32 %v1346, %v1490
      %v1492 = vpop.f32.mrf.mxu0
      %1493 = vdwg.mxu0
      %s1494 = scalar_lea.vmem %s3, 128
      %v1495 = vld [vmem:[%s1494] sm:$0xf]
      %v1496 = vld [vmem:[%s1494 + $0x4] sm:$0xf]
      %v1497 = vld [vmem:[%s1494 + $0x8] sm:$0xf]
      %v1498 = vld [vmem:[%s1494 + $0xc] sm:$0xf]
      %v1499 = vld [vmem:[%s1494 + $0x10] sm:$0xf]
      %v1500 = vld [vmem:[%s1494 + $0x14] sm:$0xf]
      %v1501 = vld [vmem:[%s1494 + $0x18] sm:$0xf]
      %v1502 = vld [vmem:[%s1494 + $0x1c] sm:$0xf]
      %v1503 = vld [vmem:[%s1494 + $0x20] sm:$0xf]
      %v1504 = vld [vmem:[%s1494 + $0x24] sm:$0xf]
      %v1505 = vld [vmem:[%s1494 + $0x28] sm:$0xf]
      %v1506 = vld [vmem:[%s1494 + $0x2c] sm:$0xf]
      %v1507 = vld [vmem:[%s1494 + $0x30] sm:$0xf]
      %v1508 = vld [vmem:[%s1494 + $0x34] sm:$0xf]
      %v1509 = vld [vmem:[%s1494 + $0x38] sm:$0xf]
      %v1510 = vld [vmem:[%s1494 + $0x3c] sm:$0xf]
      %v1527 = vunpack.c.l.b16 %v1495
      %v1528 = vunpack.c.l.b16 %v1496
      %v1529 = vunpack.c.l.b16 %v1497
      %v1530 = vunpack.c.l.b16 %v1498
      %v1531 = vunpack.c.l.b16 %v1499
      %v1532 = vunpack.c.l.b16 %v1500
      %v1533 = vunpack.c.l.b16 %v1501
      %v1534 = vunpack.c.l.b16 %v1502
      %v1535 = vunpack.c.l.b16 %v1503
      %v1536 = vunpack.c.l.b16 %v1504
      %v1537 = vunpack.c.l.b16 %v1505
      %v1538 = vunpack.c.l.b16 %v1506
      %v1539 = vunpack.c.l.b16 %v1507
      %v1540 = vunpack.c.l.b16 %v1508
      %v1541 = vunpack.c.l.b16 %v1509
      %v1542 = vunpack.c.l.b16 %v1510
      %v1543 = vpack.c.b16 %v1528, %v1527
      %v1544 = vpack.c.b16 %v1530, %v1529
      %v1545 = vpack.c.b16 %v1532, %v1531
      %v1546 = vpack.c.b16 %v1534, %v1533
      %v1547 = vpack.c.b16 %v1536, %v1535
      %v1548 = vpack.c.b16 %v1538, %v1537
      %v1549 = vpack.c.b16 %v1540, %v1539
      %v1550 = vpack.c.b16 %v1542, %v1541
      %1559 = vmatprep.subr.bf16.mxu0 0
      %1560 = vmatpush1.bf16.msra.mxu0 %v1550
      %1561 = vmatprep.subr.bf16.mxu0 0
      %1562 = vmatpush1.bf16.msra.mxu0 %v1549
      %1563 = vmatprep.subr.bf16.mxu0 0
      %1564 = vmatpush1.bf16.msra.mxu0 %v1548
      %1565 = vmatprep.subr.bf16.mxu0 0
      %1566 = vmatpush1.bf16.msra.mxu0 %v1547
      %1567 = vmatprep.subr.bf16.mxu0 0
      %1568 = vmatpush1.bf16.msra.mxu0 %v1546
      %1569 = vmatprep.subr.bf16.mxu0 0
      %1570 = vmatpush1.bf16.msra.mxu0 %v1545
      %1571 = vmatprep.subr.bf16.mxu0 0
      %1572 = vmatpush1.bf16.msra.mxu0 %v1544
      %1573 = vmatprep.subr.bf16.mxu0 0
      %1574 = vmatpush1.bf16.msra.mxu0 %v1543
      %1575 = vmatprep.subr.bf16.mxu0 0
      %1576 = vmatpush2.bf16.msra.mxu0 0
      %1577 = vmatprep.subr.bf16.mxu0 0
      %1578 = vmatpush2.bf16.msra.mxu0 0
      %1579 = vmatprep.subr.bf16.mxu0 0
      %1580 = vmatpush2.bf16.msra.mxu0 0
      %1581 = vmatprep.subr.bf16.mxu0 0
      %1582 = vmatpush2.bf16.msra.mxu0 0
      %1583 = vmatprep.subr.bf16.mxu0 0
      %1584 = vmatpush2.bf16.msra.mxu0 0
      %1585 = vmatprep.subr.bf16.mxu0 0
      %1586 = vmatpush2.bf16.msra.mxu0 0
      %1587 = vmatprep.subr.bf16.mxu0 0
      %1588 = vmatpush2.bf16.msra.mxu0 0
      %1589 = vmatprep.subr.bf16.mxu0 0
      %1590 = vmatpush2.bf16.msra.mxu0 0
      %1591 = vmatprep.mubr.bf16.mxu0 0
      %1592 = vmatmul.mubr.bf16.gmra.mxu0 %v1161
      %v1593 = vpop.f32.mrf.mxu0
      %v1594 = vadd.f32 0.0, %v1593
      %v1595 = vpop.f32.mrf.mxu0
      %v1596 = vpop.f32.mrf.mxu0
      %v1597 = vadd.f32 0.0, %v1596
      %v1598 = vpop.f32.mrf.mxu0
      %1599 = vmatprep.mubr.bf16.mxu0 0
      %1600 = vmatmul.mubr.bf16.gmra.mxu0 %v1162
      %v1601 = vpop.f32.mrf.mxu0
      %v1602 = vadd.f32 0.0, %v1601
      %v1603 = vpop.f32.mrf.mxu0
      %v1604 = vpop.f32.mrf.mxu0
      %v1605 = vadd.f32 0.0, %v1604
      %v1606 = vpop.f32.mrf.mxu0
      %1607 = vmatprep.mubr.bf16.mxu0 0
      %1608 = vmatmul.mubr.bf16.gmra.mxu0 %v1163
      %v1609 = vpop.f32.mrf.mxu0
      %v1610 = vadd.f32 0.0, %v1609
      %v1611 = vpop.f32.mrf.mxu0
      %v1612 = vpop.f32.mrf.mxu0
      %v1613 = vadd.f32 0.0, %v1612
      %v1614 = vpop.f32.mrf.mxu0
      %1615 = vmatprep.mubr.bf16.mxu0 0
      %1616 = vmatmul.mubr.bf16.gmra.mxu0 %v1164
      %v1617 = vpop.f32.mrf.mxu0
      %v1618 = vadd.f32 0.0, %v1617
      %v1619 = vpop.f32.mrf.mxu0
      %v1620 = vpop.f32.mrf.mxu0
      %v1621 = vadd.f32 0.0, %v1620
      %v1622 = vpop.f32.mrf.mxu0
      %1623 = vmatprep.mubr.bf16.mxu0 0
      %1624 = vmatmul.mubr.bf16.gmra.mxu0 %v1165
      %v1625 = vpop.f32.mrf.mxu0
      %v1626 = vadd.f32 0.0, %v1625
      %v1627 = vpop.f32.mrf.mxu0
      %v1628 = vpop.f32.mrf.mxu0
      %v1629 = vadd.f32 0.0, %v1628
      %v1630 = vpop.f32.mrf.mxu0
      %1631 = vmatprep.mubr.bf16.mxu0 0
      %1632 = vmatmul.mubr.bf16.gmra.mxu0 %v1166
      %v1633 = vpop.f32.mrf.mxu0
      %v1634 = vadd.f32 0.0, %v1633
      %v1635 = vpop.f32.mrf.mxu0
      %v1636 = vpop.f32.mrf.mxu0
      %v1637 = vadd.f32 0.0, %v1636
      %v1638 = vpop.f32.mrf.mxu0
      %1639 = vmatprep.mubr.bf16.mxu0 0
      %1640 = vmatmul.mubr.bf16.gmra.mxu0 %v1167
      %v1641 = vpop.f32.mrf.mxu0
      %v1642 = vadd.f32 0.0, %v1641
      %v1643 = vpop.f32.mrf.mxu0
      %v1644 = vpop.f32.mrf.mxu0
      %v1645 = vadd.f32 0.0, %v1644
      %v1646 = vpop.f32.mrf.mxu0
      %1647 = vmatprep.mubr.bf16.mxu0 0
      %1648 = vmatmul.mubr.bf16.gmra.mxu0 %v1168
      %v1649 = vpop.f32.mrf.mxu0
      %v1650 = vadd.f32 0.0, %v1649
      %v1651 = vpop.f32.mrf.mxu0
      %v1652 = vpop.f32.mrf.mxu0
      %v1653 = vadd.f32 0.0, %v1652
      %v1654 = vpop.f32.mrf.mxu0
      %1655 = vdwg.mxu0
      %v1656 = vadd.f32 %v1432, %v1594
      %v1657 = vadd.f32 %v1435, %v1597
      %v1658 = vadd.f32 %v1440, %v1602
      %v1659 = vadd.f32 %v1443, %v1605
      %v1660 = vadd.f32 %v1448, %v1610
      %v1661 = vadd.f32 %v1451, %v1613
      %v1662 = vadd.f32 %v1456, %v1618
      %v1663 = vadd.f32 %v1459, %v1621
      %v1664 = vadd.f32 %v1464, %v1626
      %v1665 = vadd.f32 %v1467, %v1629
      %v1666 = vadd.f32 %v1472, %v1634
      %v1667 = vadd.f32 %v1475, %v1637
      %v1668 = vadd.f32 %v1480, %v1642
      %v1669 = vadd.f32 %v1483, %v1645
      %v1670 = vadd.f32 %v1488, %v1650
      %v1671 = vadd.f32 %v1491, %v1653
      %s1672 = scalar_lea.vmem %s3, 192
      %v1673 = vld [vmem:[%s1672] sm:$0xf]
      %v1674 = vld [vmem:[%s1672 + $0x4] sm:$0xf]
      %v1675 = vld [vmem:[%s1672 + $0x8] sm:$0xf]
      %v1676 = vld [vmem:[%s1672 + $0xc] sm:$0xf]
      %v1677 = vld [vmem:[%s1672 + $0x10] sm:$0xf]
      %v1678 = vld [vmem:[%s1672 + $0x14] sm:$0xf]
      %v1679 = vld [vmem:[%s1672 + $0x18] sm:$0xf]
      %v1680 = vld [vmem:[%s1672 + $0x1c] sm:$0xf]
      %v1681 = vld [vmem:[%s1672 + $0x20] sm:$0xf]
      %v1682 = vld [vmem:[%s1672 + $0x24] sm:$0xf]
      %v1683 = vld [vmem:[%s1672 + $0x28] sm:$0xf]
      %v1684 = vld [vmem:[%s1672 + $0x2c] sm:$0xf]
      %v1685 = vld [vmem:[%s1672 + $0x30] sm:$0xf]
      %v1686 = vld [vmem:[%s1672 + $0x34] sm:$0xf]
      %v1687 = vld [vmem:[%s1672 + $0x38] sm:$0xf]
      %v1688 = vld [vmem:[%s1672 + $0x3c] sm:$0xf]
      %v1705 = vunpack.c.l.b16 %v1673
      %v1706 = vunpack.c.l.b16 %v1674
      %v1707 = vunpack.c.l.b16 %v1675
      %v1708 = vunpack.c.l.b16 %v1676
      %v1709 = vunpack.c.l.b16 %v1677
      %v1710 = vunpack.c.l.b16 %v1678
      %v1711 = vunpack.c.l.b16 %v1679
      %v1712 = vunpack.c.l.b16 %v1680
      %v1713 = vunpack.c.l.b16 %v1681
      %v1714 = vunpack.c.l.b16 %v1682
      %v1715 = vunpack.c.l.b16 %v1683
      %v1716 = vunpack.c.l.b16 %v1684
      %v1717 = vunpack.c.l.b16 %v1685
      %v1718 = vunpack.c.l.b16 %v1686
      %v1719 = vunpack.c.l.b16 %v1687
      %v1720 = vunpack.c.l.b16 %v1688
      %v1721 = vpack.c.b16 %v1706, %v1705
      %v1722 = vpack.c.b16 %v1708, %v1707
      %v1723 = vpack.c.b16 %v1710, %v1709
      %v1724 = vpack.c.b16 %v1712, %v1711
      %v1725 = vpack.c.b16 %v1714, %v1713
      %v1726 = vpack.c.b16 %v1716, %v1715
      %v1727 = vpack.c.b16 %v1718, %v1717
      %v1728 = vpack.c.b16 %v1720, %v1719
      %1737 = vmatprep.subr.bf16.mxu0 0
      %1738 = vmatpush1.bf16.msra.mxu0 %v1728
      %1739 = vmatprep.subr.bf16.mxu0 0
      %1740 = vmatpush1.bf16.msra.mxu0 %v1727
      %1741 = vmatprep.subr.bf16.mxu0 0
      %1742 = vmatpush1.bf16.msra.mxu0 %v1726
      %1743 = vmatprep.subr.bf16.mxu0 0
      %1744 = vmatpush1.bf16.msra.mxu0 %v1725
      %1745 = vmatprep.subr.bf16.mxu0 0
      %1746 = vmatpush1.bf16.msra.mxu0 %v1724
      %1747 = vmatprep.subr.bf16.mxu0 0
      %1748 = vmatpush1.bf16.msra.mxu0 %v1723
      %1749 = vmatprep.subr.bf16.mxu0 0
      %1750 = vmatpush1.bf16.msra.mxu0 %v1722
      %1751 = vmatprep.subr.bf16.mxu0 0
      %1752 = vmatpush1.bf16.msra.mxu0 %v1721
      %1753 = vmatprep.subr.bf16.mxu0 0
      %1754 = vmatpush2.bf16.msra.mxu0 0
      %1755 = vmatprep.subr.bf16.mxu0 0
      %1756 = vmatpush2.bf16.msra.mxu0 0
      %1757 = vmatprep.subr.bf16.mxu0 0
      %1758 = vmatpush2.bf16.msra.mxu0 0
      %1759 = vmatprep.subr.bf16.mxu0 0
      %1760 = vmatpush2.bf16.msra.mxu0 0
      %1761 = vmatprep.subr.bf16.mxu0 0
      %1762 = vmatpush2.bf16.msra.mxu0 0
      %1763 = vmatprep.subr.bf16.mxu0 0
      %1764 = vmatpush2.bf16.msra.mxu0 0
      %1765 = vmatprep.subr.bf16.mxu0 0
      %1766 = vmatpush2.bf16.msra.mxu0 0
      %1767 = vmatprep.subr.bf16.mxu0 0
      %1768 = vmatpush2.bf16.msra.mxu0 0
      %1769 = vmatprep.mubr.bf16.mxu0 0
      %1770 = vmatmul.mubr.bf16.gmra.mxu0 %v1142
      %v1771 = vpop.f32.mrf.mxu0
      %v1772 = vadd.f32 0.0, %v1771
      %v1773 = vpop.f32.mrf.mxu0
      %v1774 = vpop.f32.mrf.mxu0
      %v1775 = vadd.f32 0.0, %v1774
      %v1776 = vpop.f32.mrf.mxu0
      %1777 = vmatprep.mubr.bf16.mxu0 0
      %1778 = vmatmul.mubr.bf16.gmra.mxu0 %v1143
      %v1779 = vpop.f32.mrf.mxu0
      %v1780 = vadd.f32 0.0, %v1779
      %v1781 = vpop.f32.mrf.mxu0
      %v1782 = vpop.f32.mrf.mxu0
      %v1783 = vadd.f32 0.0, %v1782
      %v1784 = vpop.f32.mrf.mxu0
      %1785 = vmatprep.mubr.bf16.mxu0 0
      %1786 = vmatmul.mubr.bf16.gmra.mxu0 %v1144
      %v1787 = vpop.f32.mrf.mxu0
      %v1788 = vadd.f32 0.0, %v1787
      %v1789 = vpop.f32.mrf.mxu0
      %v1790 = vpop.f32.mrf.mxu0
      %v1791 = vadd.f32 0.0, %v1790
      %v1792 = vpop.f32.mrf.mxu0
      %1793 = vmatprep.mubr.bf16.mxu0 0
      %1794 = vmatmul.mubr.bf16.gmra.mxu0 %v1145
      %v1795 = vpop.f32.mrf.mxu0
      %v1796 = vadd.f32 0.0, %v1795
      %v1797 = vpop.f32.mrf.mxu0
      %v1798 = vpop.f32.mrf.mxu0
      %v1799 = vadd.f32 0.0, %v1798
      %v1800 = vpop.f32.mrf.mxu0
      %1801 = vmatprep.mubr.bf16.mxu0 0
      %1802 = vmatmul.mubr.bf16.gmra.mxu0 %v1146
      %v1803 = vpop.f32.mrf.mxu0
      %v1804 = vadd.f32 0.0, %v1803
      %v1805 = vpop.f32.mrf.mxu0
      %v1806 = vpop.f32.mrf.mxu0
      %v1807 = vadd.f32 0.0, %v1806
      %v1808 = vpop.f32.mrf.mxu0
      %1809 = vmatprep.mubr.bf16.mxu0 0
      %1810 = vmatmul.mubr.bf16.gmra.mxu0 %v1147
      %v1811 = vpop.f32.mrf.mxu0
      %v1812 = vadd.f32 0.0, %v1811
      %v1813 = vpop.f32.mrf.mxu0
      %v1814 = vpop.f32.mrf.mxu0
      %v1815 = vadd.f32 0.0, %v1814
      %v1816 = vpop.f32.mrf.mxu0
      %1817 = vmatprep.mubr.bf16.mxu0 0
      %1818 = vmatmul.mubr.bf16.gmra.mxu0 %v1148
      %v1819 = vpop.f32.mrf.mxu0
      %v1820 = vadd.f32 0.0, %v1819
      %v1821 = vpop.f32.mrf.mxu0
      %v1822 = vpop.f32.mrf.mxu0
      %v1823 = vadd.f32 0.0, %v1822
      %v1824 = vpop.f32.mrf.mxu0
      %1825 = vmatprep.mubr.bf16.mxu0 0
      %1826 = vmatmul.mubr.bf16.gmra.mxu0 %v1149
      %v1827 = vpop.f32.mrf.mxu0
      %v1828 = vadd.f32 0.0, %v1827
      %v1829 = vpop.f32.mrf.mxu0
      %v1830 = vpop.f32.mrf.mxu0
      %v1831 = vadd.f32 0.0, %v1830
      %v1832 = vpop.f32.mrf.mxu0
      %1833 = vdwg.mxu0
      %v1834 = vadd.f32 %v1656, %v1772
      %v1835 = vadd.f32 %v1657, %v1775
      %v1836 = vadd.f32 %v1658, %v1780
      %v1837 = vadd.f32 %v1659, %v1783
      %v1838 = vadd.f32 %v1660, %v1788
      %v1839 = vadd.f32 %v1661, %v1791
      %v1840 = vadd.f32 %v1662, %v1796
      %v1841 = vadd.f32 %v1663, %v1799
      %v1842 = vadd.f32 %v1664, %v1804
      %v1843 = vadd.f32 %v1665, %v1807
      %v1844 = vadd.f32 %v1666, %v1812
      %v1845 = vadd.f32 %v1667, %v1815
      %v1846 = vadd.f32 %v1668, %v1820
      %v1847 = vadd.f32 %v1669, %v1823
      %v1848 = vadd.f32 %v1670, %v1828
      %v1849 = vadd.f32 %v1671, %v1831
      %s1850 = scalar_lea.vmem %s3, 256
      %v1851 = vld [vmem:[%s1850] sm:$0xf]
      %v1852 = vld [vmem:[%s1850 + $0x4] sm:$0xf]
      %v1853 = vld [vmem:[%s1850 + $0x8] sm:$0xf]
      %v1854 = vld [vmem:[%s1850 + $0xc] sm:$0xf]
      %v1855 = vld [vmem:[%s1850 + $0x10] sm:$0xf]
      %v1856 = vld [vmem:[%s1850 + $0x14] sm:$0xf]
      %v1857 = vld [vmem:[%s1850 + $0x18] sm:$0xf]
      %v1858 = vld [vmem:[%s1850 + $0x1c] sm:$0xf]
      %v1859 = vld [vmem:[%s1850 + $0x20] sm:$0xf]
      %v1860 = vld [vmem:[%s1850 + $0x24] sm:$0xf]
      %v1861 = vld [vmem:[%s1850 + $0x28] sm:$0xf]
      %v1862 = vld [vmem:[%s1850 + $0x2c] sm:$0xf]
      %v1863 = vld [vmem:[%s1850 + $0x30] sm:$0xf]
      %v1864 = vld [vmem:[%s1850 + $0x34] sm:$0xf]
      %v1865 = vld [vmem:[%s1850 + $0x38] sm:$0xf]
      %v1866 = vld [vmem:[%s1850 + $0x3c] sm:$0xf]
      %v1883 = vunpack.c.l.b16 %v1851
      %v1884 = vunpack.c.l.b16 %v1852
      %v1885 = vunpack.c.l.b16 %v1853
      %v1886 = vunpack.c.l.b16 %v1854
      %v1887 = vunpack.c.l.b16 %v1855
      %v1888 = vunpack.c.l.b16 %v1856
      %v1889 = vunpack.c.l.b16 %v1857
      %v1890 = vunpack.c.l.b16 %v1858
      %v1891 = vunpack.c.l.b16 %v1859
      %v1892 = vunpack.c.l.b16 %v1860
      %v1893 = vunpack.c.l.b16 %v1861
      %v1894 = vunpack.c.l.b16 %v1862
      %v1895 = vunpack.c.l.b16 %v1863
      %v1896 = vunpack.c.l.b16 %v1864
      %v1897 = vunpack.c.l.b16 %v1865
      %v1898 = vunpack.c.l.b16 %v1866
      %v1899 = vpack.c.b16 %v1884, %v1883
      %v1900 = vpack.c.b16 %v1886, %v1885
      %v1901 = vpack.c.b16 %v1888, %v1887
      %v1902 = vpack.c.b16 %v1890, %v1889
      %v1903 = vpack.c.b16 %v1892, %v1891
      %v1904 = vpack.c.b16 %v1894, %v1893
      %v1905 = vpack.c.b16 %v1896, %v1895
      %v1906 = vpack.c.b16 %v1898, %v1897
      %1915 = vmatprep.subr.bf16.mxu0 0
      %1916 = vmatpush1.bf16.msra.mxu0 %v1906
      %1917 = vmatprep.subr.bf16.mxu0 0
      %1918 = vmatpush1.bf16.msra.mxu0 %v1905
      %1919 = vmatprep.subr.bf16.mxu0 0
      %1920 = vmatpush1.bf16.msra.mxu0 %v1904
      %1921 = vmatprep.subr.bf16.mxu0 0
      %1922 = vmatpush1.bf16.msra.mxu0 %v1903
      %1923 = vmatprep.subr.bf16.mxu0 0
      %1924 = vmatpush1.bf16.msra.mxu0 %v1902
      %1925 = vmatprep.subr.bf16.mxu0 0
      %1926 = vmatpush1.bf16.msra.mxu0 %v1901
      %1927 = vmatprep.subr.bf16.mxu0 0
      %1928 = vmatpush1.bf16.msra.mxu0 %v1900
      %1929 = vmatprep.subr.bf16.mxu0 0
      %1930 = vmatpush1.bf16.msra.mxu0 %v1899
      %1931 = vmatprep.subr.bf16.mxu0 0
      %1932 = vmatpush2.bf16.msra.mxu0 0
      %1933 = vmatprep.subr.bf16.mxu0 0
      %1934 = vmatpush2.bf16.msra.mxu0 0
      %1935 = vmatprep.subr.bf16.mxu0 0
      %1936 = vmatpush2.bf16.msra.mxu0 0
      %1937 = vmatprep.subr.bf16.mxu0 0
      %1938 = vmatpush2.bf16.msra.mxu0 0
      %1939 = vmatprep.subr.bf16.mxu0 0
      %1940 = vmatpush2.bf16.msra.mxu0 0
      %1941 = vmatprep.subr.bf16.mxu0 0
      %1942 = vmatpush2.bf16.msra.mxu0 0
      %1943 = vmatprep.subr.bf16.mxu0 0
      %1944 = vmatpush2.bf16.msra.mxu0 0
      %1945 = vmatprep.subr.bf16.mxu0 0
      %1946 = vmatpush2.bf16.msra.mxu0 0
      %1947 = vmatprep.mubr.bf16.mxu0 0
      %1948 = vmatmul.mubr.bf16.gmra.mxu0 %v1152
      %v1949 = vpop.f32.mrf.mxu0
      %v1950 = vadd.f32 0.0, %v1949
      %v1951 = vpop.f32.mrf.mxu0
      %v1952 = vpop.f32.mrf.mxu0
      %v1953 = vadd.f32 0.0, %v1952
      %v1954 = vpop.f32.mrf.mxu0
      %1955 = vmatprep.mubr.bf16.mxu0 0
      %1956 = vmatmul.mubr.bf16.gmra.mxu0 %v1153
      %v1957 = vpop.f32.mrf.mxu0
      %v1958 = vadd.f32 0.0, %v1957
      %v1959 = vpop.f32.mrf.mxu0
      %v1960 = vpop.f32.mrf.mxu0
      %v1961 = vadd.f32 0.0, %v1960
      %v1962 = vpop.f32.mrf.mxu0
      %1963 = vmatprep.mubr.bf16.mxu0 0
      %1964 = vmatmul.mubr.bf16.gmra.mxu0 %v1154
      %v1965 = vpop.f32.mrf.mxu0
      %v1966 = vadd.f32 0.0, %v1965
      %v1967 = vpop.f32.mrf.mxu0
      %v1968 = vpop.f32.mrf.mxu0
      %v1969 = vadd.f32 0.0, %v1968
      %v1970 = vpop.f32.mrf.mxu0
      %1971 = vmatprep.mubr.bf16.mxu0 0
      %1972 = vmatmul.mubr.bf16.gmra.mxu0 %v1155
      %v1973 = vpop.f32.mrf.mxu0
      %v1974 = vadd.f32 0.0, %v1973
      %v1975 = vpop.f32.mrf.mxu0
      %v1976 = vpop.f32.mrf.mxu0
      %v1977 = vadd.f32 0.0, %v1976
      %v1978 = vpop.f32.mrf.mxu0
      %1979 = vmatprep.mubr.bf16.mxu0 0
      %1980 = vmatmul.mubr.bf16.gmra.mxu0 %v1156
      %v1981 = vpop.f32.mrf.mxu0
      %v1982 = vadd.f32 0.0, %v1981
      %v1983 = vpop.f32.mrf.mxu0
      %v1984 = vpop.f32.mrf.mxu0
      %v1985 = vadd.f32 0.0, %v1984
      %v1986 = vpop.f32.mrf.mxu0
      %1987 = vmatprep.mubr.bf16.mxu0 0
      %1988 = vmatmul.mubr.bf16.gmra.mxu0 %v1157
      %v1989 = vpop.f32.mrf.mxu0
      %v1990 = vadd.f32 0.0, %v1989
      %v1991 = vpop.f32.mrf.mxu0
      %v1992 = vpop.f32.mrf.mxu0
      %v1993 = vadd.f32 0.0, %v1992
      %v1994 = vpop.f32.mrf.mxu0
      %1995 = vmatprep.mubr.bf16.mxu0 0
      %1996 = vmatmul.mubr.bf16.gmra.mxu0 %v1158
      %v1997 = vpop.f32.mrf.mxu0
      %v1998 = vadd.f32 0.0, %v1997
      %v1999 = vpop.f32.mrf.mxu0
      %v2000 = vpop.f32.mrf.mxu0
      %v2001 = vadd.f32 0.0, %v2000
      %v2002 = vpop.f32.mrf.mxu0
      %2003 = vmatprep.mubr.bf16.mxu0 0
      %2004 = vmatmul.mubr.bf16.gmra.mxu0 %v1159
      %v2005 = vpop.f32.mrf.mxu0
      %v2006 = vadd.f32 0.0, %v2005
      %v2007 = vpop.f32.mrf.mxu0
      %v2008 = vpop.f32.mrf.mxu0
      %v2009 = vadd.f32 0.0, %v2008
      %v2010 = vpop.f32.mrf.mxu0
      %2011 = vdwg.mxu0
      %v2012 = vadd.f32 %v1834, %v1950
      %v2013 = vadd.f32 %v1835, %v1953
      %v2014 = vadd.f32 %v1836, %v1958
      %v2015 = vadd.f32 %v1837, %v1961
      %v2016 = vadd.f32 %v1838, %v1966
      %v2017 = vadd.f32 %v1839, %v1969
      %v2018 = vadd.f32 %v1840, %v1974
      %v2019 = vadd.f32 %v1841, %v1977
      %v2020 = vadd.f32 %v1842, %v1982
      %v2021 = vadd.f32 %v1843, %v1985
      %v2022 = vadd.f32 %v1844, %v1990
      %v2023 = vadd.f32 %v1845, %v1993
      %v2024 = vadd.f32 %v1846, %v1998
      %v2025 = vadd.f32 %v1847, %v2001
      %v2026 = vadd.f32 %v1848, %v2006
      %v2027 = vadd.f32 %v1849, %v2009
      %s2028 = scalar_lea.vmem %s3, 320
      %v2029 = vld [vmem:[%s2028] sm:$0xf]
      %v2030 = vld [vmem:[%s2028 + $0x4] sm:$0xf]
      %v2031 = vld [vmem:[%s2028 + $0x8] sm:$0xf]
      %v2032 = vld [vmem:[%s2028 + $0xc] sm:$0xf]
      %v2033 = vld [vmem:[%s2028 + $0x10] sm:$0xf]
      %v2034 = vld [vmem:[%s2028 + $0x14] sm:$0xf]
      %v2035 = vld [vmem:[%s2028 + $0x18] sm:$0xf]
      %v2036 = vld [vmem:[%s2028 + $0x1c] sm:$0xf]
      %v2037 = vld [vmem:[%s2028 + $0x20] sm:$0xf]
      %v2038 = vld [vmem:[%s2028 + $0x24] sm:$0xf]
      %v2039 = vld [vmem:[%s2028 + $0x28] sm:$0xf]
      %v2040 = vld [vmem:[%s2028 + $0x2c] sm:$0xf]
      %v2041 = vld [vmem:[%s2028 + $0x30] sm:$0xf]
      %v2042 = vld [vmem:[%s2028 + $0x34] sm:$0xf]
      %v2043 = vld [vmem:[%s2028 + $0x38] sm:$0xf]
      %v2044 = vld [vmem:[%s2028 + $0x3c] sm:$0xf]
      %v2061 = vunpack.c.l.b16 %v2029
      %v2062 = vunpack.c.l.b16 %v2030
      %v2063 = vunpack.c.l.b16 %v2031
      %v2064 = vunpack.c.l.b16 %v2032
      %v2065 = vunpack.c.l.b16 %v2033
      %v2066 = vunpack.c.l.b16 %v2034
      %v2067 = vunpack.c.l.b16 %v2035
      %v2068 = vunpack.c.l.b16 %v2036
      %v2069 = vunpack.c.l.b16 %v2037
      %v2070 = vunpack.c.l.b16 %v2038
      %v2071 = vunpack.c.l.b16 %v2039
      %v2072 = vunpack.c.l.b16 %v2040
      %v2073 = vunpack.c.l.b16 %v2041
      %v2074 = vunpack.c.l.b16 %v2042
      %v2075 = vunpack.c.l.b16 %v2043
      %v2076 = vunpack.c.l.b16 %v2044
      %v2077 = vpack.c.b16 %v2062, %v2061
      %v2078 = vpack.c.b16 %v2064, %v2063
      %v2079 = vpack.c.b16 %v2066, %v2065
      %v2080 = vpack.c.b16 %v2068, %v2067
      %v2081 = vpack.c.b16 %v2070, %v2069
      %v2082 = vpack.c.b16 %v2072, %v2071
      %v2083 = vpack.c.b16 %v2074, %v2073
      %v2084 = vpack.c.b16 %v2076, %v2075
      %2093 = vmatprep.subr.bf16.mxu0 0
      %2094 = vmatpush1.bf16.msra.mxu0 %v2084
      %2095 = vmatprep.subr.bf16.mxu0 0
      %2096 = vmatpush1.bf16.msra.mxu0 %v2083
      %2097 = vmatprep.subr.bf16.mxu0 0
      %2098 = vmatpush1.bf16.msra.mxu0 %v2082
      %2099 = vmatprep.subr.bf16.mxu0 0
      %2100 = vmatpush1.bf16.msra.mxu0 %v2081
      %2101 = vmatprep.subr.bf16.mxu0 0
      %2102 = vmatpush1.bf16.msra.mxu0 %v2080
      %2103 = vmatprep.subr.bf16.mxu0 0
      %2104 = vmatpush1.bf16.msra.mxu0 %v2079
      %2105 = vmatprep.subr.bf16.mxu0 0
      %2106 = vmatpush1.bf16.msra.mxu0 %v2078
      %2107 = vmatprep.subr.bf16.mxu0 0
      %2108 = vmatpush1.bf16.msra.mxu0 %v2077
      %2109 = vmatprep.subr.bf16.mxu0 0
      %2110 = vmatpush2.bf16.msra.mxu0 0
      %2111 = vmatprep.subr.bf16.mxu0 0
      %2112 = vmatpush2.bf16.msra.mxu0 0
      %2113 = vmatprep.subr.bf16.mxu0 0
      %2114 = vmatpush2.bf16.msra.mxu0 0
      %2115 = vmatprep.subr.bf16.mxu0 0
      %2116 = vmatpush2.bf16.msra.mxu0 0
      %2117 = vmatprep.subr.bf16.mxu0 0
      %2118 = vmatpush2.bf16.msra.mxu0 0
      %2119 = vmatprep.subr.bf16.mxu0 0
      %2120 = vmatpush2.bf16.msra.mxu0 0
      %2121 = vmatprep.subr.bf16.mxu0 0
      %2122 = vmatpush2.bf16.msra.mxu0 0
      %2123 = vmatprep.subr.bf16.mxu0 0
      %2124 = vmatpush2.bf16.msra.mxu0 0
      %2125 = vmatprep.mubr.bf16.mxu0 0
      %2126 = vmatmul.mubr.bf16.gmra.mxu0 %v1162
      %v2127 = vpop.f32.mrf.mxu0
      %v2128 = vadd.f32 0.0, %v2127
      %v2129 = vpop.f32.mrf.mxu0
      %v2130 = vpop.f32.mrf.mxu0
      %v2131 = vadd.f32 0.0, %v2130
      %v2132 = vpop.f32.mrf.mxu0
      %2133 = vmatprep.mubr.bf16.mxu0 0
      %2134 = vmatmul.mubr.bf16.gmra.mxu0 %v1163
      %v2135 = vpop.f32.mrf.mxu0
      %v2136 = vadd.f32 0.0, %v2135
      %v2137 = vpop.f32.mrf.mxu0
      %v2138 = vpop.f32.mrf.mxu0
      %v2139 = vadd.f32 0.0, %v2138
      %v2140 = vpop.f32.mrf.mxu0
      %2141 = vmatprep.mubr.bf16.mxu0 0
      %2142 = vmatmul.mubr.bf16.gmra.mxu0 %v1164
      %v2143 = vpop.f32.mrf.mxu0
      %v2144 = vadd.f32 0.0, %v2143
      %v2145 = vpop.f32.mrf.mxu0
      %v2146 = vpop.f32.mrf.mxu0
      %v2147 = vadd.f32 0.0, %v2146
      %v2148 = vpop.f32.mrf.mxu0
      %2149 = vmatprep.mubr.bf16.mxu0 0
      %2150 = vmatmul.mubr.bf16.gmra.mxu0 %v1165
      %v2151 = vpop.f32.mrf.mxu0
      %v2152 = vadd.f32 0.0, %v2151
      %v2153 = vpop.f32.mrf.mxu0
      %v2154 = vpop.f32.mrf.mxu0
      %v2155 = vadd.f32 0.0, %v2154
      %v2156 = vpop.f32.mrf.mxu0
      %2157 = vmatprep.mubr.bf16.mxu0 0
      %2158 = vmatmul.mubr.bf16.gmra.mxu0 %v1166
      %v2159 = vpop.f32.mrf.mxu0
      %v2160 = vadd.f32 0.0, %v2159
      %v2161 = vpop.f32.mrf.mxu0
      %v2162 = vpop.f32.mrf.mxu0
      %v2163 = vadd.f32 0.0, %v2162
      %v2164 = vpop.f32.mrf.mxu0
      %2165 = vmatprep.mubr.bf16.mxu0 0
      %2166 = vmatmul.mubr.bf16.gmra.mxu0 %v1167
      %v2167 = vpop.f32.mrf.mxu0
      %v2168 = vadd.f32 0.0, %v2167
      %v2169 = vpop.f32.mrf.mxu0
      %v2170 = vpop.f32.mrf.mxu0
      %v2171 = vadd.f32 0.0, %v2170
      %v2172 = vpop.f32.mrf.mxu0
      %2173 = vmatprep.mubr.bf16.mxu0 0
      %2174 = vmatmul.mubr.bf16.gmra.mxu0 %v1168
      %v2175 = vpop.f32.mrf.mxu0
      %v2176 = vadd.f32 0.0, %v2175
      %v2177 = vpop.f32.mrf.mxu0
      %v2178 = vpop.f32.mrf.mxu0
      %v2179 = vadd.f32 0.0, %v2178
      %v2180 = vpop.f32.mrf.mxu0
      %2181 = vmatprep.mubr.bf16.mxu0 0
      %2182 = vmatmul.mubr.bf16.gmra.mxu0 %v1169
      %v2183 = vpop.f32.mrf.mxu0
      %v2184 = vadd.f32 0.0, %v2183
      %v2185 = vpop.f32.mrf.mxu0
      %v2186 = vpop.f32.mrf.mxu0
      %v2187 = vadd.f32 0.0, %v2186
      %v2188 = vpop.f32.mrf.mxu0
      %2189 = vdwg.mxu0
      %v2190 = vadd.f32 %v2012, %v2128
      %v2191 = vadd.f32 %v2013, %v2131
      %v2192 = vadd.f32 %v2014, %v2136
      %v2193 = vadd.f32 %v2015, %v2139
      %v2194 = vadd.f32 %v2016, %v2144
      %v2195 = vadd.f32 %v2017, %v2147
      %v2196 = vadd.f32 %v2018, %v2152
      %v2197 = vadd.f32 %v2019, %v2155
      %v2198 = vadd.f32 %v2020, %v2160
      %v2199 = vadd.f32 %v2021, %v2163
      %v2200 = vadd.f32 %v2022, %v2168
      %v2201 = vadd.f32 %v2023, %v2171
      %v2202 = vadd.f32 %v2024, %v2176
      %v2203 = vadd.f32 %v2025, %v2179
      %v2204 = vadd.f32 %v2026, %v2184
      %v2205 = vadd.f32 %v2027, %v2187
      %s2206 = scalar_lea.vmem %s3, 384
      %v2207 = vld [vmem:[%s2206] sm:$0xf]
      %v2208 = vld [vmem:[%s2206 + $0x4] sm:$0xf]
      %v2209 = vld [vmem:[%s2206 + $0x8] sm:$0xf]
      %v2210 = vld [vmem:[%s2206 + $0xc] sm:$0xf]
      %v2211 = vld [vmem:[%s2206 + $0x10] sm:$0xf]
      %v2212 = vld [vmem:[%s2206 + $0x14] sm:$0xf]
      %v2213 = vld [vmem:[%s2206 + $0x18] sm:$0xf]
      %v2214 = vld [vmem:[%s2206 + $0x1c] sm:$0xf]
      %v2215 = vld [vmem:[%s2206 + $0x20] sm:$0xf]
      %v2216 = vld [vmem:[%s2206 + $0x24] sm:$0xf]
      %v2217 = vld [vmem:[%s2206 + $0x28] sm:$0xf]
      %v2218 = vld [vmem:[%s2206 + $0x2c] sm:$0xf]
      %v2219 = vld [vmem:[%s2206 + $0x30] sm:$0xf]
      %v2220 = vld [vmem:[%s2206 + $0x34] sm:$0xf]
      %v2221 = vld [vmem:[%s2206 + $0x38] sm:$0xf]
      %v2222 = vld [vmem:[%s2206 + $0x3c] sm:$0xf]
      %v2239 = vunpack.c.l.b16 %v2207
      %v2240 = vunpack.c.l.b16 %v2208
      %v2241 = vunpack.c.l.b16 %v2209
      %v2242 = vunpack.c.l.b16 %v2210
      %v2243 = vunpack.c.l.b16 %v2211
      %v2244 = vunpack.c.l.b16 %v2212
      %v2245 = vunpack.c.l.b16 %v2213
      %v2246 = vunpack.c.l.b16 %v2214
      %v2247 = vunpack.c.l.b16 %v2215
      %v2248 = vunpack.c.l.b16 %v2216
      %v2249 = vunpack.c.l.b16 %v2217
      %v2250 = vunpack.c.l.b16 %v2218
      %v2251 = vunpack.c.l.b16 %v2219
      %v2252 = vunpack.c.l.b16 %v2220
      %v2253 = vunpack.c.l.b16 %v2221
      %v2254 = vunpack.c.l.b16 %v2222
      %v2255 = vpack.c.b16 %v2240, %v2239
      %v2256 = vpack.c.b16 %v2242, %v2241
      %v2257 = vpack.c.b16 %v2244, %v2243
      %v2258 = vpack.c.b16 %v2246, %v2245
      %v2259 = vpack.c.b16 %v2248, %v2247
      %v2260 = vpack.c.b16 %v2250, %v2249
      %v2261 = vpack.c.b16 %v2252, %v2251
      %v2262 = vpack.c.b16 %v2254, %v2253
      %2271 = vmatprep.subr.bf16.mxu0 0
      %2272 = vmatpush1.bf16.msra.mxu0 %v2262
      %2273 = vmatprep.subr.bf16.mxu0 0
      %2274 = vmatpush1.bf16.msra.mxu0 %v2261
      %2275 = vmatprep.subr.bf16.mxu0 0
      %2276 = vmatpush1.bf16.msra.mxu0 %v2260
      %2277 = vmatprep.subr.bf16.mxu0 0
      %2278 = vmatpush1.bf16.msra.mxu0 %v2259
      %2279 = vmatprep.subr.bf16.mxu0 0
      %2280 = vmatpush1.bf16.msra.mxu0 %v2258
      %2281 = vmatprep.subr.bf16.mxu0 0
      %2282 = vmatpush1.bf16.msra.mxu0 %v2257
      %2283 = vmatprep.subr.bf16.mxu0 0
      %2284 = vmatpush1.bf16.msra.mxu0 %v2256
      %2285 = vmatprep.subr.bf16.mxu0 0
      %2286 = vmatpush1.bf16.msra.mxu0 %v2255
      %2287 = vmatprep.subr.bf16.mxu0 0
      %2288 = vmatpush2.bf16.msra.mxu0 0
      %2289 = vmatprep.subr.bf16.mxu0 0
      %2290 = vmatpush2.bf16.msra.mxu0 0
      %2291 = vmatprep.subr.bf16.mxu0 0
      %2292 = vmatpush2.bf16.msra.mxu0 0
      %2293 = vmatprep.subr.bf16.mxu0 0
      %2294 = vmatpush2.bf16.msra.mxu0 0
      %2295 = vmatprep.subr.bf16.mxu0 0
      %2296 = vmatpush2.bf16.msra.mxu0 0
      %2297 = vmatprep.subr.bf16.mxu0 0
      %2298 = vmatpush2.bf16.msra.mxu0 0
      %2299 = vmatprep.subr.bf16.mxu0 0
      %2300 = vmatpush2.bf16.msra.mxu0 0
      %2301 = vmatprep.subr.bf16.mxu0 0
      %2302 = vmatpush2.bf16.msra.mxu0 0
      %2303 = vmatprep.mubr.bf16.mxu0 0
      %2304 = vmatmul.mubr.bf16.gmra.mxu0 %v1143
      %v2305 = vpop.f32.mrf.mxu0
      %v2306 = vadd.f32 0.0, %v2305
      %v2307 = vpop.f32.mrf.mxu0
      %v2308 = vpop.f32.mrf.mxu0
      %v2309 = vadd.f32 0.0, %v2308
      %v2310 = vpop.f32.mrf.mxu0
      %2311 = vmatprep.mubr.bf16.mxu0 0
      %2312 = vmatmul.mubr.bf16.gmra.mxu0 %v1144
      %v2313 = vpop.f32.mrf.mxu0
      %v2314 = vadd.f32 0.0, %v2313
      %v2315 = vpop.f32.mrf.mxu0
      %v2316 = vpop.f32.mrf.mxu0
      %v2317 = vadd.f32 0.0, %v2316
      %v2318 = vpop.f32.mrf.mxu0
      %2319 = vmatprep.mubr.bf16.mxu0 0
      %2320 = vmatmul.mubr.bf16.gmra.mxu0 %v1145
      %v2321 = vpop.f32.mrf.mxu0
      %v2322 = vadd.f32 0.0, %v2321
      %v2323 = vpop.f32.mrf.mxu0
      %v2324 = vpop.f32.mrf.mxu0
      %v2325 = vadd.f32 0.0, %v2324
      %v2326 = vpop.f32.mrf.mxu0
      %2327 = vmatprep.mubr.bf16.mxu0 0
      %2328 = vmatmul.mubr.bf16.gmra.mxu0 %v1146
      %v2329 = vpop.f32.mrf.mxu0
      %v2330 = vadd.f32 0.0, %v2329
      %v2331 = vpop.f32.mrf.mxu0
      %v2332 = vpop.f32.mrf.mxu0
      %v2333 = vadd.f32 0.0, %v2332
      %v2334 = vpop.f32.mrf.mxu0
      %2335 = vmatprep.mubr.bf16.mxu0 0
      %2336 = vmatmul.mubr.bf16.gmra.mxu0 %v1147
      %v2337 = vpop.f32.mrf.mxu0
      %v2338 = vadd.f32 0.0, %v2337
      %v2339 = vpop.f32.mrf.mxu0
      %v2340 = vpop.f32.mrf.mxu0
      %v2341 = vadd.f32 0.0, %v2340
      %v2342 = vpop.f32.mrf.mxu0
      %2343 = vmatprep.mubr.bf16.mxu0 0
      %2344 = vmatmul.mubr.bf16.gmra.mxu0 %v1148
      %v2345 = vpop.f32.mrf.mxu0
      %v2346 = vadd.f32 0.0, %v2345
      %v2347 = vpop.f32.mrf.mxu0
      %v2348 = vpop.f32.mrf.mxu0
      %v2349 = vadd.f32 0.0, %v2348
      %v2350 = vpop.f32.mrf.mxu0
      %2351 = vmatprep.mubr.bf16.mxu0 0
      %2352 = vmatmul.mubr.bf16.gmra.mxu0 %v1149
      %v2353 = vpop.f32.mrf.mxu0
      %v2354 = vadd.f32 0.0, %v2353
      %v2355 = vpop.f32.mrf.mxu0
      %v2356 = vpop.f32.mrf.mxu0
      %v2357 = vadd.f32 0.0, %v2356
      %v2358 = vpop.f32.mrf.mxu0
      %2359 = vmatprep.mubr.bf16.mxu0 0
      %2360 = vmatmul.mubr.bf16.gmra.mxu0 %v1150
      %v2361 = vpop.f32.mrf.mxu0
      %v2362 = vadd.f32 0.0, %v2361
      %v2363 = vpop.f32.mrf.mxu0
      %v2364 = vpop.f32.mrf.mxu0
      %v2365 = vadd.f32 0.0, %v2364
      %v2366 = vpop.f32.mrf.mxu0
      %2367 = vdwg.mxu0
      %v2368 = vadd.f32 %v2190, %v2306
      %v2369 = vadd.f32 %v2191, %v2309
      %v2370 = vadd.f32 %v2192, %v2314
      %v2371 = vadd.f32 %v2193, %v2317
      %v2372 = vadd.f32 %v2194, %v2322
      %v2373 = vadd.f32 %v2195, %v2325
      %v2374 = vadd.f32 %v2196, %v2330
      %v2375 = vadd.f32 %v2197, %v2333
      %v2376 = vadd.f32 %v2198, %v2338
      %v2377 = vadd.f32 %v2199, %v2341
      %v2378 = vadd.f32 %v2200, %v2346
      %v2379 = vadd.f32 %v2201, %v2349
      %v2380 = vadd.f32 %v2202, %v2354
      %v2381 = vadd.f32 %v2203, %v2357
      %v2382 = vadd.f32 %v2204, %v2362
      %v2383 = vadd.f32 %v2205, %v2365
      %s2384 = scalar_lea.vmem %s3, 448
      %v2385 = vld [vmem:[%s2384] sm:$0xf]
      %v2386 = vld [vmem:[%s2384 + $0x4] sm:$0xf]
      %v2387 = vld [vmem:[%s2384 + $0x8] sm:$0xf]
      %v2388 = vld [vmem:[%s2384 + $0xc] sm:$0xf]
      %v2389 = vld [vmem:[%s2384 + $0x10] sm:$0xf]
      %v2390 = vld [vmem:[%s2384 + $0x14] sm:$0xf]
      %v2391 = vld [vmem:[%s2384 + $0x18] sm:$0xf]
      %v2392 = vld [vmem:[%s2384 + $0x1c] sm:$0xf]
      %v2393 = vld [vmem:[%s2384 + $0x20] sm:$0xf]
      %v2394 = vld [vmem:[%s2384 + $0x24] sm:$0xf]
      %v2395 = vld [vmem:[%s2384 + $0x28] sm:$0xf]
      %v2396 = vld [vmem:[%s2384 + $0x2c] sm:$0xf]
      %v2397 = vld [vmem:[%s2384 + $0x30] sm:$0xf]
      %v2398 = vld [vmem:[%s2384 + $0x34] sm:$0xf]
      %v2399 = vld [vmem:[%s2384 + $0x38] sm:$0xf]
      %v2400 = vld [vmem:[%s2384 + $0x3c] sm:$0xf]
      %v2417 = vunpack.c.l.b16 %v2385
      %v2418 = vunpack.c.l.b16 %v2386
      %v2419 = vunpack.c.l.b16 %v2387
      %v2420 = vunpack.c.l.b16 %v2388
      %v2421 = vunpack.c.l.b16 %v2389
      %v2422 = vunpack.c.l.b16 %v2390
      %v2423 = vunpack.c.l.b16 %v2391
      %v2424 = vunpack.c.l.b16 %v2392
      %v2425 = vunpack.c.l.b16 %v2393
      %v2426 = vunpack.c.l.b16 %v2394
      %v2427 = vunpack.c.l.b16 %v2395
      %v2428 = vunpack.c.l.b16 %v2396
      %v2429 = vunpack.c.l.b16 %v2397
      %v2430 = vunpack.c.l.b16 %v2398
      %v2431 = vunpack.c.l.b16 %v2399
      %v2432 = vunpack.c.l.b16 %v2400
      %v2433 = vpack.c.b16 %v2418, %v2417
      %v2434 = vpack.c.b16 %v2420, %v2419
      %v2435 = vpack.c.b16 %v2422, %v2421
      %v2436 = vpack.c.b16 %v2424, %v2423
      %v2437 = vpack.c.b16 %v2426, %v2425
      %v2438 = vpack.c.b16 %v2428, %v2427
      %v2439 = vpack.c.b16 %v2430, %v2429
      %v2440 = vpack.c.b16 %v2432, %v2431
      %2449 = vmatprep.subr.bf16.mxu0 0
      %2450 = vmatpush1.bf16.msra.mxu0 %v2440
      %2451 = vmatprep.subr.bf16.mxu0 0
      %2452 = vmatpush1.bf16.msra.mxu0 %v2439
      %2453 = vmatprep.subr.bf16.mxu0 0
      %2454 = vmatpush1.bf16.msra.mxu0 %v2438
      %2455 = vmatprep.subr.bf16.mxu0 0
      %2456 = vmatpush1.bf16.msra.mxu0 %v2437
      %2457 = vmatprep.subr.bf16.mxu0 0
      %2458 = vmatpush1.bf16.msra.mxu0 %v2436
      %2459 = vmatprep.subr.bf16.mxu0 0
      %2460 = vmatpush1.bf16.msra.mxu0 %v2435
      %2461 = vmatprep.subr.bf16.mxu0 0
      %2462 = vmatpush1.bf16.msra.mxu0 %v2434
      %2463 = vmatprep.subr.bf16.mxu0 0
      %2464 = vmatpush1.bf16.msra.mxu0 %v2433
      %2465 = vmatprep.subr.bf16.mxu0 0
      %2466 = vmatpush2.bf16.msra.mxu0 0
      %2467 = vmatprep.subr.bf16.mxu0 0
      %2468 = vmatpush2.bf16.msra.mxu0 0
      %2469 = vmatprep.subr.bf16.mxu0 0
      %2470 = vmatpush2.bf16.msra.mxu0 0
      %2471 = vmatprep.subr.bf16.mxu0 0
      %2472 = vmatpush2.bf16.msra.mxu0 0
      %2473 = vmatprep.subr.bf16.mxu0 0
      %2474 = vmatpush2.bf16.msra.mxu0 0
      %2475 = vmatprep.subr.bf16.mxu0 0
      %2476 = vmatpush2.bf16.msra.mxu0 0
      %2477 = vmatprep.subr.bf16.mxu0 0
      %2478 = vmatpush2.bf16.msra.mxu0 0
      %2479 = vmatprep.subr.bf16.mxu0 0
      %2480 = vmatpush2.bf16.msra.mxu0 0
      %2481 = vmatprep.mubr.bf16.mxu0 0
      %2482 = vmatmul.mubr.bf16.gmra.mxu0 %v1153
      %v2483 = vpop.f32.mrf.mxu0
      %v2484 = vadd.f32 0.0, %v2483
      %v2485 = vpop.f32.mrf.mxu0
      %v2486 = vpop.f32.mrf.mxu0
      %v2487 = vadd.f32 0.0, %v2486
      %v2488 = vpop.f32.mrf.mxu0
      %2489 = vmatprep.mubr.bf16.mxu0 0
      %2490 = vmatmul.mubr.bf16.gmra.mxu0 %v1154
      %v2491 = vpop.f32.mrf.mxu0
      %v2492 = vadd.f32 0.0, %v2491
      %v2493 = vpop.f32.mrf.mxu0
      %v2494 = vpop.f32.mrf.mxu0
      %v2495 = vadd.f32 0.0, %v2494
      %v2496 = vpop.f32.mrf.mxu0
      %2497 = vmatprep.mubr.bf16.mxu0 0
      %2498 = vmatmul.mubr.bf16.gmra.mxu0 %v1155
      %v2499 = vpop.f32.mrf.mxu0
      %v2500 = vadd.f32 0.0, %v2499
      %v2501 = vpop.f32.mrf.mxu0
      %v2502 = vpop.f32.mrf.mxu0
      %v2503 = vadd.f32 0.0, %v2502
      %v2504 = vpop.f32.mrf.mxu0
      %2505 = vmatprep.mubr.bf16.mxu0 0
      %2506 = vmatmul.mubr.bf16.gmra.mxu0 %v1156
      %v2507 = vpop.f32.mrf.mxu0
      %v2508 = vadd.f32 0.0, %v2507
      %v2509 = vpop.f32.mrf.mxu0
      %v2510 = vpop.f32.mrf.mxu0
      %v2511 = vadd.f32 0.0, %v2510
      %v2512 = vpop.f32.mrf.mxu0
      %2513 = vmatprep.mubr.bf16.mxu0 0
      %2514 = vmatmul.mubr.bf16.gmra.mxu0 %v1157
      %v2515 = vpop.f32.mrf.mxu0
      %v2516 = vadd.f32 0.0, %v2515
      %v2517 = vpop.f32.mrf.mxu0
      %v2518 = vpop.f32.mrf.mxu0
      %v2519 = vadd.f32 0.0, %v2518
      %v2520 = vpop.f32.mrf.mxu0
      %2521 = vmatprep.mubr.bf16.mxu0 0
      %2522 = vmatmul.mubr.bf16.gmra.mxu0 %v1158
      %v2523 = vpop.f32.mrf.mxu0
      %v2524 = vadd.f32 0.0, %v2523
      %v2525 = vpop.f32.mrf.mxu0
      %v2526 = vpop.f32.mrf.mxu0
      %v2527 = vadd.f32 0.0, %v2526
      %v2528 = vpop.f32.mrf.mxu0
      %2529 = vmatprep.mubr.bf16.mxu0 0
      %2530 = vmatmul.mubr.bf16.gmra.mxu0 %v1159
      %v2531 = vpop.f32.mrf.mxu0
      %v2532 = vadd.f32 0.0, %v2531
      %v2533 = vpop.f32.mrf.mxu0
      %v2534 = vpop.f32.mrf.mxu0
      %v2535 = vadd.f32 0.0, %v2534
      %v2536 = vpop.f32.mrf.mxu0
      %2537 = vmatprep.mubr.bf16.mxu0 0
      %2538 = vmatmul.mubr.bf16.gmra.mxu0 %v1160
      %v2539 = vpop.f32.mrf.mxu0
      %v2540 = vadd.f32 0.0, %v2539
      %v2541 = vpop.f32.mrf.mxu0
      %v2542 = vpop.f32.mrf.mxu0
      %v2543 = vadd.f32 0.0, %v2542
      %v2544 = vpop.f32.mrf.mxu0
      %2545 = vdwg.mxu0
      %v2546 = vadd.f32 %v2368, %v2484
      %v2547 = vadd.f32 %v2369, %v2487
      %v2548 = vadd.f32 %v2370, %v2492
      %v2549 = vadd.f32 %v2371, %v2495
      %v2550 = vadd.f32 %v2372, %v2500
      %v2551 = vadd.f32 %v2373, %v2503
      %v2552 = vadd.f32 %v2374, %v2508
      %v2553 = vadd.f32 %v2375, %v2511
      %v2554 = vadd.f32 %v2376, %v2516
      %v2555 = vadd.f32 %v2377, %v2519
      %v2556 = vadd.f32 %v2378, %v2524
      %v2557 = vadd.f32 %v2379, %v2527
      %v2558 = vadd.f32 %v2380, %v2532
      %v2559 = vadd.f32 %v2381, %v2535
      %v2560 = vadd.f32 %v2382, %v2540
      %v2561 = vadd.f32 %v2383, %v2543
      %s2562 = scalar_lea.vmem %s3, 512
      %v2563 = vld [vmem:[%s2562] sm:$0xf]
      %v2564 = vld [vmem:[%s2562 + $0x4] sm:$0xf]
      %v2565 = vld [vmem:[%s2562 + $0x8] sm:$0xf]
      %v2566 = vld [vmem:[%s2562 + $0xc] sm:$0xf]
      %v2567 = vld [vmem:[%s2562 + $0x10] sm:$0xf]
      %v2568 = vld [vmem:[%s2562 + $0x14] sm:$0xf]
      %v2569 = vld [vmem:[%s2562 + $0x18] sm:$0xf]
      %v2570 = vld [vmem:[%s2562 + $0x1c] sm:$0xf]
      %v2571 = vld [vmem:[%s2562 + $0x20] sm:$0xf]
      %v2572 = vld [vmem:[%s2562 + $0x24] sm:$0xf]
      %v2573 = vld [vmem:[%s2562 + $0x28] sm:$0xf]
      %v2574 = vld [vmem:[%s2562 + $0x2c] sm:$0xf]
      %v2575 = vld [vmem:[%s2562 + $0x30] sm:$0xf]
      %v2576 = vld [vmem:[%s2562 + $0x34] sm:$0xf]
      %v2577 = vld [vmem:[%s2562 + $0x38] sm:$0xf]
      %v2578 = vld [vmem:[%s2562 + $0x3c] sm:$0xf]
      %v2595 = vunpack.c.l.b16 %v2563
      %v2596 = vunpack.c.l.b16 %v2564
      %v2597 = vunpack.c.l.b16 %v2565
      %v2598 = vunpack.c.l.b16 %v2566
      %v2599 = vunpack.c.l.b16 %v2567
      %v2600 = vunpack.c.l.b16 %v2568
      %v2601 = vunpack.c.l.b16 %v2569
      %v2602 = vunpack.c.l.b16 %v2570
      %v2603 = vunpack.c.l.b16 %v2571
      %v2604 = vunpack.c.l.b16 %v2572
      %v2605 = vunpack.c.l.b16 %v2573
      %v2606 = vunpack.c.l.b16 %v2574
      %v2607 = vunpack.c.l.b16 %v2575
      %v2608 = vunpack.c.l.b16 %v2576
      %v2609 = vunpack.c.l.b16 %v2577
      %v2610 = vunpack.c.l.b16 %v2578
      %v2611 = vpack.c.b16 %v2596, %v2595
      %v2612 = vpack.c.b16 %v2598, %v2597
      %v2613 = vpack.c.b16 %v2600, %v2599
      %v2614 = vpack.c.b16 %v2602, %v2601
      %v2615 = vpack.c.b16 %v2604, %v2603
      %v2616 = vpack.c.b16 %v2606, %v2605
      %v2617 = vpack.c.b16 %v2608, %v2607
      %v2618 = vpack.c.b16 %v2610, %v2609
      %2627 = vmatprep.subr.bf16.mxu0 0
      %2628 = vmatpush1.bf16.msra.mxu0 %v2618
      %2629 = vmatprep.subr.bf16.mxu0 0
      %2630 = vmatpush1.bf16.msra.mxu0 %v2617
      %2631 = vmatprep.subr.bf16.mxu0 0
      %2632 = vmatpush1.bf16.msra.mxu0 %v2616
      %2633 = vmatprep.subr.bf16.mxu0 0
      %2634 = vmatpush1.bf16.msra.mxu0 %v2615
      %2635 = vmatprep.subr.bf16.mxu0 0
      %2636 = vmatpush1.bf16.msra.mxu0 %v2614
      %2637 = vmatprep.subr.bf16.mxu0 0
      %2638 = vmatpush1.bf16.msra.mxu0 %v2613
      %2639 = vmatprep.subr.bf16.mxu0 0
      %2640 = vmatpush1.bf16.msra.mxu0 %v2612
      %2641 = vmatprep.subr.bf16.mxu0 0
      %2642 = vmatpush1.bf16.msra.mxu0 %v2611
      %2643 = vmatprep.subr.bf16.mxu0 0
      %2644 = vmatpush2.bf16.msra.mxu0 0
      %2645 = vmatprep.subr.bf16.mxu0 0
      %2646 = vmatpush2.bf16.msra.mxu0 0
      %2647 = vmatprep.subr.bf16.mxu0 0
      %2648 = vmatpush2.bf16.msra.mxu0 0
      %2649 = vmatprep.subr.bf16.mxu0 0
      %2650 = vmatpush2.bf16.msra.mxu0 0
      %2651 = vmatprep.subr.bf16.mxu0 0
      %2652 = vmatpush2.bf16.msra.mxu0 0
      %2653 = vmatprep.subr.bf16.mxu0 0
      %2654 = vmatpush2.bf16.msra.mxu0 0
      %2655 = vmatprep.subr.bf16.mxu0 0
      %2656 = vmatpush2.bf16.msra.mxu0 0
      %2657 = vmatprep.subr.bf16.mxu0 0
      %2658 = vmatpush2.bf16.msra.mxu0 0
      %2659 = vmatprep.mubr.bf16.mxu0 0
      %2660 = vmatmul.mubr.bf16.gmra.mxu0 %v1163
      %v2661 = vpop.f32.mrf.mxu0
      %v2662 = vadd.f32 0.0, %v2661
      %v2663 = vpop.f32.mrf.mxu0
      %v2664 = vpop.f32.mrf.mxu0
      %v2665 = vadd.f32 0.0, %v2664
      %v2666 = vpop.f32.mrf.mxu0
      %2667 = vmatprep.mubr.bf16.mxu0 0
      %2668 = vmatmul.mubr.bf16.gmra.mxu0 %v1164
      %v2669 = vpop.f32.mrf.mxu0
      %v2670 = vadd.f32 0.0, %v2669
      %v2671 = vpop.f32.mrf.mxu0
      %v2672 = vpop.f32.mrf.mxu0
      %v2673 = vadd.f32 0.0, %v2672
      %v2674 = vpop.f32.mrf.mxu0
      %2675 = vmatprep.mubr.bf16.mxu0 0
      %2676 = vmatmul.mubr.bf16.gmra.mxu0 %v1165
      %v2677 = vpop.f32.mrf.mxu0
      %v2678 = vadd.f32 0.0, %v2677
      %v2679 = vpop.f32.mrf.mxu0
      %v2680 = vpop.f32.mrf.mxu0
      %v2681 = vadd.f32 0.0, %v2680
      %v2682 = vpop.f32.mrf.mxu0
      %2683 = vmatprep.mubr.bf16.mxu0 0
      %2684 = vmatmul.mubr.bf16.gmra.mxu0 %v1166
      %v2685 = vpop.f32.mrf.mxu0
      %v2686 = vadd.f32 0.0, %v2685
      %v2687 = vpop.f32.mrf.mxu0
      %v2688 = vpop.f32.mrf.mxu0
      %v2689 = vadd.f32 0.0, %v2688
      %v2690 = vpop.f32.mrf.mxu0
      %2691 = vmatprep.mubr.bf16.mxu0 0
      %2692 = vmatmul.mubr.bf16.gmra.mxu0 %v1167
      %v2693 = vpop.f32.mrf.mxu0
      %v2694 = vadd.f32 0.0, %v2693
      %v2695 = vpop.f32.mrf.mxu0
      %v2696 = vpop.f32.mrf.mxu0
      %v2697 = vadd.f32 0.0, %v2696
      %v2698 = vpop.f32.mrf.mxu0
      %2699 = vmatprep.mubr.bf16.mxu0 0
      %2700 = vmatmul.mubr.bf16.gmra.mxu0 %v1168
      %v2701 = vpop.f32.mrf.mxu0
      %v2702 = vadd.f32 0.0, %v2701
      %v2703 = vpop.f32.mrf.mxu0
      %v2704 = vpop.f32.mrf.mxu0
      %v2705 = vadd.f32 0.0, %v2704
      %v2706 = vpop.f32.mrf.mxu0
      %2707 = vmatprep.mubr.bf16.mxu0 0
      %2708 = vmatmul.mubr.bf16.gmra.mxu0 %v1169
      %v2709 = vpop.f32.mrf.mxu0
      %v2710 = vadd.f32 0.0, %v2709
      %v2711 = vpop.f32.mrf.mxu0
      %v2712 = vpop.f32.mrf.mxu0
      %v2713 = vadd.f32 0.0, %v2712
      %v2714 = vpop.f32.mrf.mxu0
      %2715 = vmatprep.mubr.bf16.mxu0 0
      %2716 = vmatmul.mubr.bf16.gmra.mxu0 %v1170
      %v2717 = vpop.f32.mrf.mxu0
      %v2718 = vadd.f32 0.0, %v2717
      %v2719 = vpop.f32.mrf.mxu0
      %v2720 = vpop.f32.mrf.mxu0
      %v2721 = vadd.f32 0.0, %v2720
      %v2722 = vpop.f32.mrf.mxu0
      %2723 = vdwg.mxu0
      %v2724 = vadd.f32 %v2546, %v2662
      %v2725 = vadd.f32 %v2547, %v2665
      %v2726 = vadd.f32 %v2548, %v2670
      %v2727 = vadd.f32 %v2549, %v2673
      %v2728 = vadd.f32 %v2550, %v2678
      %v2729 = vadd.f32 %v2551, %v2681
      %v2730 = vadd.f32 %v2552, %v2686
      %v2731 = vadd.f32 %v2553, %v2689
      %v2732 = vadd.f32 %v2554, %v2694
      %v2733 = vadd.f32 %v2555, %v2697
      %v2734 = vadd.f32 %v2556, %v2702
      %v2735 = vadd.f32 %v2557, %v2705
      %v2736 = vadd.f32 %v2558, %v2710
      %v2737 = vadd.f32 %v2559, %v2713
      %v2738 = vadd.f32 %v2560, %v2718
      %v2739 = vadd.f32 %v2561, %v2721
      %v2740 = vadd.f32 %v2724, %v2725
      %v2741 = vadd.f32 %v2740, %v2726
      %v2742 = vadd.f32 %v2741, %v2727
      %v2743 = vadd.f32 %v2742, %v2728
      %v2744 = vadd.f32 %v2743, %v2729
      %v2745 = vadd.f32 %v2744, %v2730
      %v2746 = vadd.f32 %v2745, %v2731
      %v2747 = vadd.f32 %v2746, %v2732
      %v2748 = vadd.f32 %v2747, %v2733
      %v2749 = vadd.f32 %v2748, %v2734
      %v2750 = vadd.f32 %v2749, %v2735
      %v2751 = vadd.f32 %v2750, %v2736
      %v2752 = vadd.f32 %v2751, %v2737
      %v2753 = vadd.f32 %v2752, %v2738
      %v2754 = vadd.f32 %v2753, %v2739
      %v2755 = vrot.slane %v2754, 4
      %v2756 = vadd.f32 %v2754, %v2755
      %v2757 = vrot.slane %v2756, 2
      %v2758 = vadd.f32 %v2756, %v2757
      %v2759 = vrot.slane %v2758, 1
      %v2760 = vadd.f32 %v2758, %v2759
      %2761 = vst [vmem:[%s503] sm:$0x1] %v2760
      %v2762 = vmul.f32 %v2724, %v2724
      %v2763 = vmul.f32 %v2725, %v2725
      %v2764 = vmul.f32 %v2726, %v2726
      %v2765 = vmul.f32 %v2727, %v2727
      %v2766 = vmul.f32 %v2728, %v2728
      %v2767 = vmul.f32 %v2729, %v2729
      %v2768 = vmul.f32 %v2730, %v2730
      %v2769 = vmul.f32 %v2731, %v2731
      %v2770 = vmul.f32 %v2732, %v2732
      %v2771 = vmul.f32 %v2733, %v2733
      %v2772 = vmul.f32 %v2734, %v2734
      %v2773 = vmul.f32 %v2735, %v2735
      %v2774 = vmul.f32 %v2736, %v2736
      %v2775 = vmul.f32 %v2737, %v2737
      %v2776 = vmul.f32 %v2738, %v2738
      %v2777 = vmul.f32 %v2739, %v2739
      %v2778 = vadd.f32 %v2762, %v2763
      %v2779 = vadd.f32 %v2778, %v2764
      %v2780 = vadd.f32 %v2779, %v2765
      %v2781 = vadd.f32 %v2780, %v2766
      %v2782 = vadd.f32 %v2781, %v2767
      %v2783 = vadd.f32 %v2782, %v2768
      %v2784 = vadd.f32 %v2783, %v2769
      %v2785 = vadd.f32 %v2784, %v2770
      %v2786 = vadd.f32 %v2785, %v2771
      %v2787 = vadd.f32 %v2786, %v2772
      %v2788 = vadd.f32 %v2787, %v2773
      %v2789 = vadd.f32 %v2788, %v2774
      %v2790 = vadd.f32 %v2789, %v2775
      %v2791 = vadd.f32 %v2790, %v2776
      %v2792 = vadd.f32 %v2791, %v2777
      %v2793 = vrot.slane %v2792, 4
      %v2794 = vadd.f32 %v2792, %v2793
      %v2795 = vrot.slane %v2794, 2
      %v2796 = vadd.f32 %v2794, %v2795
      %v2797 = vrot.slane %v2796, 1
      %v2798 = vadd.f32 %v2796, %v2797
      %2799 = vst [vmem:[%s510] sm:$0x1] %v2798
      %v2800 = vpack.c.bf16 %v2725, %v2724
      %v2801 = vpack.c.bf16 %v2727, %v2726
      %v2802 = vpack.c.bf16 %v2729, %v2728
      %v2803 = vpack.c.bf16 %v2731, %v2730
      %v2804 = vpack.c.bf16 %v2733, %v2732
      %v2805 = vpack.c.bf16 %v2735, %v2734
      %v2806 = vpack.c.bf16 %v2737, %v2736
      %v2807 = vpack.c.bf16 %v2739, %v2738
      %v2816 = vunpack.c.l.b16 %v2800
      %v2817 = vunpack.c.h.b16 %v2800
      %v2818 = vunpack.c.l.b16 %v2801
      %v2819 = vunpack.c.h.b16 %v2801
      %v2820 = vunpack.c.l.b16 %v2802
      %v2821 = vunpack.c.h.b16 %v2802
      %v2822 = vunpack.c.l.b16 %v2803
      %v2823 = vunpack.c.h.b16 %v2803
      %v2824 = vunpack.c.l.b16 %v2804
      %v2825 = vunpack.c.h.b16 %v2804
      %v2826 = vunpack.c.l.b16 %v2805
      %v2827 = vunpack.c.h.b16 %v2805
      %v2828 = vunpack.c.l.b16 %v2806
      %v2829 = vunpack.c.h.b16 %v2806
      %v2830 = vunpack.c.l.b16 %v2807
      %v2831 = vunpack.c.h.b16 %v2807
      %v2832 = vpack.c.b16 %v2816, %v2816
      %v2833 = vpack.c.b16 %v2817, %v2817
      %v2834 = vpack.c.b16 %v2818, %v2818
      %v2835 = vpack.c.b16 %v2819, %v2819
      %v2836 = vpack.c.b16 %v2820, %v2820
      %v2837 = vpack.c.b16 %v2821, %v2821
      %v2838 = vpack.c.b16 %v2822, %v2822
      %v2839 = vpack.c.b16 %v2823, %v2823
      %v2840 = vpack.c.b16 %v2824, %v2824
      %v2841 = vpack.c.b16 %v2825, %v2825
      %v2842 = vpack.c.b16 %v2826, %v2826
      %v2843 = vpack.c.b16 %v2827, %v2827
      %v2844 = vpack.c.b16 %v2828, %v2828
      %v2845 = vpack.c.b16 %v2829, %v2829
      %v2846 = vpack.c.b16 %v2830, %v2830
      %v2847 = vpack.c.b16 %v2831, %v2831
      %2864 = vst [vmem:[%s495] sm:$0xf] %v2832
      %2865 = vst [vmem:[%s495 + $0x4] sm:$0xf] %v2833
      %2866 = vst [vmem:[%s495 + $0x8] sm:$0xf] %v2834
      %2867 = vst [vmem:[%s495 + $0xc] sm:$0xf] %v2835
      %2868 = vst [vmem:[%s495 + $0x10] sm:$0xf] %v2836
      %2869 = vst [vmem:[%s495 + $0x14] sm:$0xf] %v2837
      %2870 = vst [vmem:[%s495 + $0x18] sm:$0xf] %v2838
      %2871 = vst [vmem:[%s495 + $0x1c] sm:$0xf] %v2839
      %2872 = vst [vmem:[%s495 + $0x20] sm:$0xf] %v2840
      %2873 = vst [vmem:[%s495 + $0x24] sm:$0xf] %v2841
      %2874 = vst [vmem:[%s495 + $0x28] sm:$0xf] %v2842
      %2875 = vst [vmem:[%s495 + $0x2c] sm:$0xf] %v2843
      %2876 = vst [vmem:[%s495 + $0x30] sm:$0xf] %v2844
      %2877 = vst [vmem:[%s495 + $0x34] sm:$0xf] %v2845
      %2878 = vst [vmem:[%s495 + $0x38] sm:$0xf] %v2846
      %2879 = vst [vmem:[%s495 + $0x3c] sm:$0xf] %v2847
      %s2880 = smul.u32 8, %s25
      %p2881 = scmp.lt.s32.totalorder %s24, 1
      %s2882 = scalar_select %p2881, %s24, 1
      %p2883 = scmp.lt.s32.totalorder %s2880, 15
      %s2884 = scalar_select %p2883, %s2880, 15
      %s2885 = smul.addr %s2884, 2
      %s2886 = smul.addr %s2882, 32
      %s2887 = sadd.s32 %s2885, %s2886
      %s2888 = smul.addr %s2887, 4
      %s2889 = scalar_lea.vmem %s6, %s2888
      %p2890 = scmp.lt.s32.totalorder %s24, 1
      %s2891 = scalar_select %p2890, %s24, 1
      %p2892 = scmp.lt.s32.totalorder %s25, 1
      %s2893 = scalar_select %p2892, %s25, 1
      %s2894 = smul.addr %s2891, 2
      %s2895 = sadd.s32 %s2893, %s2894
      %s2896 = scalar_lea.vmem %s7, %s2895
      %p2897 = scmp.lt.s32.totalorder %s24, 1
      %s2898 = scalar_select %p2897, %s24, 1
      %p2899 = scmp.lt.s32.totalorder %s25, 1
      %s2900 = scalar_select %p2899, %s25, 1
      %s2901 = smul.addr %s2898, 2
      %s2902 = sadd.s32 %s2900, %s2901
      %s2903 = scalar_lea.vmem %s8, %s2902
      // Predicated region
      $region45: #{double_conv.4} parent=43 // pred_check
        %p2904 = pneg %p215
      $region46: #{double_conv.4} parent=43 // pred_check_branch
        %2906 = sbr.rel (%p2904) target = $region48
      $region47: #{double_conv.4} parent=43 // pred_region
        %s2907 = smul.u32 8, %s25
      $region48: #{double_conv.4} parent=43 // pred_fallthru
        _
      // Predicated region
      $region49: #{double_conv.4} parent=43 // pred_check
        %p2908 = pneg %p243
      $region50: #{double_conv.4} parent=43 // pred_check_branch
        %2910 = sbr.rel (%p2908) target = $region52
      $region51: #{double_conv.4} parent=43 // pred_region
        _
      $region52: #{double_conv.4} parent=43 // pred_fallthru
        _
      // Predicated region
      $region53: #{double_conv.4} parent=43 // pred_check
        %p2911 = pneg %p271
      $region54: #{double_conv.4} parent=43 // pred_check_branch
        %2913 = sbr.rel (%p2911) target = $region56
      $region55: #{double_conv.4} parent=43 // pred_region
        _
      $region56: #{double_conv.4} parent=43 // pred_fallthru
        _
    $region44: #{double_conv.4} parent=5 // pred_fallthru
      _
    %p2914 = scmp.le.s32.totalorder 2, %s15
    // Predicated region
    $region57: #{double_conv.4} parent=5 // pred_check
      %p2915 = pneg %p2914
    $region58: #{double_conv.4} parent=5 // pred_check_branch
      %2917 = sbr.rel (%p2915) target = $region60
    $region59: #{double_conv.4} parent=5 // pred_region
      %s2918 = ssub.s32 %s15, 2
      // Predicated region
      $region61: #{double_conv.4} parent=59 // pred_check
        %p2919 = pneg %p221
      $region62: #{double_conv.4} parent=59 // pred_check_branch
        %2921 = sbr.rel (%p2919) target = $region64
      $region63: #{double_conv.4} parent=59 // pred_region
        %s2922 = smul.u32 8, %s27
        %p2923 = scmp.lt.s32.totalorder %s26, 1
        %s2924 = scalar_select %p2923, %s26, 1
        %p2925 = scmp.lt.s32.totalorder %s2922, 15
        %s2926 = scalar_select %p2925, %s2922, 15
        %s2927 = smul.addr %s2926, 2
        %s2928 = smul.addr %s2924, 32
        %s2929 = sadd.s32 %s2927, %s2928
        %s2930 = smul.addr %s2929, 4
        %s2931 = scalar_lea.vmem %s6, %s2930
      $region64: #{double_conv.4} parent=59 // pred_fallthru
        _
      // Predicated region
      $region65: #{double_conv.4} parent=59 // pred_check
        %p2932 = pneg %p249
      $region66: #{double_conv.4} parent=59 // pred_check_branch
        %2934 = sbr.rel (%p2932) target = $region68
      $region67: #{double_conv.4} parent=59 // pred_region
        %p2935 = scmp.lt.s32.totalorder %s26, 1
        %s2936 = scalar_select %p2935, %s26, 1
        %p2937 = scmp.lt.s32.totalorder %s27, 1
        %s2938 = scalar_select %p2937, %s27, 1
        %s2939 = smul.addr %s2936, 2
        %s2940 = sadd.s32 %s2938, %s2939
        %s2941 = scalar_lea.vmem %s7, %s2940
      $region68: #{double_conv.4} parent=59 // pred_fallthru
        _
      // Predicated region
      $region69: #{double_conv.4} parent=59 // pred_check
        %p2942 = pneg %p277
      $region70: #{double_conv.4} parent=59 // pred_check_branch
        %2944 = sbr.rel (%p2942) target = $region72
      $region71: #{double_conv.4} parent=59 // pred_region
        %p2945 = scmp.lt.s32.totalorder %s26, 1
        %s2946 = scalar_select %p2945, %s26, 1
        %p2947 = scmp.lt.s32.totalorder %s27, 1
        %s2948 = scalar_select %p2947, %s27, 1
        %s2949 = smul.addr %s2946, 2
        %s2950 = sadd.s32 %s2948, %s2949
        %s2951 = scalar_lea.vmem %s8, %s2950
      $region72: #{double_conv.4} parent=59 // pred_fallthru
        _
    $region60: #{double_conv.4} parent=5 // pred_fallthru
      _
  $region6: #{double_conv.4} parent=0 // loop_footer
    %s19 = sadd.s32 1, %s15
  $region7: #{double_conv.4} parent=0 // loop_footer_branch
    %14 = sbr.rel target = $region3
  $region8: #{double_conv.4} parent=0 // loop_exit
    _

</llo_original>
